<compile_context>
chip_gen: v6e
topology: v6e:2x2x1
jax: 0.10.0
libtpu: 0.0.40
codegen_flags: <defaults>
</compile_context>

<pallas_src>
import functools

import jax
import jax.numpy as jnp
from jax.experimental import pallas as pl
from jax.experimental.pallas import tpu as pltpu


# --------------------------------------------------------------------------
# model config (scaled down vs. VGG16 / 1024, structure preserved)
# --------------------------------------------------------------------------
B = 2
IMG_HW = 32
CONV_CHANNELS = [(3, 16), (16, 32), (32, 64)]        # VGG-lite conv blocks
CLS_DIM = 256                                         # analog of VGG's 4096
IMG_OUT = 256                                         # args.image_feature_output (orig 1024)
VOCAB = 100
WORD_EMB = 64                                         # args.word_embedding
T = 8                                                 # question length
HIDDEN = 64                                           # args.rnn_hidden_size
ANS_VOCAB = 50
QT_DIM = 10                                           # question_type_output_dim
MLP_HID = 128                                         # analog of 1000


# --------------------------------------------------------------------------
# helpers
# --------------------------------------------------------------------------
def _full_spec(shape):
    nd = len(shape)
    return pl.BlockSpec(shape, lambda *_: (0,) * nd)


# --------------------------------------------------------------------------
# kernel 1: fused 3x3 conv (as matmul) + bias + ReLU + 2x2 max-pool
# --------------------------------------------------------------------------
def _conv3x3_relu_pool_kernel(pm_ref, w_ref, b_ref, o_ref):
    # pm_ref: (4, N, 9*Cin) phase-ordered im2col patches; phase ph = 2p+q holds the conv
    # inputs of output pixels (2i+p, 2j+q).  The 2x2 max-pool is therefore just an
    # elementwise max over the 4 phase results -> fully fused epilogue, lane layout
    # stays dense, no transposes.
    w = w_ref[...]
    b = b_ref[...]
    pooled = None
    for ph in range(4):
        y = jnp.maximum(
            jnp.dot(pm_ref[ph], w, preferred_element_type=jnp.float32) + b, 0.0)
        pooled = y if pooled is None else jnp.maximum(pooled, y)
    o_ref[...] = pooled


def conv3x3_relu_pool(x, w, b):
    """Fused 3x3 SAME conv + ReLU + 2x2/stride-2 max-pool.
    x:(B,H,W,Cin) NHWC, w:(9*Cin,Cout), b:(1,Cout) -> (B,H//2,W//2,Cout).
    Patch extraction is XLA glue; matmul + bias + ReLU + pool run in one Pallas kernel."""
    Bn, H, W, Cin = x.shape
    Cout = w.shape[-1]
    Hh, Wh = H // 2, W // 2
    xp = jnp.pad(x, ((0, 0), (1, 1), (1, 1), (0, 0)))
    # TODO(synk): for large images move the patch gather in-kernel (per-tap accumulation)
    # to avoid the 9x im2col materialisation; at these sizes the path is launch-bound.
    phases = []
    for p in (0, 1):
        for q in (0, 1):
            taps = [xp[:, p + dh:p + dh + H:2, q + dw:q + dw + W:2, :]
                    for dh in range(3) for dw in range(3)]
            phases.append(
                jnp.concatenate(taps, axis=-1).reshape(Bn * Hh * Wh, 9 * Cin))
    pm = jnp.stack(phases, axis=0)                    # (4, B*Hh*Wh, 9*Cin)
    out = pl.pallas_call(
        _conv3x3_relu_pool_kernel,
        grid=(1,),
        in_specs=[_full_spec(pm.shape), _full_spec(w.shape), _full_spec(b.shape)],
        out_specs=_full_spec((Bn * Hh * Wh, Cout)),
        out_shape=jax.ShapeDtypeStruct((Bn * Hh * Wh, Cout), jnp.float32),
    )(pm, w, b)
    return out.reshape(Bn, Hh, Wh, Cout)


# --------------------------------------------------------------------------
# kernel 2: image classifier head + L2-norm  +  hoisted LSTM input projection
# --------------------------------------------------------------------------
def _encoder_head_kernel(feat_ref, w1_ref, b1_ref, w2_ref, b2_ref, w3_ref, b3_ref,
                         xw_ref, wih0_ref, b0_ref, img_ref, gx0_ref):
    # VGG classifier (minus last layer; Dropout = identity in eval): two FC + ReLU.
    f = jnp.maximum(
        jnp.dot(feat_ref[...], w1_ref[...], preferred_element_type=jnp.float32)
        + b1_ref[...], 0.0)
    f = jnp.maximum(
        jnp.dot(f, w2_ref[...], preferred_element_type=jnp.float32) + b2_ref[...], 0.0)
    # fflayer: Linear + Tanh, then L2 normalisation (torch: x / x.norm(p=2, dim=1)).
    y = jnp.tanh(jnp.dot(f, w3_ref[...], preferred_element_type=jnp.float32) + b3_ref[...])
    norm = jnp.sqrt(jnp.sum(y * y, axis=1, keepdims=True))   # no eps: matches torch
    img_ref[...] = y / norm
    # hoisted LSTM layer-0 input projection: all T timesteps, both stacks, bias folded in.
    gx0_ref[...] = (jnp.dot(xw_ref[...], wih0_ref[...], preferred_element_type=jnp.float32)
                    + b0_ref[...])


def encoder_head(feat, xw, p):
    Bn = feat.shape[0]
    TB = xw.shape[0]
    w1, b1 = p["cls_fc1"]
    w2, b2 = p["cls_fc2"]
    w3, b3 = p["fflayer"]
    wih0, b0 = p["wih0"], p["b0"]
    n_img = w3.shape[1]
    g8 = wih0.shape[1]
    operands = (feat, w1, b1, w2, b2, w3, b3, xw, wih0, b0)
    return pl.pallas_call(
        _encoder_head_kernel,
        grid=(1,),
        in_specs=[_full_spec(a.shape) for a in operands],
        out_specs=[_full_spec((Bn, n_img)), _full_spec((TB, g8))],
        out_shape=(jax.ShapeDtypeStruct((Bn, n_img), jnp.float32),
                   jax.ShapeDtypeStruct((TB, g8), jnp.float32)),
    )(*operands)


# --------------------------------------------------------------------------
# kernel 3: both 2-layer LSTM stacks (fused) + answer head on the last step
# --------------------------------------------------------------------------
def _lstm_stacks_head_kernel(
        gx0_ref, whh0_ref, wih1_ref, whh1_ref, b1_ref,
        img_ref, wqe_ref, bqe_ref, wqt_ref, bqt_ref,
        w11_ref, b11_ref, w12_ref, b12_ref, map_ref,
        w21_ref, b21_ref, w22_ref, b22_ref,
        vqa_ref, qtype_ref,
        h0_sc, c0_sc, h1_sc, c1_sc, *, gate_w):
    """One timestep of BOTH 2-layer LSTM stacks (QuestionEncoder + QuestionType).

    h/c layout: (B, 2H) = [qenc(H) | qt(H)] on the lane axis; every gate block of the
    packed weights is gate_w = 2H (=128) lanes wide so the gate slicing below is
    vreg-aligned.  On the last timestep the whole answer head runs in-kernel."""
    t = pl.program_id(0)

    @pl.when(t == 0)
    def _init():
        h0_sc[...] = jnp.zeros_like(h0_sc)
        c0_sc[...] = jnp.zeros_like(c0_sc)
        h1_sc[...] = jnp.zeros_like(h1_sc)
        c1_sc[...] = jnp.zeros_like(c1_sc)

    def lstm_cell(gates, c_prev):
        # PyTorch LSTM gate order: i, f, g, o (each block gate_w lanes wide).
        i = jax.nn.sigmoid(gates[:, 0 * gate_w:1 * gate_w])
        f = jax.nn.sigmoid(gates[:, 1 * gate_w:2 * gate_w])
        g = jnp.tanh(gates[:, 2 * gate_w:3 * gate_w])
        o = jax.nn.sigmoid(gates[:, 3 * gate_w:4 * gate_w])
        c = f * c_prev + i * g
        h = o * jnp.tanh(c)
        return h, c

    # layer 0: the x @ W_ih projection (incl. biases) was hoisted out of the serial loop.
    g0 = gx0_ref[0] + jnp.dot(h0_sc[...], whh0_ref[...],
                              preferred_element_type=jnp.float32)
    h0, c0 = lstm_cell(g0, c0_sc[...])
    h0_sc[...] = h0
    c0_sc[...] = c0

    # layer 1 (fed directly from layer 0's hidden state in VMEM).
    g1 = (jnp.dot(h0, wih1_ref[...], preferred_element_type=jnp.float32)
          + jnp.dot(h1_sc[...], whh1_ref[...], preferred_element_type=jnp.float32)
          + b1_ref[...])
    h1, c1 = lstm_cell(g1, c1_sc[...])
    h1_sc[...] = h1
    c1_sc[...] = c1

    @pl.when(t == pl.num_programs(0) - 1)
    def _head():
        # last hidden of the top layer; the fc weights are zero-padded so the fused
        # (B, 2H) state can be used directly without lane-offset slicing.
        q_emb = (jnp.dot(h1, wqe_ref[...], preferred_element_type=jnp.float32)
                 + bqe_ref[...])
        qtype = (jnp.dot(h1, wqt_ref[...], preferred_element_type=jnp.float32)
                 + bqt_ref[...])
        combine = img_ref[...] * q_emb                         # torch.mul(image, question)
        hh = jnp.maximum(
            jnp.dot(combine, w11_ref[...], preferred_element_type=jnp.float32)
            + b11_ref[...], 0.0)                               # mlp_1: Linear, Dropout(id), ReLU
        vqa = jnp.dot(hh, w12_ref[...], preferred_element_type=jnp.float32) + b12_ref[...]
        # TODO(synk): OneHotLayer/ProbabilityLayer source not provided; implementing the
        # standard ProbabilityLayer semantics: vqa * (softmax(qtype_logits) @ qtype_map).
        m = jnp.max(qtype, axis=1, keepdims=True)
        e = jnp.exp(qtype - m)
        mask = jnp.dot(e / jnp.sum(e, axis=1, keepdims=True), map_ref[...],
                       preferred_element_type=jnp.float32)
        vqa = vqa * mask
        hh2 = jnp.maximum(
            jnp.dot(vqa, w21_ref[...], preferred_element_type=jnp.float32)
            + b21_ref[...], 0.0)                               # mlp_2 (architecture == 1)
        vqa = jnp.dot(hh2, w22_ref[...], preferred_element_type=jnp.float32) + b22_ref[...]
        vqa_ref[...] = vqa
        qtype_ref[...] = qtype


def lstm_stacks_and_head(gx0, img_emb, p):
    """gx0: (T, B, 8H) precomputed layer-0 gate inputs (both stacks, biases folded)."""
    Tn, Bn, G8 = gx0.shape
    gate_w = G8 // 4                                    # = 2H = 128
    wqe, bqe = p["qenc_fc"]
    wqt, bqt = p["qt_fc"]
    w11, b11 = p["mlp1_fc1"]
    w12, b12 = p["mlp1_fc2"]
    w21, b21 = p["mlp2_fc1"]
    w22, b22 = p["mlp2_fc2"]
    qmap = p["qtype_map"]
    n_ans = w12.shape[1]
    n_qt = wqt.shape[1]
    operands = (gx0, p["whh0"], p["wih1"], p["whh1"], p["b1"], img_emb,
                wqe, bqe, wqt, bqt, w11, b11, w12, b12, qmap, w21, b21, w22, b22)
    in_specs = [pl.BlockSpec((1, Bn, G8), lambda t: (t, 0, 0))]
    in_specs += [_full_spec(a.shape) for a in operands[1:]]
    return pl.pallas_call(
        functools.partial(_lstm_stacks_head_kernel, gate_w=gate_w),
        grid=(Tn,),
        in_specs=in_specs,
        out_specs=[_full_spec((Bn, n_ans)), _full_spec((Bn, n_qt))],
        out_shape=(jax.ShapeDtypeStruct((Bn, n_ans), jnp.float32),
                   jax.ShapeDtypeStruct((Bn, n_qt), jnp.float32)),
        scratch_shapes=[pltpu.VMEM((Bn, gate_w), jnp.float32)] * 4,  # h0, c0, h1, c1
        compiler_params=pltpu.CompilerParams(dimension_semantics=("arbitrary",)),
    )(*operands)


# --------------------------------------------------------------------------
# parameter construction (deterministic, synthetic)
# --------------------------------------------------------------------------
def _dense_init(key, fan_in, fan_out):
    k1, k2 = jax.random.split(key)
    s = 1.0 / jnp.sqrt(jnp.float32(fan_in))
    w = jax.random.uniform(k1, (fan_in, fan_out), jnp.float32, -s, s)
    b = jax.random.uniform(k2, (1, fan_out), jnp.float32, -s, s)
    return w, b


def _lstm_stack_init(key, in_dim, hidden):
    """Two-layer LSTM stack; per layer (w_ih, w_hh, b) with PyTorch gate order i,f,g,o."""
    ks = jax.random.split(key, 6)
    s = 1.0 / jnp.sqrt(jnp.float32(hidden))

    def u(k, shape):
        return jax.random.uniform(k, shape, jnp.float32, -s, s)

    l0 = (u(ks[0], (in_dim, 4 * hidden)), u(ks[1], (hidden, 4 * hidden)),
          u(ks[2], (1, 4 * hidden)))                    # b_ih + b_hh folded
    l1 = (u(ks[3], (hidden, 4 * hidden)), u(ks[4], (hidden, 4 * hidden)),
          u(ks[5], (1, 4 * hidden)))
    return l0, l1


def _gate_interleave(a, b, hidden):
    """(.., 4H) weights of two stacks -> (.., 8H) with per-gate blocks [a(H) | b(H)]."""
    parts = []
    for g in range(4):
        parts.append(a[..., g * hidden:(g + 1) * hidden])
        parts.append(b[..., g * hidden:(g + 1) * hidden])
    return jnp.concatenate(parts, axis=-1)


def _block_diag_gates(a, b, hidden):
    """(H,4H)+(H,4H) -> (2H,8H): zero cross-stack blocks keep the stacks independent."""
    top = _gate_interleave(a, jnp.zeros_like(a), hidden)
    bot = _gate_interleave(jnp.zeros_like(b), b, hidden)
    return jnp.concatenate([top, bot], axis=0)


def init_params(key):
    keys = jax.random.split(key, 16)
    params = {}
    convs = []
    for n, (cin, cout) in enumerate(CONV_CHANNELS):
        w, bcv = _dense_init(keys[n], 9 * cin, cout)    # rows ordered (dh, dw, cin)
        convs.append((w, bcv))
    params["convs"] = convs
    spatial = IMG_HW // (2 ** len(CONV_CHANNELS))
    flat = spatial * spatial * CONV_CHANNELS[-1][1]
    params["cls_fc1"] = _dense_init(keys[3], flat, CLS_DIM)
    params["cls_fc2"] = _dense_init(keys[4], CLS_DIM, CLS_DIM)
    params["fflayer"] = _dense_init(keys[5], CLS_DIM, IMG_OUT)
    params["emb"] = 0.1 * jax.random.normal(keys[6], (VOCAB, WORD_EMB), jnp.float32)

    # Two independent 2-layer LSTM stacks (QuestionEncoder / QuestionType), packed into
    # the fused lane-concatenated layout: each gate block is 2H = 128 lanes = [qenc|qt].
    qe0, qe1 = _lstm_stack_init(keys[7], WORD_EMB, HIDDEN)
    qt0, qt1 = _lstm_stack_init(keys[8], WORD_EMB, HIDDEN)
    params["wih0"] = _gate_interleave(qe0[0], qt0[0], HIDDEN)       # (E, 8H), shared input
    params["whh0"] = _block_diag_gates(qe0[1], qt0[1], HIDDEN)      # (2H, 8H)
    params["b0"] = _gate_interleave(qe0[2], qt0[2], HIDDEN)         # (1, 8H)
    params["wih1"] = _block_diag_gates(qe1[0], qt1[0], HIDDEN)      # (2H, 8H)
    params["whh1"] = _block_diag_gates(qe1[1], qt1[1], HIDDEN)      # (2H, 8H)
    params["b1"] = _gate_interleave(qe1[2], qt1[2], HIDDEN)         # (1, 8H)

    # fcs on the last hidden, zero-padded to read from the fused (B, 2H) state directly.
    wqe, bqe = _dense_init(keys[9], HIDDEN, IMG_OUT)
    wqt, bqt = _dense_init(keys[10], HIDDEN, QT_DIM)
    params["qenc_fc"] = (jnp.concatenate([wqe, jnp.zeros_like(wqe)], axis=0), bqe)
    params["qt_fc"] = (jnp.concatenate([jnp.zeros_like(wqt), wqt], axis=0), bqt)

    params["mlp1_fc1"] = _dense_init(keys[11], IMG_OUT, MLP_HID)
    params["mlp1_fc2"] = _dense_init(keys[12], MLP_HID, ANS_VOCAB)
    params["mlp2_fc1"] = _dense_init(keys[13], ANS_VOCAB, MLP_HID)
    params["mlp2_fc2"] = _dense_init(keys[14], MLP_HID, ANS_VOCAB)
    # deterministic question_type -> answer mask (each answer belongs to one type)
    params["qtype_map"] = (
        (jnp.arange(ANS_VOCAB)[None, :] % QT_DIM) == jnp.arange(QT_DIM)[:, None]
    ).astype(jnp.float32)
    return params


# --------------------------------------------------------------------------
# forward pass (architecture == 1, eval mode -> Dropout is identity)
# --------------------------------------------------------------------------
def forward(params, image_nchw, question_ids):
    # ---------------- ImageEncoder: fused conv+ReLU+pool blocks ----------------
    x = jnp.transpose(image_nchw, (0, 2, 3, 1))       # NCHW -> NHWC (glue)
    for cw, cb in params["convs"]:
        x = conv3x3_relu_pool(x, cw, cb)
    feat = x.reshape(x.shape[0], -1)                  # NHWC flatten (synthetic weights)

    # ---------------- WordEmbedding (gather glue) ----------------
    word_emb = params["emb"][question_ids]            # (B, T, E)
    x_tbe = jnp.transpose(word_emb, (1, 0, 2))        # time-major (T, B, E)
    Tn, Bn, E = x_tbe.shape
    xw = x_tbe.reshape(Tn * Bn, E)

    # ---------------- fused encoder head ----------------
    # classifier FCs + fflayer(tanh) + L2 norm, and the hoisted LSTM input projection.
    img_emb, gx0 = encoder_head(feat, xw, params)
    gx0 = gx0.reshape(Tn, Bn, -1)                     # (T, B, 8H)

    # ---------------- fused 2-stack 2-layer LSTM + answer head ----------------
    vqa, qtype = lstm_stacks_and_head(gx0, img_emb, params)
    return vqa, qtype


# --------------------------------------------------------------------------
if __name__ == "__main__":
    key = jax.random.PRNGKey(0)
    kp, ki, kq = jax.random.split(key, 3)
    params = init_params(kp)
    image = jax.random.normal(ki, (B, 3, IMG_HW, IMG_HW), jnp.float32)
    question_rnn_input = jax.random.randint(kq, (B, T), 0, VOCAB, dtype=jnp.int32)

    vqa_out, qtype_out = jax.jit(forward)(params, image, question_rnn_input)
    jax.block_until_ready((vqa_out, qtype_out))

    assert vqa_out.shape == (B, ANS_VOCAB)
    assert qtype_out.shape == (B, QT_DIM)
    print("KERNEL_OK")
</pallas_src>

<mosaic_0001>
module attributes {stable_mosaic.version = 11 : i64} {
  func.func @_conv3x3_relu_pool_kernel(%arg0: i32, %arg1: memref<4x512x27xf32, #tpu.memory_space<vmem>>, %arg2: memref<27x16xf32, #tpu.memory_space<vmem>>, %arg3: memref<1x16xf32, #tpu.memory_space<vmem>>, %arg4: memref<512x16xf32, #tpu.memory_space<vmem>>) attributes {dimension_semantics = [#tpu.dimension_semantics<arbitrary>], iteration_bounds = array<i64: 1>, scalar_prefetch = 0 : i64, scratch_operands = 0 : i64, tpu.core_type = #tpu.core_type<tc>, window_params = [{pipeline_mode = #tpu.pipeline_mode<synchronous>, transform_indices = @transform_0, window_bounds = array<i64: 4, 512, 27>}, {pipeline_mode = #tpu.pipeline_mode<synchronous>, transform_indices = @transform_1, window_bounds = array<i64: 27, 16>}, {pipeline_mode = #tpu.pipeline_mode<synchronous>, transform_indices = @transform_2, window_bounds = array<i64: 1, 16>}, {pipeline_mode = #tpu.pipeline_mode<synchronous>, transform_indices = @transform_3, window_bounds = array<i64: 512, 16>}]} {
    %c0 = arith.constant 0 : index
    %c0_0 = arith.constant 0 : index
    %0 = vector.load %arg2[%c0, %c0_0] : memref<27x16xf32, #tpu.memory_space<vmem>>, vector<27x16xf32>
    %c0_1 = arith.constant 0 : index
    %c0_2 = arith.constant 0 : index
    %1 = vector.load %arg3[%c0_1, %c0_2] : memref<1x16xf32, #tpu.memory_space<vmem>>, vector<1x16xf32>
    %c0_3 = arith.constant 0 : index
    %c0_4 = arith.constant 0 : index
    %c0_5 = arith.constant 0 : index
    %2 = vector.load %arg1[%c0_3, %c0_4, %c0_5] : memref<4x512x27xf32, #tpu.memory_space<vmem>>, vector<1x512x27xf32>
    %3 = vector.shape_cast %2 : vector<1x512x27xf32> to vector<512x27xf32>
    %cst = arith.constant dense<0.000000e+00> : vector<512x16xf32>
    %4 = tpu.matmul %3, %0, %cst {dimension_numbers = #tpu.dot_dimension_numbers<[1], [0], [0], [1], [0, 0, 1, 1], [], []>} : vector<512x27xf32>, vector<27x16xf32>, vector<512x16xf32> -> vector<512x16xf32>
    %5 = vector.broadcast %1 : vector<1x16xf32> to vector<512x16xf32>
    %6 = arith.addf %4, %5 : vector<512x16xf32>
    %cst_6 = arith.constant 0.000000e+00 : f32
    %7 = vector.broadcast %cst_6 : f32 to vector<512x16xf32>
    %8 = arith.maximumf %6, %7 : vector<512x16xf32>
    %c1 = arith.constant 1 : index
    %c0_7 = arith.constant 0 : index
    %c0_8 = arith.constant 0 : index
    %9 = vector.load %arg1[%c1, %c0_7, %c0_8] : memref<4x512x27xf32, #tpu.memory_space<vmem>>, vector<1x512x27xf32>
    %10 = vector.shape_cast %9 : vector<1x512x27xf32> to vector<512x27xf32>
    %cst_9 = arith.constant dense<0.000000e+00> : vector<512x16xf32>
    %11 = tpu.matmul %10, %0, %cst_9 {dimension_numbers = #tpu.dot_dimension_numbers<[1], [0], [0], [1], [0, 0, 1, 1], [], []>} : vector<512x27xf32>, vector<27x16xf32>, vector<512x16xf32> -> vector<512x16xf32>
    %12 = vector.broadcast %1 : vector<1x16xf32> to vector<512x16xf32>
    %13 = arith.addf %11, %12 : vector<512x16xf32>
    %cst_10 = arith.constant 0.000000e+00 : f32
    %14 = vector.broadcast %cst_10 : f32 to vector<512x16xf32>
    %15 = arith.maximumf %13, %14 : vector<512x16xf32>
    %16 = arith.maximumf %8, %15 : vector<512x16xf32>
    %c2 = arith.constant 2 : index
    %c0_11 = arith.constant 0 : index
    %c0_12 = arith.constant 0 : index
    %17 = vector.load %arg1[%c2, %c0_11, %c0_12] : memref<4x512x27xf32, #tpu.memory_space<vmem>>, vector<1x512x27xf32>
    %18 = vector.shape_cast %17 : vector<1x512x27xf32> to vector<512x27xf32>
    %cst_13 = arith.constant dense<0.000000e+00> : vector<512x16xf32>
    %19 = tpu.matmul %18, %0, %cst_13 {dimension_numbers = #tpu.dot_dimension_numbers<[1], [0], [0], [1], [0, 0, 1, 1], [], []>} : vector<512x27xf32>, vector<27x16xf32>, vector<512x16xf32> -> vector<512x16xf32>
    %20 = vector.broadcast %1 : vector<1x16xf32> to vector<512x16xf32>
    %21 = arith.addf %19, %20 : vector<512x16xf32>
    %cst_14 = arith.constant 0.000000e+00 : f32
    %22 = vector.broadcast %cst_14 : f32 to vector<512x16xf32>
    %23 = arith.maximumf %21, %22 : vector<512x16xf32>
    %24 = arith.maximumf %16, %23 : vector<512x16xf32>
    %c3 = arith.constant 3 : index
    %c0_15 = arith.constant 0 : index
    %c0_16 = arith.constant 0 : index
    %25 = vector.load %arg1[%c3, %c0_15, %c0_16] : memref<4x512x27xf32, #tpu.memory_space<vmem>>, vector<1x512x27xf32>
    %26 = vector.shape_cast %25 : vector<1x512x27xf32> to vector<512x27xf32>
    %cst_17 = arith.constant dense<0.000000e+00> : vector<512x16xf32>
    %27 = tpu.matmul %26, %0, %cst_17 {dimension_numbers = #tpu.dot_dimension_numbers<[1], [0], [0], [1], [0, 0, 1, 1], [], []>} : vector<512x27xf32>, vector<27x16xf32>, vector<512x16xf32> -> vector<512x16xf32>
    %28 = vector.broadcast %1 : vector<1x16xf32> to vector<512x16xf32>
    %29 = arith.addf %27, %28 : vector<512x16xf32>
    %cst_18 = arith.constant 0.000000e+00 : f32
    %30 = vector.broadcast %cst_18 : f32 to vector<512x16xf32>
    %31 = arith.maximumf %29, %30 : vector<512x16xf32>
    %32 = arith.maximumf %24, %31 : vector<512x16xf32>
    %c0_19 = arith.constant 0 : index
    %c0_20 = arith.constant 0 : index
    %33 = vector.load %arg4[%c0_19, %c0_20] : memref<512x16xf32, #tpu.memory_space<vmem>>, vector<512x16xf32>
    tpu.vector_store %arg4[%c0_19, %c0_20], %32 {strides = array<i32>} : memref<512x16xf32, #tpu.memory_space<vmem>>, vector<512x16xf32>,
    return
  }
  func.func @transform_0(%arg0: i32) -> (i32, i32, i32) {
    %c0_i32 = arith.constant 0 : i32
    %c0_i32_0 = arith.constant 0 : i32
    %c0_i32_1 = arith.constant 0 : i32
    %c0_i32_2 = arith.constant 0 : i32
    return %c0_i32, %c0_i32_0, %c0_i32_1 : i32, i32, i32
  }
  func.func @transform_1(%arg0: i32) -> (i32, i32) {
    %c0_i32 = arith.constant 0 : i32
    %c0_i32_0 = arith.constant 0 : i32
    %c0_i32_1 = arith.constant 0 : i32
    return %c0_i32, %c0_i32_0 : i32, i32
  }
  func.func @transform_2(%arg0: i32) -> (i32, i32) {
    %c0_i32 = arith.constant 0 : i32
    %c0_i32_0 = arith.constant 0 : i32
    %c0_i32_1 = arith.constant 0 : i32
    return %c0_i32, %c0_i32_0 : i32, i32
  }
  func.func @transform_3(%arg0: i32) -> (i32, i32) {
    %c0_i32 = arith.constant 0 : i32
    %c0_i32_0 = arith.constant 0 : i32
    %c0_i32_1 = arith.constant 0 : i32
    return %c0_i32, %c0_i32_0 : i32, i32
  }
}

module attributes {stable_mosaic.version = 11 : i64} {
  func.func @_conv3x3_relu_pool_kernel(%arg0: i32, %arg1: memref<4x128x144xf32, #tpu.memory_space<vmem>>, %arg2: memref<144x32xf32, #tpu.memory_space<vmem>>, %arg3: memref<1x32xf32, #tpu.memory_space<vmem>>, %arg4: memref<128x32xf32, #tpu.memory_space<vmem>>) attributes {dimension_semantics = [#tpu.dimension_semantics<arbitrary>], iteration_bounds = array<i64: 1>, scalar_prefetch = 0 : i64, scratch_operands = 0 : i64, tpu.core_type = #tpu.core_type<tc>, window_params = [{pipeline_mode = #tpu.pipeline_mode<synchronous>, transform_indices = @transform_0, window_bounds = array<i64: 4, 128, 144>}, {pipeline_mode = #tpu.pipeline_mode<synchronous>, transform_indices = @transform_1, window_bounds = array<i64: 144, 32>}, {pipeline_mode = #tpu.pipeline_mode<synchronous>, transform_indices = @transform_2, window_bounds = array<i64: 1, 32>}, {pipeline_mode = #tpu.pipeline_mode<synchronous>, transform_indices = @transform_3, window_bounds = array<i64: 128, 32>}]} {
    %c0 = arith.constant 0 : index
    %c0_0 = arith.constant 0 : index
    %0 = vector.load %arg2[%c0, %c0_0] : memref<144x32xf32, #tpu.memory_space<vmem>>, vector<144x32xf32>
    %c0_1 = arith.constant 0 : index
    %c0_2 = arith.constant 0 : index
    %1 = vector.load %arg3[%c0_1, %c0_2] : memref<1x32xf32, #tpu.memory_space<vmem>>, vector<1x32xf32>
    %c0_3 = arith.constant 0 : index
    %c0_4 = arith.constant 0 : index
    %c0_5 = arith.constant 0 : index
    %2 = vector.load %arg1[%c0_3, %c0_4, %c0_5] : memref<4x128x144xf32, #tpu.memory_space<vmem>>, vector<1x128x144xf32>
    %3 = vector.shape_cast %2 : vector<1x128x144xf32> to vector<128x144xf32>
    %cst = arith.constant dense<0.000000e+00> : vector<128x32xf32>
    %4 = tpu.matmul %3, %0, %cst {dimension_numbers = #tpu.dot_dimension_numbers<[1], [0], [0], [1], [0, 0, 1, 1], [], []>} : vector<128x144xf32>, vector<144x32xf32>, vector<128x32xf32> -> vector<128x32xf32>
    %5 = vector.broadcast %1 : vector<1x32xf32> to vector<128x32xf32>
    %6 = arith.addf %4, %5 : vector<128x32xf32>
    %cst_6 = arith.constant 0.000000e+00 : f32
    %7 = vector.broadcast %cst_6 : f32 to vector<128x32xf32>
    %8 = arith.maximumf %6, %7 : vector<128x32xf32>
    %c1 = arith.constant 1 : index
    %c0_7 = arith.constant 0 : index
    %c0_8 = arith.constant 0 : index
    %9 = vector.load %arg1[%c1, %c0_7, %c0_8] : memref<4x128x144xf32, #tpu.memory_space<vmem>>, vector<1x128x144xf32>
    %10 = vector.shape_cast %9 : vector<1x128x144xf32> to vector<128x144xf32>
    %cst_9 = arith.constant dense<0.000000e+00> : vector<128x32xf32>
    %11 = tpu.matmul %10, %0, %cst_9 {dimension_numbers = #tpu.dot_dimension_numbers<[1], [0], [0], [1], [0, 0, 1, 1], [], []>} : vector<128x144xf32>, vector<144x32xf32>, vector<128x32xf32> -> vector<128x32xf32>
    %12 = vector.broadcast %1 : vector<1x32xf32> to vector<128x32xf32>
    %13 = arith.addf %11, %12 : vector<128x32xf32>
    %cst_10 = arith.constant 0.000000e+00 : f32
    %14 = vector.broadcast %cst_10 : f32 to vector<128x32xf32>
    %15 = arith.maximumf %13, %14 : vector<128x32xf32>
    %16 = arith.maximumf %8, %15 : vector<128x32xf32>
    %c2 = arith.constant 2 : index
    %c0_11 = arith.constant 0 : index
    %c0_12 = arith.constant 0 : index
    %17 = vector.load %arg1[%c2, %c0_11, %c0_12] : memref<4x128x144xf32, #tpu.memory_space<vmem>>, vector<1x128x144xf32>
    %18 = vector.shape_cast %17 : vector<1x128x144xf32> to vector<128x144xf32>
    %cst_13 = arith.constant dense<0.000000e+00> : vector<128x32xf32>
    %19 = tpu.matmul %18, %0, %cst_13 {dimension_numbers = #tpu.dot_dimension_numbers<[1], [0], [0], [1], [0, 0, 1, 1], [], []>} : vector<128x144xf32>, vector<144x32xf32>, vector<128x32xf32> -> vector<128x32xf32>
    %20 = vector.broadcast %1 : vector<1x32xf32> to vector<128x32xf32>
    %21 = arith.addf %19, %20 : vector<128x32xf32>
    %cst_14 = arith.constant 0.000000e+00 : f32
    %22 = vector.broadcast %cst_14 : f32 to vector<128x32xf32>
    %23 = arith.maximumf %21, %22 : vector<128x32xf32>
    %24 = arith.maximumf %16, %23 : vector<128x32xf32>
    %c3 = arith.constant 3 : index
    %c0_15 = arith.constant 0 : index
    %c0_16 = arith.constant 0 : index
    %25 = vector.load %arg1[%c3, %c0_15, %c0_16] : memref<4x128x144xf32, #tpu.memory_space<vmem>>, vector<1x128x144xf32>
    %26 = vector.shape_cast %25 : vector<1x128x144xf32> to vector<128x144xf32>
    %cst_17 = arith.constant dense<0.000000e+00> : vector<128x32xf32>
    %27 = tpu.matmul %26, %0, %cst_17 {dimension_numbers = #tpu.dot_dimension_numbers<[1], [0], [0], [1], [0, 0, 1, 1], [], []>} : vector<128x144xf32>, vector<144x32xf32>, vector<128x32xf32> -> vector<128x32xf32>
    %28 = vector.broadcast %1 : vector<1x32xf32> to vector<128x32xf32>
    %29 = arith.addf %27, %28 : vector<128x32xf32>
    %cst_18 = arith.constant 0.000000e+00 : f32
    %30 = vector.broadcast %cst_18 : f32 to vector<128x32xf32>
    %31 = arith.maximumf %29, %30 : vector<128x32xf32>
    %32 = arith.maximumf %24, %31 : vector<128x32xf32>
    %c0_19 = arith.constant 0 : index
    %c0_20 = arith.constant 0 : index
    %33 = vector.load %arg4[%c0_19, %c0_20] : memref<128x32xf32, #tpu.memory_space<vmem>>, vector<128x32xf32>
    tpu.vector_store %arg4[%c0_19, %c0_20], %32 {strides = array<i32>} : memref<128x32xf32, #tpu.memory_space<vmem>>, vector<128x32xf32>,
    return
  }
  func.func @transform_0(%arg0: i32) -> (i32, i32, i32) {
    %c0_i32 = arith.constant 0 : i32
    %c0_i32_0 = arith.constant 0 : i32
    %c0_i32_1 = arith.constant 0 : i32
    %c0_i32_2 = arith.constant 0 : i32
    return %c0_i32, %c0_i32_0, %c0_i32_1 : i32, i32, i32
  }
  func.func @transform_1(%arg0: i32) -> (i32, i32) {
    %c0_i32 = arith.constant 0 : i32
    %c0_i32_0 = arith.constant 0 : i32
    %c0_i32_1 = arith.constant 0 : i32
    return %c0_i32, %c0_i32_0 : i32, i32
  }
  func.func @transform_2(%arg0: i32) -> (i32, i32) {
    %c0_i32 = arith.constant 0 : i32
    %c0_i32_0 = arith.constant 0 : i32
    %c0_i32_1 = arith.constant 0 : i32
    return %c0_i32, %c0_i32_0 : i32, i32
  }
  func.func @transform_3(%arg0: i32) -> (i32, i32) {
    %c0_i32 = arith.constant 0 : i32
    %c0_i32_0 = arith.constant 0 : i32
    %c0_i32_1 = arith.constant 0 : i32
    return %c0_i32, %c0_i32_0 : i32, i32
  }
}

module attributes {stable_mosaic.version = 11 : i64} {
  func.func @_conv3x3_relu_pool_kernel(%arg0: i32, %arg1: memref<4x32x288xf32, #tpu.memory_space<vmem>>, %arg2: memref<288x64xf32, #tpu.memory_space<vmem>>, %arg3: memref<1x64xf32, #tpu.memory_space<vmem>>, %arg4: memref<32x64xf32, #tpu.memory_space<vmem>>) attributes {dimension_semantics = [#tpu.dimension_semantics<arbitrary>], iteration_bounds = array<i64: 1>, scalar_prefetch = 0 : i64, scratch_operands = 0 : i64, tpu.core_type = #tpu.core_type<tc>, window_params = [{pipeline_mode = #tpu.pipeline_mode<synchronous>, transform_indices = @transform_0, window_bounds = array<i64: 4, 32, 288>}, {pipeline_mode = #tpu.pipeline_mode<synchronous>, transform_indices = @transform_1, window_bounds = array<i64: 288, 64>}, {pipeline_mode = #tpu.pipeline_mode<synchronous>, transform_indices = @transform_2, window_bounds = array<i64: 1, 64>}, {pipeline_mode = #tpu.pipeline_mode<synchronous>, transform_indices = @transform_3, window_bounds = array<i64: 32, 64>}]} {
    %c0 = arith.constant 0 : index
    %c0_0 = arith.constant 0 : index
    %0 = vector.load %arg2[%c0, %c0_0] : memref<288x64xf32, #tpu.memory_space<vmem>>, vector<288x64xf32>
    %c0_1 = arith.constant 0 : index
    %c0_2 = arith.constant 0 : index
    %1 = vector.load %arg3[%c0_1, %c0_2] : memref<1x64xf32, #tpu.memory_space<vmem>>, vector<1x64xf32>
    %c0_3 = arith.constant 0 : index
    %c0_4 = arith.constant 0 : index
    %c0_5 = arith.constant 0 : index
    %2 = vector.load %arg1[%c0_3, %c0_4, %c0_5] : memref<4x32x288xf32, #tpu.memory_space<vmem>>, vector<1x32x288xf32>
    %3 = vector.shape_cast %2 : vector<1x32x288xf32> to vector<32x288xf32>
    %cst = arith.constant dense<0.000000e+00> : vector<32x64xf32>
    %4 = tpu.matmul %3, %0, %cst {dimension_numbers = #tpu.dot_dimension_numbers<[1], [0], [0], [1], [0, 0, 1, 1], [], []>} : vector<32x288xf32>, vector<288x64xf32>, vector<32x64xf32> -> vector<32x64xf32>
    %5 = vector.broadcast %1 : vector<1x64xf32> to vector<32x64xf32>
    %6 = arith.addf %4, %5 : vector<32x64xf32>
    %cst_6 = arith.constant 0.000000e+00 : f32
    %7 = vector.broadcast %cst_6 : f32 to vector<32x64xf32>
    %8 = arith.maximumf %6, %7 : vector<32x64xf32>
    %c1 = arith.constant 1 : index
    %c0_7 = arith.constant 0 : index
    %c0_8 = arith.constant 0 : index
    %9 = vector.load %arg1[%c1, %c0_7, %c0_8] : memref<4x32x288xf32, #tpu.memory_space<vmem>>, vector<1x32x288xf32>
    %10 = vector.shape_cast %9 : vector<1x32x288xf32> to vector<32x288xf32>
    %cst_9 = arith.constant dense<0.000000e+00> : vector<32x64xf32>
    %11 = tpu.matmul %10, %0, %cst_9 {dimension_numbers = #tpu.dot_dimension_numbers<[1], [0], [0], [1], [0, 0, 1, 1], [], []>} : vector<32x288xf32>, vector<288x64xf32>, vector<32x64xf32> -> vector<32x64xf32>
    %12 = vector.broadcast %1 : vector<1x64xf32> to vector<32x64xf32>
    %13 = arith.addf %11, %12 : vector<32x64xf32>
    %cst_10 = arith.constant 0.000000e+00 : f32
    %14 = vector.broadcast %cst_10 : f32 to vector<32x64xf32>
    %15 = arith.maximumf %13, %14 : vector<32x64xf32>
    %16 = arith.maximumf %8, %15 : vector<32x64xf32>
    %c2 = arith.constant 2 : index
    %c0_11 = arith.constant 0 : index
    %c0_12 = arith.constant 0 : index
    %17 = vector.load %arg1[%c2, %c0_11, %c0_12] : memref<4x32x288xf32, #tpu.memory_space<vmem>>, vector<1x32x288xf32>
    %18 = vector.shape_cast %17 : vector<1x32x288xf32> to vector<32x288xf32>
    %cst_13 = arith.constant dense<0.000000e+00> : vector<32x64xf32>
    %19 = tpu.matmul %18, %0, %cst_13 {dimension_numbers = #tpu.dot_dimension_numbers<[1], [0], [0], [1], [0, 0, 1, 1], [], []>} : vector<32x288xf32>, vector<288x64xf32>, vector<32x64xf32> -> vector<32x64xf32>
    %20 = vector.broadcast %1 : vector<1x64xf32> to vector<32x64xf32>
    %21 = arith.addf %19, %20 : vector<32x64xf32>
    %cst_14 = arith.constant 0.000000e+00 : f32
    %22 = vector.broadcast %cst_14 : f32 to vector<32x64xf32>
    %23 = arith.maximumf %21, %22 : vector<32x64xf32>
    %24 = arith.maximumf %16, %23 : vector<32x64xf32>
    %c3 = arith.constant 3 : index
    %c0_15 = arith.constant 0 : index
    %c0_16 = arith.constant 0 : index
    %25 = vector.load %arg1[%c3, %c0_15, %c0_16] : memref<4x32x288xf32, #tpu.memory_space<vmem>>, vector<1x32x288xf32>
    %26 = vector.shape_cast %25 : vector<1x32x288xf32> to vector<32x288xf32>
    %cst_17 = arith.constant dense<0.000000e+00> : vector<32x64xf32>
    %27 = tpu.matmul %26, %0, %cst_17 {dimension_numbers = #tpu.dot_dimension_numbers<[1], [0], [0], [1], [0, 0, 1, 1], [], []>} : vector<32x288xf32>, vector<288x64xf32>, vector<32x64xf32> -> vector<32x64xf32>
    %28 = vector.broadcast %1 : vector<1x64xf32> to vector<32x64xf32>
    %29 = arith.addf %27, %28 : vector<32x64xf32>
    %cst_18 = arith.constant 0.000000e+00 : f32
    %30 = vector.broadcast %cst_18 : f32 to vector<32x64xf32>
    %31 = arith.maximumf %29, %30 : vector<32x64xf32>
    %32 = arith.maximumf %24, %31 : vector<32x64xf32>
    %c0_19 = arith.constant 0 : index
    %c0_20 = arith.constant 0 : index
    %33 = vector.load %arg4[%c0_19, %c0_20] : memref<32x64xf32, #tpu.memory_space<vmem>>, vector<32x64xf32>
    tpu.vector_store %arg4[%c0_19, %c0_20], %32 {strides = array<i32>} : memref<32x64xf32, #tpu.memory_space<vmem>>, vector<32x64xf32>,
    return
  }
  func.func @transform_0(%arg0: i32) -> (i32, i32, i32) {
    %c0_i32 = arith.constant 0 : i32
    %c0_i32_0 = arith.constant 0 : i32
    %c0_i32_1 = arith.constant 0 : i32
    %c0_i32_2 = arith.constant 0 : i32
    return %c0_i32, %c0_i32_0, %c0_i32_1 : i32, i32, i32
  }
  func.func @transform_1(%arg0: i32) -> (i32, i32) {
    %c0_i32 = arith.constant 0 : i32
    %c0_i32_0 = arith.constant 0 : i32
    %c0_i32_1 = arith.constant 0 : i32
    return %c0_i32, %c0_i32_0 : i32, i32
  }
  func.func @transform_2(%arg0: i32) -> (i32, i32) {
    %c0_i32 = arith.constant 0 : i32
    %c0_i32_0 = arith.constant 0 : i32
    %c0_i32_1 = arith.constant 0 : i32
    return %c0_i32, %c0_i32_0 : i32, i32
  }
  func.func @transform_3(%arg0: i32) -> (i32, i32) {
    %c0_i32 = arith.constant 0 : i32
    %c0_i32_0 = arith.constant 0 : i32
    %c0_i32_1 = arith.constant 0 : i32
    return %c0_i32, %c0_i32_0 : i32, i32
  }
}

module attributes {stable_mosaic.version = 11 : i64} {
  func.func @_encoder_head_kernel(%arg0: i32, %arg1: memref<2x1024xf32, #tpu.memory_space<vmem>>, %arg2: memref<1024x256xf32, #tpu.memory_space<vmem>>, %arg3: memref<1x256xf32, #tpu.memory_space<vmem>>, %arg4: memref<256x256xf32, #tpu.memory_space<vmem>>, %arg5: memref<1x256xf32, #tpu.memory_space<vmem>>, %arg6: memref<256x256xf32, #tpu.memory_space<vmem>>, %arg7: memref<1x256xf32, #tpu.memory_space<vmem>>, %arg8: memref<16x64xf32, #tpu.memory_space<vmem>>, %arg9: memref<64x512xf32, #tpu.memory_space<vmem>>, %arg10: memref<1x512xf32, #tpu.memory_space<vmem>>, %arg11: memref<2x256xf32, #tpu.memory_space<vmem>>, %arg12: memref<16x512xf32, #tpu.memory_space<vmem>>) attributes {dimension_semantics = [#tpu.dimension_semantics<arbitrary>], iteration_bounds = array<i64: 1>, scalar_prefetch = 0 : i64, scratch_operands = 0 : i64, tpu.core_type = #tpu.core_type<tc>, window_params = [{pipeline_mode = #tpu.pipeline_mode<synchronous>, transform_indices = @transform_0, window_bounds = array<i64: 2, 1024>}, {pipeline_mode = #tpu.pipeline_mode<synchronous>, transform_indices = @transform_1, window_bounds = array<i64: 1024, 256>}, {pipeline_mode = #tpu.pipeline_mode<synchronous>, transform_indices = @transform_2, window_bounds = array<i64: 1, 256>}, {pipeline_mode = #tpu.pipeline_mode<synchronous>, transform_indices = @transform_3, window_bounds = array<i64: 256, 256>}, {pipeline_mode = #tpu.pipeline_mode<synchronous>, transform_indices = @transform_4, window_bounds = array<i64: 1, 256>}, {pipeline_mode = #tpu.pipeline_mode<synchronous>, transform_indices = @transform_5, window_bounds = array<i64: 256, 256>}, {pipeline_mode = #tpu.pipeline_mode<synchronous>, transform_indices = @transform_6, window_bounds = array<i64: 1, 256>}, {pipeline_mode = #tpu.pipeline_mode<synchronous>, transform_indices = @transform_7, window_bounds = array<i64: 16, 64>}, {pipeline_mode = #tpu.pipeline_mode<synchronous>, transform_indices = @transform_8, window_bounds = array<i64: 64, 512>}, {pipeline_mode = #tpu.pipeline_mode<synchronous>, transform_indices = @transform_9, window_bounds = array<i64: 1, 512>}, {pipeline_mode = #tpu.pipeline_mode<synchronous>, transform_indices = @transform_10, window_bounds = array<i64: 2, 256>}, {pipeline_mode = #tpu.pipeline_mode<synchronous>, transform_indices = @transform_11, window_bounds = array<i64: 16, 512>}]} {
    %c0 = arith.constant 0 : index
    %c0_0 = arith.constant 0 : index
    %0 = vector.load %arg1[%c0, %c0_0] : memref<2x1024xf32, #tpu.memory_space<vmem>>, vector<2x1024xf32>
    %c0_1 = arith.constant 0 : index
    %c0_2 = arith.constant 0 : index
    %1 = vector.load %arg2[%c0_1, %c0_2] : memref<1024x256xf32, #tpu.memory_space<vmem>>, vector<1024x256xf32>
    %cst = arith.constant dense<0.000000e+00> : vector<2x256xf32>
    %2 = tpu.matmul %0, %1, %cst {dimension_numbers = #tpu.dot_dimension_numbers<[1], [0], [0], [1], [0, 0, 1, 1], [], []>} : vector<2x1024xf32>, vector<1024x256xf32>, vector<2x256xf32> -> vector<2x256xf32>
    %c0_3 = arith.constant 0 : index
    %c0_4 = arith.constant 0 : index
    %3 = vector.load %arg3[%c0_3, %c0_4] : memref<1x256xf32, #tpu.memory_space<vmem>>, vector<1x256xf32>
    %4 = vector.broadcast %3 : vector<1x256xf32> to vector<2x256xf32>
    %5 = arith.addf %2, %4 : vector<2x256xf32>
    %cst_5 = arith.constant 0.000000e+00 : f32
    %6 = vector.broadcast %cst_5 : f32 to vector<2x256xf32>
    %7 = arith.maximumf %5, %6 : vector<2x256xf32>
    %c0_6 = arith.constant 0 : index
    %c0_7 = arith.constant 0 : index
    %8 = vector.load %arg4[%c0_6, %c0_7] : memref<256x256xf32, #tpu.memory_space<vmem>>, vector<256x256xf32>
    %cst_8 = arith.constant dense<0.000000e+00> : vector<2x256xf32>
    %9 = tpu.matmul %7, %8, %cst_8 {dimension_numbers = #tpu.dot_dimension_numbers<[1], [0], [0], [1], [0, 0, 1, 1], [], []>} : vector<2x256xf32>, vector<256x256xf32>, vector<2x256xf32> -> vector<2x256xf32>
    %c0_9 = arith.constant 0 : index
    %c0_10 = arith.constant 0 : index
    %10 = vector.load %arg5[%c0_9, %c0_10] : memref<1x256xf32, #tpu.memory_space<vmem>>, vector<1x256xf32>
    %11 = vector.broadcast %10 : vector<1x256xf32> to vector<2x256xf32>
    %12 = arith.addf %9, %11 : vector<2x256xf32>
    %cst_11 = arith.constant 0.000000e+00 : f32
    %13 = vector.broadcast %cst_11 : f32 to vector<2x256xf32>
    %14 = arith.maximumf %12, %13 : vector<2x256xf32>
    %c0_12 = arith.constant 0 : index
    %c0_13 = arith.constant 0 : index
    %15 = vector.load %arg6[%c0_12, %c0_13] : memref<256x256xf32, #tpu.memory_space<vmem>>, vector<256x256xf32>
    %cst_14 = arith.constant dense<0.000000e+00> : vector<2x256xf32>
    %16 = tpu.matmul %14, %15, %cst_14 {dimension_numbers = #tpu.dot_dimension_numbers<[1], [0], [0], [1], [0, 0, 1, 1], [], []>} : vector<2x256xf32>, vector<256x256xf32>, vector<2x256xf32> -> vector<2x256xf32>
    %c0_15 = arith.constant 0 : index
    %c0_16 = arith.constant 0 : index
    %17 = vector.load %arg7[%c0_15, %c0_16] : memref<1x256xf32, #tpu.memory_space<vmem>>, vector<1x256xf32>
    %18 = vector.broadcast %17 : vector<1x256xf32> to vector<2x256xf32>
    %19 = arith.addf %16, %18 : vector<2x256xf32>
    %20 = math.tanh %19 : vector<2x256xf32>
    %21 = arith.mulf %20, %20 : vector<2x256xf32>
    %cst_17 = arith.constant dense<0.000000e+00> : vector<2xf32>
    %22 = vector.multi_reduction <add>, %21, %cst_17 [1] : vector<2x256xf32> to vector<2xf32>
    %23 = vector.shape_cast %22 : vector<2xf32> to vector<2x1xf32>
    %24 = math.sqrt %23 : vector<2x1xf32>
    %25 = vector.broadcast %24 : vector<2x1xf32> to vector<2x256xf32>
    %26 = arith.divf %20, %25 : vector<2x256xf32>
    %c0_18 = arith.constant 0 : index
    %c0_19 = arith.constant 0 : index
    %27 = vector.load %arg11[%c0_18, %c0_19] : memref<2x256xf32, #tpu.memory_space<vmem>>, vector<2x256xf32>
    tpu.vector_store %arg11[%c0_18, %c0_19], %26 {strides = array<i32>} : memref<2x256xf32, #tpu.memory_space<vmem>>, vector<2x256xf32>,
    %c0_20 = arith.constant 0 : index
    %c0_21 = arith.constant 0 : index
    %28 = vector.load %arg8[%c0_20, %c0_21] : memref<16x64xf32, #tpu.memory_space<vmem>>, vector<16x64xf32>
    %c0_22 = arith.constant 0 : index
    %c0_23 = arith.constant 0 : index
    %29 = vector.load %arg9[%c0_22, %c0_23] : memref<64x512xf32, #tpu.memory_space<vmem>>, vector<64x512xf32>
    %cst_24 = arith.constant dense<0.000000e+00> : vector<16x512xf32>
    %30 = tpu.matmul %28, %29, %cst_24 {dimension_numbers = #tpu.dot_dimension_numbers<[1], [0], [0], [1], [0, 0, 1, 1], [], []>} : vector<16x64xf32>, vector<64x512xf32>, vector<16x512xf32> -> vector<16x512xf32>
    %c0_25 = arith.constant 0 : index
    %c0_26 = arith.constant 0 : index
    %31 = vector.load %arg10[%c0_25, %c0_26] : memref<1x512xf32, #tpu.memory_space<vmem>>, vector<1x512xf32>
    %32 = vector.broadcast %31 : vector<1x512xf32> to vector<16x512xf32>
    %33 = arith.addf %30, %32 : vector<16x512xf32>
    %c0_27 = arith.constant 0 : index
    %c0_28 = arith.constant 0 : index
    %34 = vector.load %arg12[%c0_27, %c0_28] : memref<16x512xf32, #tpu.memory_space<vmem>>, vector<16x512xf32>
    tpu.vector_store %arg12[%c0_27, %c0_28], %33 {strides = array<i32>} : memref<16x512xf32, #tpu.memory_space<vmem>>, vector<16x512xf32>,
    return
  }
  func.func @transform_0(%arg0: i32) -> (i32, i32) {
    %c0_i32 = arith.constant 0 : i32
    %c0_i32_0 = arith.constant 0 : i32
    %c0_i32_1 = arith.constant 0 : i32
    return %c0_i32, %c0_i32_0 : i32, i32
  }
  func.func @transform_1(%arg0: i32) -> (i32, i32) {
    %c0_i32 = arith.constant 0 : i32
    %c0_i32_0 = arith.constant 0 : i32
    %c0_i32_1 = arith.constant 0 : i32
    return %c0_i32, %c0_i32_0 : i32, i32
  }
  func.func @transform_2(%arg0: i32) -> (i32, i32) {
    %c0_i32 = arith.constant 0 : i32
    %c0_i32_0 = arith.constant 0 : i32
    %c0_i32_1 = arith.constant 0 : i32
    return %c0_i32, %c0_i32_0 : i32, i32
  }
  func.func @transform_3(%arg0: i32) -> (i32, i32) {
    %c0_i32 = arith.constant 0 : i32
    %c0_i32_0 = arith.constant 0 : i32
    %c0_i32_1 = arith.constant 0 : i32
    return %c0_i32, %c0_i32_0 : i32, i32
  }
  func.func @transform_4(%arg0: i32) -> (i32, i32) {
    %c0_i32 = arith.constant 0 : i32
    %c0_i32_0 = arith.constant 0 : i32
    %c0_i32_1 = arith.constant 0 : i32
    return %c0_i32, %c0_i32_0 : i32, i32
  }
  func.func @transform_5(%arg0: i32) -> (i32, i32) {
    %c0_i32 = arith.constant 0 : i32
    %c0_i32_0 = arith.constant 0 : i32
    %c0_i32_1 = arith.constant 0 : i32
    return %c0_i32, %c0_i32_0 : i32, i32
  }
  func.func @transform_6(%arg0: i32) -> (i32, i32) {
    %c0_i32 = arith.constant 0 : i32
    %c0_i32_0 = arith.constant 0 : i32
    %c0_i32_1 = arith.constant 0 : i32
    return %c0_i32, %c0_i32_0 : i32, i32
  }
  func.func @transform_7(%arg0: i32) -> (i32, i32) {
    %c0_i32 = arith.constant 0 : i32
    %c0_i32_0 = arith.constant 0 : i32
    %c0_i32_1 = arith.constant 0 : i32
    return %c0_i32, %c0_i32_0 : i32, i32
  }
  func.func @transform_8(%arg0: i32) -> (i32, i32) {
    %c0_i32 = arith.constant 0 : i32
    %c0_i32_0 = arith.constant 0 : i32
    %c0_i32_1 = arith.constant 0 : i32
    return %c0_i32, %c0_i32_0 : i32, i32
  }
  func.func @transform_9(%arg0: i32) -> (i32, i32) {
    %c0_i32 = arith.constant 0 : i32
    %c0_i32_0 = arith.constant 0 : i32
    %c0_i32_1 = arith.constant 0 : i32
    return %c0_i32, %c0_i32_0 : i32, i32
  }
  func.func @transform_10(%arg0: i32) -> (i32, i32) {
    %c0_i32 = arith.constant 0 : i32
    %c0_i32_0 = arith.constant 0 : i32
    %c0_i32_1 = arith.constant 0 : i32
    return %c0_i32, %c0_i32_0 : i32, i32
  }
  func.func @transform_11(%arg0: i32) -> (i32, i32) {
    %c0_i32 = arith.constant 0 : i32
    %c0_i32_0 = arith.constant 0 : i32
    %c0_i32_1 = arith.constant 0 : i32
    return %c0_i32, %c0_i32_0 : i32, i32
  }
}

module attributes {stable_mosaic.version = 11 : i64} {
  func.func @_lstm_stacks_head_kernel(%arg0: i32, %arg1: memref<1x2x512xf32, #tpu.memory_space<vmem>>, %arg2: memref<128x512xf32, #tpu.memory_space<vmem>>, %arg3: memref<128x512xf32, #tpu.memory_space<vmem>>, %arg4: memref<128x512xf32, #tpu.memory_space<vmem>>, %arg5: memref<1x512xf32, #tpu.memory_space<vmem>>, %arg6: memref<2x256xf32, #tpu.memory_space<vmem>>, %arg7: memref<128x256xf32, #tpu.memory_space<vmem>>, %arg8: memref<1x256xf32, #tpu.memory_space<vmem>>, %arg9: memref<128x10xf32, #tpu.memory_space<vmem>>, %arg10: memref<1x10xf32, #tpu.memory_space<vmem>>, %arg11: memref<256x128xf32, #tpu.memory_space<vmem>>, %arg12: memref<1x128xf32, #tpu.memory_space<vmem>>, %arg13: memref<128x50xf32, #tpu.memory_space<vmem>>, %arg14: memref<1x50xf32, #tpu.memory_space<vmem>>, %arg15: memref<10x50xf32, #tpu.memory_space<vmem>>, %arg16: memref<50x128xf32, #tpu.memory_space<vmem>>, %arg17: memref<1x128xf32, #tpu.memory_space<vmem>>, %arg18: memref<128x50xf32, #tpu.memory_space<vmem>>, %arg19: memref<1x50xf32, #tpu.memory_space<vmem>>, %arg20: memref<2x50xf32, #tpu.memory_space<vmem>>, %arg21: memref<2x10xf32, #tpu.memory_space<vmem>>, %arg22: memref<2x128xf32, #tpu.memory_space<vmem>>, %arg23: memref<2x128xf32, #tpu.memory_space<vmem>>, %arg24: memref<2x128xf32, #tpu.memory_space<vmem>>, %arg25: memref<2x128xf32, #tpu.memory_space<vmem>>) attributes {dimension_semantics = [#tpu.dimension_semantics<arbitrary>], iteration_bounds = array<i64: 8>, scalar_prefetch = 0 : i64, scratch_operands = 4 : i64, tpu.core_type = #tpu.core_type<tc>, window_params = [{transform_indices = @transform_0, window_bounds = array<i64: 1, 2, 512>}, {pipeline_mode = #tpu.pipeline_mode<synchronous>, transform_indices = @transform_1, window_bounds = array<i64: 128, 512>}, {pipeline_mode = #tpu.pipeline_mode<synchronous>, transform_indices = @transform_2, window_bounds = array<i64: 128, 512>}, {pipeline_mode = #tpu.pipeline_mode<synchronous>, transform_indices = @transform_3, window_bounds = array<i64: 128, 512>}, {pipeline_mode = #tpu.pipeline_mode<synchronous>, transform_indices = @transform_4, window_bounds = array<i64: 1, 512>}, {pipeline_mode = #tpu.pipeline_mode<synchronous>, transform_indices = @transform_5, window_bounds = array<i64: 2, 256>}, {pipeline_mode = #tpu.pipeline_mode<synchronous>, transform_indices = @transform_6, window_bounds = array<i64: 128, 256>}, {pipeline_mode = #tpu.pipeline_mode<synchronous>, transform_indices = @transform_7, window_bounds = array<i64: 1, 256>}, {pipeline_mode = #tpu.pipeline_mode<synchronous>, transform_indices = @transform_8, window_bounds = array<i64: 128, 10>}, {pipeline_mode = #tpu.pipeline_mode<synchronous>, transform_indices = @transform_9, window_bounds = array<i64: 1, 10>}, {pipeline_mode = #tpu.pipeline_mode<synchronous>, transform_indices = @transform_10, window_bounds = array<i64: 256, 128>}, {pipeline_mode = #tpu.pipeline_mode<synchronous>, transform_indices = @transform_11, window_bounds = array<i64: 1, 128>}, {pipeline_mode = #tpu.pipeline_mode<synchronous>, transform_indices = @transform_12, window_bounds = array<i64: 128, 50>}, {pipeline_mode = #tpu.pipeline_mode<synchronous>, transform_indices = @transform_13, window_bounds = array<i64: 1, 50>}, {pipeline_mode = #tpu.pipeline_mode<synchronous>, transform_indices = @transform_14, window_bounds = array<i64: 10, 50>}, {pipeline_mode = #tpu.pipeline_mode<synchronous>, transform_indices = @transform_15, window_bounds = array<i64: 50, 128>}, {pipeline_mode = #tpu.pipeline_mode<synchronous>, transform_indices = @transform_16, window_bounds = array<i64: 1, 128>}, {pipeline_mode = #tpu.pipeline_mode<synchronous>, transform_indices = @transform_17, window_bounds = array<i64: 128, 50>}, {pipeline_mode = #tpu.pipeline_mode<synchronous>, transform_indices = @transform_18, window_bounds = array<i64: 1, 50>}, {pipeline_mode = #tpu.pipeline_mode<synchronous>, transform_indices = @transform_19, window_bounds = array<i64: 2, 50>}, {pipeline_mode = #tpu.pipeline_mode<synchronous>, transform_indices = @transform_20, window_bounds = array<i64: 2, 10>}]} {
    %c0_i32 = arith.constant 0 : i32
    %0 = arith.cmpi eq, %arg0, %c0_i32 : i32
    %1 = arith.extui %0 : i1 to i32
    %c0_i32_0 = arith.constant 0 : i32
    %2 = arith.cmpi ne, %1, %c0_i32_0 : i32
    scf.if %2 {
      %cst_36 = arith.constant 0.000000e+00 : f32
      %77 = vector.broadcast %cst_36 : f32 to vector<2x128xf32>
      %c0_37 = arith.constant 0 : index
      %c0_38 = arith.constant 0 : index
      %78 = vector.load %arg22[%c0_37, %c0_38] : memref<2x128xf32, #tpu.memory_space<vmem>>, vector<2x128xf32>
      tpu.vector_store %arg22[%c0_37, %c0_38], %77 {strides = array<i32>} : memref<2x128xf32, #tpu.memory_space<vmem>>, vector<2x128xf32>,
      %cst_39 = arith.constant 0.000000e+00 : f32
      %79 = vector.broadcast %cst_39 : f32 to vector<2x128xf32>
      %c0_40 = arith.constant 0 : index
      %c0_41 = arith.constant 0 : index
      %80 = vector.load %arg23[%c0_40, %c0_41] : memref<2x128xf32, #tpu.memory_space<vmem>>, vector<2x128xf32>
      tpu.vector_store %arg23[%c0_40, %c0_41], %79 {strides = array<i32>} : memref<2x128xf32, #tpu.memory_space<vmem>>, vector<2x128xf32>,
      %cst_42 = arith.constant 0.000000e+00 : f32
      %81 = vector.broadcast %cst_42 : f32 to vector<2x128xf32>
      %c0_43 = arith.constant 0 : index
      %c0_44 = arith.constant 0 : index
      %82 = vector.load %arg24[%c0_43, %c0_44] : memref<2x128xf32, #tpu.memory_space<vmem>>, vector<2x128xf32>
      tpu.vector_store %arg24[%c0_43, %c0_44], %81 {strides = array<i32>} : memref<2x128xf32, #tpu.memory_space<vmem>>, vector<2x128xf32>,
      %cst_45 = arith.constant 0.000000e+00 : f32
      %83 = vector.broadcast %cst_45 : f32 to vector<2x128xf32>
      %c0_46 = arith.constant 0 : index
      %c0_47 = arith.constant 0 : index
      %84 = vector.load %arg25[%c0_46, %c0_47] : memref<2x128xf32, #tpu.memory_space<vmem>>, vector<2x128xf32>
      tpu.vector_store %arg25[%c0_46, %c0_47], %83 {strides = array<i32>} : memref<2x128xf32, #tpu.memory_space<vmem>>, vector<2x128xf32>,
    } else {
    }
    %c0 = arith.constant 0 : index
    %c0_1 = arith.constant 0 : index
    %c0_2 = arith.constant 0 : index
    %3 = vector.load %arg1[%c0, %c0_1, %c0_2] : memref<1x2x512xf32, #tpu.memory_space<vmem>>, vector<1x2x512xf32>
    %4 = vector.shape_cast %3 : vector<1x2x512xf32> to vector<2x512xf32>
    %c0_3 = arith.constant 0 : index
    %c0_4 = arith.constant 0 : index
    %5 = vector.load %arg22[%c0_3, %c0_4] : memref<2x128xf32, #tpu.memory_space<vmem>>, vector<2x128xf32>
    %c0_5 = arith.constant 0 : index
    %c0_6 = arith.constant 0 : index
    %6 = vector.load %arg2[%c0_5, %c0_6] : memref<128x512xf32, #tpu.memory_space<vmem>>, vector<128x512xf32>
    %cst = arith.constant dense<0.000000e+00> : vector<2x512xf32>
    %7 = tpu.matmul %5, %6, %cst {dimension_numbers = #tpu.dot_dimension_numbers<[1], [0], [0], [1], [0, 0, 1, 1], [], []>} : vector<2x128xf32>, vector<128x512xf32>, vector<2x512xf32> -> vector<2x512xf32>
    %8 = arith.addf %4, %7 : vector<2x512xf32>
    %c0_7 = arith.constant 0 : index
    %c0_8 = arith.constant 0 : index
    %9 = vector.load %arg23[%c0_7, %c0_8] : memref<2x128xf32, #tpu.memory_space<vmem>>, vector<2x128xf32>
    %10 = vector.extract_strided_slice %8 {offsets = [0, 0], sizes = [2, 128], strides = [1, 1]} : vector<2x512xf32> to vector<2x128xf32>
    %11 = arith.negf %10 : vector<2x128xf32>
    %12 = math.exp %11 : vector<2x128xf32>
    %cst_9 = arith.constant 1.000000e+00 : f32
    %13 = vector.broadcast %cst_9 : f32 to vector<2x128xf32>
    %14 = arith.addf %13, %12 : vector<2x128xf32>
    %15 = arith.divf %13, %14 : vector<2x128xf32>
    %16 = vector.extract_strided_slice %8 {offsets = [0, 128], sizes = [2, 128], strides = [1, 1]} : vector<2x512xf32> to vector<2x128xf32>
    %17 = arith.negf %16 : vector<2x128xf32>
    %18 = math.exp %17 : vector<2x128xf32>
    %cst_10 = arith.constant 1.000000e+00 : f32
    %19 = vector.broadcast %cst_10 : f32 to vector<2x128xf32>
    %20 = arith.addf %19, %18 : vector<2x128xf32>
    %21 = arith.divf %19, %20 : vector<2x128xf32>
    %22 = vector.extract_strided_slice %8 {offsets = [0, 256], sizes = [2, 128], strides = [1, 1]} : vector<2x512xf32> to vector<2x128xf32>
    %23 = math.tanh %22 : vector<2x128xf32>
    %24 = vector.extract_strided_slice %8 {offsets = [0, 384], sizes = [2, 128], strides = [1, 1]} : vector<2x512xf32> to vector<2x128xf32>
    %25 = arith.negf %24 : vector<2x128xf32>
    %26 = math.exp %25 : vector<2x128xf32>
    %cst_11 = arith.constant 1.000000e+00 : f32
    %27 = vector.broadcast %cst_11 : f32 to vector<2x128xf32>
    %28 = arith.addf %27, %26 : vector<2x128xf32>
    %29 = arith.divf %27, %28 : vector<2x128xf32>
    %30 = arith.mulf %21, %9 : vector<2x128xf32>
    %31 = arith.mulf %15, %23 : vector<2x128xf32>
    %32 = arith.addf %30, %31 : vector<2x128xf32>
    %33 = math.tanh %32 : vector<2x128xf32>
    %34 = arith.mulf %29, %33 : vector<2x128xf32>
    %c0_12 = arith.constant 0 : index
    %c0_13 = arith.constant 0 : index
    %35 = vector.load %arg22[%c0_12, %c0_13] : memref<2x128xf32, #tpu.memory_space<vmem>>, vector<2x128xf32>
    tpu.vector_store %arg22[%c0_12, %c0_13], %34 {strides = array<i32>} : memref<2x128xf32, #tpu.memory_space<vmem>>, vector<2x128xf32>,
    %c0_14 = arith.constant 0 : index
    %c0_15 = arith.constant 0 : index
    %36 = vector.load %arg23[%c0_14, %c0_15] : memref<2x128xf32, #tpu.memory_space<vmem>>, vector<2x128xf32>
    tpu.vector_store %arg23[%c0_14, %c0_15], %32 {strides = array<i32>} : memref<2x128xf32, #tpu.memory_space<vmem>>, vector<2x128xf32>,
    %c0_16 = arith.constant 0 : index
    %c0_17 = arith.constant 0 : index
    %37 = vector.load %arg3[%c0_16, %c0_17] : memref<128x512xf32, #tpu.memory_space<vmem>>, vector<128x512xf32>
    %cst_18 = arith.constant dense<0.000000e+00> : vector<2x512xf32>
    %38 = tpu.matmul %34, %37, %cst_18 {dimension_numbers = #tpu.dot_dimension_numbers<[1], [0], [0], [1], [0, 0, 1, 1], [], []>} : vector<2x128xf32>, vector<128x512xf32>, vector<2x512xf32> -> vector<2x512xf32>
    %c0_19 = arith.constant 0 : index
    %c0_20 = arith.constant 0 : index
    %39 = vector.load %arg24[%c0_19, %c0_20] : memref<2x128xf32, #tpu.memory_space<vmem>>, vector<2x128xf32>
    %c0_21 = arith.constant 0 : index
    %c0_22 = arith.constant 0 : index
    %40 = vector.load %arg4[%c0_21, %c0_22] : memref<128x512xf32, #tpu.memory_space<vmem>>, vector<128x512xf32>
    %cst_23 = arith.constant dense<0.000000e+00> : vector<2x512xf32>
    %41 = tpu.matmul %39, %40, %cst_23 {dimension_numbers = #tpu.dot_dimension_numbers<[1], [0], [0], [1], [0, 0, 1, 1], [], []>} : vector<2x128xf32>, vector<128x512xf32>, vector<2x512xf32> -> vector<2x512xf32>
    %42 = arith.addf %38, %41 : vector<2x512xf32>
    %c0_24 = arith.constant 0 : index
    %c0_25 = arith.constant 0 : index
    %43 = vector.load %arg5[%c0_24, %c0_25] : memref<1x512xf32, #tpu.memory_space<vmem>>, vector<1x512xf32>
    %44 = vector.broadcast %43 : vector<1x512xf32> to vector<2x512xf32>
    %45 = arith.addf %42, %44 : vector<2x512xf32>
    %c0_26 = arith.constant 0 : index
    %c0_27 = arith.constant 0 : index
    %46 = vector.load %arg25[%c0_26, %c0_27] : memref<2x128xf32, #tpu.memory_space<vmem>>, vector<2x128xf32>
    %47 = vector.extract_strided_slice %45 {offsets = [0, 0], sizes = [2, 128], strides = [1, 1]} : vector<2x512xf32> to vector<2x128xf32>
    %48 = arith.negf %47 : vector<2x128xf32>
    %49 = math.exp %48 : vector<2x128xf32>
    %cst_28 = arith.constant 1.000000e+00 : f32
    %50 = vector.broadcast %cst_28 : f32 to vector<2x128xf32>
    %51 = arith.addf %50, %49 : vector<2x128xf32>
    %52 = arith.divf %50, %51 : vector<2x128xf32>
    %53 = vector.extract_strided_slice %45 {offsets = [0, 128], sizes = [2, 128], strides = [1, 1]} : vector<2x512xf32> to vector<2x128xf32>
    %54 = arith.negf %53 : vector<2x128xf32>
    %55 = math.exp %54 : vector<2x128xf32>
    %cst_29 = arith.constant 1.000000e+00 : f32
    %56 = vector.broadcast %cst_29 : f32 to vector<2x128xf32>
    %57 = arith.addf %56, %55 : vector<2x128xf32>
    %58 = arith.divf %56, %57 : vector<2x128xf32>
    %59 = vector.extract_strided_slice %45 {offsets = [0, 256], sizes = [2, 128], strides = [1, 1]} : vector<2x512xf32> to vector<2x128xf32>
    %60 = math.tanh %59 : vector<2x128xf32>
    %61 = vector.extract_strided_slice %45 {offsets = [0, 384], sizes = [2, 128], strides = [1, 1]} : vector<2x512xf32> to vector<2x128xf32>
    %62 = arith.negf %61 : vector<2x128xf32>
    %63 = math.exp %62 : vector<2x128xf32>
    %cst_30 = arith.constant 1.000000e+00 : f32
    %64 = vector.broadcast %cst_30 : f32 to vector<2x128xf32>
    %65 = arith.addf %64, %63 : vector<2x128xf32>
    %66 = arith.divf %64, %65 : vector<2x128xf32>
    %67 = arith.mulf %58, %46 : vector<2x128xf32>
    %68 = arith.mulf %52, %60 : vector<2x128xf32>
    %69 = arith.addf %67, %68 : vector<2x128xf32>
    %70 = math.tanh %69 : vector<2x128xf32>
    %71 = arith.mulf %66, %70 : vector<2x128xf32>
    %c0_31 = arith.constant 0 : index
    %c0_32 = arith.constant 0 : index
    %72 = vector.load %arg24[%c0_31, %c0_32] : memref<2x128xf32, #tpu.memory_space<vmem>>, vector<2x128xf32>
    tpu.vector_store %arg24[%c0_31, %c0_32], %71 {strides = array<i32>} : memref<2x128xf32, #tpu.memory_space<vmem>>, vector<2x128xf32>,
    %c0_33 = arith.constant 0 : index
    %c0_34 = arith.constant 0 : index
    %73 = vector.load %arg25[%c0_33, %c0_34] : memref<2x128xf32, #tpu.memory_space<vmem>>, vector<2x128xf32>
    tpu.vector_store %arg25[%c0_33, %c0_34], %69 {strides = array<i32>} : memref<2x128xf32, #tpu.memory_space<vmem>>, vector<2x128xf32>,
    %c7_i32 = arith.constant 7 : i32
    %74 = arith.cmpi eq, %arg0, %c7_i32 : i32
    %75 = arith.extui %74 : i1 to i32
    %c0_i32_35 = arith.constant 0 : i32
    %76 = arith.cmpi ne, %75, %c0_i32_35 : i32
    scf.if %76 {
      %c0_36 = arith.constant 0 : index
      %c0_37 = arith.constant 0 : index
      %77 = vector.load %arg7[%c0_36, %c0_37] : memref<128x256xf32, #tpu.memory_space<vmem>>, vector<128x256xf32>
      %cst_38 = arith.constant dense<0.000000e+00> : vector<2x256xf32>
      %78 = tpu.matmul %71, %77, %cst_38 {dimension_numbers = #tpu.dot_dimension_numbers<[1], [0], [0], [1], [0, 0, 1, 1], [], []>} : vector<2x128xf32>, vector<128x256xf32>, vector<2x256xf32> -> vector<2x256xf32>
      %c0_39 = arith.constant 0 : index
      %c0_40 = arith.constant 0 : index
      %79 = vector.load %arg8[%c0_39, %c0_40] : memref<1x256xf32, #tpu.memory_space<vmem>>, vector<1x256xf32>
      %80 = vector.broadcast %79 : vector<1x256xf32> to vector<2x256xf32>
      %81 = arith.addf %78, %80 : vector<2x256xf32>
      %c0_41 = arith.constant 0 : index
      %c0_42 = arith.constant 0 : index
      %82 = vector.load %arg9[%c0_41, %c0_42] : memref<128x10xf32, #tpu.memory_space<vmem>>, vector<128x10xf32>
      %cst_43 = arith.constant dense<0.000000e+00> : vector<2x10xf32>
      %83 = tpu.matmul %71, %82, %cst_43 {dimension_numbers = #tpu.dot_dimension_numbers<[1], [0], [0], [1], [0, 0, 1, 1], [], []>} : vector<2x128xf32>, vector<128x10xf32>, vector<2x10xf32> -> vector<2x10xf32>
      %c0_44 = arith.constant 0 : index
      %c0_45 = arith.constant 0 : index
      %84 = vector.load %arg10[%c0_44, %c0_45] : memref<1x10xf32, #tpu.memory_space<vmem>>, vector<1x10xf32>
      %85 = vector.broadcast %84 : vector<1x10xf32> to vector<2x10xf32>
      %86 = arith.addf %83, %85 : vector<2x10xf32>
      %c0_46 = arith.constant 0 : index
      %c0_47 = arith.constant 0 : index
      %87 = vector.load %arg6[%c0_46, %c0_47] : memref<2x256xf32, #tpu.memory_space<vmem>>, vector<2x256xf32>
      %88 = arith.mulf %87, %81 : vector<2x256xf32>
      %c0_48 = arith.constant 0 : index
      %c0_49 = arith.constant 0 : index
      %89 = vector.load %arg11[%c0_48, %c0_49] : memref<256x128xf32, #tpu.memory_space<vmem>>, vector<256x128xf32>
      %cst_50 = arith.constant dense<0.000000e+00> : vector<2x128xf32>
      %90 = tpu.matmul %88, %89, %cst_50 {dimension_numbers = #tpu.dot_dimension_numbers<[1], [0], [0], [1], [0, 0, 1, 1], [], []>} : vector<2x256xf32>, vector<256x128xf32>, vector<2x128xf32> -> vector<2x128xf32>
      %c0_51 = arith.constant 0 : index
      %c0_52 = arith.constant 0 : index
      %91 = vector.load %arg12[%c0_51, %c0_52] : memref<1x128xf32, #tpu.memory_space<vmem>>, vector<1x128xf32>
      %92 = vector.broadcast %91 : vector<1x128xf32> to vector<2x128xf32>
      %93 = arith.addf %90, %92 : vector<2x128xf32>
      %cst_53 = arith.constant 0.000000e+00 : f32
      %94 = vector.broadcast %cst_53 : f32 to vector<2x128xf32>
      %95 = arith.maximumf %93, %94 : vector<2x128xf32>
      %c0_54 = arith.constant 0 : index
      %c0_55 = arith.constant 0 : index
      %96 = vector.load %arg13[%c0_54, %c0_55] : memref<128x50xf32, #tpu.memory_space<vmem>>, vector<128x50xf32>
      %cst_56 = arith.constant dense<0.000000e+00> : vector<2x50xf32>
      %97 = tpu.matmul %95, %96, %cst_56 {dimension_numbers = #tpu.dot_dimension_numbers<[1], [0], [0], [1], [0, 0, 1, 1], [], []>} : vector<2x128xf32>, vector<128x50xf32>, vector<2x50xf32> -> vector<2x50xf32>
      %c0_57 = arith.constant 0 : index
      %c0_58 = arith.constant 0 : index
      %98 = vector.load %arg14[%c0_57, %c0_58] : memref<1x50xf32, #tpu.memory_space<vmem>>, vector<1x50xf32>
      %99 = vector.broadcast %98 : vector<1x50xf32> to vector<2x50xf32>
      %100 = arith.addf %97, %99 : vector<2x50xf32>
      %cst_59 = arith.constant dense<0xFF800000> : vector<2xf32>
      %101 = vector.multi_reduction <maximumf>, %86, %cst_59 [1] : vector<2x10xf32> to vector<2xf32>
      %102 = vector.shape_cast %101 : vector<2xf32> to vector<2x1xf32>
      %103 = vector.broadcast %102 : vector<2x1xf32> to vector<2x10xf32>
      %104 = arith.subf %86, %103 : vector<2x10xf32>
      %105 = math.exp %104 : vector<2x10xf32>
      %cst_60 = arith.constant dense<0.000000e+00> : vector<2xf32>
      %106 = vector.multi_reduction <add>, %105, %cst_60 [1] : vector<2x10xf32> to vector<2xf32>
      %107 = vector.shape_cast %106 : vector<2xf32> to vector<2x1xf32>
      %108 = vector.broadcast %107 : vector<2x1xf32> to vector<2x10xf32>
      %109 = arith.divf %105, %108 : vector<2x10xf32>
      %c0_61 = arith.constant 0 : index
      %c0_62 = arith.constant 0 : index
      %110 = vector.load %arg15[%c0_61, %c0_62] : memref<10x50xf32, #tpu.memory_space<vmem>>, vector<10x50xf32>
      %cst_63 = arith.constant dense<0.000000e+00> : vector<2x50xf32>
      %111 = tpu.matmul %109, %110, %cst_63 {dimension_numbers = #tpu.dot_dimension_numbers<[1], [0], [0], [1], [0, 0, 1, 1], [], []>} : vector<2x10xf32>, vector<10x50xf32>, vector<2x50xf32> -> vector<2x50xf32>
      %112 = arith.mulf %100, %111 : vector<2x50xf32>
      %c0_64 = arith.constant 0 : index
      %c0_65 = arith.constant 0 : index
      %113 = vector.load %arg16[%c0_64, %c0_65] : memref<50x128xf32, #tpu.memory_space<vmem>>, vector<50x128xf32>
      %cst_66 = arith.constant dense<0.000000e+00> : vector<2x128xf32>
      %114 = tpu.matmul %112, %113, %cst_66 {dimension_numbers = #tpu.dot_dimension_numbers<[1], [0], [0], [1], [0, 0, 1, 1], [], []>} : vector<2x50xf32>, vector<50x128xf32>, vector<2x128xf32> -> vector<2x128xf32>
      %c0_67 = arith.constant 0 : index
      %c0_68 = arith.constant 0 : index
      %115 = vector.load %arg17[%c0_67, %c0_68] : memref<1x128xf32, #tpu.memory_space<vmem>>, vector<1x128xf32>
      %116 = vector.broadcast %115 : vector<1x128xf32> to vector<2x128xf32>
      %117 = arith.addf %114, %116 : vector<2x128xf32>
      %cst_69 = arith.constant 0.000000e+00 : f32
      %118 = vector.broadcast %cst_69 : f32 to vector<2x128xf32>
      %119 = arith.maximumf %117, %118 : vector<2x128xf32>
      %c0_70 = arith.constant 0 : index
      %c0_71 = arith.constant 0 : index
      %120 = vector.load %arg18[%c0_70, %c0_71] : memref<128x50xf32, #tpu.memory_space<vmem>>, vector<128x50xf32>
      %cst_72 = arith.constant dense<0.000000e+00> : vector<2x50xf32>
      %121 = tpu.matmul %119, %120, %cst_72 {dimension_numbers = #tpu.dot_dimension_numbers<[1], [0], [0], [1], [0, 0, 1, 1], [], []>} : vector<2x128xf32>, vector<128x50xf32>, vector<2x50xf32> -> vector<2x50xf32>
      %c0_73 = arith.constant 0 : index
      %c0_74 = arith.constant 0 : index
      %122 = vector.load %arg19[%c0_73, %c0_74] : memref<1x50xf32, #tpu.memory_space<vmem>>, vector<1x50xf32>
      %123 = vector.broadcast %122 : vector<1x50xf32> to vector<2x50xf32>
      %124 = arith.addf %121, %123 : vector<2x50xf32>
      %c0_75 = arith.constant 0 : index
      %c0_76 = arith.constant 0 : index
      %125 = vector.load %arg20[%c0_75, %c0_76] : memref<2x50xf32, #tpu.memory_space<vmem>>, vector<2x50xf32>
      tpu.vector_store %arg20[%c0_75, %c0_76], %124 {strides = array<i32>} : memref<2x50xf32, #tpu.memory_space<vmem>>, vector<2x50xf32>,
      %c0_77 = arith.constant 0 : index
      %c0_78 = arith.constant 0 : index
      %126 = vector.load %arg21[%c0_77, %c0_78] : memref<2x10xf32, #tpu.memory_space<vmem>>, vector<2x10xf32>
      tpu.vector_store %arg21[%c0_77, %c0_78], %86 {strides = array<i32>} : memref<2x10xf32, #tpu.memory_space<vmem>>, vector<2x10xf32>,
    } else {
    }
    return
  }
  func.func @transform_0(%arg0: i32) -> (i32, i32, i32) {
    %c0_i32 = arith.constant 0 : i32
    %c0_i32_0 = arith.constant 0 : i32
    %c0_i32_1 = arith.constant 0 : i32
    return %arg0, %c0_i32, %c0_i32_0 : i32, i32, i32
  }
  func.func @transform_1(%arg0: i32) -> (i32, i32) {
    %c0_i32 = arith.constant 0 : i32
    %c0_i32_0 = arith.constant 0 : i32
    %c0_i32_1 = arith.constant 0 : i32
    return %c0_i32, %c0_i32_0 : i32, i32
  }
  func.func @transform_2(%arg0: i32) -> (i32, i32) {
    %c0_i32 = arith.constant 0 : i32
    %c0_i32_0 = arith.constant 0 : i32
    %c0_i32_1 = arith.constant 0 : i32
    return %c0_i32, %c0_i32_0 : i32, i32
  }
  func.func @transform_3(%arg0: i32) -> (i32, i32) {
    %c0_i32 = arith.constant 0 : i32
    %c0_i32_0 = arith.constant 0 : i32
    %c0_i32_1 = arith.constant 0 : i32
    return %c0_i32, %c0_i32_0 : i32, i32
  }
  func.func @transform_4(%arg0: i32) -> (i32, i32) {
    %c0_i32 = arith.constant 0 : i32
    %c0_i32_0 = arith.constant 0 : i32
    %c0_i32_1 = arith.constant 0 : i32
    return %c0_i32, %c0_i32_0 : i32, i32
  }
  func.func @transform_5(%arg0: i32) -> (i32, i32) {
    %c0_i32 = arith.constant 0 : i32
    %c0_i32_0 = arith.constant 0 : i32
    %c0_i32_1 = arith.constant 0 : i32
    return %c0_i32, %c0_i32_0 : i32, i32
  }
  func.func @transform_6(%arg0: i32) -> (i32, i32) {
    %c0_i32 = arith.constant 0 : i32
    %c0_i32_0 = arith.constant 0 : i32
    %c0_i32_1 = arith.constant 0 : i32
    return %c0_i32, %c0_i32_0 : i32, i32
  }
  func.func @transform_7(%arg0: i32) -> (i32, i32) {
    %c0_i32 = arith.constant 0 : i32
    %c0_i32_0 = arith.constant 0 : i32
    %c0_i32_1 = arith.constant 0 : i32
    return %c0_i32, %c0_i32_0 : i32, i32
  }
  func.func @transform_8(%arg0: i32) -> (i32, i32) {
    %c0_i32 = arith.constant 0 : i32
    %c0_i32_0 = arith.constant 0 : i32
    %c0_i32_1 = arith.constant 0 : i32
    return %c0_i32, %c0_i32_0 : i32, i32
  }
  func.func @transform_9(%arg0: i32) -> (i32, i32) {
    %c0_i32 = arith.constant 0 : i32
    %c0_i32_0 = arith.constant 0 : i32
    %c0_i32_1 = arith.constant 0 : i32
    return %c0_i32, %c0_i32_0 : i32, i32
  }
  func.func @transform_10(%arg0: i32) -> (i32, i32) {
    %c0_i32 = arith.constant 0 : i32
    %c0_i32_0 = arith.constant 0 : i32
    %c0_i32_1 = arith.constant 0 : i32
    return %c0_i32, %c0_i32_0 : i32, i32
  }
  func.func @transform_11(%arg0: i32) -> (i32, i32) {
    %c0_i32 = arith.constant 0 : i32
    %c0_i32_0 = arith.constant 0 : i32
    %c0_i32_1 = arith.constant 0 : i32
    return %c0_i32, %c0_i32_0 : i32, i32
  }
  func.func @transform_12(%arg0: i32) -> (i32, i32) {
    %c0_i32 = arith.constant 0 : i32
    %c0_i32_0 = arith.constant 0 : i32
    %c0_i32_1 = arith.constant 0 : i32
    return %c0_i32, %c0_i32_0 : i32, i32
  }
  func.func @transform_13(%arg0: i32) -> (i32, i32) {
    %c0_i32 = arith.constant 0 : i32
    %c0_i32_0 = arith.constant 0 : i32
    %c0_i32_1 = arith.constant 0 : i32
    return %c0_i32, %c0_i32_0 : i32, i32
  }
  func.func @transform_14(%arg0: i32) -> (i32, i32) {
    %c0_i32 = arith.constant 0 : i32
    %c0_i32_0 = arith.constant 0 : i32
    %c0_i32_1 = arith.constant 0 : i32
    return %c0_i32, %c0_i32_0 : i32, i32
  }
  func.func @transform_15(%arg0: i32) -> (i32, i32) {
    %c0_i32 = arith.constant 0 : i32
    %c0_i32_0 = arith.constant 0 : i32
    %c0_i32_1 = arith.constant 0 : i32
    return %c0_i32, %c0_i32_0 : i32, i32
  }
  func.func @transform_16(%arg0: i32) -> (i32, i32) {
    %c0_i32 = arith.constant 0 : i32
    %c0_i32_0 = arith.constant 0 : i32
    %c0_i32_1 = arith.constant 0 : i32
    return %c0_i32, %c0_i32_0 : i32, i32
  }
  func.func @transform_17(%arg0: i32) -> (i32, i32) {
    %c0_i32 = arith.constant 0 : i32
    %c0_i32_0 = arith.constant 0 : i32
    %c0_i32_1 = arith.constant 0 : i32
    return %c0_i32, %c0_i32_0 : i32, i32
  }
  func.func @transform_18(%arg0: i32) -> (i32, i32) {
    %c0_i32 = arith.constant 0 : i32
    %c0_i32_0 = arith.constant 0 : i32
    %c0_i32_1 = arith.constant 0 : i32
    return %c0_i32, %c0_i32_0 : i32, i32
  }
  func.func @transform_19(%arg0: i32) -> (i32, i32) {
    %c0_i32 = arith.constant 0 : i32
    %c0_i32_0 = arith.constant 0 : i32
    %c0_i32_1 = arith.constant 0 : i32
    return %c0_i32, %c0_i32_0 : i32, i32
  }
  func.func @transform_20(%arg0: i32) -> (i32, i32) {
    %c0_i32 = arith.constant 0 : i32
    %c0_i32_0 = arith.constant 0 : i32
    %c0_i32_1 = arith.constant 0 : i32
    return %c0_i32, %c0_i32_0 : i32, i32
  }
}

</mosaic_0001>

<llo_original>
// kernel: forward.5
$region0: #{forward.5}
  #allocation0 [shape = 'u32[]', space=smem, size = 0x4, offset = 0x4, fixed_abs, tag = 'smem constant byte address 0x4 - core index']
  #allocation1 [shape = 'u32[144,128]{1,0:T(1,128)}', space=vmem, size = 0x12000, scoped, tag = 'internal scratch']
  %s0 = inlined_call_operand.vmem [shape: f32[4,512,27], index: 0, kind: input, shape index: {}]
  %s1 = inlined_call_operand.vmem [shape: f32[27,16], index: 1, kind: input, shape index: {}]
  %s2 = inlined_call_operand.vmem [shape: f32[1,16], index: 2, kind: input, shape index: {}]
  %s3 = inlined_call_operand.vmem [shape: f32[512,16], index: 3, kind: output, shape index: {}]
  %s4 = sld [smem:[#allocation0]]
  $region22: #{forward.5} parent=0
    _
  %s6 = ssub.s32 1, %s4
  %s7 = scalar_select 0, %s6, %s4
  // Predicated region
  $region2: #{forward.5} parent=0 // pred_check
    _
  $region3: #{forward.5} parent=0 // pred_check_branch
    %9 = sbr.rel (0) target = $region5
  $region4: #{forward.5} parent=0 // pred_region
    _
  $region5: #{forward.5} parent=0 // pred_fallthru
    _
  // Predicated region
  $region6: #{forward.5} parent=0 // pred_check
    _
  $region7: #{forward.5} parent=0 // pred_check_branch
    %11 = sbr.rel (0) target = $region9
  $region8: #{forward.5} parent=0 // pred_region
    _
  $region9: #{forward.5} parent=0 // pred_fallthru
    _
  // Predicated region
  $region10: #{forward.5} parent=0 // pred_check
    _
  $region11: #{forward.5} parent=0 // pred_check_branch
    %13 = sbr.rel (0) target = $region13
  $region12: #{forward.5} parent=0 // pred_region
    _
  $region13: #{forward.5} parent=0 // pred_fallthru
    _
  %v14 = vld [vmem:[%s1] sm:$0xff]
  %v15 = vld [vmem:[%s1 + $0x8] sm:$0xff]
  %v16 = vld [vmem:[%s1 + $0x10] sm:$0xff]
  %v17 = vld [vmem:[%s1 + $0x18] sm:$0x7]
  %v18 = vld [vmem:[%s2] sm:$0x1]
  %v19 = vld [vmem:[%s0] sm:$0xff]
  %v20 = vld [vmem:[%s0 + $0x8] sm:$0xff]
  %v21 = vld [vmem:[%s0 + $0x10] sm:$0xff]
  %v22 = vld [vmem:[%s0 + $0x18] sm:$0xff]
  %v23 = vld [vmem:[%s0 + $0x20] sm:$0xff]
  %v24 = vld [vmem:[%s0 + $0x28] sm:$0xff]
  %v25 = vld [vmem:[%s0 + $0x30] sm:$0xff]
  %v26 = vld [vmem:[%s0 + $0x38] sm:$0xff]
  %v27 = vld [vmem:[%s0 + $0x40] sm:$0xff]
  %v28 = vld [vmem:[%s0 + $0x48] sm:$0xff]
  %v29 = vld [vmem:[%s0 + $0x50] sm:$0xff]
  %v30 = vld [vmem:[%s0 + $0x58] sm:$0xff]
  %v31 = vld [vmem:[%s0 + $0x60] sm:$0xff]
  %v32 = vld [vmem:[%s0 + $0x68] sm:$0xff]
  %v33 = vld [vmem:[%s0 + $0x70] sm:$0xff]
  %v34 = vld [vmem:[%s0 + $0x78] sm:$0xff]
  %v35 = vld [vmem:[%s0 + $0x80] sm:$0xff]
  %v36 = vld [vmem:[%s0 + $0x88] sm:$0xff]
  %v37 = vld [vmem:[%s0 + $0x90] sm:$0xff]
  %v38 = vld [vmem:[%s0 + $0x98] sm:$0xff]
  %v39 = vld [vmem:[%s0 + $0xa0] sm:$0xff]
  %v40 = vld [vmem:[%s0 + $0xa8] sm:$0xff]
  %v41 = vld [vmem:[%s0 + $0xb0] sm:$0xff]
  %v42 = vld [vmem:[%s0 + $0xb8] sm:$0xff]
  %v43 = vld [vmem:[%s0 + $0xc0] sm:$0xff]
  %v44 = vld [vmem:[%s0 + $0xc8] sm:$0xff]
  %v45 = vld [vmem:[%s0 + $0xd0] sm:$0xff]
  %v46 = vld [vmem:[%s0 + $0xd8] sm:$0xff]
  %v47 = vld [vmem:[%s0 + $0xe0] sm:$0xff]
  %v48 = vld [vmem:[%s0 + $0xe8] sm:$0xff]
  %v49 = vld [vmem:[%s0 + $0xf0] sm:$0xff]
  %v50 = vld [vmem:[%s0 + $0xf8] sm:$0xff]
  %v51 = vld [vmem:[%s0 + $0x100] sm:$0xff]
  %v52 = vld [vmem:[%s0 + $0x108] sm:$0xff]
  %v53 = vld [vmem:[%s0 + $0x110] sm:$0xff]
  %v54 = vld [vmem:[%s0 + $0x118] sm:$0xff]
  %v55 = vld [vmem:[%s0 + $0x120] sm:$0xff]
  %v56 = vld [vmem:[%s0 + $0x128] sm:$0xff]
  %v57 = vld [vmem:[%s0 + $0x130] sm:$0xff]
  %v58 = vld [vmem:[%s0 + $0x138] sm:$0xff]
  %v59 = vld [vmem:[%s0 + $0x140] sm:$0xff]
  %v60 = vld [vmem:[%s0 + $0x148] sm:$0xff]
  %v61 = vld [vmem:[%s0 + $0x150] sm:$0xff]
  %v62 = vld [vmem:[%s0 + $0x158] sm:$0xff]
  %v63 = vld [vmem:[%s0 + $0x160] sm:$0xff]
  %v64 = vld [vmem:[%s0 + $0x168] sm:$0xff]
  %v65 = vld [vmem:[%s0 + $0x170] sm:$0xff]
  %v66 = vld [vmem:[%s0 + $0x178] sm:$0xff]
  %v67 = vld [vmem:[%s0 + $0x180] sm:$0xff]
  %v68 = vld [vmem:[%s0 + $0x188] sm:$0xff]
  %v69 = vld [vmem:[%s0 + $0x190] sm:$0xff]
  %v70 = vld [vmem:[%s0 + $0x198] sm:$0xff]
  %v71 = vld [vmem:[%s0 + $0x1a0] sm:$0xff]
  %v72 = vld [vmem:[%s0 + $0x1a8] sm:$0xff]
  %v73 = vld [vmem:[%s0 + $0x1b0] sm:$0xff]
  %v74 = vld [vmem:[%s0 + $0x1b8] sm:$0xff]
  %v75 = vld [vmem:[%s0 + $0x1c0] sm:$0xff]
  %v76 = vld [vmem:[%s0 + $0x1c8] sm:$0xff]
  %v77 = vld [vmem:[%s0 + $0x1d0] sm:$0xff]
  %v78 = vld [vmem:[%s0 + $0x1d8] sm:$0xff]
  %v79 = vld [vmem:[%s0 + $0x1e0] sm:$0xff]
  %v80 = vld [vmem:[%s0 + $0x1e8] sm:$0xff]
  %v81 = vld [vmem:[%s0 + $0x1f0] sm:$0xff]
  %v82 = vld [vmem:[%s0 + $0x1f8] sm:$0xff]
  %v84 = vlaneseq
  %v85 = vshrl.u32 %v84, 7
  %v86 = vsub.s32 0, %v85
  %v87 = vrot.slane %v18, %v86
  %vm89 = vcmask 220160
  %v91 = vsel %vm89, %v19, 0
  %v94 = vsel %vm89, %v20, 0
  %v97 = vsel %vm89, %v21, 0
  %v100 = vsel %vm89, %v22, 0
  %v103 = vsel %vm89, %v23, 0
  %v106 = vsel %vm89, %v24, 0
  %v109 = vsel %vm89, %v25, 0
  %v112 = vsel %vm89, %v26, 0
  %v115 = vsel %vm89, %v27, 0
  %v118 = vsel %vm89, %v28, 0
  %v121 = vsel %vm89, %v29, 0
  %v124 = vsel %vm89, %v30, 0
  %v127 = vsel %vm89, %v31, 0
  %v130 = vsel %vm89, %v32, 0
  %v133 = vsel %vm89, %v33, 0
  %v136 = vsel %vm89, %v34, 0
  %v139 = vsel %vm89, %v35, 0
  %v142 = vsel %vm89, %v36, 0
  %v145 = vsel %vm89, %v37, 0
  %v148 = vsel %vm89, %v38, 0
  %v151 = vsel %vm89, %v39, 0
  %v154 = vsel %vm89, %v40, 0
  %v157 = vsel %vm89, %v41, 0
  %v160 = vsel %vm89, %v42, 0
  %v163 = vsel %vm89, %v43, 0
  %v166 = vsel %vm89, %v44, 0
  %v169 = vsel %vm89, %v45, 0
  %v172 = vsel %vm89, %v46, 0
  %v175 = vsel %vm89, %v47, 0
  %v178 = vsel %vm89, %v48, 0
  %v181 = vsel %vm89, %v49, 0
  %v184 = vsel %vm89, %v50, 0
  %v187 = vsel %vm89, %v51, 0
  %v190 = vsel %vm89, %v52, 0
  %v193 = vsel %vm89, %v53, 0
  %v196 = vsel %vm89, %v54, 0
  %v199 = vsel %vm89, %v55, 0
  %v202 = vsel %vm89, %v56, 0
  %v205 = vsel %vm89, %v57, 0
  %v208 = vsel %vm89, %v58, 0
  %v211 = vsel %vm89, %v59, 0
  %v214 = vsel %vm89, %v60, 0
  %v217 = vsel %vm89, %v61, 0
  %v220 = vsel %vm89, %v62, 0
  %v223 = vsel %vm89, %v63, 0
  %v226 = vsel %vm89, %v64, 0
  %v229 = vsel %vm89, %v65, 0
  %v232 = vsel %vm89, %v66, 0
  %v235 = vsel %vm89, %v67, 0
  %v238 = vsel %vm89, %v68, 0
  %v241 = vsel %vm89, %v69, 0
  %v244 = vsel %vm89, %v70, 0
  %v247 = vsel %vm89, %v71, 0
  %v250 = vsel %vm89, %v72, 0
  %v253 = vsel %vm89, %v73, 0
  %v256 = vsel %vm89, %v74, 0
  %v259 = vsel %vm89, %v75, 0
  %v262 = vsel %vm89, %v76, 0
  %v265 = vsel %vm89, %v77, 0
  %v268 = vsel %vm89, %v78, 0
  %v271 = vsel %vm89, %v79, 0
  %v274 = vsel %vm89, %v80, 0
  %v277 = vsel %vm89, %v81, 0
  %v280 = vsel %vm89, %v82, 0
  %vm282 = vcmask 1042432
  %v284 = vsel %vm282, %v17, 0
  %286 = vmatprep.subr.mxu0 0.0
  %287 = vmatpush1.msra.mxu0 0.0
  %288 = vmatprep.subr.mxu0 0.0
  %289 = vmatpush1.msra.mxu0 0.0
  %290 = vmatprep.subr.mxu0 0.0
  %291 = vmatpush1.msra.mxu0 0.0
  %292 = vmatprep.subr.mxu0 0.0
  %293 = vmatpush1.msra.mxu0 0.0
  %294 = vmatprep.subr.mxu0 0.0
  %295 = vmatpush1.msra.mxu0 0.0
  %296 = vmatprep.subr.mxu0 0.0
  %297 = vmatpush1.msra.mxu0 0.0
  %298 = vmatprep.subr.mxu0 0.0
  %299 = vmatpush1.msra.mxu0 0.0
  %300 = vmatprep.subr.mxu0 0.0
  %301 = vmatpush1.msra.mxu0 0.0
  %302 = vmatprep.subr.mxu0 0.0
  %303 = vmatpush1.msra.mxu0 0.0
  %304 = vmatprep.subr.mxu0 0.0
  %305 = vmatpush1.msra.mxu0 0.0
  %306 = vmatprep.subr.mxu0 0.0
  %307 = vmatpush1.msra.mxu0 0.0
  %308 = vmatprep.subr.mxu0 0.0
  %309 = vmatpush1.msra.mxu0 0.0
  %310 = vmatprep.subr.mxu0 0.0
  %311 = vmatpush1.msra.mxu0 %v284
  %312 = vmatprep.subr.mxu0 0.0
  %313 = vmatpush1.msra.mxu0 %v16
  %314 = vmatprep.subr.mxu0 0.0
  %315 = vmatpush1.msra.mxu0 %v15
  %316 = vmatprep.subr.mxu0 0.0
  %317 = vmatpush1.msra.mxu0 %v14
  %318 = vmatprep.subr.mxu0 0.0
  %319 = vmatpush2.msra.mxu0 0.0
  %320 = vmatprep.subr.mxu0 0.0
  %321 = vmatpush2.msra.mxu0 0.0
  %322 = vmatprep.subr.mxu0 0.0
  %323 = vmatpush2.msra.mxu0 0.0
  %324 = vmatprep.subr.mxu0 0.0
  %325 = vmatpush2.msra.mxu0 0.0
  %326 = vmatprep.subr.mxu0 0.0
  %327 = vmatpush2.msra.mxu0 0.0
  %328 = vmatprep.subr.mxu0 0.0
  %329 = vmatpush2.msra.mxu0 0.0
  %330 = vmatprep.subr.mxu0 0.0
  %331 = vmatpush2.msra.mxu0 0.0
  %332 = vmatprep.subr.mxu0 0.0
  %333 = vmatpush2.msra.mxu0 0.0
  %334 = vmatprep.subr.mxu0 0.0
  %335 = vmatpush2.msra.mxu0 0.0
  %336 = vmatprep.subr.mxu0 0.0
  %337 = vmatpush2.msra.mxu0 0.0
  %338 = vmatprep.subr.mxu0 0.0
  %339 = vmatpush2.msra.mxu0 0.0
  %340 = vmatprep.subr.mxu0 0.0
  %341 = vmatpush2.msra.mxu0 0.0
  %342 = vmatprep.subr.mxu0 0.0
  %343 = vmatpush2.msra.mxu0 0.0
  %344 = vmatprep.subr.mxu0 0.0
  %345 = vmatpush2.msra.mxu0 0.0
  %346 = vmatprep.subr.mxu0 0.0
  %347 = vmatpush2.msra.mxu0 0.0
  %348 = vmatprep.subr.mxu0 0.0
  %349 = vmatpush2.msra.mxu0 0.0
  %350 = vmatprep.mubr.f32.mxu0 0.0
  %351 = vmatmul.mubr.f32.gmra.mxu0 %v91
  %v352 = vpop.f32.mrf.mxu0
  %v353 = vadd.f32 %v87, %v352
  %v354 = vpop.f32.mrf.mxu0
  %355 = vmatprep.mubr.f32.mxu0 0.0
  %356 = vmatmul.mubr.f32.gmra.mxu0 %v94
  %v357 = vpop.f32.mrf.mxu0
  %v358 = vadd.f32 %v87, %v357
  %v359 = vpop.f32.mrf.mxu0
  %360 = vmatprep.mubr.f32.mxu0 0.0
  %361 = vmatmul.mubr.f32.gmra.mxu0 %v97
  %v362 = vpop.f32.mrf.mxu0
  %v363 = vadd.f32 %v87, %v362
  %v364 = vpop.f32.mrf.mxu0
  %365 = vmatprep.mubr.f32.mxu0 0.0
  %366 = vmatmul.mubr.f32.gmra.mxu0 %v100
  %v367 = vpop.f32.mrf.mxu0
  %v368 = vadd.f32 %v87, %v367
  %v369 = vpop.f32.mrf.mxu0
  %370 = vmatprep.mubr.f32.mxu0 0.0
  %371 = vmatmul.mubr.f32.gmra.mxu0 %v103
  %v372 = vpop.f32.mrf.mxu0
  %v373 = vadd.f32 %v87, %v372
  %v374 = vpop.f32.mrf.mxu0
  %375 = vmatprep.mubr.f32.mxu0 0.0
  %376 = vmatmul.mubr.f32.gmra.mxu0 %v106
  %v377 = vpop.f32.mrf.mxu0
  %v378 = vadd.f32 %v87, %v377
  %v379 = vpop.f32.mrf.mxu0
  %380 = vmatprep.mubr.f32.mxu0 0.0
  %381 = vmatmul.mubr.f32.gmra.mxu0 %v109
  %v382 = vpop.f32.mrf.mxu0
  %v383 = vadd.f32 %v87, %v382
  %v384 = vpop.f32.mrf.mxu0
  %385 = vmatprep.mubr.f32.mxu0 0.0
  %386 = vmatmul.mubr.f32.gmra.mxu0 %v112
  %v387 = vpop.f32.mrf.mxu0
  %v388 = vadd.f32 %v87, %v387
  %v389 = vpop.f32.mrf.mxu0
  %390 = vmatprep.mubr.f32.mxu0 0.0
  %391 = vmatmul.mubr.f32.gmra.mxu0 %v115
  %v392 = vpop.f32.mrf.mxu0
  %v393 = vadd.f32 %v87, %v392
  %v394 = vpop.f32.mrf.mxu0
  %395 = vmatprep.mubr.f32.mxu0 0.0
  %396 = vmatmul.mubr.f32.gmra.mxu0 %v118
  %v397 = vpop.f32.mrf.mxu0
  %v398 = vadd.f32 %v87, %v397
  %v399 = vpop.f32.mrf.mxu0
  %400 = vmatprep.mubr.f32.mxu0 0.0
  %401 = vmatmul.mubr.f32.gmra.mxu0 %v121
  %v402 = vpop.f32.mrf.mxu0
  %v403 = vadd.f32 %v87, %v402
  %v404 = vpop.f32.mrf.mxu0
  %405 = vmatprep.mubr.f32.mxu0 0.0
  %406 = vmatmul.mubr.f32.gmra.mxu0 %v124
  %v407 = vpop.f32.mrf.mxu0
  %v408 = vadd.f32 %v87, %v407
  %v409 = vpop.f32.mrf.mxu0
  %410 = vmatprep.mubr.f32.mxu0 0.0
  %411 = vmatmul.mubr.f32.gmra.mxu0 %v127
  %v412 = vpop.f32.mrf.mxu0
  %v413 = vadd.f32 %v87, %v412
  %v414 = vpop.f32.mrf.mxu0
  %415 = vmatprep.mubr.f32.mxu0 0.0
  %416 = vmatmul.mubr.f32.gmra.mxu0 %v130
  %v417 = vpop.f32.mrf.mxu0
  %v418 = vadd.f32 %v87, %v417
  %v419 = vpop.f32.mrf.mxu0
  %420 = vmatprep.mubr.f32.mxu0 0.0
  %421 = vmatmul.mubr.f32.gmra.mxu0 %v133
  %v422 = vpop.f32.mrf.mxu0
  %v423 = vadd.f32 %v87, %v422
  %v424 = vpop.f32.mrf.mxu0
  %425 = vmatprep.mubr.f32.mxu0 0.0
  %426 = vmatmul.mubr.f32.gmra.mxu0 %v136
  %v427 = vpop.f32.mrf.mxu0
  %v428 = vadd.f32 %v87, %v427
  %v429 = vpop.f32.mrf.mxu0
  %430 = vmatprep.mubr.f32.mxu0 0.0
  %431 = vmatmul.mubr.f32.gmra.mxu0 %v139
  %v432 = vpop.f32.mrf.mxu0
  %v433 = vadd.f32 %v87, %v432
  %v434 = vpop.f32.mrf.mxu0
  %435 = vmatprep.mubr.f32.mxu0 0.0
  %436 = vmatmul.mubr.f32.gmra.mxu0 %v142
  %v437 = vpop.f32.mrf.mxu0
  %v438 = vadd.f32 %v87, %v437
  %v439 = vpop.f32.mrf.mxu0
  %440 = vmatprep.mubr.f32.mxu0 0.0
  %441 = vmatmul.mubr.f32.gmra.mxu0 %v145
  %v442 = vpop.f32.mrf.mxu0
  %v443 = vadd.f32 %v87, %v442
  %v444 = vpop.f32.mrf.mxu0
  %445 = vmatprep.mubr.f32.mxu0 0.0
  %446 = vmatmul.mubr.f32.gmra.mxu0 %v148
  %v447 = vpop.f32.mrf.mxu0
  %v448 = vadd.f32 %v87, %v447
  %v449 = vpop.f32.mrf.mxu0
  %450 = vmatprep.mubr.f32.mxu0 0.0
  %451 = vmatmul.mubr.f32.gmra.mxu0 %v151
  %v452 = vpop.f32.mrf.mxu0
  %v453 = vadd.f32 %v87, %v452
  %v454 = vpop.f32.mrf.mxu0
  %455 = vmatprep.mubr.f32.mxu0 0.0
  %456 = vmatmul.mubr.f32.gmra.mxu0 %v154
  %v457 = vpop.f32.mrf.mxu0
  %v458 = vadd.f32 %v87, %v457
  %v459 = vpop.f32.mrf.mxu0
  %460 = vmatprep.mubr.f32.mxu0 0.0
  %461 = vmatmul.mubr.f32.gmra.mxu0 %v157
  %v462 = vpop.f32.mrf.mxu0
  %v463 = vadd.f32 %v87, %v462
  %v464 = vpop.f32.mrf.mxu0
  %465 = vmatprep.mubr.f32.mxu0 0.0
  %466 = vmatmul.mubr.f32.gmra.mxu0 %v160
  %v467 = vpop.f32.mrf.mxu0
  %v468 = vadd.f32 %v87, %v467
  %v469 = vpop.f32.mrf.mxu0
  %470 = vmatprep.mubr.f32.mxu0 0.0
  %471 = vmatmul.mubr.f32.gmra.mxu0 %v163
  %v472 = vpop.f32.mrf.mxu0
  %v473 = vadd.f32 %v87, %v472
  %v474 = vpop.f32.mrf.mxu0
  %475 = vmatprep.mubr.f32.mxu0 0.0
  %476 = vmatmul.mubr.f32.gmra.mxu0 %v166
  %v477 = vpop.f32.mrf.mxu0
  %v478 = vadd.f32 %v87, %v477
  %v479 = vpop.f32.mrf.mxu0
  %480 = vmatprep.mubr.f32.mxu0 0.0
  %481 = vmatmul.mubr.f32.gmra.mxu0 %v169
  %v482 = vpop.f32.mrf.mxu0
  %v483 = vadd.f32 %v87, %v482
  %v484 = vpop.f32.mrf.mxu0
  %485 = vmatprep.mubr.f32.mxu0 0.0
  %486 = vmatmul.mubr.f32.gmra.mxu0 %v172
  %v487 = vpop.f32.mrf.mxu0
  %v488 = vadd.f32 %v87, %v487
  %v489 = vpop.f32.mrf.mxu0
  %490 = vmatprep.mubr.f32.mxu0 0.0
  %491 = vmatmul.mubr.f32.gmra.mxu0 %v175
  %v492 = vpop.f32.mrf.mxu0
  %v493 = vadd.f32 %v87, %v492
  %v494 = vpop.f32.mrf.mxu0
  %495 = vmatprep.mubr.f32.mxu0 0.0
  %496 = vmatmul.mubr.f32.gmra.mxu0 %v178
  %v497 = vpop.f32.mrf.mxu0
  %v498 = vadd.f32 %v87, %v497
  %v499 = vpop.f32.mrf.mxu0
  %500 = vmatprep.mubr.f32.mxu0 0.0
  %501 = vmatmul.mubr.f32.gmra.mxu0 %v181
  %v502 = vpop.f32.mrf.mxu0
  %v503 = vadd.f32 %v87, %v502
  %v504 = vpop.f32.mrf.mxu0
  %505 = vmatprep.mubr.f32.mxu0 0.0
  %506 = vmatmul.mubr.f32.gmra.mxu0 %v184
  %v507 = vpop.f32.mrf.mxu0
  %v508 = vadd.f32 %v87, %v507
  %v509 = vpop.f32.mrf.mxu0
  %510 = vmatprep.mubr.f32.mxu0 0.0
  %511 = vmatmul.mubr.f32.gmra.mxu0 %v187
  %v512 = vpop.f32.mrf.mxu0
  %v513 = vadd.f32 %v87, %v512
  %v514 = vpop.f32.mrf.mxu0
  %515 = vmatprep.mubr.f32.mxu0 0.0
  %516 = vmatmul.mubr.f32.gmra.mxu0 %v190
  %v517 = vpop.f32.mrf.mxu0
  %v518 = vadd.f32 %v87, %v517
  %v519 = vpop.f32.mrf.mxu0
  %520 = vmatprep.mubr.f32.mxu0 0.0
  %521 = vmatmul.mubr.f32.gmra.mxu0 %v193
  %v522 = vpop.f32.mrf.mxu0
  %v523 = vadd.f32 %v87, %v522
  %v524 = vpop.f32.mrf.mxu0
  %525 = vmatprep.mubr.f32.mxu0 0.0
  %526 = vmatmul.mubr.f32.gmra.mxu0 %v196
  %v527 = vpop.f32.mrf.mxu0
  %v528 = vadd.f32 %v87, %v527
  %v529 = vpop.f32.mrf.mxu0
  %530 = vmatprep.mubr.f32.mxu0 0.0
  %531 = vmatmul.mubr.f32.gmra.mxu0 %v199
  %v532 = vpop.f32.mrf.mxu0
  %v533 = vadd.f32 %v87, %v532
  %v534 = vpop.f32.mrf.mxu0
  %535 = vmatprep.mubr.f32.mxu0 0.0
  %536 = vmatmul.mubr.f32.gmra.mxu0 %v202
  %v537 = vpop.f32.mrf.mxu0
  %v538 = vadd.f32 %v87, %v537
  %v539 = vpop.f32.mrf.mxu0
  %540 = vmatprep.mubr.f32.mxu0 0.0
  %541 = vmatmul.mubr.f32.gmra.mxu0 %v205
  %v542 = vpop.f32.mrf.mxu0
  %v543 = vadd.f32 %v87, %v542
  %v544 = vpop.f32.mrf.mxu0
  %545 = vmatprep.mubr.f32.mxu0 0.0
  %546 = vmatmul.mubr.f32.gmra.mxu0 %v208
  %v547 = vpop.f32.mrf.mxu0
  %v548 = vadd.f32 %v87, %v547
  %v549 = vpop.f32.mrf.mxu0
  %550 = vmatprep.mubr.f32.mxu0 0.0
  %551 = vmatmul.mubr.f32.gmra.mxu0 %v211
  %v552 = vpop.f32.mrf.mxu0
  %v553 = vadd.f32 %v87, %v552
  %v554 = vpop.f32.mrf.mxu0
  %555 = vmatprep.mubr.f32.mxu0 0.0
  %556 = vmatmul.mubr.f32.gmra.mxu0 %v214
  %v557 = vpop.f32.mrf.mxu0
  %v558 = vadd.f32 %v87, %v557
  %v559 = vpop.f32.mrf.mxu0
  %560 = vmatprep.mubr.f32.mxu0 0.0
  %561 = vmatmul.mubr.f32.gmra.mxu0 %v217
  %v562 = vpop.f32.mrf.mxu0
  %v563 = vadd.f32 %v87, %v562
  %v564 = vpop.f32.mrf.mxu0
  %565 = vmatprep.mubr.f32.mxu0 0.0
  %566 = vmatmul.mubr.f32.gmra.mxu0 %v220
  %v567 = vpop.f32.mrf.mxu0
  %v568 = vadd.f32 %v87, %v567
  %v569 = vpop.f32.mrf.mxu0
  %570 = vmatprep.mubr.f32.mxu0 0.0
  %571 = vmatmul.mubr.f32.gmra.mxu0 %v223
  %v572 = vpop.f32.mrf.mxu0
  %v573 = vadd.f32 %v87, %v572
  %v574 = vpop.f32.mrf.mxu0
  %575 = vmatprep.mubr.f32.mxu0 0.0
  %576 = vmatmul.mubr.f32.gmra.mxu0 %v226
  %v577 = vpop.f32.mrf.mxu0
  %v578 = vadd.f32 %v87, %v577
  %v579 = vpop.f32.mrf.mxu0
  %580 = vmatprep.mubr.f32.mxu0 0.0
  %581 = vmatmul.mubr.f32.gmra.mxu0 %v229
  %v582 = vpop.f32.mrf.mxu0
  %v583 = vadd.f32 %v87, %v582
  %v584 = vpop.f32.mrf.mxu0
  %585 = vmatprep.mubr.f32.mxu0 0.0
  %586 = vmatmul.mubr.f32.gmra.mxu0 %v232
  %v587 = vpop.f32.mrf.mxu0
  %v588 = vadd.f32 %v87, %v587
  %v589 = vpop.f32.mrf.mxu0
  %590 = vmatprep.mubr.f32.mxu0 0.0
  %591 = vmatmul.mubr.f32.gmra.mxu0 %v235
  %v592 = vpop.f32.mrf.mxu0
  %v593 = vadd.f32 %v87, %v592
  %v594 = vpop.f32.mrf.mxu0
  %595 = vmatprep.mubr.f32.mxu0 0.0
  %596 = vmatmul.mubr.f32.gmra.mxu0 %v238
  %v597 = vpop.f32.mrf.mxu0
  %v598 = vadd.f32 %v87, %v597
  %v599 = vpop.f32.mrf.mxu0
  %600 = vmatprep.mubr.f32.mxu0 0.0
  %601 = vmatmul.mubr.f32.gmra.mxu0 %v241
  %v602 = vpop.f32.mrf.mxu0
  %v603 = vadd.f32 %v87, %v602
  %v604 = vpop.f32.mrf.mxu0
  %605 = vmatprep.mubr.f32.mxu0 0.0
  %606 = vmatmul.mubr.f32.gmra.mxu0 %v244
  %v607 = vpop.f32.mrf.mxu0
  %v608 = vadd.f32 %v87, %v607
  %v609 = vpop.f32.mrf.mxu0
  %610 = vmatprep.mubr.f32.mxu0 0.0
  %611 = vmatmul.mubr.f32.gmra.mxu0 %v247
  %v612 = vpop.f32.mrf.mxu0
  %v613 = vadd.f32 %v87, %v612
  %v614 = vpop.f32.mrf.mxu0
  %615 = vmatprep.mubr.f32.mxu0 0.0
  %616 = vmatmul.mubr.f32.gmra.mxu0 %v250
  %v617 = vpop.f32.mrf.mxu0
  %v618 = vadd.f32 %v87, %v617
  %v619 = vpop.f32.mrf.mxu0
  %620 = vmatprep.mubr.f32.mxu0 0.0
  %621 = vmatmul.mubr.f32.gmra.mxu0 %v253
  %v622 = vpop.f32.mrf.mxu0
  %v623 = vadd.f32 %v87, %v622
  %v624 = vpop.f32.mrf.mxu0
  %625 = vmatprep.mubr.f32.mxu0 0.0
  %626 = vmatmul.mubr.f32.gmra.mxu0 %v256
  %v627 = vpop.f32.mrf.mxu0
  %v628 = vadd.f32 %v87, %v627
  %v629 = vpop.f32.mrf.mxu0
  %630 = vmatprep.mubr.f32.mxu0 0.0
  %631 = vmatmul.mubr.f32.gmra.mxu0 %v259
  %v632 = vpop.f32.mrf.mxu0
  %v633 = vadd.f32 %v87, %v632
  %v634 = vpop.f32.mrf.mxu0
  %635 = vmatprep.mubr.f32.mxu0 0.0
  %636 = vmatmul.mubr.f32.gmra.mxu0 %v262
  %v637 = vpop.f32.mrf.mxu0
  %v638 = vadd.f32 %v87, %v637
  %v639 = vpop.f32.mrf.mxu0
  %640 = vmatprep.mubr.f32.mxu0 0.0
  %641 = vmatmul.mubr.f32.gmra.mxu0 %v265
  %v642 = vpop.f32.mrf.mxu0
  %v643 = vadd.f32 %v87, %v642
  %v644 = vpop.f32.mrf.mxu0
  %645 = vmatprep.mubr.f32.mxu0 0.0
  %646 = vmatmul.mubr.f32.gmra.mxu0 %v268
  %v647 = vpop.f32.mrf.mxu0
  %v648 = vadd.f32 %v87, %v647
  %v649 = vpop.f32.mrf.mxu0
  %650 = vmatprep.mubr.f32.mxu0 0.0
  %651 = vmatmul.mubr.f32.gmra.mxu0 %v271
  %v652 = vpop.f32.mrf.mxu0
  %v653 = vadd.f32 %v87, %v652
  %v654 = vpop.f32.mrf.mxu0
  %655 = vmatprep.mubr.f32.mxu0 0.0
  %656 = vmatmul.mubr.f32.gmra.mxu0 %v274
  %v657 = vpop.f32.mrf.mxu0
  %v658 = vadd.f32 %v87, %v657
  %v659 = vpop.f32.mrf.mxu0
  %660 = vmatprep.mubr.f32.mxu0 0.0
  %661 = vmatmul.mubr.f32.gmra.mxu0 %v277
  %v662 = vpop.f32.mrf.mxu0
  %v663 = vadd.f32 %v87, %v662
  %v664 = vpop.f32.mrf.mxu0
  %665 = vmatprep.mubr.f32.mxu0 0.0
  %666 = vmatmul.mubr.f32.gmra.mxu0 %v280
  %v667 = vpop.f32.mrf.mxu0
  %v668 = vadd.f32 %v87, %v667
  %v669 = vpop.f32.mrf.mxu0
  %670 = vdwg.mxu0
  %v671 = vmax.f32 %v353, 0.0
  %v672 = vmax.f32 %v358, 0.0
  %v673 = vmax.f32 %v363, 0.0
  %v674 = vmax.f32 %v368, 0.0
  %v675 = vmax.f32 %v373, 0.0
  %v676 = vmax.f32 %v378, 0.0
  %v677 = vmax.f32 %v383, 0.0
  %v678 = vmax.f32 %v388, 0.0
  %v679 = vmax.f32 %v393, 0.0
  %v680 = vmax.f32 %v398, 0.0
  %v681 = vmax.f32 %v403, 0.0
  %v682 = vmax.f32 %v408, 0.0
  %v683 = vmax.f32 %v413, 0.0
  %v684 = vmax.f32 %v418, 0.0
  %v685 = vmax.f32 %v423, 0.0
  %v686 = vmax.f32 %v428, 0.0
  %v687 = vmax.f32 %v433, 0.0
  %v688 = vmax.f32 %v438, 0.0
  %v689 = vmax.f32 %v443, 0.0
  %v690 = vmax.f32 %v448, 0.0
  %v691 = vmax.f32 %v453, 0.0
  %v692 = vmax.f32 %v458, 0.0
  %v693 = vmax.f32 %v463, 0.0
  %v694 = vmax.f32 %v468, 0.0
  %v695 = vmax.f32 %v473, 0.0
  %v696 = vmax.f32 %v478, 0.0
  %v697 = vmax.f32 %v483, 0.0
  %v698 = vmax.f32 %v488, 0.0
  %v699 = vmax.f32 %v493, 0.0
  %v700 = vmax.f32 %v498, 0.0
  %v701 = vmax.f32 %v503, 0.0
  %v702 = vmax.f32 %v508, 0.0
  %v703 = vmax.f32 %v513, 0.0
  %v704 = vmax.f32 %v518, 0.0
  %v705 = vmax.f32 %v523, 0.0
  %v706 = vmax.f32 %v528, 0.0
  %v707 = vmax.f32 %v533, 0.0
  %v708 = vmax.f32 %v538, 0.0
  %v709 = vmax.f32 %v543, 0.0
  %v710 = vmax.f32 %v548, 0.0
  %v711 = vmax.f32 %v553, 0.0
  %v712 = vmax.f32 %v558, 0.0
  %v713 = vmax.f32 %v563, 0.0
  %v714 = vmax.f32 %v568, 0.0
  %v715 = vmax.f32 %v573, 0.0
  %v716 = vmax.f32 %v578, 0.0
  %v717 = vmax.f32 %v583, 0.0
  %v718 = vmax.f32 %v588, 0.0
  %v719 = vmax.f32 %v593, 0.0
  %v720 = vmax.f32 %v598, 0.0
  %v721 = vmax.f32 %v603, 0.0
  %v722 = vmax.f32 %v608, 0.0
  %v723 = vmax.f32 %v613, 0.0
  %v724 = vmax.f32 %v618, 0.0
  %v725 = vmax.f32 %v623, 0.0
  %v726 = vmax.f32 %v628, 0.0
  %v727 = vmax.f32 %v633, 0.0
  %v728 = vmax.f32 %v638, 0.0
  %v729 = vmax.f32 %v643, 0.0
  %v730 = vmax.f32 %v648, 0.0
  %v731 = vmax.f32 %v653, 0.0
  %v732 = vmax.f32 %v658, 0.0
  %v733 = vmax.f32 %v663, 0.0
  %v734 = vmax.f32 %v668, 0.0
  %s735 = scalar_lea.vmem %s0, 512
  %v736 = vld [vmem:[%s735] sm:$0xff]
  %v737 = vld [vmem:[%s735 + $0x8] sm:$0xff]
  %v738 = vld [vmem:[%s735 + $0x10] sm:$0xff]
  %v739 = vld [vmem:[%s735 + $0x18] sm:$0xff]
  %v740 = vld [vmem:[%s735 + $0x20] sm:$0xff]
  %v741 = vld [vmem:[%s735 + $0x28] sm:$0xff]
  %v742 = vld [vmem:[%s735 + $0x30] sm:$0xff]
  %v743 = vld [vmem:[%s735 + $0x38] sm:$0xff]
  %v744 = vld [vmem:[%s735 + $0x40] sm:$0xff]
  %v745 = vld [vmem:[%s735 + $0x48] sm:$0xff]
  %v746 = vld [vmem:[%s735 + $0x50] sm:$0xff]
  %v747 = vld [vmem:[%s735 + $0x58] sm:$0xff]
  %v748 = vld [vmem:[%s735 + $0x60] sm:$0xff]
  %v749 = vld [vmem:[%s735 + $0x68] sm:$0xff]
  %v750 = vld [vmem:[%s735 + $0x70] sm:$0xff]
  %v751 = vld [vmem:[%s735 + $0x78] sm:$0xff]
  %v752 = vld [vmem:[%s735 + $0x80] sm:$0xff]
  %v753 = vld [vmem:[%s735 + $0x88] sm:$0xff]
  %v754 = vld [vmem:[%s735 + $0x90] sm:$0xff]
  %v755 = vld [vmem:[%s735 + $0x98] sm:$0xff]
  %v756 = vld [vmem:[%s735 + $0xa0] sm:$0xff]
  %v757 = vld [vmem:[%s735 + $0xa8] sm:$0xff]
  %v758 = vld [vmem:[%s735 + $0xb0] sm:$0xff]
  %v759 = vld [vmem:[%s735 + $0xb8] sm:$0xff]
  %v760 = vld [vmem:[%s735 + $0xc0] sm:$0xff]
  %v761 = vld [vmem:[%s735 + $0xc8] sm:$0xff]
  %v762 = vld [vmem:[%s735 + $0xd0] sm:$0xff]
  %v763 = vld [vmem:[%s735 + $0xd8] sm:$0xff]
  %v764 = vld [vmem:[%s735 + $0xe0] sm:$0xff]
  %v765 = vld [vmem:[%s735 + $0xe8] sm:$0xff]
  %v766 = vld [vmem:[%s735 + $0xf0] sm:$0xff]
  %v767 = vld [vmem:[%s735 + $0xf8] sm:$0xff]
  %v768 = vld [vmem:[%s735 + $0x100] sm:$0xff]
  %v769 = vld [vmem:[%s735 + $0x108] sm:$0xff]
  %v770 = vld [vmem:[%s735 + $0x110] sm:$0xff]
  %v771 = vld [vmem:[%s735 + $0x118] sm:$0xff]
  %v772 = vld [vmem:[%s735 + $0x120] sm:$0xff]
  %v773 = vld [vmem:[%s735 + $0x128] sm:$0xff]
  %v774 = vld [vmem:[%s735 + $0x130] sm:$0xff]
  %v775 = vld [vmem:[%s735 + $0x138] sm:$0xff]
  %v776 = vld [vmem:[%s735 + $0x140] sm:$0xff]
  %v777 = vld [vmem:[%s735 + $0x148] sm:$0xff]
  %v778 = vld [vmem:[%s735 + $0x150] sm:$0xff]
  %v779 = vld [vmem:[%s735 + $0x158] sm:$0xff]
  %v780 = vld [vmem:[%s735 + $0x160] sm:$0xff]
  %v781 = vld [vmem:[%s735 + $0x168] sm:$0xff]
  %v782 = vld [vmem:[%s735 + $0x170] sm:$0xff]
  %v783 = vld [vmem:[%s735 + $0x178] sm:$0xff]
  %v784 = vld [vmem:[%s735 + $0x180] sm:$0xff]
  %v785 = vld [vmem:[%s735 + $0x188] sm:$0xff]
  %v786 = vld [vmem:[%s735 + $0x190] sm:$0xff]
  %v787 = vld [vmem:[%s735 + $0x198] sm:$0xff]
  %v788 = vld [vmem:[%s735 + $0x1a0] sm:$0xff]
  %v789 = vld [vmem:[%s735 + $0x1a8] sm:$0xff]
  %v790 = vld [vmem:[%s735 + $0x1b0] sm:$0xff]
  %v791 = vld [vmem:[%s735 + $0x1b8] sm:$0xff]
  %v792 = vld [vmem:[%s735 + $0x1c0] sm:$0xff]
  %v793 = vld [vmem:[%s735 + $0x1c8] sm:$0xff]
  %v794 = vld [vmem:[%s735 + $0x1d0] sm:$0xff]
  %v795 = vld [vmem:[%s735 + $0x1d8] sm:$0xff]
  %v796 = vld [vmem:[%s735 + $0x1e0] sm:$0xff]
  %v797 = vld [vmem:[%s735 + $0x1e8] sm:$0xff]
  %v798 = vld [vmem:[%s735 + $0x1f0] sm:$0xff]
  %v799 = vld [vmem:[%s735 + $0x1f8] sm:$0xff]
  %v801 = vsel %vm89, %v736, 0
  %v804 = vsel %vm89, %v737, 0
  %v807 = vsel %vm89, %v738, 0
  %v810 = vsel %vm89, %v739, 0
  %v813 = vsel %vm89, %v740, 0
  %v816 = vsel %vm89, %v741, 0
  %v819 = vsel %vm89, %v742, 0
  %v822 = vsel %vm89, %v743, 0
  %v825 = vsel %vm89, %v744, 0
  %v828 = vsel %vm89, %v745, 0
  %v831 = vsel %vm89, %v746, 0
  %v834 = vsel %vm89, %v747, 0
  %v837 = vsel %vm89, %v748, 0
  %v840 = vsel %vm89, %v749, 0
  %v843 = vsel %vm89, %v750, 0
  %v846 = vsel %vm89, %v751, 0
  %v849 = vsel %vm89, %v752, 0
  %v852 = vsel %vm89, %v753, 0
  %v855 = vsel %vm89, %v754, 0
  %v858 = vsel %vm89, %v755, 0
  %v861 = vsel %vm89, %v756, 0
  %v864 = vsel %vm89, %v757, 0
  %v867 = vsel %vm89, %v758, 0
  %v870 = vsel %vm89, %v759, 0
  %v873 = vsel %vm89, %v760, 0
  %v876 = vsel %vm89, %v761, 0
  %v879 = vsel %vm89, %v762, 0
  %v882 = vsel %vm89, %v763, 0
  %v885 = vsel %vm89, %v764, 0
  %v888 = vsel %vm89, %v765, 0
  %v891 = vsel %vm89, %v766, 0
  %v894 = vsel %vm89, %v767, 0
  %v897 = vsel %vm89, %v768, 0
  %v900 = vsel %vm89, %v769, 0
  %v903 = vsel %vm89, %v770, 0
  %v906 = vsel %vm89, %v771, 0
  %v909 = vsel %vm89, %v772, 0
  %v912 = vsel %vm89, %v773, 0
  %v915 = vsel %vm89, %v774, 0
  %v918 = vsel %vm89, %v775, 0
  %v921 = vsel %vm89, %v776, 0
  %v924 = vsel %vm89, %v777, 0
  %v927 = vsel %vm89, %v778, 0
  %v930 = vsel %vm89, %v779, 0
  %v933 = vsel %vm89, %v780, 0
  %v936 = vsel %vm89, %v781, 0
  %v939 = vsel %vm89, %v782, 0
  %v942 = vsel %vm89, %v783, 0
  %v945 = vsel %vm89, %v784, 0
  %v948 = vsel %vm89, %v785, 0
  %v951 = vsel %vm89, %v786, 0
  %v954 = vsel %vm89, %v787, 0
  %v957 = vsel %vm89, %v788, 0
  %v960 = vsel %vm89, %v789, 0
  %v963 = vsel %vm89, %v790, 0
  %v966 = vsel %vm89, %v791, 0
  %v969 = vsel %vm89, %v792, 0
  %v972 = vsel %vm89, %v793, 0
  %v975 = vsel %vm89, %v794, 0
  %v978 = vsel %vm89, %v795, 0
  %v981 = vsel %vm89, %v796, 0
  %v984 = vsel %vm89, %v797, 0
  %v987 = vsel %vm89, %v798, 0
  %v990 = vsel %vm89, %v799, 0
  %992 = vmatprep.subr.mxu0 0.0
  %993 = vmatpush1.msra.mxu0 0.0
  %994 = vmatprep.subr.mxu0 0.0
  %995 = vmatpush1.msra.mxu0 0.0
  %996 = vmatprep.subr.mxu0 0.0
  %997 = vmatpush1.msra.mxu0 0.0
  %998 = vmatprep.subr.mxu0 0.0
  %999 = vmatpush1.msra.mxu0 0.0
  %1000 = vmatprep.subr.mxu0 0.0
  %1001 = vmatpush1.msra.mxu0 0.0
  %1002 = vmatprep.subr.mxu0 0.0
  %1003 = vmatpush1.msra.mxu0 0.0
  %1004 = vmatprep.subr.mxu0 0.0
  %1005 = vmatpush1.msra.mxu0 0.0
  %1006 = vmatprep.subr.mxu0 0.0
  %1007 = vmatpush1.msra.mxu0 0.0
  %1008 = vmatprep.subr.mxu0 0.0
  %1009 = vmatpush1.msra.mxu0 0.0
  %1010 = vmatprep.subr.mxu0 0.0
  %1011 = vmatpush1.msra.mxu0 0.0
  %1012 = vmatprep.subr.mxu0 0.0
  %1013 = vmatpush1.msra.mxu0 0.0
  %1014 = vmatprep.subr.mxu0 0.0
  %1015 = vmatpush1.msra.mxu0 0.0
  %1016 = vmatprep.subr.mxu0 0.0
  %1017 = vmatpush1.msra.mxu0 %v284
  %1018 = vmatprep.subr.mxu0 0.0
  %1019 = vmatpush1.msra.mxu0 %v16
  %1020 = vmatprep.subr.mxu0 0.0
  %1021 = vmatpush1.msra.mxu0 %v15
  %1022 = vmatprep.subr.mxu0 0.0
  %1023 = vmatpush1.msra.mxu0 %v14
  %1024 = vmatprep.subr.mxu0 0.0
  %1025 = vmatpush2.msra.mxu0 0.0
  %1026 = vmatprep.subr.mxu0 0.0
  %1027 = vmatpush2.msra.mxu0 0.0
  %1028 = vmatprep.subr.mxu0 0.0
  %1029 = vmatpush2.msra.mxu0 0.0
  %1030 = vmatprep.subr.mxu0 0.0
  %1031 = vmatpush2.msra.mxu0 0.0
  %1032 = vmatprep.subr.mxu0 0.0
  %1033 = vmatpush2.msra.mxu0 0.0
  %1034 = vmatprep.subr.mxu0 0.0
  %1035 = vmatpush2.msra.mxu0 0.0
  %1036 = vmatprep.subr.mxu0 0.0
  %1037 = vmatpush2.msra.mxu0 0.0
  %1038 = vmatprep.subr.mxu0 0.0
  %1039 = vmatpush2.msra.mxu0 0.0
  %1040 = vmatprep.subr.mxu0 0.0
  %1041 = vmatpush2.msra.mxu0 0.0
  %1042 = vmatprep.subr.mxu0 0.0
  %1043 = vmatpush2.msra.mxu0 0.0
  %1044 = vmatprep.subr.mxu0 0.0
  %1045 = vmatpush2.msra.mxu0 0.0
  %1046 = vmatprep.subr.mxu0 0.0
  %1047 = vmatpush2.msra.mxu0 0.0
  %1048 = vmatprep.subr.mxu0 0.0
  %1049 = vmatpush2.msra.mxu0 0.0
  %1050 = vmatprep.subr.mxu0 0.0
  %1051 = vmatpush2.msra.mxu0 0.0
  %1052 = vmatprep.subr.mxu0 0.0
  %1053 = vmatpush2.msra.mxu0 0.0
  %1054 = vmatprep.subr.mxu0 0.0
  %1055 = vmatpush2.msra.mxu0 0.0
  %1056 = vmatprep.mubr.f32.mxu0 0.0
  %1057 = vmatmul.mubr.f32.gmra.mxu0 %v801
  %v1058 = vpop.f32.mrf.mxu0
  %v1059 = vadd.f32 %v87, %v1058
  %v1060 = vpop.f32.mrf.mxu0
  %1061 = vmatprep.mubr.f32.mxu0 0.0
  %1062 = vmatmul.mubr.f32.gmra.mxu0 %v804
  %v1063 = vpop.f32.mrf.mxu0
  %v1064 = vadd.f32 %v87, %v1063
  %v1065 = vpop.f32.mrf.mxu0
  %1066 = vmatprep.mubr.f32.mxu0 0.0
  %1067 = vmatmul.mubr.f32.gmra.mxu0 %v807
  %v1068 = vpop.f32.mrf.mxu0
  %v1069 = vadd.f32 %v87, %v1068
  %v1070 = vpop.f32.mrf.mxu0
  %1071 = vmatprep.mubr.f32.mxu0 0.0
  %1072 = vmatmul.mubr.f32.gmra.mxu0 %v810
  %v1073 = vpop.f32.mrf.mxu0
  %v1074 = vadd.f32 %v87, %v1073
  %v1075 = vpop.f32.mrf.mxu0
  %1076 = vmatprep.mubr.f32.mxu0 0.0
  %1077 = vmatmul.mubr.f32.gmra.mxu0 %v813
  %v1078 = vpop.f32.mrf.mxu0
  %v1079 = vadd.f32 %v87, %v1078
  %v1080 = vpop.f32.mrf.mxu0
  %1081 = vmatprep.mubr.f32.mxu0 0.0
  %1082 = vmatmul.mubr.f32.gmra.mxu0 %v816
  %v1083 = vpop.f32.mrf.mxu0
  %v1084 = vadd.f32 %v87, %v1083
  %v1085 = vpop.f32.mrf.mxu0
  %1086 = vmatprep.mubr.f32.mxu0 0.0
  %1087 = vmatmul.mubr.f32.gmra.mxu0 %v819
  %v1088 = vpop.f32.mrf.mxu0
  %v1089 = vadd.f32 %v87, %v1088
  %v1090 = vpop.f32.mrf.mxu0
  %1091 = vmatprep.mubr.f32.mxu0 0.0
  %1092 = vmatmul.mubr.f32.gmra.mxu0 %v822
  %v1093 = vpop.f32.mrf.mxu0
  %v1094 = vadd.f32 %v87, %v1093
  %v1095 = vpop.f32.mrf.mxu0
  %1096 = vmatprep.mubr.f32.mxu0 0.0
  %1097 = vmatmul.mubr.f32.gmra.mxu0 %v825
  %v1098 = vpop.f32.mrf.mxu0
  %v1099 = vadd.f32 %v87, %v1098
  %v1100 = vpop.f32.mrf.mxu0
  %1101 = vmatprep.mubr.f32.mxu0 0.0
  %1102 = vmatmul.mubr.f32.gmra.mxu0 %v828
  %v1103 = vpop.f32.mrf.mxu0
  %v1104 = vadd.f32 %v87, %v1103
  %v1105 = vpop.f32.mrf.mxu0
  %1106 = vmatprep.mubr.f32.mxu0 0.0
  %1107 = vmatmul.mubr.f32.gmra.mxu0 %v831
  %v1108 = vpop.f32.mrf.mxu0
  %v1109 = vadd.f32 %v87, %v1108
  %v1110 = vpop.f32.mrf.mxu0
  %1111 = vmatprep.mubr.f32.mxu0 0.0
  %1112 = vmatmul.mubr.f32.gmra.mxu0 %v834
  %v1113 = vpop.f32.mrf.mxu0
  %v1114 = vadd.f32 %v87, %v1113
  %v1115 = vpop.f32.mrf.mxu0
  %1116 = vmatprep.mubr.f32.mxu0 0.0
  %1117 = vmatmul.mubr.f32.gmra.mxu0 %v837
  %v1118 = vpop.f32.mrf.mxu0
  %v1119 = vadd.f32 %v87, %v1118
  %v1120 = vpop.f32.mrf.mxu0
  %1121 = vmatprep.mubr.f32.mxu0 0.0
  %1122 = vmatmul.mubr.f32.gmra.mxu0 %v840
  %v1123 = vpop.f32.mrf.mxu0
  %v1124 = vadd.f32 %v87, %v1123
  %v1125 = vpop.f32.mrf.mxu0
  %1126 = vmatprep.mubr.f32.mxu0 0.0
  %1127 = vmatmul.mubr.f32.gmra.mxu0 %v843
  %v1128 = vpop.f32.mrf.mxu0
  %v1129 = vadd.f32 %v87, %v1128
  %v1130 = vpop.f32.mrf.mxu0
  %1131 = vmatprep.mubr.f32.mxu0 0.0
  %1132 = vmatmul.mubr.f32.gmra.mxu0 %v846
  %v1133 = vpop.f32.mrf.mxu0
  %v1134 = vadd.f32 %v87, %v1133
  %v1135 = vpop.f32.mrf.mxu0
  %1136 = vmatprep.mubr.f32.mxu0 0.0
  %1137 = vmatmul.mubr.f32.gmra.mxu0 %v849
  %v1138 = vpop.f32.mrf.mxu0
  %v1139 = vadd.f32 %v87, %v1138
  %v1140 = vpop.f32.mrf.mxu0
  %1141 = vmatprep.mubr.f32.mxu0 0.0
  %1142 = vmatmul.mubr.f32.gmra.mxu0 %v852
  %v1143 = vpop.f32.mrf.mxu0
  %v1144 = vadd.f32 %v87, %v1143
  %v1145 = vpop.f32.mrf.mxu0
  %1146 = vmatprep.mubr.f32.mxu0 0.0
  %1147 = vmatmul.mubr.f32.gmra.mxu0 %v855
  %v1148 = vpop.f32.mrf.mxu0
  %v1149 = vadd.f32 %v87, %v1148
  %v1150 = vpop.f32.mrf.mxu0
  %1151 = vmatprep.mubr.f32.mxu0 0.0
  %1152 = vmatmul.mubr.f32.gmra.mxu0 %v858
  %v1153 = vpop.f32.mrf.mxu0
  %v1154 = vadd.f32 %v87, %v1153
  %v1155 = vpop.f32.mrf.mxu0
  %1156 = vmatprep.mubr.f32.mxu0 0.0
  %1157 = vmatmul.mubr.f32.gmra.mxu0 %v861
  %v1158 = vpop.f32.mrf.mxu0
  %v1159 = vadd.f32 %v87, %v1158
  %v1160 = vpop.f32.mrf.mxu0
  %1161 = vmatprep.mubr.f32.mxu0 0.0
  %1162 = vmatmul.mubr.f32.gmra.mxu0 %v864
  %v1163 = vpop.f32.mrf.mxu0
  %v1164 = vadd.f32 %v87, %v1163
  %v1165 = vpop.f32.mrf.mxu0
  %1166 = vmatprep.mubr.f32.mxu0 0.0
  %1167 = vmatmul.mubr.f32.gmra.mxu0 %v867
  %v1168 = vpop.f32.mrf.mxu0
  %v1169 = vadd.f32 %v87, %v1168
  %v1170 = vpop.f32.mrf.mxu0
  %1171 = vmatprep.mubr.f32.mxu0 0.0
  %1172 = vmatmul.mubr.f32.gmra.mxu0 %v870
  %v1173 = vpop.f32.mrf.mxu0
  %v1174 = vadd.f32 %v87, %v1173
  %v1175 = vpop.f32.mrf.mxu0
  %1176 = vmatprep.mubr.f32.mxu0 0.0
  %1177 = vmatmul.mubr.f32.gmra.mxu0 %v873
  %v1178 = vpop.f32.mrf.mxu0
  %v1179 = vadd.f32 %v87, %v1178
  %v1180 = vpop.f32.mrf.mxu0
  %1181 = vmatprep.mubr.f32.mxu0 0.0
  %1182 = vmatmul.mubr.f32.gmra.mxu0 %v876
  %v1183 = vpop.f32.mrf.mxu0
  %v1184 = vadd.f32 %v87, %v1183
  %v1185 = vpop.f32.mrf.mxu0
  %1186 = vmatprep.mubr.f32.mxu0 0.0
  %1187 = vmatmul.mubr.f32.gmra.mxu0 %v879
  %v1188 = vpop.f32.mrf.mxu0
  %v1189 = vadd.f32 %v87, %v1188
  %v1190 = vpop.f32.mrf.mxu0
  %1191 = vmatprep.mubr.f32.mxu0 0.0
  %1192 = vmatmul.mubr.f32.gmra.mxu0 %v882
  %v1193 = vpop.f32.mrf.mxu0
  %v1194 = vadd.f32 %v87, %v1193
  %v1195 = vpop.f32.mrf.mxu0
  %1196 = vmatprep.mubr.f32.mxu0 0.0
  %1197 = vmatmul.mubr.f32.gmra.mxu0 %v885
  %v1198 = vpop.f32.mrf.mxu0
  %v1199 = vadd.f32 %v87, %v1198
  %v1200 = vpop.f32.mrf.mxu0
  %1201 = vmatprep.mubr.f32.mxu0 0.0
  %1202 = vmatmul.mubr.f32.gmra.mxu0 %v888
  %v1203 = vpop.f32.mrf.mxu0
  %v1204 = vadd.f32 %v87, %v1203
  %v1205 = vpop.f32.mrf.mxu0
  %1206 = vmatprep.mubr.f32.mxu0 0.0
  %1207 = vmatmul.mubr.f32.gmra.mxu0 %v891
  %v1208 = vpop.f32.mrf.mxu0
  %v1209 = vadd.f32 %v87, %v1208
  %v1210 = vpop.f32.mrf.mxu0
  %1211 = vmatprep.mubr.f32.mxu0 0.0
  %1212 = vmatmul.mubr.f32.gmra.mxu0 %v894
  %v1213 = vpop.f32.mrf.mxu0
  %v1214 = vadd.f32 %v87, %v1213
  %v1215 = vpop.f32.mrf.mxu0
  %1216 = vmatprep.mubr.f32.mxu0 0.0
  %1217 = vmatmul.mubr.f32.gmra.mxu0 %v897
  %v1218 = vpop.f32.mrf.mxu0
  %v1219 = vadd.f32 %v87, %v1218
  %v1220 = vpop.f32.mrf.mxu0
  %1221 = vmatprep.mubr.f32.mxu0 0.0
  %1222 = vmatmul.mubr.f32.gmra.mxu0 %v900
  %v1223 = vpop.f32.mrf.mxu0
  %v1224 = vadd.f32 %v87, %v1223
  %v1225 = vpop.f32.mrf.mxu0
  %1226 = vmatprep.mubr.f32.mxu0 0.0
  %1227 = vmatmul.mubr.f32.gmra.mxu0 %v903
  %v1228 = vpop.f32.mrf.mxu0
  %v1229 = vadd.f32 %v87, %v1228
  %v1230 = vpop.f32.mrf.mxu0
  %1231 = vmatprep.mubr.f32.mxu0 0.0
  %1232 = vmatmul.mubr.f32.gmra.mxu0 %v906
  %v1233 = vpop.f32.mrf.mxu0
  %v1234 = vadd.f32 %v87, %v1233
  %v1235 = vpop.f32.mrf.mxu0
  %1236 = vmatprep.mubr.f32.mxu0 0.0
  %1237 = vmatmul.mubr.f32.gmra.mxu0 %v909
  %v1238 = vpop.f32.mrf.mxu0
  %v1239 = vadd.f32 %v87, %v1238
  %v1240 = vpop.f32.mrf.mxu0
  %1241 = vmatprep.mubr.f32.mxu0 0.0
  %1242 = vmatmul.mubr.f32.gmra.mxu0 %v912
  %v1243 = vpop.f32.mrf.mxu0
  %v1244 = vadd.f32 %v87, %v1243
  %v1245 = vpop.f32.mrf.mxu0
  %1246 = vmatprep.mubr.f32.mxu0 0.0
  %1247 = vmatmul.mubr.f32.gmra.mxu0 %v915
  %v1248 = vpop.f32.mrf.mxu0
  %v1249 = vadd.f32 %v87, %v1248
  %v1250 = vpop.f32.mrf.mxu0
  %1251 = vmatprep.mubr.f32.mxu0 0.0
  %1252 = vmatmul.mubr.f32.gmra.mxu0 %v918
  %v1253 = vpop.f32.mrf.mxu0
  %v1254 = vadd.f32 %v87, %v1253
  %v1255 = vpop.f32.mrf.mxu0
  %1256 = vmatprep.mubr.f32.mxu0 0.0
  %1257 = vmatmul.mubr.f32.gmra.mxu0 %v921
  %v1258 = vpop.f32.mrf.mxu0
  %v1259 = vadd.f32 %v87, %v1258
  %v1260 = vpop.f32.mrf.mxu0
  %1261 = vmatprep.mubr.f32.mxu0 0.0
  %1262 = vmatmul.mubr.f32.gmra.mxu0 %v924
  %v1263 = vpop.f32.mrf.mxu0
  %v1264 = vadd.f32 %v87, %v1263
  %v1265 = vpop.f32.mrf.mxu0
  %1266 = vmatprep.mubr.f32.mxu0 0.0
  %1267 = vmatmul.mubr.f32.gmra.mxu0 %v927
  %v1268 = vpop.f32.mrf.mxu0
  %v1269 = vadd.f32 %v87, %v1268
  %v1270 = vpop.f32.mrf.mxu0
  %1271 = vmatprep.mubr.f32.mxu0 0.0
  %1272 = vmatmul.mubr.f32.gmra.mxu0 %v930
  %v1273 = vpop.f32.mrf.mxu0
  %v1274 = vadd.f32 %v87, %v1273
  %v1275 = vpop.f32.mrf.mxu0
  %1276 = vmatprep.mubr.f32.mxu0 0.0
  %1277 = vmatmul.mubr.f32.gmra.mxu0 %v933
  %v1278 = vpop.f32.mrf.mxu0
  %v1279 = vadd.f32 %v87, %v1278
  %v1280 = vpop.f32.mrf.mxu0
  %1281 = vmatprep.mubr.f32.mxu0 0.0
  %1282 = vmatmul.mubr.f32.gmra.mxu0 %v936
  %v1283 = vpop.f32.mrf.mxu0
  %v1284 = vadd.f32 %v87, %v1283
  %v1285 = vpop.f32.mrf.mxu0
  %1286 = vmatprep.mubr.f32.mxu0 0.0
  %1287 = vmatmul.mubr.f32.gmra.mxu0 %v939
  %v1288 = vpop.f32.mrf.mxu0
  %v1289 = vadd.f32 %v87, %v1288
  %v1290 = vpop.f32.mrf.mxu0
  %1291 = vmatprep.mubr.f32.mxu0 0.0
  %1292 = vmatmul.mubr.f32.gmra.mxu0 %v942
  %v1293 = vpop.f32.mrf.mxu0
  %v1294 = vadd.f32 %v87, %v1293
  %v1295 = vpop.f32.mrf.mxu0
  %1296 = vmatprep.mubr.f32.mxu0 0.0
  %1297 = vmatmul.mubr.f32.gmra.mxu0 %v945
  %v1298 = vpop.f32.mrf.mxu0
  %v1299 = vadd.f32 %v87, %v1298
  %v1300 = vpop.f32.mrf.mxu0
  %1301 = vmatprep.mubr.f32.mxu0 0.0
  %1302 = vmatmul.mubr.f32.gmra.mxu0 %v948
  %v1303 = vpop.f32.mrf.mxu0
  %v1304 = vadd.f32 %v87, %v1303
  %v1305 = vpop.f32.mrf.mxu0
  %1306 = vmatprep.mubr.f32.mxu0 0.0
  %1307 = vmatmul.mubr.f32.gmra.mxu0 %v951
  %v1308 = vpop.f32.mrf.mxu0
  %v1309 = vadd.f32 %v87, %v1308
  %v1310 = vpop.f32.mrf.mxu0
  %1311 = vmatprep.mubr.f32.mxu0 0.0
  %1312 = vmatmul.mubr.f32.gmra.mxu0 %v954
  %v1313 = vpop.f32.mrf.mxu0
  %v1314 = vadd.f32 %v87, %v1313
  %v1315 = vpop.f32.mrf.mxu0
  %1316 = vmatprep.mubr.f32.mxu0 0.0
  %1317 = vmatmul.mubr.f32.gmra.mxu0 %v957
  %v1318 = vpop.f32.mrf.mxu0
  %v1319 = vadd.f32 %v87, %v1318
  %v1320 = vpop.f32.mrf.mxu0
  %1321 = vmatprep.mubr.f32.mxu0 0.0
  %1322 = vmatmul.mubr.f32.gmra.mxu0 %v960
  %v1323 = vpop.f32.mrf.mxu0
  %v1324 = vadd.f32 %v87, %v1323
  %v1325 = vpop.f32.mrf.mxu0
  %1326 = vmatprep.mubr.f32.mxu0 0.0
  %1327 = vmatmul.mubr.f32.gmra.mxu0 %v963
  %v1328 = vpop.f32.mrf.mxu0
  %v1329 = vadd.f32 %v87, %v1328
  %v1330 = vpop.f32.mrf.mxu0
  %1331 = vmatprep.mubr.f32.mxu0 0.0
  %1332 = vmatmul.mubr.f32.gmra.mxu0 %v966
  %v1333 = vpop.f32.mrf.mxu0
  %v1334 = vadd.f32 %v87, %v1333
  %v1335 = vpop.f32.mrf.mxu0
  %1336 = vmatprep.mubr.f32.mxu0 0.0
  %1337 = vmatmul.mubr.f32.gmra.mxu0 %v969
  %v1338 = vpop.f32.mrf.mxu0
  %v1339 = vadd.f32 %v87, %v1338
  %v1340 = vpop.f32.mrf.mxu0
  %1341 = vmatprep.mubr.f32.mxu0 0.0
  %1342 = vmatmul.mubr.f32.gmra.mxu0 %v972
  %v1343 = vpop.f32.mrf.mxu0
  %v1344 = vadd.f32 %v87, %v1343
  %v1345 = vpop.f32.mrf.mxu0
  %1346 = vmatprep.mubr.f32.mxu0 0.0
  %1347 = vmatmul.mubr.f32.gmra.mxu0 %v975
  %v1348 = vpop.f32.mrf.mxu0
  %v1349 = vadd.f32 %v87, %v1348
  %v1350 = vpop.f32.mrf.mxu0
  %1351 = vmatprep.mubr.f32.mxu0 0.0
  %1352 = vmatmul.mubr.f32.gmra.mxu0 %v978
  %v1353 = vpop.f32.mrf.mxu0
  %v1354 = vadd.f32 %v87, %v1353
  %v1355 = vpop.f32.mrf.mxu0
  %1356 = vmatprep.mubr.f32.mxu0 0.0
  %1357 = vmatmul.mubr.f32.gmra.mxu0 %v981
  %v1358 = vpop.f32.mrf.mxu0
  %v1359 = vadd.f32 %v87, %v1358
  %v1360 = vpop.f32.mrf.mxu0
  %1361 = vmatprep.mubr.f32.mxu0 0.0
  %1362 = vmatmul.mubr.f32.gmra.mxu0 %v984
  %v1363 = vpop.f32.mrf.mxu0
  %v1364 = vadd.f32 %v87, %v1363
  %v1365 = vpop.f32.mrf.mxu0
  %1366 = vmatprep.mubr.f32.mxu0 0.0
  %1367 = vmatmul.mubr.f32.gmra.mxu0 %v987
  %v1368 = vpop.f32.mrf.mxu0
  %v1369 = vadd.f32 %v87, %v1368
  %v1370 = vpop.f32.mrf.mxu0
  %1371 = vmatprep.mubr.f32.mxu0 0.0
  %1372 = vmatmul.mubr.f32.gmra.mxu0 %v990
  %v1373 = vpop.f32.mrf.mxu0
  %v1374 = vadd.f32 %v87, %v1373
  %v1375 = vpop.f32.mrf.mxu0
  %1376 = vdwg.mxu0
  %v1377 = vmax.f32 %v1059, 0.0
  %v1378 = vmax.f32 %v1064, 0.0
  %v1379 = vmax.f32 %v1069, 0.0
  %v1380 = vmax.f32 %v1074, 0.0
  %v1381 = vmax.f32 %v1079, 0.0
  %v1382 = vmax.f32 %v1084, 0.0
  %v1383 = vmax.f32 %v1089, 0.0
  %v1384 = vmax.f32 %v1094, 0.0
  %v1385 = vmax.f32 %v1099, 0.0
  %v1386 = vmax.f32 %v1104, 0.0
  %v1387 = vmax.f32 %v1109, 0.0
  %v1388 = vmax.f32 %v1114, 0.0
  %v1389 = vmax.f32 %v1119, 0.0
  %v1390 = vmax.f32 %v1124, 0.0
  %v1391 = vmax.f32 %v1129, 0.0
  %v1392 = vmax.f32 %v1134, 0.0
  %v1393 = vmax.f32 %v1139, 0.0
  %v1394 = vmax.f32 %v1144, 0.0
  %v1395 = vmax.f32 %v1149, 0.0
  %v1396 = vmax.f32 %v1154, 0.0
  %v1397 = vmax.f32 %v1159, 0.0
  %v1398 = vmax.f32 %v1164, 0.0
  %v1399 = vmax.f32 %v1169, 0.0
  %v1400 = vmax.f32 %v1174, 0.0
  %v1401 = vmax.f32 %v1179, 0.0
  %v1402 = vmax.f32 %v1184, 0.0
  %v1403 = vmax.f32 %v1189, 0.0
  %v1404 = vmax.f32 %v1194, 0.0
  %v1405 = vmax.f32 %v1199, 0.0
  %v1406 = vmax.f32 %v1204, 0.0
  %v1407 = vmax.f32 %v1209, 0.0
  %v1408 = vmax.f32 %v1214, 0.0
  %v1409 = vmax.f32 %v1219, 0.0
  %v1410 = vmax.f32 %v1224, 0.0
  %v1411 = vmax.f32 %v1229, 0.0
  %v1412 = vmax.f32 %v1234, 0.0
  %v1413 = vmax.f32 %v1239, 0.0
  %v1414 = vmax.f32 %v1244, 0.0
  %v1415 = vmax.f32 %v1249, 0.0
  %v1416 = vmax.f32 %v1254, 0.0
  %v1417 = vmax.f32 %v1259, 0.0
  %v1418 = vmax.f32 %v1264, 0.0
  %v1419 = vmax.f32 %v1269, 0.0
  %v1420 = vmax.f32 %v1274, 0.0
  %v1421 = vmax.f32 %v1279, 0.0
  %v1422 = vmax.f32 %v1284, 0.0
  %v1423 = vmax.f32 %v1289, 0.0
  %v1424 = vmax.f32 %v1294, 0.0
  %v1425 = vmax.f32 %v1299, 0.0
  %v1426 = vmax.f32 %v1304, 0.0
  %v1427 = vmax.f32 %v1309, 0.0
  %v1428 = vmax.f32 %v1314, 0.0
  %v1429 = vmax.f32 %v1319, 0.0
  %v1430 = vmax.f32 %v1324, 0.0
  %v1431 = vmax.f32 %v1329, 0.0
  %v1432 = vmax.f32 %v1334, 0.0
  %v1433 = vmax.f32 %v1339, 0.0
  %v1434 = vmax.f32 %v1344, 0.0
  %v1435 = vmax.f32 %v1349, 0.0
  %v1436 = vmax.f32 %v1354, 0.0
  %v1437 = vmax.f32 %v1359, 0.0
  %v1438 = vmax.f32 %v1364, 0.0
  %v1439 = vmax.f32 %v1369, 0.0
  %v1440 = vmax.f32 %v1374, 0.0
  %v1441 = vmax.f32 %v671, %v1377
  %v1442 = vmax.f32 %v672, %v1378
  %v1443 = vmax.f32 %v673, %v1379
  %v1444 = vmax.f32 %v674, %v1380
  %v1445 = vmax.f32 %v675, %v1381
  %v1446 = vmax.f32 %v676, %v1382
  %v1447 = vmax.f32 %v677, %v1383
  %v1448 = vmax.f32 %v678, %v1384
  %v1449 = vmax.f32 %v679, %v1385
  %v1450 = vmax.f32 %v680, %v1386
  %v1451 = vmax.f32 %v681, %v1387
  %v1452 = vmax.f32 %v682, %v1388
  %v1453 = vmax.f32 %v683, %v1389
  %v1454 = vmax.f32 %v684, %v1390
  %v1455 = vmax.f32 %v685, %v1391
  %v1456 = vmax.f32 %v686, %v1392
  %v1457 = vmax.f32 %v687, %v1393
  %v1458 = vmax.f32 %v688, %v1394
  %v1459 = vmax.f32 %v689, %v1395
  %v1460 = vmax.f32 %v690, %v1396
  %v1461 = vmax.f32 %v691, %v1397
  %v1462 = vmax.f32 %v692, %v1398
  %v1463 = vmax.f32 %v693, %v1399
  %v1464 = vmax.f32 %v694, %v1400
  %v1465 = vmax.f32 %v695, %v1401
  %v1466 = vmax.f32 %v696, %v1402
  %v1467 = vmax.f32 %v697, %v1403
  %v1468 = vmax.f32 %v698, %v1404
  %v1469 = vmax.f32 %v699, %v1405
  %v1470 = vmax.f32 %v700, %v1406
  %v1471 = vmax.f32 %v701, %v1407
  %v1472 = vmax.f32 %v702, %v1408
  %v1473 = vmax.f32 %v703, %v1409
  %v1474 = vmax.f32 %v704, %v1410
  %v1475 = vmax.f32 %v705, %v1411
  %v1476 = vmax.f32 %v706, %v1412
  %v1477 = vmax.f32 %v707, %v1413
  %v1478 = vmax.f32 %v708, %v1414
  %v1479 = vmax.f32 %v709, %v1415
  %v1480 = vmax.f32 %v710, %v1416
  %v1481 = vmax.f32 %v711, %v1417
  %v1482 = vmax.f32 %v712, %v1418
  %v1483 = vmax.f32 %v713, %v1419
  %v1484 = vmax.f32 %v714, %v1420
  %v1485 = vmax.f32 %v715, %v1421
  %v1486 = vmax.f32 %v716, %v1422
  %v1487 = vmax.f32 %v717, %v1423
  %v1488 = vmax.f32 %v718, %v1424
  %v1489 = vmax.f32 %v719, %v1425
  %v1490 = vmax.f32 %v720, %v1426
  %v1491 = vmax.f32 %v721, %v1427
  %v1492 = vmax.f32 %v722, %v1428
  %v1493 = vmax.f32 %v723, %v1429
  %v1494 = vmax.f32 %v724, %v1430
  %v1495 = vmax.f32 %v725, %v1431
  %v1496 = vmax.f32 %v726, %v1432
  %v1497 = vmax.f32 %v727, %v1433
  %v1498 = vmax.f32 %v728, %v1434
  %v1499 = vmax.f32 %v729, %v1435
  %v1500 = vmax.f32 %v730, %v1436
  %v1501 = vmax.f32 %v731, %v1437
  %v1502 = vmax.f32 %v732, %v1438
  %v1503 = vmax.f32 %v733, %v1439
  %v1504 = vmax.f32 %v734, %v1440
  %s1505 = scalar_lea.vmem %s0, 1024
  %v1506 = vld [vmem:[%s1505] sm:$0xff]
  %v1507 = vld [vmem:[%s1505 + $0x8] sm:$0xff]
  %v1508 = vld [vmem:[%s1505 + $0x10] sm:$0xff]
  %v1509 = vld [vmem:[%s1505 + $0x18] sm:$0xff]
  %v1510 = vld [vmem:[%s1505 + $0x20] sm:$0xff]
  %v1511 = vld [vmem:[%s1505 + $0x28] sm:$0xff]
  %v1512 = vld [vmem:[%s1505 + $0x30] sm:$0xff]
  %v1513 = vld [vmem:[%s1505 + $0x38] sm:$0xff]
  %v1514 = vld [vmem:[%s1505 + $0x40] sm:$0xff]
  %v1515 = vld [vmem:[%s1505 + $0x48] sm:$0xff]
  %v1516 = vld [vmem:[%s1505 + $0x50] sm:$0xff]
  %v1517 = vld [vmem:[%s1505 + $0x58] sm:$0xff]
  %v1518 = vld [vmem:[%s1505 + $0x60] sm:$0xff]
  %v1519 = vld [vmem:[%s1505 + $0x68] sm:$0xff]
  %v1520 = vld [vmem:[%s1505 + $0x70] sm:$0xff]
  %v1521 = vld [vmem:[%s1505 + $0x78] sm:$0xff]
  %v1522 = vld [vmem:[%s1505 + $0x80] sm:$0xff]
  %v1523 = vld [vmem:[%s1505 + $0x88] sm:$0xff]
  %v1524 = vld [vmem:[%s1505 + $0x90] sm:$0xff]
  %v1525 = vld [vmem:[%s1505 + $0x98] sm:$0xff]
  %v1526 = vld [vmem:[%s1505 + $0xa0] sm:$0xff]
  %v1527 = vld [vmem:[%s1505 + $0xa8] sm:$0xff]
  %v1528 = vld [vmem:[%s1505 + $0xb0] sm:$0xff]
  %v1529 = vld [vmem:[%s1505 + $0xb8] sm:$0xff]
  %v1530 = vld [vmem:[%s1505 + $0xc0] sm:$0xff]
  %v1531 = vld [vmem:[%s1505 + $0xc8] sm:$0xff]
  %v1532 = vld [vmem:[%s1505 + $0xd0] sm:$0xff]
  %v1533 = vld [vmem:[%s1505 + $0xd8] sm:$0xff]
  %v1534 = vld [vmem:[%s1505 + $0xe0] sm:$0xff]
  %v1535 = vld [vmem:[%s1505 + $0xe8] sm:$0xff]
  %v1536 = vld [vmem:[%s1505 + $0xf0] sm:$0xff]
  %v1537 = vld [vmem:[%s1505 + $0xf8] sm:$0xff]
  %v1538 = vld [vmem:[%s1505 + $0x100] sm:$0xff]
  %v1539 = vld [vmem:[%s1505 + $0x108] sm:$0xff]
  %v1540 = vld [vmem:[%s1505 + $0x110] sm:$0xff]
  %v1541 = vld [vmem:[%s1505 + $0x118] sm:$0xff]
  %v1542 = vld [vmem:[%s1505 + $0x120] sm:$0xff]
  %v1543 = vld [vmem:[%s1505 + $0x128] sm:$0xff]
  %v1544 = vld [vmem:[%s1505 + $0x130] sm:$0xff]
  %v1545 = vld [vmem:[%s1505 + $0x138] sm:$0xff]
  %v1546 = vld [vmem:[%s1505 + $0x140] sm:$0xff]
  %v1547 = vld [vmem:[%s1505 + $0x148] sm:$0xff]
  %v1548 = vld [vmem:[%s1505 + $0x150] sm:$0xff]
  %v1549 = vld [vmem:[%s1505 + $0x158] sm:$0xff]
  %v1550 = vld [vmem:[%s1505 + $0x160] sm:$0xff]
  %v1551 = vld [vmem:[%s1505 + $0x168] sm:$0xff]
  %v1552 = vld [vmem:[%s1505 + $0x170] sm:$0xff]
  %v1553 = vld [vmem:[%s1505 + $0x178] sm:$0xff]
  %v1554 = vld [vmem:[%s1505 + $0x180] sm:$0xff]
  %v1555 = vld [vmem:[%s1505 + $0x188] sm:$0xff]
  %v1556 = vld [vmem:[%s1505 + $0x190] sm:$0xff]
  %v1557 = vld [vmem:[%s1505 + $0x198] sm:$0xff]
  %v1558 = vld [vmem:[%s1505 + $0x1a0] sm:$0xff]
  %v1559 = vld [vmem:[%s1505 + $0x1a8] sm:$0xff]
  %v1560 = vld [vmem:[%s1505 + $0x1b0] sm:$0xff]
  %v1561 = vld [vmem:[%s1505 + $0x1b8] sm:$0xff]
  %v1562 = vld [vmem:[%s1505 + $0x1c0] sm:$0xff]
  %v1563 = vld [vmem:[%s1505 + $0x1c8] sm:$0xff]
  %v1564 = vld [vmem:[%s1505 + $0x1d0] sm:$0xff]
  %v1565 = vld [vmem:[%s1505 + $0x1d8] sm:$0xff]
  %v1566 = vld [vmem:[%s1505 + $0x1e0] sm:$0xff]
  %v1567 = vld [vmem:[%s1505 + $0x1e8] sm:$0xff]
  %v1568 = vld [vmem:[%s1505 + $0x1f0] sm:$0xff]
  %v1569 = vld [vmem:[%s1505 + $0x1f8] sm:$0xff]
  %v1571 = vsel %vm89, %v1506, 0
  %v1574 = vsel %vm89, %v1507, 0
  %v1577 = vsel %vm89, %v1508, 0
  %v1580 = vsel %vm89, %v1509, 0
  %v1583 = vsel %vm89, %v1510, 0
  %v1586 = vsel %vm89, %v1511, 0
  %v1589 = vsel %vm89, %v1512, 0
  %v1592 = vsel %vm89, %v1513, 0
  %v1595 = vsel %vm89, %v1514, 0
  %v1598 = vsel %vm89, %v1515, 0
  %v1601 = vsel %vm89, %v1516, 0
  %v1604 = vsel %vm89, %v1517, 0
  %v1607 = vsel %vm89, %v1518, 0
  %v1610 = vsel %vm89, %v1519, 0
  %v1613 = vsel %vm89, %v1520, 0
  %v1616 = vsel %vm89, %v1521, 0
  %v1619 = vsel %vm89, %v1522, 0
  %v1622 = vsel %vm89, %v1523, 0
  %v1625 = vsel %vm89, %v1524, 0
  %v1628 = vsel %vm89, %v1525, 0
  %v1631 = vsel %vm89, %v1526, 0
  %v1634 = vsel %vm89, %v1527, 0
  %v1637 = vsel %vm89, %v1528, 0
  %v1640 = vsel %vm89, %v1529, 0
  %v1643 = vsel %vm89, %v1530, 0
  %v1646 = vsel %vm89, %v1531, 0
  %v1649 = vsel %vm89, %v1532, 0
  %v1652 = vsel %vm89, %v1533, 0
  %v1655 = vsel %vm89, %v1534, 0
  %v1658 = vsel %vm89, %v1535, 0
  %v1661 = vsel %vm89, %v1536, 0
  %v1664 = vsel %vm89, %v1537, 0
  %v1667 = vsel %vm89, %v1538, 0
  %v1670 = vsel %vm89, %v1539, 0
  %v1673 = vsel %vm89, %v1540, 0
  %v1676 = vsel %vm89, %v1541, 0
  %v1679 = vsel %vm89, %v1542, 0
  %v1682 = vsel %vm89, %v1543, 0
  %v1685 = vsel %vm89, %v1544, 0
  %v1688 = vsel %vm89, %v1545, 0
  %v1691 = vsel %vm89, %v1546, 0
  %v1694 = vsel %vm89, %v1547, 0
  %v1697 = vsel %vm89, %v1548, 0
  %v1700 = vsel %vm89, %v1549, 0
  %v1703 = vsel %vm89, %v1550, 0
  %v1706 = vsel %vm89, %v1551, 0
  %v1709 = vsel %vm89, %v1552, 0
  %v1712 = vsel %vm89, %v1553, 0
  %v1715 = vsel %vm89, %v1554, 0
  %v1718 = vsel %vm89, %v1555, 0
  %v1721 = vsel %vm89, %v1556, 0
  %v1724 = vsel %vm89, %v1557, 0
  %v1727 = vsel %vm89, %v1558, 0
  %v1730 = vsel %vm89, %v1559, 0
  %v1733 = vsel %vm89, %v1560, 0
  %v1736 = vsel %vm89, %v1561, 0
  %v1739 = vsel %vm89, %v1562, 0
  %v1742 = vsel %vm89, %v1563, 0
  %v1745 = vsel %vm89, %v1564, 0
  %v1748 = vsel %vm89, %v1565, 0
  %v1751 = vsel %vm89, %v1566, 0
  %v1754 = vsel %vm89, %v1567, 0
  %v1757 = vsel %vm89, %v1568, 0
  %v1760 = vsel %vm89, %v1569, 0
  %1762 = vmatprep.subr.mxu0 0.0
  %1763 = vmatpush1.msra.mxu0 0.0
  %1764 = vmatprep.subr.mxu0 0.0
  %1765 = vmatpush1.msra.mxu0 0.0
  %1766 = vmatprep.subr.mxu0 0.0
  %1767 = vmatpush1.msra.mxu0 0.0
  %1768 = vmatprep.subr.mxu0 0.0
  %1769 = vmatpush1.msra.mxu0 0.0
  %1770 = vmatprep.subr.mxu0 0.0
  %1771 = vmatpush1.msra.mxu0 0.0
  %1772 = vmatprep.subr.mxu0 0.0
  %1773 = vmatpush1.msra.mxu0 0.0
  %1774 = vmatprep.subr.mxu0 0.0
  %1775 = vmatpush1.msra.mxu0 0.0
  %1776 = vmatprep.subr.mxu0 0.0
  %1777 = vmatpush1.msra.mxu0 0.0
  %1778 = vmatprep.subr.mxu0 0.0
  %1779 = vmatpush1.msra.mxu0 0.0
  %1780 = vmatprep.subr.mxu0 0.0
  %1781 = vmatpush1.msra.mxu0 0.0
  %1782 = vmatprep.subr.mxu0 0.0
  %1783 = vmatpush1.msra.mxu0 0.0
  %1784 = vmatprep.subr.mxu0 0.0
  %1785 = vmatpush1.msra.mxu0 0.0
  %1786 = vmatprep.subr.mxu0 0.0
  %1787 = vmatpush1.msra.mxu0 %v284
  %1788 = vmatprep.subr.mxu0 0.0
  %1789 = vmatpush1.msra.mxu0 %v16
  %1790 = vmatprep.subr.mxu0 0.0
  %1791 = vmatpush1.msra.mxu0 %v15
  %1792 = vmatprep.subr.mxu0 0.0
  %1793 = vmatpush1.msra.mxu0 %v14
  %1794 = vmatprep.subr.mxu0 0.0
  %1795 = vmatpush2.msra.mxu0 0.0
  %1796 = vmatprep.subr.mxu0 0.0
  %1797 = vmatpush2.msra.mxu0 0.0
  %1798 = vmatprep.subr.mxu0 0.0
  %1799 = vmatpush2.msra.mxu0 0.0
  %1800 = vmatprep.subr.mxu0 0.0
  %1801 = vmatpush2.msra.mxu0 0.0
  %1802 = vmatprep.subr.mxu0 0.0
  %1803 = vmatpush2.msra.mxu0 0.0
  %1804 = vmatprep.subr.mxu0 0.0
  %1805 = vmatpush2.msra.mxu0 0.0
  %1806 = vmatprep.subr.mxu0 0.0
  %1807 = vmatpush2.msra.mxu0 0.0
  %1808 = vmatprep.subr.mxu0 0.0
  %1809 = vmatpush2.msra.mxu0 0.0
  %1810 = vmatprep.subr.mxu0 0.0
  %1811 = vmatpush2.msra.mxu0 0.0
  %1812 = vmatprep.subr.mxu0 0.0
  %1813 = vmatpush2.msra.mxu0 0.0
  %1814 = vmatprep.subr.mxu0 0.0
  %1815 = vmatpush2.msra.mxu0 0.0
  %1816 = vmatprep.subr.mxu0 0.0
  %1817 = vmatpush2.msra.mxu0 0.0
  %1818 = vmatprep.subr.mxu0 0.0
  %1819 = vmatpush2.msra.mxu0 0.0
  %1820 = vmatprep.subr.mxu0 0.0
  %1821 = vmatpush2.msra.mxu0 0.0
  %1822 = vmatprep.subr.mxu0 0.0
  %1823 = vmatpush2.msra.mxu0 0.0
  %1824 = vmatprep.subr.mxu0 0.0
  %1825 = vmatpush2.msra.mxu0 0.0
  %1826 = vmatprep.mubr.f32.mxu0 0.0
  %1827 = vmatmul.mubr.f32.gmra.mxu0 %v1571
  %v1828 = vpop.f32.mrf.mxu0
  %v1829 = vadd.f32 %v87, %v1828
  %v1830 = vpop.f32.mrf.mxu0
  %1831 = vmatprep.mubr.f32.mxu0 0.0
  %1832 = vmatmul.mubr.f32.gmra.mxu0 %v1574
  %v1833 = vpop.f32.mrf.mxu0
  %v1834 = vadd.f32 %v87, %v1833
  %v1835 = vpop.f32.mrf.mxu0
  %1836 = vmatprep.mubr.f32.mxu0 0.0
  %1837 = vmatmul.mubr.f32.gmra.mxu0 %v1577
  %v1838 = vpop.f32.mrf.mxu0
  %v1839 = vadd.f32 %v87, %v1838
  %v1840 = vpop.f32.mrf.mxu0
  %1841 = vmatprep.mubr.f32.mxu0 0.0
  %1842 = vmatmul.mubr.f32.gmra.mxu0 %v1580
  %v1843 = vpop.f32.mrf.mxu0
  %v1844 = vadd.f32 %v87, %v1843
  %v1845 = vpop.f32.mrf.mxu0
  %1846 = vmatprep.mubr.f32.mxu0 0.0
  %1847 = vmatmul.mubr.f32.gmra.mxu0 %v1583
  %v1848 = vpop.f32.mrf.mxu0
  %v1849 = vadd.f32 %v87, %v1848
  %v1850 = vpop.f32.mrf.mxu0
  %1851 = vmatprep.mubr.f32.mxu0 0.0
  %1852 = vmatmul.mubr.f32.gmra.mxu0 %v1586
  %v1853 = vpop.f32.mrf.mxu0
  %v1854 = vadd.f32 %v87, %v1853
  %v1855 = vpop.f32.mrf.mxu0
  %1856 = vmatprep.mubr.f32.mxu0 0.0
  %1857 = vmatmul.mubr.f32.gmra.mxu0 %v1589
  %v1858 = vpop.f32.mrf.mxu0
  %v1859 = vadd.f32 %v87, %v1858
  %v1860 = vpop.f32.mrf.mxu0
  %1861 = vmatprep.mubr.f32.mxu0 0.0
  %1862 = vmatmul.mubr.f32.gmra.mxu0 %v1592
  %v1863 = vpop.f32.mrf.mxu0
  %v1864 = vadd.f32 %v87, %v1863
  %v1865 = vpop.f32.mrf.mxu0
  %1866 = vmatprep.mubr.f32.mxu0 0.0
  %1867 = vmatmul.mubr.f32.gmra.mxu0 %v1595
  %v1868 = vpop.f32.mrf.mxu0
  %v1869 = vadd.f32 %v87, %v1868
  %v1870 = vpop.f32.mrf.mxu0
  %1871 = vmatprep.mubr.f32.mxu0 0.0
  %1872 = vmatmul.mubr.f32.gmra.mxu0 %v1598
  %v1873 = vpop.f32.mrf.mxu0
  %v1874 = vadd.f32 %v87, %v1873
  %v1875 = vpop.f32.mrf.mxu0
  %1876 = vmatprep.mubr.f32.mxu0 0.0
  %1877 = vmatmul.mubr.f32.gmra.mxu0 %v1601
  %v1878 = vpop.f32.mrf.mxu0
  %v1879 = vadd.f32 %v87, %v1878
  %v1880 = vpop.f32.mrf.mxu0
  %1881 = vmatprep.mubr.f32.mxu0 0.0
  %1882 = vmatmul.mubr.f32.gmra.mxu0 %v1604
  %v1883 = vpop.f32.mrf.mxu0
  %v1884 = vadd.f32 %v87, %v1883
  %v1885 = vpop.f32.mrf.mxu0
  %1886 = vmatprep.mubr.f32.mxu0 0.0
  %1887 = vmatmul.mubr.f32.gmra.mxu0 %v1607
  %v1888 = vpop.f32.mrf.mxu0
  %v1889 = vadd.f32 %v87, %v1888
  %v1890 = vpop.f32.mrf.mxu0
  %1891 = vmatprep.mubr.f32.mxu0 0.0
  %1892 = vmatmul.mubr.f32.gmra.mxu0 %v1610
  %v1893 = vpop.f32.mrf.mxu0
  %v1894 = vadd.f32 %v87, %v1893
  %v1895 = vpop.f32.mrf.mxu0
  %1896 = vmatprep.mubr.f32.mxu0 0.0
  %1897 = vmatmul.mubr.f32.gmra.mxu0 %v1613
  %v1898 = vpop.f32.mrf.mxu0
  %v1899 = vadd.f32 %v87, %v1898
  %v1900 = vpop.f32.mrf.mxu0
  %1901 = vmatprep.mubr.f32.mxu0 0.0
  %1902 = vmatmul.mubr.f32.gmra.mxu0 %v1616
  %v1903 = vpop.f32.mrf.mxu0
  %v1904 = vadd.f32 %v87, %v1903
  %v1905 = vpop.f32.mrf.mxu0
  %1906 = vmatprep.mubr.f32.mxu0 0.0
  %1907 = vmatmul.mubr.f32.gmra.mxu0 %v1619
  %v1908 = vpop.f32.mrf.mxu0
  %v1909 = vadd.f32 %v87, %v1908
  %v1910 = vpop.f32.mrf.mxu0
  %1911 = vmatprep.mubr.f32.mxu0 0.0
  %1912 = vmatmul.mubr.f32.gmra.mxu0 %v1622
  %v1913 = vpop.f32.mrf.mxu0
  %v1914 = vadd.f32 %v87, %v1913
  %v1915 = vpop.f32.mrf.mxu0
  %1916 = vmatprep.mubr.f32.mxu0 0.0
  %1917 = vmatmul.mubr.f32.gmra.mxu0 %v1625
  %v1918 = vpop.f32.mrf.mxu0
  %v1919 = vadd.f32 %v87, %v1918
  %v1920 = vpop.f32.mrf.mxu0
  %1921 = vmatprep.mubr.f32.mxu0 0.0
  %1922 = vmatmul.mubr.f32.gmra.mxu0 %v1628
  %v1923 = vpop.f32.mrf.mxu0
  %v1924 = vadd.f32 %v87, %v1923
  %v1925 = vpop.f32.mrf.mxu0
  %1926 = vmatprep.mubr.f32.mxu0 0.0
  %1927 = vmatmul.mubr.f32.gmra.mxu0 %v1631
  %v1928 = vpop.f32.mrf.mxu0
  %v1929 = vadd.f32 %v87, %v1928
  %v1930 = vpop.f32.mrf.mxu0
  %1931 = vmatprep.mubr.f32.mxu0 0.0
  %1932 = vmatmul.mubr.f32.gmra.mxu0 %v1634
  %v1933 = vpop.f32.mrf.mxu0
  %v1934 = vadd.f32 %v87, %v1933
  %v1935 = vpop.f32.mrf.mxu0
  %1936 = vmatprep.mubr.f32.mxu0 0.0
  %1937 = vmatmul.mubr.f32.gmra.mxu0 %v1637
  %v1938 = vpop.f32.mrf.mxu0
  %v1939 = vadd.f32 %v87, %v1938
  %v1940 = vpop.f32.mrf.mxu0
  %1941 = vmatprep.mubr.f32.mxu0 0.0
  %1942 = vmatmul.mubr.f32.gmra.mxu0 %v1640
  %v1943 = vpop.f32.mrf.mxu0
  %v1944 = vadd.f32 %v87, %v1943
  %v1945 = vpop.f32.mrf.mxu0
  %1946 = vmatprep.mubr.f32.mxu0 0.0
  %1947 = vmatmul.mubr.f32.gmra.mxu0 %v1643
  %v1948 = vpop.f32.mrf.mxu0
  %v1949 = vadd.f32 %v87, %v1948
  %v1950 = vpop.f32.mrf.mxu0
  %1951 = vmatprep.mubr.f32.mxu0 0.0
  %1952 = vmatmul.mubr.f32.gmra.mxu0 %v1646
  %v1953 = vpop.f32.mrf.mxu0
  %v1954 = vadd.f32 %v87, %v1953
  %v1955 = vpop.f32.mrf.mxu0
  %1956 = vmatprep.mubr.f32.mxu0 0.0
  %1957 = vmatmul.mubr.f32.gmra.mxu0 %v1649
  %v1958 = vpop.f32.mrf.mxu0
  %v1959 = vadd.f32 %v87, %v1958
  %v1960 = vpop.f32.mrf.mxu0
  %1961 = vmatprep.mubr.f32.mxu0 0.0
  %1962 = vmatmul.mubr.f32.gmra.mxu0 %v1652
  %v1963 = vpop.f32.mrf.mxu0
  %v1964 = vadd.f32 %v87, %v1963
  %v1965 = vpop.f32.mrf.mxu0
  %1966 = vmatprep.mubr.f32.mxu0 0.0
  %1967 = vmatmul.mubr.f32.gmra.mxu0 %v1655
  %v1968 = vpop.f32.mrf.mxu0
  %v1969 = vadd.f32 %v87, %v1968
  %v1970 = vpop.f32.mrf.mxu0
  %1971 = vmatprep.mubr.f32.mxu0 0.0
  %1972 = vmatmul.mubr.f32.gmra.mxu0 %v1658
  %v1973 = vpop.f32.mrf.mxu0
  %v1974 = vadd.f32 %v87, %v1973
  %v1975 = vpop.f32.mrf.mxu0
  %1976 = vmatprep.mubr.f32.mxu0 0.0
  %1977 = vmatmul.mubr.f32.gmra.mxu0 %v1661
  %v1978 = vpop.f32.mrf.mxu0
  %v1979 = vadd.f32 %v87, %v1978
  %v1980 = vpop.f32.mrf.mxu0
  %1981 = vmatprep.mubr.f32.mxu0 0.0
  %1982 = vmatmul.mubr.f32.gmra.mxu0 %v1664
  %v1983 = vpop.f32.mrf.mxu0
  %v1984 = vadd.f32 %v87, %v1983
  %v1985 = vpop.f32.mrf.mxu0
  %1986 = vmatprep.mubr.f32.mxu0 0.0
  %1987 = vmatmul.mubr.f32.gmra.mxu0 %v1667
  %v1988 = vpop.f32.mrf.mxu0
  %v1989 = vadd.f32 %v87, %v1988
  %v1990 = vpop.f32.mrf.mxu0
  %1991 = vmatprep.mubr.f32.mxu0 0.0
  %1992 = vmatmul.mubr.f32.gmra.mxu0 %v1670
  %v1993 = vpop.f32.mrf.mxu0
  %v1994 = vadd.f32 %v87, %v1993
  %v1995 = vpop.f32.mrf.mxu0
  %1996 = vmatprep.mubr.f32.mxu0 0.0
  %1997 = vmatmul.mubr.f32.gmra.mxu0 %v1673
  %v1998 = vpop.f32.mrf.mxu0
  %v1999 = vadd.f32 %v87, %v1998
  %v2000 = vpop.f32.mrf.mxu0
  %2001 = vmatprep.mubr.f32.mxu0 0.0
  %2002 = vmatmul.mubr.f32.gmra.mxu0 %v1676
  %v2003 = vpop.f32.mrf.mxu0
  %v2004 = vadd.f32 %v87, %v2003
  %v2005 = vpop.f32.mrf.mxu0
  %2006 = vmatprep.mubr.f32.mxu0 0.0
  %2007 = vmatmul.mubr.f32.gmra.mxu0 %v1679
  %v2008 = vpop.f32.mrf.mxu0
  %v2009 = vadd.f32 %v87, %v2008
  %v2010 = vpop.f32.mrf.mxu0
  %2011 = vmatprep.mubr.f32.mxu0 0.0
  %2012 = vmatmul.mubr.f32.gmra.mxu0 %v1682
  %v2013 = vpop.f32.mrf.mxu0
  %v2014 = vadd.f32 %v87, %v2013
  %v2015 = vpop.f32.mrf.mxu0
  %2016 = vmatprep.mubr.f32.mxu0 0.0
  %2017 = vmatmul.mubr.f32.gmra.mxu0 %v1685
  %v2018 = vpop.f32.mrf.mxu0
  %v2019 = vadd.f32 %v87, %v2018
  %v2020 = vpop.f32.mrf.mxu0
  %2021 = vmatprep.mubr.f32.mxu0 0.0
  %2022 = vmatmul.mubr.f32.gmra.mxu0 %v1688
  %v2023 = vpop.f32.mrf.mxu0
  %v2024 = vadd.f32 %v87, %v2023
  %v2025 = vpop.f32.mrf.mxu0
  %2026 = vmatprep.mubr.f32.mxu0 0.0
  %2027 = vmatmul.mubr.f32.gmra.mxu0 %v1691
  %v2028 = vpop.f32.mrf.mxu0
  %v2029 = vadd.f32 %v87, %v2028
  %v2030 = vpop.f32.mrf.mxu0
  %2031 = vmatprep.mubr.f32.mxu0 0.0
  %2032 = vmatmul.mubr.f32.gmra.mxu0 %v1694
  %v2033 = vpop.f32.mrf.mxu0
  %v2034 = vadd.f32 %v87, %v2033
  %v2035 = vpop.f32.mrf.mxu0
  %2036 = vmatprep.mubr.f32.mxu0 0.0
  %2037 = vmatmul.mubr.f32.gmra.mxu0 %v1697
  %v2038 = vpop.f32.mrf.mxu0
  %v2039 = vadd.f32 %v87, %v2038
  %v2040 = vpop.f32.mrf.mxu0
  %2041 = vmatprep.mubr.f32.mxu0 0.0
  %2042 = vmatmul.mubr.f32.gmra.mxu0 %v1700
  %v2043 = vpop.f32.mrf.mxu0
  %v2044 = vadd.f32 %v87, %v2043
  %v2045 = vpop.f32.mrf.mxu0
  %2046 = vmatprep.mubr.f32.mxu0 0.0
  %2047 = vmatmul.mubr.f32.gmra.mxu0 %v1703
  %v2048 = vpop.f32.mrf.mxu0
  %v2049 = vadd.f32 %v87, %v2048
  %v2050 = vpop.f32.mrf.mxu0
  %2051 = vmatprep.mubr.f32.mxu0 0.0
  %2052 = vmatmul.mubr.f32.gmra.mxu0 %v1706
  %v2053 = vpop.f32.mrf.mxu0
  %v2054 = vadd.f32 %v87, %v2053
  %v2055 = vpop.f32.mrf.mxu0
  %2056 = vmatprep.mubr.f32.mxu0 0.0
  %2057 = vmatmul.mubr.f32.gmra.mxu0 %v1709
  %v2058 = vpop.f32.mrf.mxu0
  %v2059 = vadd.f32 %v87, %v2058
  %v2060 = vpop.f32.mrf.mxu0
  %2061 = vmatprep.mubr.f32.mxu0 0.0
  %2062 = vmatmul.mubr.f32.gmra.mxu0 %v1712
  %v2063 = vpop.f32.mrf.mxu0
  %v2064 = vadd.f32 %v87, %v2063
  %v2065 = vpop.f32.mrf.mxu0
  %2066 = vmatprep.mubr.f32.mxu0 0.0
  %2067 = vmatmul.mubr.f32.gmra.mxu0 %v1715
  %v2068 = vpop.f32.mrf.mxu0
  %v2069 = vadd.f32 %v87, %v2068
  %v2070 = vpop.f32.mrf.mxu0
  %2071 = vmatprep.mubr.f32.mxu0 0.0
  %2072 = vmatmul.mubr.f32.gmra.mxu0 %v1718
  %v2073 = vpop.f32.mrf.mxu0
  %v2074 = vadd.f32 %v87, %v2073
  %v2075 = vpop.f32.mrf.mxu0
  %2076 = vmatprep.mubr.f32.mxu0 0.0
  %2077 = vmatmul.mubr.f32.gmra.mxu0 %v1721
  %v2078 = vpop.f32.mrf.mxu0
  %v2079 = vadd.f32 %v87, %v2078
  %v2080 = vpop.f32.mrf.mxu0
  %2081 = vmatprep.mubr.f32.mxu0 0.0
  %2082 = vmatmul.mubr.f32.gmra.mxu0 %v1724
  %v2083 = vpop.f32.mrf.mxu0
  %v2084 = vadd.f32 %v87, %v2083
  %v2085 = vpop.f32.mrf.mxu0
  %2086 = vmatprep.mubr.f32.mxu0 0.0
  %2087 = vmatmul.mubr.f32.gmra.mxu0 %v1727
  %v2088 = vpop.f32.mrf.mxu0
  %v2089 = vadd.f32 %v87, %v2088
  %v2090 = vpop.f32.mrf.mxu0
  %2091 = vmatprep.mubr.f32.mxu0 0.0
  %2092 = vmatmul.mubr.f32.gmra.mxu0 %v1730
  %v2093 = vpop.f32.mrf.mxu0
  %v2094 = vadd.f32 %v87, %v2093
  %v2095 = vpop.f32.mrf.mxu0
  %2096 = vmatprep.mubr.f32.mxu0 0.0
  %2097 = vmatmul.mubr.f32.gmra.mxu0 %v1733
  %v2098 = vpop.f32.mrf.mxu0
  %v2099 = vadd.f32 %v87, %v2098
  %v2100 = vpop.f32.mrf.mxu0
  %2101 = vmatprep.mubr.f32.mxu0 0.0
  %2102 = vmatmul.mubr.f32.gmra.mxu0 %v1736
  %v2103 = vpop.f32.mrf.mxu0
  %v2104 = vadd.f32 %v87, %v2103
  %v2105 = vpop.f32.mrf.mxu0
  %2106 = vmatprep.mubr.f32.mxu0 0.0
  %2107 = vmatmul.mubr.f32.gmra.mxu0 %v1739
  %v2108 = vpop.f32.mrf.mxu0
  %v2109 = vadd.f32 %v87, %v2108
  %v2110 = vpop.f32.mrf.mxu0
  %2111 = vmatprep.mubr.f32.mxu0 0.0
  %2112 = vmatmul.mubr.f32.gmra.mxu0 %v1742
  %v2113 = vpop.f32.mrf.mxu0
  %v2114 = vadd.f32 %v87, %v2113
  %v2115 = vpop.f32.mrf.mxu0
  %2116 = vmatprep.mubr.f32.mxu0 0.0
  %2117 = vmatmul.mubr.f32.gmra.mxu0 %v1745
  %v2118 = vpop.f32.mrf.mxu0
  %v2119 = vadd.f32 %v87, %v2118
  %v2120 = vpop.f32.mrf.mxu0
  %2121 = vmatprep.mubr.f32.mxu0 0.0
  %2122 = vmatmul.mubr.f32.gmra.mxu0 %v1748
  %v2123 = vpop.f32.mrf.mxu0
  %v2124 = vadd.f32 %v87, %v2123
  %v2125 = vpop.f32.mrf.mxu0
  %2126 = vmatprep.mubr.f32.mxu0 0.0
  %2127 = vmatmul.mubr.f32.gmra.mxu0 %v1751
  %v2128 = vpop.f32.mrf.mxu0
  %v2129 = vadd.f32 %v87, %v2128
  %v2130 = vpop.f32.mrf.mxu0
  %2131 = vmatprep.mubr.f32.mxu0 0.0
  %2132 = vmatmul.mubr.f32.gmra.mxu0 %v1754
  %v2133 = vpop.f32.mrf.mxu0
  %v2134 = vadd.f32 %v87, %v2133
  %v2135 = vpop.f32.mrf.mxu0
  %2136 = vmatprep.mubr.f32.mxu0 0.0
  %2137 = vmatmul.mubr.f32.gmra.mxu0 %v1757
  %v2138 = vpop.f32.mrf.mxu0
  %v2139 = vadd.f32 %v87, %v2138
  %v2140 = vpop.f32.mrf.mxu0
  %2141 = vmatprep.mubr.f32.mxu0 0.0
  %2142 = vmatmul.mubr.f32.gmra.mxu0 %v1760
  %v2143 = vpop.f32.mrf.mxu0
  %v2144 = vadd.f32 %v87, %v2143
  %v2145 = vpop.f32.mrf.mxu0
  %2146 = vdwg.mxu0
  %v2147 = vmax.f32 %v1829, 0.0
  %v2148 = vmax.f32 %v1834, 0.0
  %v2149 = vmax.f32 %v1839, 0.0
  %v2150 = vmax.f32 %v1844, 0.0
  %v2151 = vmax.f32 %v1849, 0.0
  %v2152 = vmax.f32 %v1854, 0.0
  %v2153 = vmax.f32 %v1859, 0.0
  %v2154 = vmax.f32 %v1864, 0.0
  %v2155 = vmax.f32 %v1869, 0.0
  %v2156 = vmax.f32 %v1874, 0.0
  %v2157 = vmax.f32 %v1879, 0.0
  %v2158 = vmax.f32 %v1884, 0.0
  %v2159 = vmax.f32 %v1889, 0.0
  %v2160 = vmax.f32 %v1894, 0.0
  %v2161 = vmax.f32 %v1899, 0.0
  %v2162 = vmax.f32 %v1904, 0.0
  %v2163 = vmax.f32 %v1909, 0.0
  %v2164 = vmax.f32 %v1914, 0.0
  %v2165 = vmax.f32 %v1919, 0.0
  %v2166 = vmax.f32 %v1924, 0.0
  %v2167 = vmax.f32 %v1929, 0.0
  %v2168 = vmax.f32 %v1934, 0.0
  %v2169 = vmax.f32 %v1939, 0.0
  %v2170 = vmax.f32 %v1944, 0.0
  %v2171 = vmax.f32 %v1949, 0.0
  %v2172 = vmax.f32 %v1954, 0.0
  %v2173 = vmax.f32 %v1959, 0.0
  %v2174 = vmax.f32 %v1964, 0.0
  %v2175 = vmax.f32 %v1969, 0.0
  %v2176 = vmax.f32 %v1974, 0.0
  %v2177 = vmax.f32 %v1979, 0.0
  %v2178 = vmax.f32 %v1984, 0.0
  %v2179 = vmax.f32 %v1989, 0.0
  %v2180 = vmax.f32 %v1994, 0.0
  %v2181 = vmax.f32 %v1999, 0.0
  %v2182 = vmax.f32 %v2004, 0.0
  %v2183 = vmax.f32 %v2009, 0.0
  %v2184 = vmax.f32 %v2014, 0.0
  %v2185 = vmax.f32 %v2019, 0.0
  %v2186 = vmax.f32 %v2024, 0.0
  %v2187 = vmax.f32 %v2029, 0.0
  %v2188 = vmax.f32 %v2034, 0.0
  %v2189 = vmax.f32 %v2039, 0.0
  %v2190 = vmax.f32 %v2044, 0.0
  %v2191 = vmax.f32 %v2049, 0.0
  %v2192 = vmax.f32 %v2054, 0.0
  %v2193 = vmax.f32 %v2059, 0.0
  %v2194 = vmax.f32 %v2064, 0.0
  %v2195 = vmax.f32 %v2069, 0.0
  %v2196 = vmax.f32 %v2074, 0.0
  %v2197 = vmax.f32 %v2079, 0.0
  %v2198 = vmax.f32 %v2084, 0.0
  %v2199 = vmax.f32 %v2089, 0.0
  %v2200 = vmax.f32 %v2094, 0.0
  %v2201 = vmax.f32 %v2099, 0.0
  %v2202 = vmax.f32 %v2104, 0.0
  %v2203 = vmax.f32 %v2109, 0.0
  %v2204 = vmax.f32 %v2114, 0.0
  %v2205 = vmax.f32 %v2119, 0.0
  %v2206 = vmax.f32 %v2124, 0.0
  %v2207 = vmax.f32 %v2129, 0.0
  %v2208 = vmax.f32 %v2134, 0.0
  %v2209 = vmax.f32 %v2139, 0.0
  %v2210 = vmax.f32 %v2144, 0.0
  %v2211 = vmax.f32 %v1441, %v2147
  %v2212 = vmax.f32 %v1442, %v2148
  %v2213 = vmax.f32 %v1443, %v2149
  %v2214 = vmax.f32 %v1444, %v2150
  %v2215 = vmax.f32 %v1445, %v2151
  %v2216 = vmax.f32 %v1446, %v2152
  %v2217 = vmax.f32 %v1447, %v2153
  %v2218 = vmax.f32 %v1448, %v2154
  %v2219 = vmax.f32 %v1449, %v2155
  %v2220 = vmax.f32 %v1450, %v2156
  %v2221 = vmax.f32 %v1451, %v2157
  %v2222 = vmax.f32 %v1452, %v2158
  %v2223 = vmax.f32 %v1453, %v2159
  %v2224 = vmax.f32 %v1454, %v2160
  %v2225 = vmax.f32 %v1455, %v2161
  %v2226 = vmax.f32 %v1456, %v2162
  %v2227 = vmax.f32 %v1457, %v2163
  %v2228 = vmax.f32 %v1458, %v2164
  %v2229 = vmax.f32 %v1459, %v2165
  %v2230 = vmax.f32 %v1460, %v2166
  %v2231 = vmax.f32 %v1461, %v2167
  %v2232 = vmax.f32 %v1462, %v2168
  %v2233 = vmax.f32 %v1463, %v2169
  %v2234 = vmax.f32 %v1464, %v2170
  %v2235 = vmax.f32 %v1465, %v2171
  %v2236 = vmax.f32 %v1466, %v2172
  %v2237 = vmax.f32 %v1467, %v2173
  %v2238 = vmax.f32 %v1468, %v2174
  %v2239 = vmax.f32 %v1469, %v2175
  %v2240 = vmax.f32 %v1470, %v2176
  %v2241 = vmax.f32 %v1471, %v2177
  %v2242 = vmax.f32 %v1472, %v2178
  %v2243 = vmax.f32 %v1473, %v2179
  %v2244 = vmax.f32 %v1474, %v2180
  %v2245 = vmax.f32 %v1475, %v2181
  %v2246 = vmax.f32 %v1476, %v2182
  %v2247 = vmax.f32 %v1477, %v2183
  %v2248 = vmax.f32 %v1478, %v2184
  %v2249 = vmax.f32 %v1479, %v2185
  %v2250 = vmax.f32 %v1480, %v2186
  %v2251 = vmax.f32 %v1481, %v2187
  %v2252 = vmax.f32 %v1482, %v2188
  %v2253 = vmax.f32 %v1483, %v2189
  %v2254 = vmax.f32 %v1484, %v2190
  %v2255 = vmax.f32 %v1485, %v2191
  %v2256 = vmax.f32 %v1486, %v2192
  %v2257 = vmax.f32 %v1487, %v2193
  %v2258 = vmax.f32 %v1488, %v2194
  %v2259 = vmax.f32 %v1489, %v2195
  %v2260 = vmax.f32 %v1490, %v2196
  %v2261 = vmax.f32 %v1491, %v2197
  %v2262 = vmax.f32 %v1492, %v2198
  %v2263 = vmax.f32 %v1493, %v2199
  %v2264 = vmax.f32 %v1494, %v2200
  %v2265 = vmax.f32 %v1495, %v2201
  %v2266 = vmax.f32 %v1496, %v2202
  %v2267 = vmax.f32 %v1497, %v2203
  %v2268 = vmax.f32 %v1498, %v2204
  %v2269 = vmax.f32 %v1499, %v2205
  %v2270 = vmax.f32 %v1500, %v2206
  %v2271 = vmax.f32 %v1501, %v2207
  %v2272 = vmax.f32 %v1502, %v2208
  %v2273 = vmax.f32 %v1503, %v2209
  %v2274 = vmax.f32 %v1504, %v2210
  %s2275 = scalar_lea.vmem %s0, 1536
  %v2276 = vld [vmem:[%s2275] sm:$0xff]
  %v2277 = vld [vmem:[%s2275 + $0x8] sm:$0xff]
  %v2278 = vld [vmem:[%s2275 + $0x10] sm:$0xff]
  %v2279 = vld [vmem:[%s2275 + $0x18] sm:$0xff]
  %v2280 = vld [vmem:[%s2275 + $0x20] sm:$0xff]
  %v2281 = vld [vmem:[%s2275 + $0x28] sm:$0xff]
  %v2282 = vld [vmem:[%s2275 + $0x30] sm:$0xff]
  %v2283 = vld [vmem:[%s2275 + $0x38] sm:$0xff]
  %v2284 = vld [vmem:[%s2275 + $0x40] sm:$0xff]
  %v2285 = vld [vmem:[%s2275 + $0x48] sm:$0xff]
  %v2286 = vld [vmem:[%s2275 + $0x50] sm:$0xff]
  %v2287 = vld [vmem:[%s2275 + $0x58] sm:$0xff]
  %v2288 = vld [vmem:[%s2275 + $0x60] sm:$0xff]
  %v2289 = vld [vmem:[%s2275 + $0x68] sm:$0xff]
  %v2290 = vld [vmem:[%s2275 + $0x70] sm:$0xff]
  %v2291 = vld [vmem:[%s2275 + $0x78] sm:$0xff]
  %v2292 = vld [vmem:[%s2275 + $0x80] sm:$0xff]
  %v2293 = vld [vmem:[%s2275 + $0x88] sm:$0xff]
  %v2294 = vld [vmem:[%s2275 + $0x90] sm:$0xff]
  %v2295 = vld [vmem:[%s2275 + $0x98] sm:$0xff]
  %v2296 = vld [vmem:[%s2275 + $0xa0] sm:$0xff]
  %v2297 = vld [vmem:[%s2275 + $0xa8] sm:$0xff]
  %v2298 = vld [vmem:[%s2275 + $0xb0] sm:$0xff]
  %v2299 = vld [vmem:[%s2275 + $0xb8] sm:$0xff]
  %v2300 = vld [vmem:[%s2275 + $0xc0] sm:$0xff]
  %v2301 = vld [vmem:[%s2275 + $0xc8] sm:$0xff]
  %v2302 = vld [vmem:[%s2275 + $0xd0] sm:$0xff]
  %v2303 = vld [vmem:[%s2275 + $0xd8] sm:$0xff]
  %v2304 = vld [vmem:[%s2275 + $0xe0] sm:$0xff]
  %v2305 = vld [vmem:[%s2275 + $0xe8] sm:$0xff]
  %v2306 = vld [vmem:[%s2275 + $0xf0] sm:$0xff]
  %v2307 = vld [vmem:[%s2275 + $0xf8] sm:$0xff]
  %v2308 = vld [vmem:[%s2275 + $0x100] sm:$0xff]
  %v2309 = vld [vmem:[%s2275 + $0x108] sm:$0xff]
  %v2310 = vld [vmem:[%s2275 + $0x110] sm:$0xff]
  %v2311 = vld [vmem:[%s2275 + $0x118] sm:$0xff]
  %v2312 = vld [vmem:[%s2275 + $0x120] sm:$0xff]
  %v2313 = vld [vmem:[%s2275 + $0x128] sm:$0xff]
  %v2314 = vld [vmem:[%s2275 + $0x130] sm:$0xff]
  %v2315 = vld [vmem:[%s2275 + $0x138] sm:$0xff]
  %v2316 = vld [vmem:[%s2275 + $0x140] sm:$0xff]
  %v2317 = vld [vmem:[%s2275 + $0x148] sm:$0xff]
  %v2318 = vld [vmem:[%s2275 + $0x150] sm:$0xff]
  %v2319 = vld [vmem:[%s2275 + $0x158] sm:$0xff]
  %v2320 = vld [vmem:[%s2275 + $0x160] sm:$0xff]
  %v2321 = vld [vmem:[%s2275 + $0x168] sm:$0xff]
  %v2322 = vld [vmem:[%s2275 + $0x170] sm:$0xff]
  %v2323 = vld [vmem:[%s2275 + $0x178] sm:$0xff]
  %v2324 = vld [vmem:[%s2275 + $0x180] sm:$0xff]
  %v2325 = vld [vmem:[%s2275 + $0x188] sm:$0xff]
  %v2326 = vld [vmem:[%s2275 + $0x190] sm:$0xff]
  %v2327 = vld [vmem:[%s2275 + $0x198] sm:$0xff]
  %v2328 = vld [vmem:[%s2275 + $0x1a0] sm:$0xff]
  %v2329 = vld [vmem:[%s2275 + $0x1a8] sm:$0xff]
  %v2330 = vld [vmem:[%s2275 + $0x1b0] sm:$0xff]
  %v2331 = vld [vmem:[%s2275 + $0x1b8] sm:$0xff]
  %v2332 = vld [vmem:[%s2275 + $0x1c0] sm:$0xff]
  %v2333 = vld [vmem:[%s2275 + $0x1c8] sm:$0xff]
  %v2334 = vld [vmem:[%s2275 + $0x1d0] sm:$0xff]
  %v2335 = vld [vmem:[%s2275 + $0x1d8] sm:$0xff]
  %v2336 = vld [vmem:[%s2275 + $0x1e0] sm:$0xff]
  %v2337 = vld [vmem:[%s2275 + $0x1e8] sm:$0xff]
  %v2338 = vld [vmem:[%s2275 + $0x1f0] sm:$0xff]
  %v2339 = vld [vmem:[%s2275 + $0x1f8] sm:$0xff]
  %v2341 = vsel %vm89, %v2276, 0
  %v2344 = vsel %vm89, %v2277, 0
  %v2347 = vsel %vm89, %v2278, 0
  %v2350 = vsel %vm89, %v2279, 0
  %v2353 = vsel %vm89, %v2280, 0
  %v2356 = vsel %vm89, %v2281, 0
  %v2359 = vsel %vm89, %v2282, 0
  %v2362 = vsel %vm89, %v2283, 0
  %v2365 = vsel %vm89, %v2284, 0
  %v2368 = vsel %vm89, %v2285, 0
  %v2371 = vsel %vm89, %v2286, 0
  %v2374 = vsel %vm89, %v2287, 0
  %v2377 = vsel %vm89, %v2288, 0
  %v2380 = vsel %vm89, %v2289, 0
  %v2383 = vsel %vm89, %v2290, 0
  %v2386 = vsel %vm89, %v2291, 0
  %v2389 = vsel %vm89, %v2292, 0
  %v2392 = vsel %vm89, %v2293, 0
  %v2395 = vsel %vm89, %v2294, 0
  %v2398 = vsel %vm89, %v2295, 0
  %v2401 = vsel %vm89, %v2296, 0
  %v2404 = vsel %vm89, %v2297, 0
  %v2407 = vsel %vm89, %v2298, 0
  %v2410 = vsel %vm89, %v2299, 0
  %v2413 = vsel %vm89, %v2300, 0
  %v2416 = vsel %vm89, %v2301, 0
  %v2419 = vsel %vm89, %v2302, 0
  %v2422 = vsel %vm89, %v2303, 0
  %v2425 = vsel %vm89, %v2304, 0
  %v2428 = vsel %vm89, %v2305, 0
  %v2431 = vsel %vm89, %v2306, 0
  %v2434 = vsel %vm89, %v2307, 0
  %v2437 = vsel %vm89, %v2308, 0
  %v2440 = vsel %vm89, %v2309, 0
  %v2443 = vsel %vm89, %v2310, 0
  %v2446 = vsel %vm89, %v2311, 0
  %v2449 = vsel %vm89, %v2312, 0
  %v2452 = vsel %vm89, %v2313, 0
  %v2455 = vsel %vm89, %v2314, 0
  %v2458 = vsel %vm89, %v2315, 0
  %v2461 = vsel %vm89, %v2316, 0
  %v2464 = vsel %vm89, %v2317, 0
  %v2467 = vsel %vm89, %v2318, 0
  %v2470 = vsel %vm89, %v2319, 0
  %v2473 = vsel %vm89, %v2320, 0
  %v2476 = vsel %vm89, %v2321, 0
  %v2479 = vsel %vm89, %v2322, 0
  %v2482 = vsel %vm89, %v2323, 0
  %v2485 = vsel %vm89, %v2324, 0
  %v2488 = vsel %vm89, %v2325, 0
  %v2491 = vsel %vm89, %v2326, 0
  %v2494 = vsel %vm89, %v2327, 0
  %v2497 = vsel %vm89, %v2328, 0
  %v2500 = vsel %vm89, %v2329, 0
  %v2503 = vsel %vm89, %v2330, 0
  %v2506 = vsel %vm89, %v2331, 0
  %v2509 = vsel %vm89, %v2332, 0
  %v2512 = vsel %vm89, %v2333, 0
  %v2515 = vsel %vm89, %v2334, 0
  %v2518 = vsel %vm89, %v2335, 0
  %v2521 = vsel %vm89, %v2336, 0
  %v2524 = vsel %vm89, %v2337, 0
  %v2527 = vsel %vm89, %v2338, 0
  %v2530 = vsel %vm89, %v2339, 0
  %2532 = vmatprep.subr.mxu0 0.0
  %2533 = vmatpush1.msra.mxu0 0.0
  %2534 = vmatprep.subr.mxu0 0.0
  %2535 = vmatpush1.msra.mxu0 0.0
  %2536 = vmatprep.subr.mxu0 0.0
  %2537 = vmatpush1.msra.mxu0 0.0
  %2538 = vmatprep.subr.mxu0 0.0
  %2539 = vmatpush1.msra.mxu0 0.0
  %2540 = vmatprep.subr.mxu0 0.0
  %2541 = vmatpush1.msra.mxu0 0.0
  %2542 = vmatprep.subr.mxu0 0.0
  %2543 = vmatpush1.msra.mxu0 0.0
  %2544 = vmatprep.subr.mxu0 0.0
  %2545 = vmatpush1.msra.mxu0 0.0
  %2546 = vmatprep.subr.mxu0 0.0
  %2547 = vmatpush1.msra.mxu0 0.0
  %2548 = vmatprep.subr.mxu0 0.0
  %2549 = vmatpush1.msra.mxu0 0.0
  %2550 = vmatprep.subr.mxu0 0.0
  %2551 = vmatpush1.msra.mxu0 0.0
  %2552 = vmatprep.subr.mxu0 0.0
  %2553 = vmatpush1.msra.mxu0 0.0
  %2554 = vmatprep.subr.mxu0 0.0
  %2555 = vmatpush1.msra.mxu0 0.0
  %2556 = vmatprep.subr.mxu0 0.0
  %2557 = vmatpush1.msra.mxu0 %v284
  %2558 = vmatprep.subr.mxu0 0.0
  %2559 = vmatpush1.msra.mxu0 %v16
  %2560 = vmatprep.subr.mxu0 0.0
  %2561 = vmatpush1.msra.mxu0 %v15
  %2562 = vmatprep.subr.mxu0 0.0
  %2563 = vmatpush1.msra.mxu0 %v14
  %2564 = vmatprep.subr.mxu0 0.0
  %2565 = vmatpush2.msra.mxu0 0.0
  %2566 = vmatprep.subr.mxu0 0.0
  %2567 = vmatpush2.msra.mxu0 0.0
  %2568 = vmatprep.subr.mxu0 0.0
  %2569 = vmatpush2.msra.mxu0 0.0
  %2570 = vmatprep.subr.mxu0 0.0
  %2571 = vmatpush2.msra.mxu0 0.0
  %2572 = vmatprep.subr.mxu0 0.0
  %2573 = vmatpush2.msra.mxu0 0.0
  %2574 = vmatprep.subr.mxu0 0.0
  %2575 = vmatpush2.msra.mxu0 0.0
  %2576 = vmatprep.subr.mxu0 0.0
  %2577 = vmatpush2.msra.mxu0 0.0
  %2578 = vmatprep.subr.mxu0 0.0
  %2579 = vmatpush2.msra.mxu0 0.0
  %2580 = vmatprep.subr.mxu0 0.0
  %2581 = vmatpush2.msra.mxu0 0.0
  %2582 = vmatprep.subr.mxu0 0.0
  %2583 = vmatpush2.msra.mxu0 0.0
  %2584 = vmatprep.subr.mxu0 0.0
  %2585 = vmatpush2.msra.mxu0 0.0
  %2586 = vmatprep.subr.mxu0 0.0
  %2587 = vmatpush2.msra.mxu0 0.0
  %2588 = vmatprep.subr.mxu0 0.0
  %2589 = vmatpush2.msra.mxu0 0.0
  %2590 = vmatprep.subr.mxu0 0.0
  %2591 = vmatpush2.msra.mxu0 0.0
  %2592 = vmatprep.subr.mxu0 0.0
  %2593 = vmatpush2.msra.mxu0 0.0
  %2594 = vmatprep.subr.mxu0 0.0
  %2595 = vmatpush2.msra.mxu0 0.0
  %2596 = vmatprep.mubr.f32.mxu0 0.0
  %2597 = vmatmul.mubr.f32.gmra.mxu0 %v2341
  %v2598 = vpop.f32.mrf.mxu0
  %v2599 = vadd.f32 %v87, %v2598
  %v2600 = vpop.f32.mrf.mxu0
  %2601 = vmatprep.mubr.f32.mxu0 0.0
  %2602 = vmatmul.mubr.f32.gmra.mxu0 %v2344
  %v2603 = vpop.f32.mrf.mxu0
  %v2604 = vadd.f32 %v87, %v2603
  %v2605 = vpop.f32.mrf.mxu0
  %2606 = vmatprep.mubr.f32.mxu0 0.0
  %2607 = vmatmul.mubr.f32.gmra.mxu0 %v2347
  %v2608 = vpop.f32.mrf.mxu0
  %v2609 = vadd.f32 %v87, %v2608
  %v2610 = vpop.f32.mrf.mxu0
  %2611 = vmatprep.mubr.f32.mxu0 0.0
  %2612 = vmatmul.mubr.f32.gmra.mxu0 %v2350
  %v2613 = vpop.f32.mrf.mxu0
  %v2614 = vadd.f32 %v87, %v2613
  %v2615 = vpop.f32.mrf.mxu0
  %2616 = vmatprep.mubr.f32.mxu0 0.0
  %2617 = vmatmul.mubr.f32.gmra.mxu0 %v2353
  %v2618 = vpop.f32.mrf.mxu0
  %v2619 = vadd.f32 %v87, %v2618
  %v2620 = vpop.f32.mrf.mxu0
  %2621 = vmatprep.mubr.f32.mxu0 0.0
  %2622 = vmatmul.mubr.f32.gmra.mxu0 %v2356
  %v2623 = vpop.f32.mrf.mxu0
  %v2624 = vadd.f32 %v87, %v2623
  %v2625 = vpop.f32.mrf.mxu0
  %2626 = vmatprep.mubr.f32.mxu0 0.0
  %2627 = vmatmul.mubr.f32.gmra.mxu0 %v2359
  %v2628 = vpop.f32.mrf.mxu0
  %v2629 = vadd.f32 %v87, %v2628
  %v2630 = vpop.f32.mrf.mxu0
  %2631 = vmatprep.mubr.f32.mxu0 0.0
  %2632 = vmatmul.mubr.f32.gmra.mxu0 %v2362
  %v2633 = vpop.f32.mrf.mxu0
  %v2634 = vadd.f32 %v87, %v2633
  %v2635 = vpop.f32.mrf.mxu0
  %2636 = vmatprep.mubr.f32.mxu0 0.0
  %2637 = vmatmul.mubr.f32.gmra.mxu0 %v2365
  %v2638 = vpop.f32.mrf.mxu0
  %v2639 = vadd.f32 %v87, %v2638
  %v2640 = vpop.f32.mrf.mxu0
  %2641 = vmatprep.mubr.f32.mxu0 0.0
  %2642 = vmatmul.mubr.f32.gmra.mxu0 %v2368
  %v2643 = vpop.f32.mrf.mxu0
  %v2644 = vadd.f32 %v87, %v2643
  %v2645 = vpop.f32.mrf.mxu0
  %2646 = vmatprep.mubr.f32.mxu0 0.0
  %2647 = vmatmul.mubr.f32.gmra.mxu0 %v2371
  %v2648 = vpop.f32.mrf.mxu0
  %v2649 = vadd.f32 %v87, %v2648
  %v2650 = vpop.f32.mrf.mxu0
  %2651 = vmatprep.mubr.f32.mxu0 0.0
  %2652 = vmatmul.mubr.f32.gmra.mxu0 %v2374
  %v2653 = vpop.f32.mrf.mxu0
  %v2654 = vadd.f32 %v87, %v2653
  %v2655 = vpop.f32.mrf.mxu0
  %2656 = vmatprep.mubr.f32.mxu0 0.0
  %2657 = vmatmul.mubr.f32.gmra.mxu0 %v2377
  %v2658 = vpop.f32.mrf.mxu0
  %v2659 = vadd.f32 %v87, %v2658
  %v2660 = vpop.f32.mrf.mxu0
  %2661 = vmatprep.mubr.f32.mxu0 0.0
  %2662 = vmatmul.mubr.f32.gmra.mxu0 %v2380
  %v2663 = vpop.f32.mrf.mxu0
  %v2664 = vadd.f32 %v87, %v2663
  %v2665 = vpop.f32.mrf.mxu0
  %2666 = vmatprep.mubr.f32.mxu0 0.0
  %2667 = vmatmul.mubr.f32.gmra.mxu0 %v2383
  %v2668 = vpop.f32.mrf.mxu0
  %v2669 = vadd.f32 %v87, %v2668
  %v2670 = vpop.f32.mrf.mxu0
  %2671 = vmatprep.mubr.f32.mxu0 0.0
  %2672 = vmatmul.mubr.f32.gmra.mxu0 %v2386
  %v2673 = vpop.f32.mrf.mxu0
  %v2674 = vadd.f32 %v87, %v2673
  %v2675 = vpop.f32.mrf.mxu0
  %2676 = vmatprep.mubr.f32.mxu0 0.0
  %2677 = vmatmul.mubr.f32.gmra.mxu0 %v2389
  %v2678 = vpop.f32.mrf.mxu0
  %v2679 = vadd.f32 %v87, %v2678
  %v2680 = vpop.f32.mrf.mxu0
  %2681 = vmatprep.mubr.f32.mxu0 0.0
  %2682 = vmatmul.mubr.f32.gmra.mxu0 %v2392
  %v2683 = vpop.f32.mrf.mxu0
  %v2684 = vadd.f32 %v87, %v2683
  %v2685 = vpop.f32.mrf.mxu0
  %2686 = vmatprep.mubr.f32.mxu0 0.0
  %2687 = vmatmul.mubr.f32.gmra.mxu0 %v2395
  %v2688 = vpop.f32.mrf.mxu0
  %v2689 = vadd.f32 %v87, %v2688
  %v2690 = vpop.f32.mrf.mxu0
  %2691 = vmatprep.mubr.f32.mxu0 0.0
  %2692 = vmatmul.mubr.f32.gmra.mxu0 %v2398
  %v2693 = vpop.f32.mrf.mxu0
  %v2694 = vadd.f32 %v87, %v2693
  %v2695 = vpop.f32.mrf.mxu0
  %2696 = vmatprep.mubr.f32.mxu0 0.0
  %2697 = vmatmul.mubr.f32.gmra.mxu0 %v2401
  %v2698 = vpop.f32.mrf.mxu0
  %v2699 = vadd.f32 %v87, %v2698
  %v2700 = vpop.f32.mrf.mxu0
  %2701 = vmatprep.mubr.f32.mxu0 0.0
  %2702 = vmatmul.mubr.f32.gmra.mxu0 %v2404
  %v2703 = vpop.f32.mrf.mxu0
  %v2704 = vadd.f32 %v87, %v2703
  %v2705 = vpop.f32.mrf.mxu0
  %2706 = vmatprep.mubr.f32.mxu0 0.0
  %2707 = vmatmul.mubr.f32.gmra.mxu0 %v2407
  %v2708 = vpop.f32.mrf.mxu0
  %v2709 = vadd.f32 %v87, %v2708
  %v2710 = vpop.f32.mrf.mxu0
  %2711 = vmatprep.mubr.f32.mxu0 0.0
  %2712 = vmatmul.mubr.f32.gmra.mxu0 %v2410
  %v2713 = vpop.f32.mrf.mxu0
  %v2714 = vadd.f32 %v87, %v2713
  %v2715 = vpop.f32.mrf.mxu0
  %2716 = vmatprep.mubr.f32.mxu0 0.0
  %2717 = vmatmul.mubr.f32.gmra.mxu0 %v2413
  %v2718 = vpop.f32.mrf.mxu0
  %v2719 = vadd.f32 %v87, %v2718
  %v2720 = vpop.f32.mrf.mxu0
  %2721 = vmatprep.mubr.f32.mxu0 0.0
  %2722 = vmatmul.mubr.f32.gmra.mxu0 %v2416
  %v2723 = vpop.f32.mrf.mxu0
  %v2724 = vadd.f32 %v87, %v2723
  %v2725 = vpop.f32.mrf.mxu0
  %2726 = vmatprep.mubr.f32.mxu0 0.0
  %2727 = vmatmul.mubr.f32.gmra.mxu0 %v2419
  %v2728 = vpop.f32.mrf.mxu0
  %v2729 = vadd.f32 %v87, %v2728
  %v2730 = vpop.f32.mrf.mxu0
  %2731 = vmatprep.mubr.f32.mxu0 0.0
  %2732 = vmatmul.mubr.f32.gmra.mxu0 %v2422
  %v2733 = vpop.f32.mrf.mxu0
  %v2734 = vadd.f32 %v87, %v2733
  %v2735 = vpop.f32.mrf.mxu0
  %2736 = vmatprep.mubr.f32.mxu0 0.0
  %2737 = vmatmul.mubr.f32.gmra.mxu0 %v2425
  %v2738 = vpop.f32.mrf.mxu0
  %v2739 = vadd.f32 %v87, %v2738
  %v2740 = vpop.f32.mrf.mxu0
  %2741 = vmatprep.mubr.f32.mxu0 0.0
  %2742 = vmatmul.mubr.f32.gmra.mxu0 %v2428
  %v2743 = vpop.f32.mrf.mxu0
  %v2744 = vadd.f32 %v87, %v2743
  %v2745 = vpop.f32.mrf.mxu0
  %2746 = vmatprep.mubr.f32.mxu0 0.0
  %2747 = vmatmul.mubr.f32.gmra.mxu0 %v2431
  %v2748 = vpop.f32.mrf.mxu0
  %v2749 = vadd.f32 %v87, %v2748
  %v2750 = vpop.f32.mrf.mxu0
  %2751 = vmatprep.mubr.f32.mxu0 0.0
  %2752 = vmatmul.mubr.f32.gmra.mxu0 %v2434
  %v2753 = vpop.f32.mrf.mxu0
  %v2754 = vadd.f32 %v87, %v2753
  %v2755 = vpop.f32.mrf.mxu0
  %2756 = vmatprep.mubr.f32.mxu0 0.0
  %2757 = vmatmul.mubr.f32.gmra.mxu0 %v2437
  %v2758 = vpop.f32.mrf.mxu0
  %v2759 = vadd.f32 %v87, %v2758
  %v2760 = vpop.f32.mrf.mxu0
  %2761 = vmatprep.mubr.f32.mxu0 0.0
  %2762 = vmatmul.mubr.f32.gmra.mxu0 %v2440
  %v2763 = vpop.f32.mrf.mxu0
  %v2764 = vadd.f32 %v87, %v2763
  %v2765 = vpop.f32.mrf.mxu0
  %2766 = vmatprep.mubr.f32.mxu0 0.0
  %2767 = vmatmul.mubr.f32.gmra.mxu0 %v2443
  %v2768 = vpop.f32.mrf.mxu0
  %v2769 = vadd.f32 %v87, %v2768
  %v2770 = vpop.f32.mrf.mxu0
  %2771 = vmatprep.mubr.f32.mxu0 0.0
  %2772 = vmatmul.mubr.f32.gmra.mxu0 %v2446
  %v2773 = vpop.f32.mrf.mxu0
  %v2774 = vadd.f32 %v87, %v2773
  %v2775 = vpop.f32.mrf.mxu0
  %2776 = vmatprep.mubr.f32.mxu0 0.0
  %2777 = vmatmul.mubr.f32.gmra.mxu0 %v2449
  %v2778 = vpop.f32.mrf.mxu0
  %v2779 = vadd.f32 %v87, %v2778
  %v2780 = vpop.f32.mrf.mxu0
  %2781 = vmatprep.mubr.f32.mxu0 0.0
  %2782 = vmatmul.mubr.f32.gmra.mxu0 %v2452
  %v2783 = vpop.f32.mrf.mxu0
  %v2784 = vadd.f32 %v87, %v2783
  %v2785 = vpop.f32.mrf.mxu0
  %2786 = vmatprep.mubr.f32.mxu0 0.0
  %2787 = vmatmul.mubr.f32.gmra.mxu0 %v2455
  %v2788 = vpop.f32.mrf.mxu0
  %v2789 = vadd.f32 %v87, %v2788
  %v2790 = vpop.f32.mrf.mxu0
  %2791 = vmatprep.mubr.f32.mxu0 0.0
  %2792 = vmatmul.mubr.f32.gmra.mxu0 %v2458
  %v2793 = vpop.f32.mrf.mxu0
  %v2794 = vadd.f32 %v87, %v2793
  %v2795 = vpop.f32.mrf.mxu0
  %2796 = vmatprep.mubr.f32.mxu0 0.0
  %2797 = vmatmul.mubr.f32.gmra.mxu0 %v2461
  %v2798 = vpop.f32.mrf.mxu0
  %v2799 = vadd.f32 %v87, %v2798
  %v2800 = vpop.f32.mrf.mxu0
  %2801 = vmatprep.mubr.f32.mxu0 0.0
  %2802 = vmatmul.mubr.f32.gmra.mxu0 %v2464
  %v2803 = vpop.f32.mrf.mxu0
  %v2804 = vadd.f32 %v87, %v2803
  %v2805 = vpop.f32.mrf.mxu0
  %2806 = vmatprep.mubr.f32.mxu0 0.0
  %2807 = vmatmul.mubr.f32.gmra.mxu0 %v2467
  %v2808 = vpop.f32.mrf.mxu0
  %v2809 = vadd.f32 %v87, %v2808
  %v2810 = vpop.f32.mrf.mxu0
  %2811 = vmatprep.mubr.f32.mxu0 0.0
  %2812 = vmatmul.mubr.f32.gmra.mxu0 %v2470
  %v2813 = vpop.f32.mrf.mxu0
  %v2814 = vadd.f32 %v87, %v2813
  %v2815 = vpop.f32.mrf.mxu0
  %2816 = vmatprep.mubr.f32.mxu0 0.0
  %2817 = vmatmul.mubr.f32.gmra.mxu0 %v2473
  %v2818 = vpop.f32.mrf.mxu0
  %v2819 = vadd.f32 %v87, %v2818
  %v2820 = vpop.f32.mrf.mxu0
  %2821 = vmatprep.mubr.f32.mxu0 0.0
  %2822 = vmatmul.mubr.f32.gmra.mxu0 %v2476
  %v2823 = vpop.f32.mrf.mxu0
  %v2824 = vadd.f32 %v87, %v2823
  %v2825 = vpop.f32.mrf.mxu0
  %2826 = vmatprep.mubr.f32.mxu0 0.0
  %2827 = vmatmul.mubr.f32.gmra.mxu0 %v2479
  %v2828 = vpop.f32.mrf.mxu0
  %v2829 = vadd.f32 %v87, %v2828
  %v2830 = vpop.f32.mrf.mxu0
  %2831 = vmatprep.mubr.f32.mxu0 0.0
  %2832 = vmatmul.mubr.f32.gmra.mxu0 %v2482
  %v2833 = vpop.f32.mrf.mxu0
  %v2834 = vadd.f32 %v87, %v2833
  %v2835 = vpop.f32.mrf.mxu0
  %2836 = vmatprep.mubr.f32.mxu0 0.0
  %2837 = vmatmul.mubr.f32.gmra.mxu0 %v2485
  %v2838 = vpop.f32.mrf.mxu0
  %v2839 = vadd.f32 %v87, %v2838
  %v2840 = vpop.f32.mrf.mxu0
  %2841 = vmatprep.mubr.f32.mxu0 0.0
  %2842 = vmatmul.mubr.f32.gmra.mxu0 %v2488
  %v2843 = vpop.f32.mrf.mxu0
  %v2844 = vadd.f32 %v87, %v2843
  %v2845 = vpop.f32.mrf.mxu0
  %2846 = vmatprep.mubr.f32.mxu0 0.0
  %2847 = vmatmul.mubr.f32.gmra.mxu0 %v2491
  %v2848 = vpop.f32.mrf.mxu0
  %v2849 = vadd.f32 %v87, %v2848
  %v2850 = vpop.f32.mrf.mxu0
  %2851 = vmatprep.mubr.f32.mxu0 0.0
  %2852 = vmatmul.mubr.f32.gmra.mxu0 %v2494
  %v2853 = vpop.f32.mrf.mxu0
  %v2854 = vadd.f32 %v87, %v2853
  %v2855 = vpop.f32.mrf.mxu0
  %2856 = vmatprep.mubr.f32.mxu0 0.0
  %2857 = vmatmul.mubr.f32.gmra.mxu0 %v2497
  %v2858 = vpop.f32.mrf.mxu0
  %v2859 = vadd.f32 %v87, %v2858
  %v2860 = vpop.f32.mrf.mxu0
  %2861 = vmatprep.mubr.f32.mxu0 0.0
  %2862 = vmatmul.mubr.f32.gmra.mxu0 %v2500
  %v2863 = vpop.f32.mrf.mxu0
  %v2864 = vadd.f32 %v87, %v2863
  %v2865 = vpop.f32.mrf.mxu0
  %2866 = vmatprep.mubr.f32.mxu0 0.0
  %2867 = vmatmul.mubr.f32.gmra.mxu0 %v2503
  %v2868 = vpop.f32.mrf.mxu0
  %v2869 = vadd.f32 %v87, %v2868
  %v2870 = vpop.f32.mrf.mxu0
  %2871 = vmatprep.mubr.f32.mxu0 0.0
  %2872 = vmatmul.mubr.f32.gmra.mxu0 %v2506
  %v2873 = vpop.f32.mrf.mxu0
  %v2874 = vadd.f32 %v87, %v2873
  %v2875 = vpop.f32.mrf.mxu0
  %2876 = vmatprep.mubr.f32.mxu0 0.0
  %2877 = vmatmul.mubr.f32.gmra.mxu0 %v2509
  %v2878 = vpop.f32.mrf.mxu0
  %v2879 = vadd.f32 %v87, %v2878
  %v2880 = vpop.f32.mrf.mxu0
  %2881 = vmatprep.mubr.f32.mxu0 0.0
  %2882 = vmatmul.mubr.f32.gmra.mxu0 %v2512
  %v2883 = vpop.f32.mrf.mxu0
  %v2884 = vadd.f32 %v87, %v2883
  %v2885 = vpop.f32.mrf.mxu0
  %2886 = vmatprep.mubr.f32.mxu0 0.0
  %2887 = vmatmul.mubr.f32.gmra.mxu0 %v2515
  %v2888 = vpop.f32.mrf.mxu0
  %v2889 = vadd.f32 %v87, %v2888
  %v2890 = vpop.f32.mrf.mxu0
  %2891 = vmatprep.mubr.f32.mxu0 0.0
  %2892 = vmatmul.mubr.f32.gmra.mxu0 %v2518
  %v2893 = vpop.f32.mrf.mxu0
  %v2894 = vadd.f32 %v87, %v2893
  %v2895 = vpop.f32.mrf.mxu0
  %2896 = vmatprep.mubr.f32.mxu0 0.0
  %2897 = vmatmul.mubr.f32.gmra.mxu0 %v2521
  %v2898 = vpop.f32.mrf.mxu0
  %v2899 = vadd.f32 %v87, %v2898
  %v2900 = vpop.f32.mrf.mxu0
  %2901 = vmatprep.mubr.f32.mxu0 0.0
  %2902 = vmatmul.mubr.f32.gmra.mxu0 %v2524
  %v2903 = vpop.f32.mrf.mxu0
  %v2904 = vadd.f32 %v87, %v2903
  %v2905 = vpop.f32.mrf.mxu0
  %2906 = vmatprep.mubr.f32.mxu0 0.0
  %2907 = vmatmul.mubr.f32.gmra.mxu0 %v2527
  %v2908 = vpop.f32.mrf.mxu0
  %v2909 = vadd.f32 %v87, %v2908
  %v2910 = vpop.f32.mrf.mxu0
  %2911 = vmatprep.mubr.f32.mxu0 0.0
  %2912 = vmatmul.mubr.f32.gmra.mxu0 %v2530
  %v2913 = vpop.f32.mrf.mxu0
  %v2914 = vadd.f32 %v87, %v2913
  %v2915 = vpop.f32.mrf.mxu0
  %2916 = vdwg.mxu0
  %v2917 = vmax.f32 %v2599, 0.0
  %v2918 = vmax.f32 %v2604, 0.0
  %v2919 = vmax.f32 %v2609, 0.0
  %v2920 = vmax.f32 %v2614, 0.0
  %v2921 = vmax.f32 %v2619, 0.0
  %v2922 = vmax.f32 %v2624, 0.0
  %v2923 = vmax.f32 %v2629, 0.0
  %v2924 = vmax.f32 %v2634, 0.0
  %v2925 = vmax.f32 %v2639, 0.0
  %v2926 = vmax.f32 %v2644, 0.0
  %v2927 = vmax.f32 %v2649, 0.0
  %v2928 = vmax.f32 %v2654, 0.0
  %v2929 = vmax.f32 %v2659, 0.0
  %v2930 = vmax.f32 %v2664, 0.0
  %v2931 = vmax.f32 %v2669, 0.0
  %v2932 = vmax.f32 %v2674, 0.0
  %v2933 = vmax.f32 %v2679, 0.0
  %v2934 = vmax.f32 %v2684, 0.0
  %v2935 = vmax.f32 %v2689, 0.0
  %v2936 = vmax.f32 %v2694, 0.0
  %v2937 = vmax.f32 %v2699, 0.0
  %v2938 = vmax.f32 %v2704, 0.0
  %v2939 = vmax.f32 %v2709, 0.0
  %v2940 = vmax.f32 %v2714, 0.0
  %v2941 = vmax.f32 %v2719, 0.0
  %v2942 = vmax.f32 %v2724, 0.0
  %v2943 = vmax.f32 %v2729, 0.0
  %v2944 = vmax.f32 %v2734, 0.0
  %v2945 = vmax.f32 %v2739, 0.0
  %v2946 = vmax.f32 %v2744, 0.0
  %v2947 = vmax.f32 %v2749, 0.0
  %v2948 = vmax.f32 %v2754, 0.0
  %v2949 = vmax.f32 %v2759, 0.0
  %v2950 = vmax.f32 %v2764, 0.0
  %v2951 = vmax.f32 %v2769, 0.0
  %v2952 = vmax.f32 %v2774, 0.0
  %v2953 = vmax.f32 %v2779, 0.0
  %v2954 = vmax.f32 %v2784, 0.0
  %v2955 = vmax.f32 %v2789, 0.0
  %v2956 = vmax.f32 %v2794, 0.0
  %v2957 = vmax.f32 %v2799, 0.0
  %v2958 = vmax.f32 %v2804, 0.0
  %v2959 = vmax.f32 %v2809, 0.0
  %v2960 = vmax.f32 %v2814, 0.0
  %v2961 = vmax.f32 %v2819, 0.0
  %v2962 = vmax.f32 %v2824, 0.0
  %v2963 = vmax.f32 %v2829, 0.0
  %v2964 = vmax.f32 %v2834, 0.0
  %v2965 = vmax.f32 %v2839, 0.0
  %v2966 = vmax.f32 %v2844, 0.0
  %v2967 = vmax.f32 %v2849, 0.0
  %v2968 = vmax.f32 %v2854, 0.0
  %v2969 = vmax.f32 %v2859, 0.0
  %v2970 = vmax.f32 %v2864, 0.0
  %v2971 = vmax.f32 %v2869, 0.0
  %v2972 = vmax.f32 %v2874, 0.0
  %v2973 = vmax.f32 %v2879, 0.0
  %v2974 = vmax.f32 %v2884, 0.0
  %v2975 = vmax.f32 %v2889, 0.0
  %v2976 = vmax.f32 %v2894, 0.0
  %v2977 = vmax.f32 %v2899, 0.0
  %v2978 = vmax.f32 %v2904, 0.0
  %v2979 = vmax.f32 %v2909, 0.0
  %v2980 = vmax.f32 %v2914, 0.0
  %v2981 = vmax.f32 %v2211, %v2917
  %v2982 = vmax.f32 %v2212, %v2918
  %v2983 = vmax.f32 %v2213, %v2919
  %v2984 = vmax.f32 %v2214, %v2920
  %v2985 = vmax.f32 %v2215, %v2921
  %v2986 = vmax.f32 %v2216, %v2922
  %v2987 = vmax.f32 %v2217, %v2923
  %v2988 = vmax.f32 %v2218, %v2924
  %v2989 = vmax.f32 %v2219, %v2925
  %v2990 = vmax.f32 %v2220, %v2926
  %v2991 = vmax.f32 %v2221, %v2927
  %v2992 = vmax.f32 %v2222, %v2928
  %v2993 = vmax.f32 %v2223, %v2929
  %v2994 = vmax.f32 %v2224, %v2930
  %v2995 = vmax.f32 %v2225, %v2931
  %v2996 = vmax.f32 %v2226, %v2932
  %v2997 = vmax.f32 %v2227, %v2933
  %v2998 = vmax.f32 %v2228, %v2934
  %v2999 = vmax.f32 %v2229, %v2935
  %v3000 = vmax.f32 %v2230, %v2936
  %v3001 = vmax.f32 %v2231, %v2937
  %v3002 = vmax.f32 %v2232, %v2938
  %v3003 = vmax.f32 %v2233, %v2939
  %v3004 = vmax.f32 %v2234, %v2940
  %v3005 = vmax.f32 %v2235, %v2941
  %v3006 = vmax.f32 %v2236, %v2942
  %v3007 = vmax.f32 %v2237, %v2943
  %v3008 = vmax.f32 %v2238, %v2944
  %v3009 = vmax.f32 %v2239, %v2945
  %v3010 = vmax.f32 %v2240, %v2946
  %v3011 = vmax.f32 %v2241, %v2947
  %v3012 = vmax.f32 %v2242, %v2948
  %v3013 = vmax.f32 %v2243, %v2949
  %v3014 = vmax.f32 %v2244, %v2950
  %v3015 = vmax.f32 %v2245, %v2951
  %v3016 = vmax.f32 %v2246, %v2952
  %v3017 = vmax.f32 %v2247, %v2953
  %v3018 = vmax.f32 %v2248, %v2954
  %v3019 = vmax.f32 %v2249, %v2955
  %v3020 = vmax.f32 %v2250, %v2956
  %v3021 = vmax.f32 %v2251, %v2957
  %v3022 = vmax.f32 %v2252, %v2958
  %v3023 = vmax.f32 %v2253, %v2959
  %v3024 = vmax.f32 %v2254, %v2960
  %v3025 = vmax.f32 %v2255, %v2961
  %v3026 = vmax.f32 %v2256, %v2962
  %v3027 = vmax.f32 %v2257, %v2963
  %v3028 = vmax.f32 %v2258, %v2964
  %v3029 = vmax.f32 %v2259, %v2965
  %v3030 = vmax.f32 %v2260, %v2966
  %v3031 = vmax.f32 %v2261, %v2967
  %v3032 = vmax.f32 %v2262, %v2968
  %v3033 = vmax.f32 %v2263, %v2969
  %v3034 = vmax.f32 %v2264, %v2970
  %v3035 = vmax.f32 %v2265, %v2971
  %v3036 = vmax.f32 %v2266, %v2972
  %v3037 = vmax.f32 %v2267, %v2973
  %v3038 = vmax.f32 %v2268, %v2974
  %v3039 = vmax.f32 %v2269, %v2975
  %v3040 = vmax.f32 %v2270, %v2976
  %v3041 = vmax.f32 %v2271, %v2977
  %v3042 = vmax.f32 %v2272, %v2978
  %v3043 = vmax.f32 %v2273, %v2979
  %v3044 = vmax.f32 %v2274, %v2980
  %vm3045 = vcmask 130048
  %3046 = vst.msk [vmem:[%s3] sm:$0xff] %vm3045, %v2981
  %3047 = vst.msk [vmem:[%s3 + $0x8] sm:$0xff] %vm3045, %v2982
  %3048 = vst.msk [vmem:[%s3 + $0x10] sm:$0xff] %vm3045, %v2983
  %3049 = vst.msk [vmem:[%s3 + $0x18] sm:$0xff] %vm3045, %v2984
  %3050 = vst.msk [vmem:[%s3 + $0x20] sm:$0xff] %vm3045, %v2985
  %3051 = vst.msk [vmem:[%s3 + $0x28] sm:$0xff] %vm3045, %v2986
  %3052 = vst.msk [vmem:[%s3 + $0x30] sm:$0xff] %vm3045, %v2987
  %3053 = vst.msk [vmem:[%s3 + $0x38] sm:$0xff] %vm3045, %v2988
  %3054 = vst.msk [vmem:[%s3 + $0x40] sm:$0xff] %vm3045, %v2989
  %3055 = vst.msk [vmem:[%s3 + $0x48] sm:$0xff] %vm3045, %v2990
  %3056 = vst.msk [vmem:[%s3 + $0x50] sm:$0xff] %vm3045, %v2991
  %3057 = vst.msk [vmem:[%s3 + $0x58] sm:$0xff] %vm3045, %v2992
  %3058 = vst.msk [vmem:[%s3 + $0x60] sm:$0xff] %vm3045, %v2993
  %3059 = vst.msk [vmem:[%s3 + $0x68] sm:$0xff] %vm3045, %v2994
  %3060 = vst.msk [vmem:[%s3 + $0x70] sm:$0xff] %vm3045, %v2995
  %3061 = vst.msk [vmem:[%s3 + $0x78] sm:$0xff] %vm3045, %v2996
  %3062 = vst.msk [vmem:[%s3 + $0x80] sm:$0xff] %vm3045, %v2997
  %3063 = vst.msk [vmem:[%s3 + $0x88] sm:$0xff] %vm3045, %v2998
  %3064 = vst.msk [vmem:[%s3 + $0x90] sm:$0xff] %vm3045, %v2999
  %3065 = vst.msk [vmem:[%s3 + $0x98] sm:$0xff] %vm3045, %v3000
  %3066 = vst.msk [vmem:[%s3 + $0xa0] sm:$0xff] %vm3045, %v3001
  %3067 = vst.msk [vmem:[%s3 + $0xa8] sm:$0xff] %vm3045, %v3002
  %3068 = vst.msk [vmem:[%s3 + $0xb0] sm:$0xff] %vm3045, %v3003
  %3069 = vst.msk [vmem:[%s3 + $0xb8] sm:$0xff] %vm3045, %v3004
  %3070 = vst.msk [vmem:[%s3 + $0xc0] sm:$0xff] %vm3045, %v3005
  %3071 = vst.msk [vmem:[%s3 + $0xc8] sm:$0xff] %vm3045, %v3006
  %3072 = vst.msk [vmem:[%s3 + $0xd0] sm:$0xff] %vm3045, %v3007
  %3073 = vst.msk [vmem:[%s3 + $0xd8] sm:$0xff] %vm3045, %v3008
  %3074 = vst.msk [vmem:[%s3 + $0xe0] sm:$0xff] %vm3045, %v3009
  %3075 = vst.msk [vmem:[%s3 + $0xe8] sm:$0xff] %vm3045, %v3010
  %3076 = vst.msk [vmem:[%s3 + $0xf0] sm:$0xff] %vm3045, %v3011
  %3077 = vst.msk [vmem:[%s3 + $0xf8] sm:$0xff] %vm3045, %v3012
  %3078 = vst.msk [vmem:[%s3 + $0x100] sm:$0xff] %vm3045, %v3013
  %3079 = vst.msk [vmem:[%s3 + $0x108] sm:$0xff] %vm3045, %v3014
  %3080 = vst.msk [vmem:[%s3 + $0x110] sm:$0xff] %vm3045, %v3015
  %3081 = vst.msk [vmem:[%s3 + $0x118] sm:$0xff] %vm3045, %v3016
  %3082 = vst.msk [vmem:[%s3 + $0x120] sm:$0xff] %vm3045, %v3017
  %3083 = vst.msk [vmem:[%s3 + $0x128] sm:$0xff] %vm3045, %v3018
  %3084 = vst.msk [vmem:[%s3 + $0x130] sm:$0xff] %vm3045, %v3019
  %3085 = vst.msk [vmem:[%s3 + $0x138] sm:$0xff] %vm3045, %v3020
  %3086 = vst.msk [vmem:[%s3 + $0x140] sm:$0xff] %vm3045, %v3021
  %3087 = vst.msk [vmem:[%s3 + $0x148] sm:$0xff] %vm3045, %v3022
  %3088 = vst.msk [vmem:[%s3 + $0x150] sm:$0xff] %vm3045, %v3023
  %3089 = vst.msk [vmem:[%s3 + $0x158] sm:$0xff] %vm3045, %v3024
  %3090 = vst.msk [vmem:[%s3 + $0x160] sm:$0xff] %vm3045, %v3025
  %3091 = vst.msk [vmem:[%s3 + $0x168] sm:$0xff] %vm3045, %v3026
  %3092 = vst.msk [vmem:[%s3 + $0x170] sm:$0xff] %vm3045, %v3027
  %3093 = vst.msk [vmem:[%s3 + $0x178] sm:$0xff] %vm3045, %v3028
  %3094 = vst.msk [vmem:[%s3 + $0x180] sm:$0xff] %vm3045, %v3029
  %3095 = vst.msk [vmem:[%s3 + $0x188] sm:$0xff] %vm3045, %v3030
  %3096 = vst.msk [vmem:[%s3 + $0x190] sm:$0xff] %vm3045, %v3031
  %3097 = vst.msk [vmem:[%s3 + $0x198] sm:$0xff] %vm3045, %v3032
  %3098 = vst.msk [vmem:[%s3 + $0x1a0] sm:$0xff] %vm3045, %v3033
  %3099 = vst.msk [vmem:[%s3 + $0x1a8] sm:$0xff] %vm3045, %v3034
  %3100 = vst.msk [vmem:[%s3 + $0x1b0] sm:$0xff] %vm3045, %v3035
  %3101 = vst.msk [vmem:[%s3 + $0x1b8] sm:$0xff] %vm3045, %v3036
  %3102 = vst.msk [vmem:[%s3 + $0x1c0] sm:$0xff] %vm3045, %v3037
  %3103 = vst.msk [vmem:[%s3 + $0x1c8] sm:$0xff] %vm3045, %v3038
  %3104 = vst.msk [vmem:[%s3 + $0x1d0] sm:$0xff] %vm3045, %v3039
  %3105 = vst.msk [vmem:[%s3 + $0x1d8] sm:$0xff] %vm3045, %v3040
  %3106 = vst.msk [vmem:[%s3 + $0x1e0] sm:$0xff] %vm3045, %v3041
  %3107 = vst.msk [vmem:[%s3 + $0x1e8] sm:$0xff] %vm3045, %v3042
  %3108 = vst.msk [vmem:[%s3 + $0x1f0] sm:$0xff] %vm3045, %v3043
  %3109 = vst.msk [vmem:[%s3 + $0x1f8] sm:$0xff] %vm3045, %v3044
  // Predicated region
  $region14: #{forward.5} parent=0 // pred_check
    _
  $region15: #{forward.5} parent=0 // pred_check_branch
    %3111 = sbr.rel (0) target = $region17
  $region16: #{forward.5} parent=0 // pred_region
    _
  $region17: #{forward.5} parent=0 // pred_fallthru
    _
  // Predicated region
  $region18: #{forward.5} parent=0 // pred_check
    _
  $region19: #{forward.5} parent=0 // pred_check_branch
    %3113 = sbr.rel (0) target = $region21
  $region20: #{forward.5} parent=0 // pred_region
    _
  $region21: #{forward.5} parent=0 // pred_fallthru
    _

// kernel: forward.6
$region0: #{forward.6}
  #allocation0 [shape = 'u32[]', space=smem, size = 0x4, offset = 0x4, fixed_abs, tag = 'smem constant byte address 0x4 - core index']
  #allocation1 [shape = 'u32[144,128]{1,0:T(1,128)}', space=vmem, size = 0x12000, scoped, tag = 'internal scratch']
  %s0 = inlined_call_operand.vmem [shape: f32[4,128,144], index: 0, kind: input, shape index: {}]
  %s1 = inlined_call_operand.vmem [shape: f32[144,32], index: 1, kind: input, shape index: {}]
  %s2 = inlined_call_operand.vmem [shape: f32[1,32], index: 2, kind: input, shape index: {}]
  %s3 = inlined_call_operand.vmem [shape: f32[128,32], index: 3, kind: output, shape index: {}]
  %s4 = sld [smem:[#allocation0]]
  $region22: #{forward.6} parent=0
    _
  %s6 = ssub.s32 1, %s4
  %s7 = scalar_select 0, %s6, %s4
  // Predicated region
  $region2: #{forward.6} parent=0 // pred_check
    _
  $region3: #{forward.6} parent=0 // pred_check_branch
    %9 = sbr.rel (0) target = $region5
  $region4: #{forward.6} parent=0 // pred_region
    _
  $region5: #{forward.6} parent=0 // pred_fallthru
    _
  // Predicated region
  $region6: #{forward.6} parent=0 // pred_check
    _
  $region7: #{forward.6} parent=0 // pred_check_branch
    %11 = sbr.rel (0) target = $region9
  $region8: #{forward.6} parent=0 // pred_region
    _
  $region9: #{forward.6} parent=0 // pred_fallthru
    _
  // Predicated region
  $region10: #{forward.6} parent=0 // pred_check
    _
  $region11: #{forward.6} parent=0 // pred_check_branch
    %13 = sbr.rel (0) target = $region13
  $region12: #{forward.6} parent=0 // pred_region
    _
  $region13: #{forward.6} parent=0 // pred_fallthru
    _
  %v14 = vld [vmem:[%s1] sm:$0xff]
  %v15 = vld [vmem:[%s1 + $0x8] sm:$0xff]
  %v16 = vld [vmem:[%s1 + $0x10] sm:$0xff]
  %v17 = vld [vmem:[%s1 + $0x18] sm:$0xff]
  %v18 = vld [vmem:[%s1 + $0x20] sm:$0xff]
  %v19 = vld [vmem:[%s1 + $0x28] sm:$0xff]
  %v20 = vld [vmem:[%s1 + $0x30] sm:$0xff]
  %v21 = vld [vmem:[%s1 + $0x38] sm:$0xff]
  %v22 = vld [vmem:[%s1 + $0x40] sm:$0xff]
  %v23 = vld [vmem:[%s1 + $0x48] sm:$0xff]
  %v24 = vld [vmem:[%s1 + $0x50] sm:$0xff]
  %v25 = vld [vmem:[%s1 + $0x58] sm:$0xff]
  %v26 = vld [vmem:[%s1 + $0x60] sm:$0xff]
  %v27 = vld [vmem:[%s1 + $0x68] sm:$0xff]
  %v28 = vld [vmem:[%s1 + $0x70] sm:$0xff]
  %v29 = vld [vmem:[%s1 + $0x78] sm:$0xff]
  %v30 = vld [vmem:[%s1 + $0x80] sm:$0xff]
  %v31 = vld [vmem:[%s1 + $0x88] sm:$0xff]
  %v32 = vld [vmem:[%s2] sm:$0x1]
  %v33 = vld [vmem:[%s0] sm:$0xff]
  %v34 = vld [vmem:[%s0 + $0x8] sm:$0xff]
  %v35 = vld [vmem:[%s0 + $0x10] sm:$0xff]
  %v36 = vld [vmem:[%s0 + $0x18] sm:$0xff]
  %v37 = vld [vmem:[%s0 + $0x20] sm:$0xff]
  %v38 = vld [vmem:[%s0 + $0x28] sm:$0xff]
  %v39 = vld [vmem:[%s0 + $0x30] sm:$0xff]
  %v40 = vld [vmem:[%s0 + $0x38] sm:$0xff]
  %v41 = vld [vmem:[%s0 + $0x40] sm:$0xff]
  %v42 = vld [vmem:[%s0 + $0x48] sm:$0xff]
  %v43 = vld [vmem:[%s0 + $0x50] sm:$0xff]
  %v44 = vld [vmem:[%s0 + $0x58] sm:$0xff]
  %v45 = vld [vmem:[%s0 + $0x60] sm:$0xff]
  %v46 = vld [vmem:[%s0 + $0x68] sm:$0xff]
  %v47 = vld [vmem:[%s0 + $0x70] sm:$0xff]
  %v48 = vld [vmem:[%s0 + $0x78] sm:$0xff]
  %v49 = vld [vmem:[%s0 + $0x80] sm:$0xff]
  %v50 = vld [vmem:[%s0 + $0x88] sm:$0xff]
  %v51 = vld [vmem:[%s0 + $0x90] sm:$0xff]
  %v52 = vld [vmem:[%s0 + $0x98] sm:$0xff]
  %v53 = vld [vmem:[%s0 + $0xa0] sm:$0xff]
  %v54 = vld [vmem:[%s0 + $0xa8] sm:$0xff]
  %v55 = vld [vmem:[%s0 + $0xb0] sm:$0xff]
  %v56 = vld [vmem:[%s0 + $0xb8] sm:$0xff]
  %v57 = vld [vmem:[%s0 + $0xc0] sm:$0xff]
  %v58 = vld [vmem:[%s0 + $0xc8] sm:$0xff]
  %v59 = vld [vmem:[%s0 + $0xd0] sm:$0xff]
  %v60 = vld [vmem:[%s0 + $0xd8] sm:$0xff]
  %v61 = vld [vmem:[%s0 + $0xe0] sm:$0xff]
  %v62 = vld [vmem:[%s0 + $0xe8] sm:$0xff]
  %v63 = vld [vmem:[%s0 + $0xf0] sm:$0xff]
  %v64 = vld [vmem:[%s0 + $0xf8] sm:$0xff]
  %v66 = vlaneseq
  %v67 = vshrl.u32 %v66, 7
  %v68 = vsub.s32 0, %v67
  %v69 = vrot.slane %v32, %v68
  %vm71 = vcmask 130048
  %v73 = vsel %vm71, %v34, 0
  %v76 = vsel %vm71, %v36, 0
  %v79 = vsel %vm71, %v38, 0
  %v82 = vsel %vm71, %v40, 0
  %v85 = vsel %vm71, %v42, 0
  %v88 = vsel %vm71, %v44, 0
  %v91 = vsel %vm71, %v46, 0
  %v94 = vsel %vm71, %v48, 0
  %v97 = vsel %vm71, %v50, 0
  %v100 = vsel %vm71, %v52, 0
  %v103 = vsel %vm71, %v54, 0
  %v106 = vsel %vm71, %v56, 0
  %v109 = vsel %vm71, %v58, 0
  %v112 = vsel %vm71, %v60, 0
  %v115 = vsel %vm71, %v62, 0
  %v118 = vsel %vm71, %v64, 0
  %120 = vmatprep.subr.mxu0 0.0
  %121 = vmatpush1.msra.mxu0 %v29
  %122 = vmatprep.subr.mxu0 0.0
  %123 = vmatpush1.msra.mxu0 %v28
  %124 = vmatprep.subr.mxu0 0.0
  %125 = vmatpush1.msra.mxu0 %v27
  %126 = vmatprep.subr.mxu0 0.0
  %127 = vmatpush1.msra.mxu0 %v26
  %128 = vmatprep.subr.mxu0 0.0
  %129 = vmatpush1.msra.mxu0 %v25
  %130 = vmatprep.subr.mxu0 0.0
  %131 = vmatpush1.msra.mxu0 %v24
  %132 = vmatprep.subr.mxu0 0.0
  %133 = vmatpush1.msra.mxu0 %v23
  %134 = vmatprep.subr.mxu0 0.0
  %135 = vmatpush1.msra.mxu0 %v22
  %136 = vmatprep.subr.mxu0 0.0
  %137 = vmatpush1.msra.mxu0 %v21
  %138 = vmatprep.subr.mxu0 0.0
  %139 = vmatpush1.msra.mxu0 %v20
  %140 = vmatprep.subr.mxu0 0.0
  %141 = vmatpush1.msra.mxu0 %v19
  %142 = vmatprep.subr.mxu0 0.0
  %143 = vmatpush1.msra.mxu0 %v18
  %144 = vmatprep.subr.mxu0 0.0
  %145 = vmatpush1.msra.mxu0 %v17
  %146 = vmatprep.subr.mxu0 0.0
  %147 = vmatpush1.msra.mxu0 %v16
  %148 = vmatprep.subr.mxu0 0.0
  %149 = vmatpush1.msra.mxu0 %v15
  %150 = vmatprep.subr.mxu0 0.0
  %151 = vmatpush1.msra.mxu0 %v14
  %152 = vmatprep.subr.mxu0 0.0
  %153 = vmatpush2.msra.mxu0 0.0
  %154 = vmatprep.subr.mxu0 0.0
  %155 = vmatpush2.msra.mxu0 0.0
  %156 = vmatprep.subr.mxu0 0.0
  %157 = vmatpush2.msra.mxu0 0.0
  %158 = vmatprep.subr.mxu0 0.0
  %159 = vmatpush2.msra.mxu0 0.0
  %160 = vmatprep.subr.mxu0 0.0
  %161 = vmatpush2.msra.mxu0 0.0
  %162 = vmatprep.subr.mxu0 0.0
  %163 = vmatpush2.msra.mxu0 0.0
  %164 = vmatprep.subr.mxu0 0.0
  %165 = vmatpush2.msra.mxu0 0.0
  %166 = vmatprep.subr.mxu0 0.0
  %167 = vmatpush2.msra.mxu0 0.0
  %168 = vmatprep.subr.mxu0 0.0
  %169 = vmatpush2.msra.mxu0 0.0
  %170 = vmatprep.subr.mxu0 0.0
  %171 = vmatpush2.msra.mxu0 0.0
  %172 = vmatprep.subr.mxu0 0.0
  %173 = vmatpush2.msra.mxu0 0.0
  %174 = vmatprep.subr.mxu0 0.0
  %175 = vmatpush2.msra.mxu0 0.0
  %176 = vmatprep.subr.mxu0 0.0
  %177 = vmatpush2.msra.mxu0 0.0
  %178 = vmatprep.subr.mxu0 0.0
  %179 = vmatpush2.msra.mxu0 0.0
  %180 = vmatprep.subr.mxu0 0.0
  %181 = vmatpush2.msra.mxu0 %v31
  %182 = vmatprep.subr.mxu0 0.0
  %183 = vmatpush2.msra.mxu0 %v30
  %184 = vmatprep.mubr.f32.mxu0 %v73
  %185 = vmatmul.mubr.f32.gmra.mxu0 %v33
  %v186 = vpop.f32.mrf.mxu0
  %v187 = vadd.f32 %v69, %v186
  %v188 = vpop.f32.mrf.mxu0
  %189 = vmatprep.mubr.f32.mxu0 %v76
  %190 = vmatmul.mubr.f32.gmra.mxu0 %v35
  %v191 = vpop.f32.mrf.mxu0
  %v192 = vadd.f32 %v69, %v191
  %v193 = vpop.f32.mrf.mxu0
  %194 = vmatprep.mubr.f32.mxu0 %v79
  %195 = vmatmul.mubr.f32.gmra.mxu0 %v37
  %v196 = vpop.f32.mrf.mxu0
  %v197 = vadd.f32 %v69, %v196
  %v198 = vpop.f32.mrf.mxu0
  %199 = vmatprep.mubr.f32.mxu0 %v82
  %200 = vmatmul.mubr.f32.gmra.mxu0 %v39
  %v201 = vpop.f32.mrf.mxu0
  %v202 = vadd.f32 %v69, %v201
  %v203 = vpop.f32.mrf.mxu0
  %204 = vmatprep.mubr.f32.mxu0 %v85
  %205 = vmatmul.mubr.f32.gmra.mxu0 %v41
  %v206 = vpop.f32.mrf.mxu0
  %v207 = vadd.f32 %v69, %v206
  %v208 = vpop.f32.mrf.mxu0
  %209 = vmatprep.mubr.f32.mxu0 %v88
  %210 = vmatmul.mubr.f32.gmra.mxu0 %v43
  %v211 = vpop.f32.mrf.mxu0
  %v212 = vadd.f32 %v69, %v211
  %v213 = vpop.f32.mrf.mxu0
  %214 = vmatprep.mubr.f32.mxu0 %v91
  %215 = vmatmul.mubr.f32.gmra.mxu0 %v45
  %v216 = vpop.f32.mrf.mxu0
  %v217 = vadd.f32 %v69, %v216
  %v218 = vpop.f32.mrf.mxu0
  %219 = vmatprep.mubr.f32.mxu0 %v94
  %220 = vmatmul.mubr.f32.gmra.mxu0 %v47
  %v221 = vpop.f32.mrf.mxu0
  %v222 = vadd.f32 %v69, %v221
  %v223 = vpop.f32.mrf.mxu0
  %224 = vmatprep.mubr.f32.mxu0 %v97
  %225 = vmatmul.mubr.f32.gmra.mxu0 %v49
  %v226 = vpop.f32.mrf.mxu0
  %v227 = vadd.f32 %v69, %v226
  %v228 = vpop.f32.mrf.mxu0
  %229 = vmatprep.mubr.f32.mxu0 %v100
  %230 = vmatmul.mubr.f32.gmra.mxu0 %v51
  %v231 = vpop.f32.mrf.mxu0
  %v232 = vadd.f32 %v69, %v231
  %v233 = vpop.f32.mrf.mxu0
  %234 = vmatprep.mubr.f32.mxu0 %v103
  %235 = vmatmul.mubr.f32.gmra.mxu0 %v53
  %v236 = vpop.f32.mrf.mxu0
  %v237 = vadd.f32 %v69, %v236
  %v238 = vpop.f32.mrf.mxu0
  %239 = vmatprep.mubr.f32.mxu0 %v106
  %240 = vmatmul.mubr.f32.gmra.mxu0 %v55
  %v241 = vpop.f32.mrf.mxu0
  %v242 = vadd.f32 %v69, %v241
  %v243 = vpop.f32.mrf.mxu0
  %244 = vmatprep.mubr.f32.mxu0 %v109
  %245 = vmatmul.mubr.f32.gmra.mxu0 %v57
  %v246 = vpop.f32.mrf.mxu0
  %v247 = vadd.f32 %v69, %v246
  %v248 = vpop.f32.mrf.mxu0
  %249 = vmatprep.mubr.f32.mxu0 %v112
  %250 = vmatmul.mubr.f32.gmra.mxu0 %v59
  %v251 = vpop.f32.mrf.mxu0
  %v252 = vadd.f32 %v69, %v251
  %v253 = vpop.f32.mrf.mxu0
  %254 = vmatprep.mubr.f32.mxu0 %v115
  %255 = vmatmul.mubr.f32.gmra.mxu0 %v61
  %v256 = vpop.f32.mrf.mxu0
  %v257 = vadd.f32 %v69, %v256
  %v258 = vpop.f32.mrf.mxu0
  %259 = vmatprep.mubr.f32.mxu0 %v118
  %260 = vmatmul.mubr.f32.gmra.mxu0 %v63
  %v261 = vpop.f32.mrf.mxu0
  %v262 = vadd.f32 %v69, %v261
  %v263 = vpop.f32.mrf.mxu0
  %264 = vdwg.mxu0
  %v265 = vmax.f32 %v187, 0.0
  %v266 = vmax.f32 %v192, 0.0
  %v267 = vmax.f32 %v197, 0.0
  %v268 = vmax.f32 %v202, 0.0
  %v269 = vmax.f32 %v207, 0.0
  %v270 = vmax.f32 %v212, 0.0
  %v271 = vmax.f32 %v217, 0.0
  %v272 = vmax.f32 %v222, 0.0
  %v273 = vmax.f32 %v227, 0.0
  %v274 = vmax.f32 %v232, 0.0
  %v275 = vmax.f32 %v237, 0.0
  %v276 = vmax.f32 %v242, 0.0
  %v277 = vmax.f32 %v247, 0.0
  %v278 = vmax.f32 %v252, 0.0
  %v279 = vmax.f32 %v257, 0.0
  %v280 = vmax.f32 %v262, 0.0
  %s281 = scalar_lea.vmem %s0, 256
  %v282 = vld [vmem:[%s281] sm:$0xff]
  %v283 = vld [vmem:[%s281 + $0x8] sm:$0xff]
  %v284 = vld [vmem:[%s281 + $0x10] sm:$0xff]
  %v285 = vld [vmem:[%s281 + $0x18] sm:$0xff]
  %v286 = vld [vmem:[%s281 + $0x20] sm:$0xff]
  %v287 = vld [vmem:[%s281 + $0x28] sm:$0xff]
  %v288 = vld [vmem:[%s281 + $0x30] sm:$0xff]
  %v289 = vld [vmem:[%s281 + $0x38] sm:$0xff]
  %v290 = vld [vmem:[%s281 + $0x40] sm:$0xff]
  %v291 = vld [vmem:[%s281 + $0x48] sm:$0xff]
  %v292 = vld [vmem:[%s281 + $0x50] sm:$0xff]
  %v293 = vld [vmem:[%s281 + $0x58] sm:$0xff]
  %v294 = vld [vmem:[%s281 + $0x60] sm:$0xff]
  %v295 = vld [vmem:[%s281 + $0x68] sm:$0xff]
  %v296 = vld [vmem:[%s281 + $0x70] sm:$0xff]
  %v297 = vld [vmem:[%s281 + $0x78] sm:$0xff]
  %v298 = vld [vmem:[%s281 + $0x80] sm:$0xff]
  %v299 = vld [vmem:[%s281 + $0x88] sm:$0xff]
  %v300 = vld [vmem:[%s281 + $0x90] sm:$0xff]
  %v301 = vld [vmem:[%s281 + $0x98] sm:$0xff]
  %v302 = vld [vmem:[%s281 + $0xa0] sm:$0xff]
  %v303 = vld [vmem:[%s281 + $0xa8] sm:$0xff]
  %v304 = vld [vmem:[%s281 + $0xb0] sm:$0xff]
  %v305 = vld [vmem:[%s281 + $0xb8] sm:$0xff]
  %v306 = vld [vmem:[%s281 + $0xc0] sm:$0xff]
  %v307 = vld [vmem:[%s281 + $0xc8] sm:$0xff]
  %v308 = vld [vmem:[%s281 + $0xd0] sm:$0xff]
  %v309 = vld [vmem:[%s281 + $0xd8] sm:$0xff]
  %v310 = vld [vmem:[%s281 + $0xe0] sm:$0xff]
  %v311 = vld [vmem:[%s281 + $0xe8] sm:$0xff]
  %v312 = vld [vmem:[%s281 + $0xf0] sm:$0xff]
  %v313 = vld [vmem:[%s281 + $0xf8] sm:$0xff]
  %v315 = vsel %vm71, %v283, 0
  %v318 = vsel %vm71, %v285, 0
  %v321 = vsel %vm71, %v287, 0
  %v324 = vsel %vm71, %v289, 0
  %v327 = vsel %vm71, %v291, 0
  %v330 = vsel %vm71, %v293, 0
  %v333 = vsel %vm71, %v295, 0
  %v336 = vsel %vm71, %v297, 0
  %v339 = vsel %vm71, %v299, 0
  %v342 = vsel %vm71, %v301, 0
  %v345 = vsel %vm71, %v303, 0
  %v348 = vsel %vm71, %v305, 0
  %v351 = vsel %vm71, %v307, 0
  %v354 = vsel %vm71, %v309, 0
  %v357 = vsel %vm71, %v311, 0
  %v360 = vsel %vm71, %v313, 0
  %362 = vmatprep.subr.mxu0 0.0
  %363 = vmatpush1.msra.mxu0 %v29
  %364 = vmatprep.subr.mxu0 0.0
  %365 = vmatpush1.msra.mxu0 %v28
  %366 = vmatprep.subr.mxu0 0.0
  %367 = vmatpush1.msra.mxu0 %v27
  %368 = vmatprep.subr.mxu0 0.0
  %369 = vmatpush1.msra.mxu0 %v26
  %370 = vmatprep.subr.mxu0 0.0
  %371 = vmatpush1.msra.mxu0 %v25
  %372 = vmatprep.subr.mxu0 0.0
  %373 = vmatpush1.msra.mxu0 %v24
  %374 = vmatprep.subr.mxu0 0.0
  %375 = vmatpush1.msra.mxu0 %v23
  %376 = vmatprep.subr.mxu0 0.0
  %377 = vmatpush1.msra.mxu0 %v22
  %378 = vmatprep.subr.mxu0 0.0
  %379 = vmatpush1.msra.mxu0 %v21
  %380 = vmatprep.subr.mxu0 0.0
  %381 = vmatpush1.msra.mxu0 %v20
  %382 = vmatprep.subr.mxu0 0.0
  %383 = vmatpush1.msra.mxu0 %v19
  %384 = vmatprep.subr.mxu0 0.0
  %385 = vmatpush1.msra.mxu0 %v18
  %386 = vmatprep.subr.mxu0 0.0
  %387 = vmatpush1.msra.mxu0 %v17
  %388 = vmatprep.subr.mxu0 0.0
  %389 = vmatpush1.msra.mxu0 %v16
  %390 = vmatprep.subr.mxu0 0.0
  %391 = vmatpush1.msra.mxu0 %v15
  %392 = vmatprep.subr.mxu0 0.0
  %393 = vmatpush1.msra.mxu0 %v14
  %394 = vmatprep.subr.mxu0 0.0
  %395 = vmatpush2.msra.mxu0 0.0
  %396 = vmatprep.subr.mxu0 0.0
  %397 = vmatpush2.msra.mxu0 0.0
  %398 = vmatprep.subr.mxu0 0.0
  %399 = vmatpush2.msra.mxu0 0.0
  %400 = vmatprep.subr.mxu0 0.0
  %401 = vmatpush2.msra.mxu0 0.0
  %402 = vmatprep.subr.mxu0 0.0
  %403 = vmatpush2.msra.mxu0 0.0
  %404 = vmatprep.subr.mxu0 0.0
  %405 = vmatpush2.msra.mxu0 0.0
  %406 = vmatprep.subr.mxu0 0.0
  %407 = vmatpush2.msra.mxu0 0.0
  %408 = vmatprep.subr.mxu0 0.0
  %409 = vmatpush2.msra.mxu0 0.0
  %410 = vmatprep.subr.mxu0 0.0
  %411 = vmatpush2.msra.mxu0 0.0
  %412 = vmatprep.subr.mxu0 0.0
  %413 = vmatpush2.msra.mxu0 0.0
  %414 = vmatprep.subr.mxu0 0.0
  %415 = vmatpush2.msra.mxu0 0.0
  %416 = vmatprep.subr.mxu0 0.0
  %417 = vmatpush2.msra.mxu0 0.0
  %418 = vmatprep.subr.mxu0 0.0
  %419 = vmatpush2.msra.mxu0 0.0
  %420 = vmatprep.subr.mxu0 0.0
  %421 = vmatpush2.msra.mxu0 0.0
  %422 = vmatprep.subr.mxu0 0.0
  %423 = vmatpush2.msra.mxu0 %v31
  %424 = vmatprep.subr.mxu0 0.0
  %425 = vmatpush2.msra.mxu0 %v30
  %426 = vmatprep.mubr.f32.mxu0 %v315
  %427 = vmatmul.mubr.f32.gmra.mxu0 %v282
  %v428 = vpop.f32.mrf.mxu0
  %v429 = vadd.f32 %v69, %v428
  %v430 = vpop.f32.mrf.mxu0
  %431 = vmatprep.mubr.f32.mxu0 %v318
  %432 = vmatmul.mubr.f32.gmra.mxu0 %v284
  %v433 = vpop.f32.mrf.mxu0
  %v434 = vadd.f32 %v69, %v433
  %v435 = vpop.f32.mrf.mxu0
  %436 = vmatprep.mubr.f32.mxu0 %v321
  %437 = vmatmul.mubr.f32.gmra.mxu0 %v286
  %v438 = vpop.f32.mrf.mxu0
  %v439 = vadd.f32 %v69, %v438
  %v440 = vpop.f32.mrf.mxu0
  %441 = vmatprep.mubr.f32.mxu0 %v324
  %442 = vmatmul.mubr.f32.gmra.mxu0 %v288
  %v443 = vpop.f32.mrf.mxu0
  %v444 = vadd.f32 %v69, %v443
  %v445 = vpop.f32.mrf.mxu0
  %446 = vmatprep.mubr.f32.mxu0 %v327
  %447 = vmatmul.mubr.f32.gmra.mxu0 %v290
  %v448 = vpop.f32.mrf.mxu0
  %v449 = vadd.f32 %v69, %v448
  %v450 = vpop.f32.mrf.mxu0
  %451 = vmatprep.mubr.f32.mxu0 %v330
  %452 = vmatmul.mubr.f32.gmra.mxu0 %v292
  %v453 = vpop.f32.mrf.mxu0
  %v454 = vadd.f32 %v69, %v453
  %v455 = vpop.f32.mrf.mxu0
  %456 = vmatprep.mubr.f32.mxu0 %v333
  %457 = vmatmul.mubr.f32.gmra.mxu0 %v294
  %v458 = vpop.f32.mrf.mxu0
  %v459 = vadd.f32 %v69, %v458
  %v460 = vpop.f32.mrf.mxu0
  %461 = vmatprep.mubr.f32.mxu0 %v336
  %462 = vmatmul.mubr.f32.gmra.mxu0 %v296
  %v463 = vpop.f32.mrf.mxu0
  %v464 = vadd.f32 %v69, %v463
  %v465 = vpop.f32.mrf.mxu0
  %466 = vmatprep.mubr.f32.mxu0 %v339
  %467 = vmatmul.mubr.f32.gmra.mxu0 %v298
  %v468 = vpop.f32.mrf.mxu0
  %v469 = vadd.f32 %v69, %v468
  %v470 = vpop.f32.mrf.mxu0
  %471 = vmatprep.mubr.f32.mxu0 %v342
  %472 = vmatmul.mubr.f32.gmra.mxu0 %v300
  %v473 = vpop.f32.mrf.mxu0
  %v474 = vadd.f32 %v69, %v473
  %v475 = vpop.f32.mrf.mxu0
  %476 = vmatprep.mubr.f32.mxu0 %v345
  %477 = vmatmul.mubr.f32.gmra.mxu0 %v302
  %v478 = vpop.f32.mrf.mxu0
  %v479 = vadd.f32 %v69, %v478
  %v480 = vpop.f32.mrf.mxu0
  %481 = vmatprep.mubr.f32.mxu0 %v348
  %482 = vmatmul.mubr.f32.gmra.mxu0 %v304
  %v483 = vpop.f32.mrf.mxu0
  %v484 = vadd.f32 %v69, %v483
  %v485 = vpop.f32.mrf.mxu0
  %486 = vmatprep.mubr.f32.mxu0 %v351
  %487 = vmatmul.mubr.f32.gmra.mxu0 %v306
  %v488 = vpop.f32.mrf.mxu0
  %v489 = vadd.f32 %v69, %v488
  %v490 = vpop.f32.mrf.mxu0
  %491 = vmatprep.mubr.f32.mxu0 %v354
  %492 = vmatmul.mubr.f32.gmra.mxu0 %v308
  %v493 = vpop.f32.mrf.mxu0
  %v494 = vadd.f32 %v69, %v493
  %v495 = vpop.f32.mrf.mxu0
  %496 = vmatprep.mubr.f32.mxu0 %v357
  %497 = vmatmul.mubr.f32.gmra.mxu0 %v310
  %v498 = vpop.f32.mrf.mxu0
  %v499 = vadd.f32 %v69, %v498
  %v500 = vpop.f32.mrf.mxu0
  %501 = vmatprep.mubr.f32.mxu0 %v360
  %502 = vmatmul.mubr.f32.gmra.mxu0 %v312
  %v503 = vpop.f32.mrf.mxu0
  %v504 = vadd.f32 %v69, %v503
  %v505 = vpop.f32.mrf.mxu0
  %506 = vdwg.mxu0
  %v507 = vmax.f32 %v429, 0.0
  %v508 = vmax.f32 %v434, 0.0
  %v509 = vmax.f32 %v439, 0.0
  %v510 = vmax.f32 %v444, 0.0
  %v511 = vmax.f32 %v449, 0.0
  %v512 = vmax.f32 %v454, 0.0
  %v513 = vmax.f32 %v459, 0.0
  %v514 = vmax.f32 %v464, 0.0
  %v515 = vmax.f32 %v469, 0.0
  %v516 = vmax.f32 %v474, 0.0
  %v517 = vmax.f32 %v479, 0.0
  %v518 = vmax.f32 %v484, 0.0
  %v519 = vmax.f32 %v489, 0.0
  %v520 = vmax.f32 %v494, 0.0
  %v521 = vmax.f32 %v499, 0.0
  %v522 = vmax.f32 %v504, 0.0
  %v523 = vmax.f32 %v265, %v507
  %v524 = vmax.f32 %v266, %v508
  %v525 = vmax.f32 %v267, %v509
  %v526 = vmax.f32 %v268, %v510
  %v527 = vmax.f32 %v269, %v511
  %v528 = vmax.f32 %v270, %v512
  %v529 = vmax.f32 %v271, %v513
  %v530 = vmax.f32 %v272, %v514
  %v531 = vmax.f32 %v273, %v515
  %v532 = vmax.f32 %v274, %v516
  %v533 = vmax.f32 %v275, %v517
  %v534 = vmax.f32 %v276, %v518
  %v535 = vmax.f32 %v277, %v519
  %v536 = vmax.f32 %v278, %v520
  %v537 = vmax.f32 %v279, %v521
  %v538 = vmax.f32 %v280, %v522
  %s539 = scalar_lea.vmem %s0, 512
  %v540 = vld [vmem:[%s539] sm:$0xff]
  %v541 = vld [vmem:[%s539 + $0x8] sm:$0xff]
  %v542 = vld [vmem:[%s539 + $0x10] sm:$0xff]
  %v543 = vld [vmem:[%s539 + $0x18] sm:$0xff]
  %v544 = vld [vmem:[%s539 + $0x20] sm:$0xff]
  %v545 = vld [vmem:[%s539 + $0x28] sm:$0xff]
  %v546 = vld [vmem:[%s539 + $0x30] sm:$0xff]
  %v547 = vld [vmem:[%s539 + $0x38] sm:$0xff]
  %v548 = vld [vmem:[%s539 + $0x40] sm:$0xff]
  %v549 = vld [vmem:[%s539 + $0x48] sm:$0xff]
  %v550 = vld [vmem:[%s539 + $0x50] sm:$0xff]
  %v551 = vld [vmem:[%s539 + $0x58] sm:$0xff]
  %v552 = vld [vmem:[%s539 + $0x60] sm:$0xff]
  %v553 = vld [vmem:[%s539 + $0x68] sm:$0xff]
  %v554 = vld [vmem:[%s539 + $0x70] sm:$0xff]
  %v555 = vld [vmem:[%s539 + $0x78] sm:$0xff]
  %v556 = vld [vmem:[%s539 + $0x80] sm:$0xff]
  %v557 = vld [vmem:[%s539 + $0x88] sm:$0xff]
  %v558 = vld [vmem:[%s539 + $0x90] sm:$0xff]
  %v559 = vld [vmem:[%s539 + $0x98] sm:$0xff]
  %v560 = vld [vmem:[%s539 + $0xa0] sm:$0xff]
  %v561 = vld [vmem:[%s539 + $0xa8] sm:$0xff]
  %v562 = vld [vmem:[%s539 + $0xb0] sm:$0xff]
  %v563 = vld [vmem:[%s539 + $0xb8] sm:$0xff]
  %v564 = vld [vmem:[%s539 + $0xc0] sm:$0xff]
  %v565 = vld [vmem:[%s539 + $0xc8] sm:$0xff]
  %v566 = vld [vmem:[%s539 + $0xd0] sm:$0xff]
  %v567 = vld [vmem:[%s539 + $0xd8] sm:$0xff]
  %v568 = vld [vmem:[%s539 + $0xe0] sm:$0xff]
  %v569 = vld [vmem:[%s539 + $0xe8] sm:$0xff]
  %v570 = vld [vmem:[%s539 + $0xf0] sm:$0xff]
  %v571 = vld [vmem:[%s539 + $0xf8] sm:$0xff]
  %v573 = vsel %vm71, %v541, 0
  %v576 = vsel %vm71, %v543, 0
  %v579 = vsel %vm71, %v545, 0
  %v582 = vsel %vm71, %v547, 0
  %v585 = vsel %vm71, %v549, 0
  %v588 = vsel %vm71, %v551, 0
  %v591 = vsel %vm71, %v553, 0
  %v594 = vsel %vm71, %v555, 0
  %v597 = vsel %vm71, %v557, 0
  %v600 = vsel %vm71, %v559, 0
  %v603 = vsel %vm71, %v561, 0
  %v606 = vsel %vm71, %v563, 0
  %v609 = vsel %vm71, %v565, 0
  %v612 = vsel %vm71, %v567, 0
  %v615 = vsel %vm71, %v569, 0
  %v618 = vsel %vm71, %v571, 0
  %620 = vmatprep.subr.mxu0 0.0
  %621 = vmatpush1.msra.mxu0 %v29
  %622 = vmatprep.subr.mxu0 0.0
  %623 = vmatpush1.msra.mxu0 %v28
  %624 = vmatprep.subr.mxu0 0.0
  %625 = vmatpush1.msra.mxu0 %v27
  %626 = vmatprep.subr.mxu0 0.0
  %627 = vmatpush1.msra.mxu0 %v26
  %628 = vmatprep.subr.mxu0 0.0
  %629 = vmatpush1.msra.mxu0 %v25
  %630 = vmatprep.subr.mxu0 0.0
  %631 = vmatpush1.msra.mxu0 %v24
  %632 = vmatprep.subr.mxu0 0.0
  %633 = vmatpush1.msra.mxu0 %v23
  %634 = vmatprep.subr.mxu0 0.0
  %635 = vmatpush1.msra.mxu0 %v22
  %636 = vmatprep.subr.mxu0 0.0
  %637 = vmatpush1.msra.mxu0 %v21
  %638 = vmatprep.subr.mxu0 0.0
  %639 = vmatpush1.msra.mxu0 %v20
  %640 = vmatprep.subr.mxu0 0.0
  %641 = vmatpush1.msra.mxu0 %v19
  %642 = vmatprep.subr.mxu0 0.0
  %643 = vmatpush1.msra.mxu0 %v18
  %644 = vmatprep.subr.mxu0 0.0
  %645 = vmatpush1.msra.mxu0 %v17
  %646 = vmatprep.subr.mxu0 0.0
  %647 = vmatpush1.msra.mxu0 %v16
  %648 = vmatprep.subr.mxu0 0.0
  %649 = vmatpush1.msra.mxu0 %v15
  %650 = vmatprep.subr.mxu0 0.0
  %651 = vmatpush1.msra.mxu0 %v14
  %652 = vmatprep.subr.mxu0 0.0
  %653 = vmatpush2.msra.mxu0 0.0
  %654 = vmatprep.subr.mxu0 0.0
  %655 = vmatpush2.msra.mxu0 0.0
  %656 = vmatprep.subr.mxu0 0.0
  %657 = vmatpush2.msra.mxu0 0.0
  %658 = vmatprep.subr.mxu0 0.0
  %659 = vmatpush2.msra.mxu0 0.0
  %660 = vmatprep.subr.mxu0 0.0
  %661 = vmatpush2.msra.mxu0 0.0
  %662 = vmatprep.subr.mxu0 0.0
  %663 = vmatpush2.msra.mxu0 0.0
  %664 = vmatprep.subr.mxu0 0.0
  %665 = vmatpush2.msra.mxu0 0.0
  %666 = vmatprep.subr.mxu0 0.0
  %667 = vmatpush2.msra.mxu0 0.0
  %668 = vmatprep.subr.mxu0 0.0
  %669 = vmatpush2.msra.mxu0 0.0
  %670 = vmatprep.subr.mxu0 0.0
  %671 = vmatpush2.msra.mxu0 0.0
  %672 = vmatprep.subr.mxu0 0.0
  %673 = vmatpush2.msra.mxu0 0.0
  %674 = vmatprep.subr.mxu0 0.0
  %675 = vmatpush2.msra.mxu0 0.0
  %676 = vmatprep.subr.mxu0 0.0
  %677 = vmatpush2.msra.mxu0 0.0
  %678 = vmatprep.subr.mxu0 0.0
  %679 = vmatpush2.msra.mxu0 0.0
  %680 = vmatprep.subr.mxu0 0.0
  %681 = vmatpush2.msra.mxu0 %v31
  %682 = vmatprep.subr.mxu0 0.0
  %683 = vmatpush2.msra.mxu0 %v30
  %684 = vmatprep.mubr.f32.mxu0 %v573
  %685 = vmatmul.mubr.f32.gmra.mxu0 %v540
  %v686 = vpop.f32.mrf.mxu0
  %v687 = vadd.f32 %v69, %v686
  %v688 = vpop.f32.mrf.mxu0
  %689 = vmatprep.mubr.f32.mxu0 %v576
  %690 = vmatmul.mubr.f32.gmra.mxu0 %v542
  %v691 = vpop.f32.mrf.mxu0
  %v692 = vadd.f32 %v69, %v691
  %v693 = vpop.f32.mrf.mxu0
  %694 = vmatprep.mubr.f32.mxu0 %v579
  %695 = vmatmul.mubr.f32.gmra.mxu0 %v544
  %v696 = vpop.f32.mrf.mxu0
  %v697 = vadd.f32 %v69, %v696
  %v698 = vpop.f32.mrf.mxu0
  %699 = vmatprep.mubr.f32.mxu0 %v582
  %700 = vmatmul.mubr.f32.gmra.mxu0 %v546
  %v701 = vpop.f32.mrf.mxu0
  %v702 = vadd.f32 %v69, %v701
  %v703 = vpop.f32.mrf.mxu0
  %704 = vmatprep.mubr.f32.mxu0 %v585
  %705 = vmatmul.mubr.f32.gmra.mxu0 %v548
  %v706 = vpop.f32.mrf.mxu0
  %v707 = vadd.f32 %v69, %v706
  %v708 = vpop.f32.mrf.mxu0
  %709 = vmatprep.mubr.f32.mxu0 %v588
  %710 = vmatmul.mubr.f32.gmra.mxu0 %v550
  %v711 = vpop.f32.mrf.mxu0
  %v712 = vadd.f32 %v69, %v711
  %v713 = vpop.f32.mrf.mxu0
  %714 = vmatprep.mubr.f32.mxu0 %v591
  %715 = vmatmul.mubr.f32.gmra.mxu0 %v552
  %v716 = vpop.f32.mrf.mxu0
  %v717 = vadd.f32 %v69, %v716
  %v718 = vpop.f32.mrf.mxu0
  %719 = vmatprep.mubr.f32.mxu0 %v594
  %720 = vmatmul.mubr.f32.gmra.mxu0 %v554
  %v721 = vpop.f32.mrf.mxu0
  %v722 = vadd.f32 %v69, %v721
  %v723 = vpop.f32.mrf.mxu0
  %724 = vmatprep.mubr.f32.mxu0 %v597
  %725 = vmatmul.mubr.f32.gmra.mxu0 %v556
  %v726 = vpop.f32.mrf.mxu0
  %v727 = vadd.f32 %v69, %v726
  %v728 = vpop.f32.mrf.mxu0
  %729 = vmatprep.mubr.f32.mxu0 %v600
  %730 = vmatmul.mubr.f32.gmra.mxu0 %v558
  %v731 = vpop.f32.mrf.mxu0
  %v732 = vadd.f32 %v69, %v731
  %v733 = vpop.f32.mrf.mxu0
  %734 = vmatprep.mubr.f32.mxu0 %v603
  %735 = vmatmul.mubr.f32.gmra.mxu0 %v560
  %v736 = vpop.f32.mrf.mxu0
  %v737 = vadd.f32 %v69, %v736
  %v738 = vpop.f32.mrf.mxu0
  %739 = vmatprep.mubr.f32.mxu0 %v606
  %740 = vmatmul.mubr.f32.gmra.mxu0 %v562
  %v741 = vpop.f32.mrf.mxu0
  %v742 = vadd.f32 %v69, %v741
  %v743 = vpop.f32.mrf.mxu0
  %744 = vmatprep.mubr.f32.mxu0 %v609
  %745 = vmatmul.mubr.f32.gmra.mxu0 %v564
  %v746 = vpop.f32.mrf.mxu0
  %v747 = vadd.f32 %v69, %v746
  %v748 = vpop.f32.mrf.mxu0
  %749 = vmatprep.mubr.f32.mxu0 %v612
  %750 = vmatmul.mubr.f32.gmra.mxu0 %v566
  %v751 = vpop.f32.mrf.mxu0
  %v752 = vadd.f32 %v69, %v751
  %v753 = vpop.f32.mrf.mxu0
  %754 = vmatprep.mubr.f32.mxu0 %v615
  %755 = vmatmul.mubr.f32.gmra.mxu0 %v568
  %v756 = vpop.f32.mrf.mxu0
  %v757 = vadd.f32 %v69, %v756
  %v758 = vpop.f32.mrf.mxu0
  %759 = vmatprep.mubr.f32.mxu0 %v618
  %760 = vmatmul.mubr.f32.gmra.mxu0 %v570
  %v761 = vpop.f32.mrf.mxu0
  %v762 = vadd.f32 %v69, %v761
  %v763 = vpop.f32.mrf.mxu0
  %764 = vdwg.mxu0
  %v765 = vmax.f32 %v687, 0.0
  %v766 = vmax.f32 %v692, 0.0
  %v767 = vmax.f32 %v697, 0.0
  %v768 = vmax.f32 %v702, 0.0
  %v769 = vmax.f32 %v707, 0.0
  %v770 = vmax.f32 %v712, 0.0
  %v771 = vmax.f32 %v717, 0.0
  %v772 = vmax.f32 %v722, 0.0
  %v773 = vmax.f32 %v727, 0.0
  %v774 = vmax.f32 %v732, 0.0
  %v775 = vmax.f32 %v737, 0.0
  %v776 = vmax.f32 %v742, 0.0
  %v777 = vmax.f32 %v747, 0.0
  %v778 = vmax.f32 %v752, 0.0
  %v779 = vmax.f32 %v757, 0.0
  %v780 = vmax.f32 %v762, 0.0
  %v781 = vmax.f32 %v523, %v765
  %v782 = vmax.f32 %v524, %v766
  %v783 = vmax.f32 %v525, %v767
  %v784 = vmax.f32 %v526, %v768
  %v785 = vmax.f32 %v527, %v769
  %v786 = vmax.f32 %v528, %v770
  %v787 = vmax.f32 %v529, %v771
  %v788 = vmax.f32 %v530, %v772
  %v789 = vmax.f32 %v531, %v773
  %v790 = vmax.f32 %v532, %v774
  %v791 = vmax.f32 %v533, %v775
  %v792 = vmax.f32 %v534, %v776
  %v793 = vmax.f32 %v535, %v777
  %v794 = vmax.f32 %v536, %v778
  %v795 = vmax.f32 %v537, %v779
  %v796 = vmax.f32 %v538, %v780
  %s797 = scalar_lea.vmem %s0, 768
  %v798 = vld [vmem:[%s797] sm:$0xff]
  %v799 = vld [vmem:[%s797 + $0x8] sm:$0xff]
  %v800 = vld [vmem:[%s797 + $0x10] sm:$0xff]
  %v801 = vld [vmem:[%s797 + $0x18] sm:$0xff]
  %v802 = vld [vmem:[%s797 + $0x20] sm:$0xff]
  %v803 = vld [vmem:[%s797 + $0x28] sm:$0xff]
  %v804 = vld [vmem:[%s797 + $0x30] sm:$0xff]
  %v805 = vld [vmem:[%s797 + $0x38] sm:$0xff]
  %v806 = vld [vmem:[%s797 + $0x40] sm:$0xff]
  %v807 = vld [vmem:[%s797 + $0x48] sm:$0xff]
  %v808 = vld [vmem:[%s797 + $0x50] sm:$0xff]
  %v809 = vld [vmem:[%s797 + $0x58] sm:$0xff]
  %v810 = vld [vmem:[%s797 + $0x60] sm:$0xff]
  %v811 = vld [vmem:[%s797 + $0x68] sm:$0xff]
  %v812 = vld [vmem:[%s797 + $0x70] sm:$0xff]
  %v813 = vld [vmem:[%s797 + $0x78] sm:$0xff]
  %v814 = vld [vmem:[%s797 + $0x80] sm:$0xff]
  %v815 = vld [vmem:[%s797 + $0x88] sm:$0xff]
  %v816 = vld [vmem:[%s797 + $0x90] sm:$0xff]
  %v817 = vld [vmem:[%s797 + $0x98] sm:$0xff]
  %v818 = vld [vmem:[%s797 + $0xa0] sm:$0xff]
  %v819 = vld [vmem:[%s797 + $0xa8] sm:$0xff]
  %v820 = vld [vmem:[%s797 + $0xb0] sm:$0xff]
  %v821 = vld [vmem:[%s797 + $0xb8] sm:$0xff]
  %v822 = vld [vmem:[%s797 + $0xc0] sm:$0xff]
  %v823 = vld [vmem:[%s797 + $0xc8] sm:$0xff]
  %v824 = vld [vmem:[%s797 + $0xd0] sm:$0xff]
  %v825 = vld [vmem:[%s797 + $0xd8] sm:$0xff]
  %v826 = vld [vmem:[%s797 + $0xe0] sm:$0xff]
  %v827 = vld [vmem:[%s797 + $0xe8] sm:$0xff]
  %v828 = vld [vmem:[%s797 + $0xf0] sm:$0xff]
  %v829 = vld [vmem:[%s797 + $0xf8] sm:$0xff]
  %v831 = vsel %vm71, %v799, 0
  %v834 = vsel %vm71, %v801, 0
  %v837 = vsel %vm71, %v803, 0
  %v840 = vsel %vm71, %v805, 0
  %v843 = vsel %vm71, %v807, 0
  %v846 = vsel %vm71, %v809, 0
  %v849 = vsel %vm71, %v811, 0
  %v852 = vsel %vm71, %v813, 0
  %v855 = vsel %vm71, %v815, 0
  %v858 = vsel %vm71, %v817, 0
  %v861 = vsel %vm71, %v819, 0
  %v864 = vsel %vm71, %v821, 0
  %v867 = vsel %vm71, %v823, 0
  %v870 = vsel %vm71, %v825, 0
  %v873 = vsel %vm71, %v827, 0
  %v876 = vsel %vm71, %v829, 0
  %878 = vmatprep.subr.mxu0 0.0
  %879 = vmatpush1.msra.mxu0 %v29
  %880 = vmatprep.subr.mxu0 0.0
  %881 = vmatpush1.msra.mxu0 %v28
  %882 = vmatprep.subr.mxu0 0.0
  %883 = vmatpush1.msra.mxu0 %v27
  %884 = vmatprep.subr.mxu0 0.0
  %885 = vmatpush1.msra.mxu0 %v26
  %886 = vmatprep.subr.mxu0 0.0
  %887 = vmatpush1.msra.mxu0 %v25
  %888 = vmatprep.subr.mxu0 0.0
  %889 = vmatpush1.msra.mxu0 %v24
  %890 = vmatprep.subr.mxu0 0.0
  %891 = vmatpush1.msra.mxu0 %v23
  %892 = vmatprep.subr.mxu0 0.0
  %893 = vmatpush1.msra.mxu0 %v22
  %894 = vmatprep.subr.mxu0 0.0
  %895 = vmatpush1.msra.mxu0 %v21
  %896 = vmatprep.subr.mxu0 0.0
  %897 = vmatpush1.msra.mxu0 %v20
  %898 = vmatprep.subr.mxu0 0.0
  %899 = vmatpush1.msra.mxu0 %v19
  %900 = vmatprep.subr.mxu0 0.0
  %901 = vmatpush1.msra.mxu0 %v18
  %902 = vmatprep.subr.mxu0 0.0
  %903 = vmatpush1.msra.mxu0 %v17
  %904 = vmatprep.subr.mxu0 0.0
  %905 = vmatpush1.msra.mxu0 %v16
  %906 = vmatprep.subr.mxu0 0.0
  %907 = vmatpush1.msra.mxu0 %v15
  %908 = vmatprep.subr.mxu0 0.0
  %909 = vmatpush1.msra.mxu0 %v14
  %910 = vmatprep.subr.mxu0 0.0
  %911 = vmatpush2.msra.mxu0 0.0
  %912 = vmatprep.subr.mxu0 0.0
  %913 = vmatpush2.msra.mxu0 0.0
  %914 = vmatprep.subr.mxu0 0.0
  %915 = vmatpush2.msra.mxu0 0.0
  %916 = vmatprep.subr.mxu0 0.0
  %917 = vmatpush2.msra.mxu0 0.0
  %918 = vmatprep.subr.mxu0 0.0
  %919 = vmatpush2.msra.mxu0 0.0
  %920 = vmatprep.subr.mxu0 0.0
  %921 = vmatpush2.msra.mxu0 0.0
  %922 = vmatprep.subr.mxu0 0.0
  %923 = vmatpush2.msra.mxu0 0.0
  %924 = vmatprep.subr.mxu0 0.0
  %925 = vmatpush2.msra.mxu0 0.0
  %926 = vmatprep.subr.mxu0 0.0
  %927 = vmatpush2.msra.mxu0 0.0
  %928 = vmatprep.subr.mxu0 0.0
  %929 = vmatpush2.msra.mxu0 0.0
  %930 = vmatprep.subr.mxu0 0.0
  %931 = vmatpush2.msra.mxu0 0.0
  %932 = vmatprep.subr.mxu0 0.0
  %933 = vmatpush2.msra.mxu0 0.0
  %934 = vmatprep.subr.mxu0 0.0
  %935 = vmatpush2.msra.mxu0 0.0
  %936 = vmatprep.subr.mxu0 0.0
  %937 = vmatpush2.msra.mxu0 0.0
  %938 = vmatprep.subr.mxu0 0.0
  %939 = vmatpush2.msra.mxu0 %v31
  %940 = vmatprep.subr.mxu0 0.0
  %941 = vmatpush2.msra.mxu0 %v30
  %942 = vmatprep.mubr.f32.mxu0 %v831
  %943 = vmatmul.mubr.f32.gmra.mxu0 %v798
  %v944 = vpop.f32.mrf.mxu0
  %v945 = vadd.f32 %v69, %v944
  %v946 = vpop.f32.mrf.mxu0
  %947 = vmatprep.mubr.f32.mxu0 %v834
  %948 = vmatmul.mubr.f32.gmra.mxu0 %v800
  %v949 = vpop.f32.mrf.mxu0
  %v950 = vadd.f32 %v69, %v949
  %v951 = vpop.f32.mrf.mxu0
  %952 = vmatprep.mubr.f32.mxu0 %v837
  %953 = vmatmul.mubr.f32.gmra.mxu0 %v802
  %v954 = vpop.f32.mrf.mxu0
  %v955 = vadd.f32 %v69, %v954
  %v956 = vpop.f32.mrf.mxu0
  %957 = vmatprep.mubr.f32.mxu0 %v840
  %958 = vmatmul.mubr.f32.gmra.mxu0 %v804
  %v959 = vpop.f32.mrf.mxu0
  %v960 = vadd.f32 %v69, %v959
  %v961 = vpop.f32.mrf.mxu0
  %962 = vmatprep.mubr.f32.mxu0 %v843
  %963 = vmatmul.mubr.f32.gmra.mxu0 %v806
  %v964 = vpop.f32.mrf.mxu0
  %v965 = vadd.f32 %v69, %v964
  %v966 = vpop.f32.mrf.mxu0
  %967 = vmatprep.mubr.f32.mxu0 %v846
  %968 = vmatmul.mubr.f32.gmra.mxu0 %v808
  %v969 = vpop.f32.mrf.mxu0
  %v970 = vadd.f32 %v69, %v969
  %v971 = vpop.f32.mrf.mxu0
  %972 = vmatprep.mubr.f32.mxu0 %v849
  %973 = vmatmul.mubr.f32.gmra.mxu0 %v810
  %v974 = vpop.f32.mrf.mxu0
  %v975 = vadd.f32 %v69, %v974
  %v976 = vpop.f32.mrf.mxu0
  %977 = vmatprep.mubr.f32.mxu0 %v852
  %978 = vmatmul.mubr.f32.gmra.mxu0 %v812
  %v979 = vpop.f32.mrf.mxu0
  %v980 = vadd.f32 %v69, %v979
  %v981 = vpop.f32.mrf.mxu0
  %982 = vmatprep.mubr.f32.mxu0 %v855
  %983 = vmatmul.mubr.f32.gmra.mxu0 %v814
  %v984 = vpop.f32.mrf.mxu0
  %v985 = vadd.f32 %v69, %v984
  %v986 = vpop.f32.mrf.mxu0
  %987 = vmatprep.mubr.f32.mxu0 %v858
  %988 = vmatmul.mubr.f32.gmra.mxu0 %v816
  %v989 = vpop.f32.mrf.mxu0
  %v990 = vadd.f32 %v69, %v989
  %v991 = vpop.f32.mrf.mxu0
  %992 = vmatprep.mubr.f32.mxu0 %v861
  %993 = vmatmul.mubr.f32.gmra.mxu0 %v818
  %v994 = vpop.f32.mrf.mxu0
  %v995 = vadd.f32 %v69, %v994
  %v996 = vpop.f32.mrf.mxu0
  %997 = vmatprep.mubr.f32.mxu0 %v864
  %998 = vmatmul.mubr.f32.gmra.mxu0 %v820
  %v999 = vpop.f32.mrf.mxu0
  %v1000 = vadd.f32 %v69, %v999
  %v1001 = vpop.f32.mrf.mxu0
  %1002 = vmatprep.mubr.f32.mxu0 %v867
  %1003 = vmatmul.mubr.f32.gmra.mxu0 %v822
  %v1004 = vpop.f32.mrf.mxu0
  %v1005 = vadd.f32 %v69, %v1004
  %v1006 = vpop.f32.mrf.mxu0
  %1007 = vmatprep.mubr.f32.mxu0 %v870
  %1008 = vmatmul.mubr.f32.gmra.mxu0 %v824
  %v1009 = vpop.f32.mrf.mxu0
  %v1010 = vadd.f32 %v69, %v1009
  %v1011 = vpop.f32.mrf.mxu0
  %1012 = vmatprep.mubr.f32.mxu0 %v873
  %1013 = vmatmul.mubr.f32.gmra.mxu0 %v826
  %v1014 = vpop.f32.mrf.mxu0
  %v1015 = vadd.f32 %v69, %v1014
  %v1016 = vpop.f32.mrf.mxu0
  %1017 = vmatprep.mubr.f32.mxu0 %v876
  %1018 = vmatmul.mubr.f32.gmra.mxu0 %v828
  %v1019 = vpop.f32.mrf.mxu0
  %v1020 = vadd.f32 %v69, %v1019
  %v1021 = vpop.f32.mrf.mxu0
  %1022 = vdwg.mxu0
  %v1023 = vmax.f32 %v945, 0.0
  %v1024 = vmax.f32 %v950, 0.0
  %v1025 = vmax.f32 %v955, 0.0
  %v1026 = vmax.f32 %v960, 0.0
  %v1027 = vmax.f32 %v965, 0.0
  %v1028 = vmax.f32 %v970, 0.0
  %v1029 = vmax.f32 %v975, 0.0
  %v1030 = vmax.f32 %v980, 0.0
  %v1031 = vmax.f32 %v985, 0.0
  %v1032 = vmax.f32 %v990, 0.0
  %v1033 = vmax.f32 %v995, 0.0
  %v1034 = vmax.f32 %v1000, 0.0
  %v1035 = vmax.f32 %v1005, 0.0
  %v1036 = vmax.f32 %v1010, 0.0
  %v1037 = vmax.f32 %v1015, 0.0
  %v1038 = vmax.f32 %v1020, 0.0
  %v1039 = vmax.f32 %v781, %v1023
  %v1040 = vmax.f32 %v782, %v1024
  %v1041 = vmax.f32 %v783, %v1025
  %v1042 = vmax.f32 %v784, %v1026
  %v1043 = vmax.f32 %v785, %v1027
  %v1044 = vmax.f32 %v786, %v1028
  %v1045 = vmax.f32 %v787, %v1029
  %v1046 = vmax.f32 %v788, %v1030
  %v1047 = vmax.f32 %v789, %v1031
  %v1048 = vmax.f32 %v790, %v1032
  %v1049 = vmax.f32 %v791, %v1033
  %v1050 = vmax.f32 %v792, %v1034
  %v1051 = vmax.f32 %v793, %v1035
  %v1052 = vmax.f32 %v794, %v1036
  %v1053 = vmax.f32 %v795, %v1037
  %v1054 = vmax.f32 %v796, %v1038
  %vm1055 = vcmask 261120
  %1056 = vst.msk [vmem:[%s3] sm:$0xff] %vm1055, %v1039
  %1057 = vst.msk [vmem:[%s3 + $0x8] sm:$0xff] %vm1055, %v1040
  %1058 = vst.msk [vmem:[%s3 + $0x10] sm:$0xff] %vm1055, %v1041
  %1059 = vst.msk [vmem:[%s3 + $0x18] sm:$0xff] %vm1055, %v1042
  %1060 = vst.msk [vmem:[%s3 + $0x20] sm:$0xff] %vm1055, %v1043
  %1061 = vst.msk [vmem:[%s3 + $0x28] sm:$0xff] %vm1055, %v1044
  %1062 = vst.msk [vmem:[%s3 + $0x30] sm:$0xff] %vm1055, %v1045
  %1063 = vst.msk [vmem:[%s3 + $0x38] sm:$0xff] %vm1055, %v1046
  %1064 = vst.msk [vmem:[%s3 + $0x40] sm:$0xff] %vm1055, %v1047
  %1065 = vst.msk [vmem:[%s3 + $0x48] sm:$0xff] %vm1055, %v1048
  %1066 = vst.msk [vmem:[%s3 + $0x50] sm:$0xff] %vm1055, %v1049
  %1067 = vst.msk [vmem:[%s3 + $0x58] sm:$0xff] %vm1055, %v1050
  %1068 = vst.msk [vmem:[%s3 + $0x60] sm:$0xff] %vm1055, %v1051
  %1069 = vst.msk [vmem:[%s3 + $0x68] sm:$0xff] %vm1055, %v1052
  %1070 = vst.msk [vmem:[%s3 + $0x70] sm:$0xff] %vm1055, %v1053
  %1071 = vst.msk [vmem:[%s3 + $0x78] sm:$0xff] %vm1055, %v1054
  // Predicated region
  $region14: #{forward.6} parent=0 // pred_check
    _
  $region15: #{forward.6} parent=0 // pred_check_branch
    %1073 = sbr.rel (0) target = $region17
  $region16: #{forward.6} parent=0 // pred_region
    _
  $region17: #{forward.6} parent=0 // pred_fallthru
    _
  // Predicated region
  $region18: #{forward.6} parent=0 // pred_check
    _
  $region19: #{forward.6} parent=0 // pred_check_branch
    %1075 = sbr.rel (0) target = $region21
  $region20: #{forward.6} parent=0 // pred_region
    _
  $region21: #{forward.6} parent=0 // pred_fallthru
    _

// kernel: forward.7
$region0: #{forward.7}
  #allocation0 [shape = 'u32[]', space=smem, size = 0x4, offset = 0x4, fixed_abs, tag = 'smem constant byte address 0x4 - core index']
  #allocation1 [shape = 'u32[144,128]{1,0:T(1,128)}', space=vmem, size = 0x12000, scoped, tag = 'internal scratch']
  %s0 = inlined_call_operand.vmem [shape: f32[4,32,288], index: 0, kind: input, shape index: {}]
  %s1 = inlined_call_operand.vmem [shape: f32[288,64], index: 1, kind: input, shape index: {}]
  %s2 = inlined_call_operand.vmem [shape: f32[1,64], index: 2, kind: input, shape index: {}]
  %s3 = inlined_call_operand.vmem [shape: f32[32,64], index: 3, kind: output, shape index: {}]
  %s4 = sld [smem:[#allocation0]]
  $region22: #{forward.7} parent=0
    _
  %s6 = ssub.s32 1, %s4
  %s7 = scalar_select 0, %s6, %s4
  // Predicated region
  $region2: #{forward.7} parent=0 // pred_check
    _
  $region3: #{forward.7} parent=0 // pred_check_branch
    %9 = sbr.rel (0) target = $region5
  $region4: #{forward.7} parent=0 // pred_region
    _
  $region5: #{forward.7} parent=0 // pred_fallthru
    _
  // Predicated region
  $region6: #{forward.7} parent=0 // pred_check
    _
  $region7: #{forward.7} parent=0 // pred_check_branch
    %11 = sbr.rel (0) target = $region9
  $region8: #{forward.7} parent=0 // pred_region
    _
  $region9: #{forward.7} parent=0 // pred_fallthru
    _
  // Predicated region
  $region10: #{forward.7} parent=0 // pred_check
    _
  $region11: #{forward.7} parent=0 // pred_check_branch
    %13 = sbr.rel (0) target = $region13
  $region12: #{forward.7} parent=0 // pred_region
    _
  $region13: #{forward.7} parent=0 // pred_fallthru
    _
  %v14 = vld [vmem:[%s1] sm:$0xff]
  %v15 = vld [vmem:[%s1 + $0x8] sm:$0xff]
  %v16 = vld [vmem:[%s1 + $0x10] sm:$0xff]
  %v17 = vld [vmem:[%s1 + $0x18] sm:$0xff]
  %v18 = vld [vmem:[%s1 + $0x20] sm:$0xff]
  %v19 = vld [vmem:[%s1 + $0x28] sm:$0xff]
  %v20 = vld [vmem:[%s1 + $0x30] sm:$0xff]
  %v21 = vld [vmem:[%s1 + $0x38] sm:$0xff]
  %v22 = vld [vmem:[%s1 + $0x40] sm:$0xff]
  %v23 = vld [vmem:[%s1 + $0x48] sm:$0xff]
  %v24 = vld [vmem:[%s1 + $0x50] sm:$0xff]
  %v25 = vld [vmem:[%s1 + $0x58] sm:$0xff]
  %v26 = vld [vmem:[%s1 + $0x60] sm:$0xff]
  %v27 = vld [vmem:[%s1 + $0x68] sm:$0xff]
  %v28 = vld [vmem:[%s1 + $0x70] sm:$0xff]
  %v29 = vld [vmem:[%s1 + $0x78] sm:$0xff]
  %v30 = vld [vmem:[%s1 + $0x80] sm:$0xff]
  %v31 = vld [vmem:[%s1 + $0x88] sm:$0xff]
  %v32 = vld [vmem:[%s1 + $0x90] sm:$0xff]
  %v33 = vld [vmem:[%s1 + $0x98] sm:$0xff]
  %v34 = vld [vmem:[%s1 + $0xa0] sm:$0xff]
  %v35 = vld [vmem:[%s1 + $0xa8] sm:$0xff]
  %v36 = vld [vmem:[%s1 + $0xb0] sm:$0xff]
  %v37 = vld [vmem:[%s1 + $0xb8] sm:$0xff]
  %v38 = vld [vmem:[%s1 + $0xc0] sm:$0xff]
  %v39 = vld [vmem:[%s1 + $0xc8] sm:$0xff]
  %v40 = vld [vmem:[%s1 + $0xd0] sm:$0xff]
  %v41 = vld [vmem:[%s1 + $0xd8] sm:$0xff]
  %v42 = vld [vmem:[%s1 + $0xe0] sm:$0xff]
  %v43 = vld [vmem:[%s1 + $0xe8] sm:$0xff]
  %v44 = vld [vmem:[%s1 + $0xf0] sm:$0xff]
  %v45 = vld [vmem:[%s1 + $0xf8] sm:$0xff]
  %v46 = vld [vmem:[%s1 + $0x100] sm:$0xff]
  %v47 = vld [vmem:[%s1 + $0x108] sm:$0xff]
  %v48 = vld [vmem:[%s1 + $0x110] sm:$0xff]
  %v49 = vld [vmem:[%s1 + $0x118] sm:$0xff]
  %v50 = vld [vmem:[%s2] sm:$0x1]
  %v51 = vld [vmem:[%s0] sm:$0xff]
  %v52 = vld [vmem:[%s0 + $0x8] sm:$0xff]
  %v53 = vld [vmem:[%s0 + $0x10] sm:$0xff]
  %v54 = vld [vmem:[%s0 + $0x18] sm:$0xff]
  %v55 = vld [vmem:[%s0 + $0x20] sm:$0xff]
  %v56 = vld [vmem:[%s0 + $0x28] sm:$0xff]
  %v57 = vld [vmem:[%s0 + $0x30] sm:$0xff]
  %v58 = vld [vmem:[%s0 + $0x38] sm:$0xff]
  %v59 = vld [vmem:[%s0 + $0x40] sm:$0xff]
  %v60 = vld [vmem:[%s0 + $0x48] sm:$0xff]
  %v61 = vld [vmem:[%s0 + $0x50] sm:$0xff]
  %v62 = vld [vmem:[%s0 + $0x58] sm:$0xff]
  %v64 = vlaneseq
  %v65 = vshrl.u32 %v64, 7
  %v66 = vsub.s32 0, %v65
  %v67 = vrot.slane %v50, %v66
  %vm69 = vcmask 261120
  %v71 = vsel %vm69, %v53, 0
  %v74 = vsel %vm69, %v56, 0
  %v77 = vsel %vm69, %v59, 0
  %v80 = vsel %vm69, %v62, 0
  %82 = vmatprep.subr.mxu0 0.0
  %83 = vmatpush1.msra.mxu0 %v29
  %84 = vmatprep.subr.mxu0 0.0
  %85 = vmatpush1.msra.mxu0 %v28
  %86 = vmatprep.subr.mxu0 0.0
  %87 = vmatpush1.msra.mxu0 %v27
  %88 = vmatprep.subr.mxu0 0.0
  %89 = vmatpush1.msra.mxu0 %v26
  %90 = vmatprep.subr.mxu0 0.0
  %91 = vmatpush1.msra.mxu0 %v25
  %92 = vmatprep.subr.mxu0 0.0
  %93 = vmatpush1.msra.mxu0 %v24
  %94 = vmatprep.subr.mxu0 0.0
  %95 = vmatpush1.msra.mxu0 %v23
  %96 = vmatprep.subr.mxu0 0.0
  %97 = vmatpush1.msra.mxu0 %v22
  %98 = vmatprep.subr.mxu0 0.0
  %99 = vmatpush1.msra.mxu0 %v21
  %100 = vmatprep.subr.mxu0 0.0
  %101 = vmatpush1.msra.mxu0 %v20
  %102 = vmatprep.subr.mxu0 0.0
  %103 = vmatpush1.msra.mxu0 %v19
  %104 = vmatprep.subr.mxu0 0.0
  %105 = vmatpush1.msra.mxu0 %v18
  %106 = vmatprep.subr.mxu0 0.0
  %107 = vmatpush1.msra.mxu0 %v17
  %108 = vmatprep.subr.mxu0 0.0
  %109 = vmatpush1.msra.mxu0 %v16
  %110 = vmatprep.subr.mxu0 0.0
  %111 = vmatpush1.msra.mxu0 %v15
  %112 = vmatprep.subr.mxu0 0.0
  %113 = vmatpush1.msra.mxu0 %v14
  %114 = vmatprep.subr.mxu0 0.0
  %115 = vmatpush2.msra.mxu0 %v45
  %116 = vmatprep.subr.mxu0 0.0
  %117 = vmatpush2.msra.mxu0 %v44
  %118 = vmatprep.subr.mxu0 0.0
  %119 = vmatpush2.msra.mxu0 %v43
  %120 = vmatprep.subr.mxu0 0.0
  %121 = vmatpush2.msra.mxu0 %v42
  %122 = vmatprep.subr.mxu0 0.0
  %123 = vmatpush2.msra.mxu0 %v41
  %124 = vmatprep.subr.mxu0 0.0
  %125 = vmatpush2.msra.mxu0 %v40
  %126 = vmatprep.subr.mxu0 0.0
  %127 = vmatpush2.msra.mxu0 %v39
  %128 = vmatprep.subr.mxu0 0.0
  %129 = vmatpush2.msra.mxu0 %v38
  %130 = vmatprep.subr.mxu0 0.0
  %131 = vmatpush2.msra.mxu0 %v37
  %132 = vmatprep.subr.mxu0 0.0
  %133 = vmatpush2.msra.mxu0 %v36
  %134 = vmatprep.subr.mxu0 0.0
  %135 = vmatpush2.msra.mxu0 %v35
  %136 = vmatprep.subr.mxu0 0.0
  %137 = vmatpush2.msra.mxu0 %v34
  %138 = vmatprep.subr.mxu0 0.0
  %139 = vmatpush2.msra.mxu0 %v33
  %140 = vmatprep.subr.mxu0 0.0
  %141 = vmatpush2.msra.mxu0 %v32
  %142 = vmatprep.subr.mxu0 0.0
  %143 = vmatpush2.msra.mxu0 %v31
  %144 = vmatprep.subr.mxu0 0.0
  %145 = vmatpush2.msra.mxu0 %v30
  %146 = vmatprep.mubr.f32.mxu0 %v52
  %147 = vmatmul.mubr.f32.gmra.mxu0 %v51
  %v148 = vpop.f32.mrf.mxu0
  %v149 = vadd.f32 %v67, %v148
  %v150 = vpop.f32.mrf.mxu0
  %151 = vmatprep.mubr.f32.mxu0 %v55
  %152 = vmatmul.mubr.f32.gmra.mxu0 %v54
  %v153 = vpop.f32.mrf.mxu0
  %v154 = vadd.f32 %v67, %v153
  %v155 = vpop.f32.mrf.mxu0
  %156 = vmatprep.mubr.f32.mxu0 %v58
  %157 = vmatmul.mubr.f32.gmra.mxu0 %v57
  %v158 = vpop.f32.mrf.mxu0
  %v159 = vadd.f32 %v67, %v158
  %v160 = vpop.f32.mrf.mxu0
  %161 = vmatprep.mubr.f32.mxu0 %v61
  %162 = vmatmul.mubr.f32.gmra.mxu0 %v60
  %v163 = vpop.f32.mrf.mxu0
  %v164 = vadd.f32 %v67, %v163
  %v165 = vpop.f32.mrf.mxu0
  %166 = vdwg.mxu0
  %167 = vmatprep.subr.mxu0 0.0
  %168 = vmatpush1.msra.mxu0 0.0
  %169 = vmatprep.subr.mxu0 0.0
  %170 = vmatpush1.msra.mxu0 0.0
  %171 = vmatprep.subr.mxu0 0.0
  %172 = vmatpush1.msra.mxu0 0.0
  %173 = vmatprep.subr.mxu0 0.0
  %174 = vmatpush1.msra.mxu0 0.0
  %175 = vmatprep.subr.mxu0 0.0
  %176 = vmatpush1.msra.mxu0 0.0
  %177 = vmatprep.subr.mxu0 0.0
  %178 = vmatpush1.msra.mxu0 0.0
  %179 = vmatprep.subr.mxu0 0.0
  %180 = vmatpush1.msra.mxu0 0.0
  %181 = vmatprep.subr.mxu0 0.0
  %182 = vmatpush1.msra.mxu0 0.0
  %183 = vmatprep.subr.mxu0 0.0
  %184 = vmatpush1.msra.mxu0 0.0
  %185 = vmatprep.subr.mxu0 0.0
  %186 = vmatpush1.msra.mxu0 0.0
  %187 = vmatprep.subr.mxu0 0.0
  %188 = vmatpush1.msra.mxu0 0.0
  %189 = vmatprep.subr.mxu0 0.0
  %190 = vmatpush1.msra.mxu0 0.0
  %191 = vmatprep.subr.mxu0 0.0
  %192 = vmatpush1.msra.mxu0 %v49
  %193 = vmatprep.subr.mxu0 0.0
  %194 = vmatpush1.msra.mxu0 %v48
  %195 = vmatprep.subr.mxu0 0.0
  %196 = vmatpush1.msra.mxu0 %v47
  %197 = vmatprep.subr.mxu0 0.0
  %198 = vmatpush1.msra.mxu0 %v46
  %199 = vmatprep.subr.mxu0 0.0
  %200 = vmatpush2.msra.mxu0 0.0
  %201 = vmatprep.subr.mxu0 0.0
  %202 = vmatpush2.msra.mxu0 0.0
  %203 = vmatprep.subr.mxu0 0.0
  %204 = vmatpush2.msra.mxu0 0.0
  %205 = vmatprep.subr.mxu0 0.0
  %206 = vmatpush2.msra.mxu0 0.0
  %207 = vmatprep.subr.mxu0 0.0
  %208 = vmatpush2.msra.mxu0 0.0
  %209 = vmatprep.subr.mxu0 0.0
  %210 = vmatpush2.msra.mxu0 0.0
  %211 = vmatprep.subr.mxu0 0.0
  %212 = vmatpush2.msra.mxu0 0.0
  %213 = vmatprep.subr.mxu0 0.0
  %214 = vmatpush2.msra.mxu0 0.0
  %215 = vmatprep.subr.mxu0 0.0
  %216 = vmatpush2.msra.mxu0 0.0
  %217 = vmatprep.subr.mxu0 0.0
  %218 = vmatpush2.msra.mxu0 0.0
  %219 = vmatprep.subr.mxu0 0.0
  %220 = vmatpush2.msra.mxu0 0.0
  %221 = vmatprep.subr.mxu0 0.0
  %222 = vmatpush2.msra.mxu0 0.0
  %223 = vmatprep.subr.mxu0 0.0
  %224 = vmatpush2.msra.mxu0 0.0
  %225 = vmatprep.subr.mxu0 0.0
  %226 = vmatpush2.msra.mxu0 0.0
  %227 = vmatprep.subr.mxu0 0.0
  %228 = vmatpush2.msra.mxu0 0.0
  %229 = vmatprep.subr.mxu0 0.0
  %230 = vmatpush2.msra.mxu0 0.0
  %231 = vmatprep.mubr.f32.mxu0 0.0
  %232 = vmatmul.mubr.f32.gmra.mxu0 %v71
  %v233 = vpop.f32.mrf.mxu0
  %v234 = vadd.f32 %v149, %v233
  %v235 = vpop.f32.mrf.mxu0
  %236 = vmatprep.mubr.f32.mxu0 0.0
  %237 = vmatmul.mubr.f32.gmra.mxu0 %v74
  %v238 = vpop.f32.mrf.mxu0
  %v239 = vadd.f32 %v154, %v238
  %v240 = vpop.f32.mrf.mxu0
  %241 = vmatprep.mubr.f32.mxu0 0.0
  %242 = vmatmul.mubr.f32.gmra.mxu0 %v77
  %v243 = vpop.f32.mrf.mxu0
  %v244 = vadd.f32 %v159, %v243
  %v245 = vpop.f32.mrf.mxu0
  %246 = vmatprep.mubr.f32.mxu0 0.0
  %247 = vmatmul.mubr.f32.gmra.mxu0 %v80
  %v248 = vpop.f32.mrf.mxu0
  %v249 = vadd.f32 %v164, %v248
  %v250 = vpop.f32.mrf.mxu0
  %251 = vdwg.mxu0
  %v252 = vmax.f32 %v234, 0.0
  %v253 = vmax.f32 %v239, 0.0
  %v254 = vmax.f32 %v244, 0.0
  %v255 = vmax.f32 %v249, 0.0
  %s256 = scalar_lea.vmem %s0, 96
  %v257 = vld [vmem:[%s256] sm:$0xff]
  %v258 = vld [vmem:[%s256 + $0x8] sm:$0xff]
  %v259 = vld [vmem:[%s256 + $0x10] sm:$0xff]
  %v260 = vld [vmem:[%s256 + $0x18] sm:$0xff]
  %v261 = vld [vmem:[%s256 + $0x20] sm:$0xff]
  %v262 = vld [vmem:[%s256 + $0x28] sm:$0xff]
  %v263 = vld [vmem:[%s256 + $0x30] sm:$0xff]
  %v264 = vld [vmem:[%s256 + $0x38] sm:$0xff]
  %v265 = vld [vmem:[%s256 + $0x40] sm:$0xff]
  %v266 = vld [vmem:[%s256 + $0x48] sm:$0xff]
  %v267 = vld [vmem:[%s256 + $0x50] sm:$0xff]
  %v268 = vld [vmem:[%s256 + $0x58] sm:$0xff]
  %v270 = vsel %vm69, %v259, 0
  %v273 = vsel %vm69, %v262, 0
  %v276 = vsel %vm69, %v265, 0
  %v279 = vsel %vm69, %v268, 0
  %281 = vmatprep.subr.mxu0 0.0
  %282 = vmatpush1.msra.mxu0 %v29
  %283 = vmatprep.subr.mxu0 0.0
  %284 = vmatpush1.msra.mxu0 %v28
  %285 = vmatprep.subr.mxu0 0.0
  %286 = vmatpush1.msra.mxu0 %v27
  %287 = vmatprep.subr.mxu0 0.0
  %288 = vmatpush1.msra.mxu0 %v26
  %289 = vmatprep.subr.mxu0 0.0
  %290 = vmatpush1.msra.mxu0 %v25
  %291 = vmatprep.subr.mxu0 0.0
  %292 = vmatpush1.msra.mxu0 %v24
  %293 = vmatprep.subr.mxu0 0.0
  %294 = vmatpush1.msra.mxu0 %v23
  %295 = vmatprep.subr.mxu0 0.0
  %296 = vmatpush1.msra.mxu0 %v22
  %297 = vmatprep.subr.mxu0 0.0
  %298 = vmatpush1.msra.mxu0 %v21
  %299 = vmatprep.subr.mxu0 0.0
  %300 = vmatpush1.msra.mxu0 %v20
  %301 = vmatprep.subr.mxu0 0.0
  %302 = vmatpush1.msra.mxu0 %v19
  %303 = vmatprep.subr.mxu0 0.0
  %304 = vmatpush1.msra.mxu0 %v18
  %305 = vmatprep.subr.mxu0 0.0
  %306 = vmatpush1.msra.mxu0 %v17
  %307 = vmatprep.subr.mxu0 0.0
  %308 = vmatpush1.msra.mxu0 %v16
  %309 = vmatprep.subr.mxu0 0.0
  %310 = vmatpush1.msra.mxu0 %v15
  %311 = vmatprep.subr.mxu0 0.0
  %312 = vmatpush1.msra.mxu0 %v14
  %313 = vmatprep.subr.mxu0 0.0
  %314 = vmatpush2.msra.mxu0 %v45
  %315 = vmatprep.subr.mxu0 0.0
  %316 = vmatpush2.msra.mxu0 %v44
  %317 = vmatprep.subr.mxu0 0.0
  %318 = vmatpush2.msra.mxu0 %v43
  %319 = vmatprep.subr.mxu0 0.0
  %320 = vmatpush2.msra.mxu0 %v42
  %321 = vmatprep.subr.mxu0 0.0
  %322 = vmatpush2.msra.mxu0 %v41
  %323 = vmatprep.subr.mxu0 0.0
  %324 = vmatpush2.msra.mxu0 %v40
  %325 = vmatprep.subr.mxu0 0.0
  %326 = vmatpush2.msra.mxu0 %v39
  %327 = vmatprep.subr.mxu0 0.0
  %328 = vmatpush2.msra.mxu0 %v38
  %329 = vmatprep.subr.mxu0 0.0
  %330 = vmatpush2.msra.mxu0 %v37
  %331 = vmatprep.subr.mxu0 0.0
  %332 = vmatpush2.msra.mxu0 %v36
  %333 = vmatprep.subr.mxu0 0.0
  %334 = vmatpush2.msra.mxu0 %v35
  %335 = vmatprep.subr.mxu0 0.0
  %336 = vmatpush2.msra.mxu0 %v34
  %337 = vmatprep.subr.mxu0 0.0
  %338 = vmatpush2.msra.mxu0 %v33
  %339 = vmatprep.subr.mxu0 0.0
  %340 = vmatpush2.msra.mxu0 %v32
  %341 = vmatprep.subr.mxu0 0.0
  %342 = vmatpush2.msra.mxu0 %v31
  %343 = vmatprep.subr.mxu0 0.0
  %344 = vmatpush2.msra.mxu0 %v30
  %345 = vmatprep.mubr.f32.mxu0 %v258
  %346 = vmatmul.mubr.f32.gmra.mxu0 %v257
  %v347 = vpop.f32.mrf.mxu0
  %v348 = vadd.f32 %v67, %v347
  %v349 = vpop.f32.mrf.mxu0
  %350 = vmatprep.mubr.f32.mxu0 %v261
  %351 = vmatmul.mubr.f32.gmra.mxu0 %v260
  %v352 = vpop.f32.mrf.mxu0
  %v353 = vadd.f32 %v67, %v352
  %v354 = vpop.f32.mrf.mxu0
  %355 = vmatprep.mubr.f32.mxu0 %v264
  %356 = vmatmul.mubr.f32.gmra.mxu0 %v263
  %v357 = vpop.f32.mrf.mxu0
  %v358 = vadd.f32 %v67, %v357
  %v359 = vpop.f32.mrf.mxu0
  %360 = vmatprep.mubr.f32.mxu0 %v267
  %361 = vmatmul.mubr.f32.gmra.mxu0 %v266
  %v362 = vpop.f32.mrf.mxu0
  %v363 = vadd.f32 %v67, %v362
  %v364 = vpop.f32.mrf.mxu0
  %365 = vdwg.mxu0
  %366 = vmatprep.subr.mxu0 0.0
  %367 = vmatpush1.msra.mxu0 0.0
  %368 = vmatprep.subr.mxu0 0.0
  %369 = vmatpush1.msra.mxu0 0.0
  %370 = vmatprep.subr.mxu0 0.0
  %371 = vmatpush1.msra.mxu0 0.0
  %372 = vmatprep.subr.mxu0 0.0
  %373 = vmatpush1.msra.mxu0 0.0
  %374 = vmatprep.subr.mxu0 0.0
  %375 = vmatpush1.msra.mxu0 0.0
  %376 = vmatprep.subr.mxu0 0.0
  %377 = vmatpush1.msra.mxu0 0.0
  %378 = vmatprep.subr.mxu0 0.0
  %379 = vmatpush1.msra.mxu0 0.0
  %380 = vmatprep.subr.mxu0 0.0
  %381 = vmatpush1.msra.mxu0 0.0
  %382 = vmatprep.subr.mxu0 0.0
  %383 = vmatpush1.msra.mxu0 0.0
  %384 = vmatprep.subr.mxu0 0.0
  %385 = vmatpush1.msra.mxu0 0.0
  %386 = vmatprep.subr.mxu0 0.0
  %387 = vmatpush1.msra.mxu0 0.0
  %388 = vmatprep.subr.mxu0 0.0
  %389 = vmatpush1.msra.mxu0 0.0
  %390 = vmatprep.subr.mxu0 0.0
  %391 = vmatpush1.msra.mxu0 %v49
  %392 = vmatprep.subr.mxu0 0.0
  %393 = vmatpush1.msra.mxu0 %v48
  %394 = vmatprep.subr.mxu0 0.0
  %395 = vmatpush1.msra.mxu0 %v47
  %396 = vmatprep.subr.mxu0 0.0
  %397 = vmatpush1.msra.mxu0 %v46
  %398 = vmatprep.subr.mxu0 0.0
  %399 = vmatpush2.msra.mxu0 0.0
  %400 = vmatprep.subr.mxu0 0.0
  %401 = vmatpush2.msra.mxu0 0.0
  %402 = vmatprep.subr.mxu0 0.0
  %403 = vmatpush2.msra.mxu0 0.0
  %404 = vmatprep.subr.mxu0 0.0
  %405 = vmatpush2.msra.mxu0 0.0
  %406 = vmatprep.subr.mxu0 0.0
  %407 = vmatpush2.msra.mxu0 0.0
  %408 = vmatprep.subr.mxu0 0.0
  %409 = vmatpush2.msra.mxu0 0.0
  %410 = vmatprep.subr.mxu0 0.0
  %411 = vmatpush2.msra.mxu0 0.0
  %412 = vmatprep.subr.mxu0 0.0
  %413 = vmatpush2.msra.mxu0 0.0
  %414 = vmatprep.subr.mxu0 0.0
  %415 = vmatpush2.msra.mxu0 0.0
  %416 = vmatprep.subr.mxu0 0.0
  %417 = vmatpush2.msra.mxu0 0.0
  %418 = vmatprep.subr.mxu0 0.0
  %419 = vmatpush2.msra.mxu0 0.0
  %420 = vmatprep.subr.mxu0 0.0
  %421 = vmatpush2.msra.mxu0 0.0
  %422 = vmatprep.subr.mxu0 0.0
  %423 = vmatpush2.msra.mxu0 0.0
  %424 = vmatprep.subr.mxu0 0.0
  %425 = vmatpush2.msra.mxu0 0.0
  %426 = vmatprep.subr.mxu0 0.0
  %427 = vmatpush2.msra.mxu0 0.0
  %428 = vmatprep.subr.mxu0 0.0
  %429 = vmatpush2.msra.mxu0 0.0
  %430 = vmatprep.mubr.f32.mxu0 0.0
  %431 = vmatmul.mubr.f32.gmra.mxu0 %v270
  %v432 = vpop.f32.mrf.mxu0
  %v433 = vadd.f32 %v348, %v432
  %v434 = vpop.f32.mrf.mxu0
  %435 = vmatprep.mubr.f32.mxu0 0.0
  %436 = vmatmul.mubr.f32.gmra.mxu0 %v273
  %v437 = vpop.f32.mrf.mxu0
  %v438 = vadd.f32 %v353, %v437
  %v439 = vpop.f32.mrf.mxu0
  %440 = vmatprep.mubr.f32.mxu0 0.0
  %441 = vmatmul.mubr.f32.gmra.mxu0 %v276
  %v442 = vpop.f32.mrf.mxu0
  %v443 = vadd.f32 %v358, %v442
  %v444 = vpop.f32.mrf.mxu0
  %445 = vmatprep.mubr.f32.mxu0 0.0
  %446 = vmatmul.mubr.f32.gmra.mxu0 %v279
  %v447 = vpop.f32.mrf.mxu0
  %v448 = vadd.f32 %v363, %v447
  %v449 = vpop.f32.mrf.mxu0
  %450 = vdwg.mxu0
  %v451 = vmax.f32 %v433, 0.0
  %v452 = vmax.f32 %v438, 0.0
  %v453 = vmax.f32 %v443, 0.0
  %v454 = vmax.f32 %v448, 0.0
  %v455 = vmax.f32 %v252, %v451
  %v456 = vmax.f32 %v253, %v452
  %v457 = vmax.f32 %v254, %v453
  %v458 = vmax.f32 %v255, %v454
  %s459 = scalar_lea.vmem %s0, 192
  %v460 = vld [vmem:[%s459] sm:$0xff]
  %v461 = vld [vmem:[%s459 + $0x8] sm:$0xff]
  %v462 = vld [vmem:[%s459 + $0x10] sm:$0xff]
  %v463 = vld [vmem:[%s459 + $0x18] sm:$0xff]
  %v464 = vld [vmem:[%s459 + $0x20] sm:$0xff]
  %v465 = vld [vmem:[%s459 + $0x28] sm:$0xff]
  %v466 = vld [vmem:[%s459 + $0x30] sm:$0xff]
  %v467 = vld [vmem:[%s459 + $0x38] sm:$0xff]
  %v468 = vld [vmem:[%s459 + $0x40] sm:$0xff]
  %v469 = vld [vmem:[%s459 + $0x48] sm:$0xff]
  %v470 = vld [vmem:[%s459 + $0x50] sm:$0xff]
  %v471 = vld [vmem:[%s459 + $0x58] sm:$0xff]
  %v473 = vsel %vm69, %v462, 0
  %v476 = vsel %vm69, %v465, 0
  %v479 = vsel %vm69, %v468, 0
  %v482 = vsel %vm69, %v471, 0
  %484 = vmatprep.subr.mxu0 0.0
  %485 = vmatpush1.msra.mxu0 %v29
  %486 = vmatprep.subr.mxu0 0.0
  %487 = vmatpush1.msra.mxu0 %v28
  %488 = vmatprep.subr.mxu0 0.0
  %489 = vmatpush1.msra.mxu0 %v27
  %490 = vmatprep.subr.mxu0 0.0
  %491 = vmatpush1.msra.mxu0 %v26
  %492 = vmatprep.subr.mxu0 0.0
  %493 = vmatpush1.msra.mxu0 %v25
  %494 = vmatprep.subr.mxu0 0.0
  %495 = vmatpush1.msra.mxu0 %v24
  %496 = vmatprep.subr.mxu0 0.0
  %497 = vmatpush1.msra.mxu0 %v23
  %498 = vmatprep.subr.mxu0 0.0
  %499 = vmatpush1.msra.mxu0 %v22
  %500 = vmatprep.subr.mxu0 0.0
  %501 = vmatpush1.msra.mxu0 %v21
  %502 = vmatprep.subr.mxu0 0.0
  %503 = vmatpush1.msra.mxu0 %v20
  %504 = vmatprep.subr.mxu0 0.0
  %505 = vmatpush1.msra.mxu0 %v19
  %506 = vmatprep.subr.mxu0 0.0
  %507 = vmatpush1.msra.mxu0 %v18
  %508 = vmatprep.subr.mxu0 0.0
  %509 = vmatpush1.msra.mxu0 %v17
  %510 = vmatprep.subr.mxu0 0.0
  %511 = vmatpush1.msra.mxu0 %v16
  %512 = vmatprep.subr.mxu0 0.0
  %513 = vmatpush1.msra.mxu0 %v15
  %514 = vmatprep.subr.mxu0 0.0
  %515 = vmatpush1.msra.mxu0 %v14
  %516 = vmatprep.subr.mxu0 0.0
  %517 = vmatpush2.msra.mxu0 %v45
  %518 = vmatprep.subr.mxu0 0.0
  %519 = vmatpush2.msra.mxu0 %v44
  %520 = vmatprep.subr.mxu0 0.0
  %521 = vmatpush2.msra.mxu0 %v43
  %522 = vmatprep.subr.mxu0 0.0
  %523 = vmatpush2.msra.mxu0 %v42
  %524 = vmatprep.subr.mxu0 0.0
  %525 = vmatpush2.msra.mxu0 %v41
  %526 = vmatprep.subr.mxu0 0.0
  %527 = vmatpush2.msra.mxu0 %v40
  %528 = vmatprep.subr.mxu0 0.0
  %529 = vmatpush2.msra.mxu0 %v39
  %530 = vmatprep.subr.mxu0 0.0
  %531 = vmatpush2.msra.mxu0 %v38
  %532 = vmatprep.subr.mxu0 0.0
  %533 = vmatpush2.msra.mxu0 %v37
  %534 = vmatprep.subr.mxu0 0.0
  %535 = vmatpush2.msra.mxu0 %v36
  %536 = vmatprep.subr.mxu0 0.0
  %537 = vmatpush2.msra.mxu0 %v35
  %538 = vmatprep.subr.mxu0 0.0
  %539 = vmatpush2.msra.mxu0 %v34
  %540 = vmatprep.subr.mxu0 0.0
  %541 = vmatpush2.msra.mxu0 %v33
  %542 = vmatprep.subr.mxu0 0.0
  %543 = vmatpush2.msra.mxu0 %v32
  %544 = vmatprep.subr.mxu0 0.0
  %545 = vmatpush2.msra.mxu0 %v31
  %546 = vmatprep.subr.mxu0 0.0
  %547 = vmatpush2.msra.mxu0 %v30
  %548 = vmatprep.mubr.f32.mxu0 %v461
  %549 = vmatmul.mubr.f32.gmra.mxu0 %v460
  %v550 = vpop.f32.mrf.mxu0
  %v551 = vadd.f32 %v67, %v550
  %v552 = vpop.f32.mrf.mxu0
  %553 = vmatprep.mubr.f32.mxu0 %v464
  %554 = vmatmul.mubr.f32.gmra.mxu0 %v463
  %v555 = vpop.f32.mrf.mxu0
  %v556 = vadd.f32 %v67, %v555
  %v557 = vpop.f32.mrf.mxu0
  %558 = vmatprep.mubr.f32.mxu0 %v467
  %559 = vmatmul.mubr.f32.gmra.mxu0 %v466
  %v560 = vpop.f32.mrf.mxu0
  %v561 = vadd.f32 %v67, %v560
  %v562 = vpop.f32.mrf.mxu0
  %563 = vmatprep.mubr.f32.mxu0 %v470
  %564 = vmatmul.mubr.f32.gmra.mxu0 %v469
  %v565 = vpop.f32.mrf.mxu0
  %v566 = vadd.f32 %v67, %v565
  %v567 = vpop.f32.mrf.mxu0
  %568 = vdwg.mxu0
  %569 = vmatprep.subr.mxu0 0.0
  %570 = vmatpush1.msra.mxu0 0.0
  %571 = vmatprep.subr.mxu0 0.0
  %572 = vmatpush1.msra.mxu0 0.0
  %573 = vmatprep.subr.mxu0 0.0
  %574 = vmatpush1.msra.mxu0 0.0
  %575 = vmatprep.subr.mxu0 0.0
  %576 = vmatpush1.msra.mxu0 0.0
  %577 = vmatprep.subr.mxu0 0.0
  %578 = vmatpush1.msra.mxu0 0.0
  %579 = vmatprep.subr.mxu0 0.0
  %580 = vmatpush1.msra.mxu0 0.0
  %581 = vmatprep.subr.mxu0 0.0
  %582 = vmatpush1.msra.mxu0 0.0
  %583 = vmatprep.subr.mxu0 0.0
  %584 = vmatpush1.msra.mxu0 0.0
  %585 = vmatprep.subr.mxu0 0.0
  %586 = vmatpush1.msra.mxu0 0.0
  %587 = vmatprep.subr.mxu0 0.0
  %588 = vmatpush1.msra.mxu0 0.0
  %589 = vmatprep.subr.mxu0 0.0
  %590 = vmatpush1.msra.mxu0 0.0
  %591 = vmatprep.subr.mxu0 0.0
  %592 = vmatpush1.msra.mxu0 0.0
  %593 = vmatprep.subr.mxu0 0.0
  %594 = vmatpush1.msra.mxu0 %v49
  %595 = vmatprep.subr.mxu0 0.0
  %596 = vmatpush1.msra.mxu0 %v48
  %597 = vmatprep.subr.mxu0 0.0
  %598 = vmatpush1.msra.mxu0 %v47
  %599 = vmatprep.subr.mxu0 0.0
  %600 = vmatpush1.msra.mxu0 %v46
  %601 = vmatprep.subr.mxu0 0.0
  %602 = vmatpush2.msra.mxu0 0.0
  %603 = vmatprep.subr.mxu0 0.0
  %604 = vmatpush2.msra.mxu0 0.0
  %605 = vmatprep.subr.mxu0 0.0
  %606 = vmatpush2.msra.mxu0 0.0
  %607 = vmatprep.subr.mxu0 0.0
  %608 = vmatpush2.msra.mxu0 0.0
  %609 = vmatprep.subr.mxu0 0.0
  %610 = vmatpush2.msra.mxu0 0.0
  %611 = vmatprep.subr.mxu0 0.0
  %612 = vmatpush2.msra.mxu0 0.0
  %613 = vmatprep.subr.mxu0 0.0
  %614 = vmatpush2.msra.mxu0 0.0
  %615 = vmatprep.subr.mxu0 0.0
  %616 = vmatpush2.msra.mxu0 0.0
  %617 = vmatprep.subr.mxu0 0.0
  %618 = vmatpush2.msra.mxu0 0.0
  %619 = vmatprep.subr.mxu0 0.0
  %620 = vmatpush2.msra.mxu0 0.0
  %621 = vmatprep.subr.mxu0 0.0
  %622 = vmatpush2.msra.mxu0 0.0
  %623 = vmatprep.subr.mxu0 0.0
  %624 = vmatpush2.msra.mxu0 0.0
  %625 = vmatprep.subr.mxu0 0.0
  %626 = vmatpush2.msra.mxu0 0.0
  %627 = vmatprep.subr.mxu0 0.0
  %628 = vmatpush2.msra.mxu0 0.0
  %629 = vmatprep.subr.mxu0 0.0
  %630 = vmatpush2.msra.mxu0 0.0
  %631 = vmatprep.subr.mxu0 0.0
  %632 = vmatpush2.msra.mxu0 0.0
  %633 = vmatprep.mubr.f32.mxu0 0.0
  %634 = vmatmul.mubr.f32.gmra.mxu0 %v473
  %v635 = vpop.f32.mrf.mxu0
  %v636 = vadd.f32 %v551, %v635
  %v637 = vpop.f32.mrf.mxu0
  %638 = vmatprep.mubr.f32.mxu0 0.0
  %639 = vmatmul.mubr.f32.gmra.mxu0 %v476
  %v640 = vpop.f32.mrf.mxu0
  %v641 = vadd.f32 %v556, %v640
  %v642 = vpop.f32.mrf.mxu0
  %643 = vmatprep.mubr.f32.mxu0 0.0
  %644 = vmatmul.mubr.f32.gmra.mxu0 %v479
  %v645 = vpop.f32.mrf.mxu0
  %v646 = vadd.f32 %v561, %v645
  %v647 = vpop.f32.mrf.mxu0
  %648 = vmatprep.mubr.f32.mxu0 0.0
  %649 = vmatmul.mubr.f32.gmra.mxu0 %v482
  %v650 = vpop.f32.mrf.mxu0
  %v651 = vadd.f32 %v566, %v650
  %v652 = vpop.f32.mrf.mxu0
  %653 = vdwg.mxu0
  %v654 = vmax.f32 %v636, 0.0
  %v655 = vmax.f32 %v641, 0.0
  %v656 = vmax.f32 %v646, 0.0
  %v657 = vmax.f32 %v651, 0.0
  %v658 = vmax.f32 %v455, %v654
  %v659 = vmax.f32 %v456, %v655
  %v660 = vmax.f32 %v457, %v656
  %v661 = vmax.f32 %v458, %v657
  %s662 = scalar_lea.vmem %s0, 288
  %v663 = vld [vmem:[%s662] sm:$0xff]
  %v664 = vld [vmem:[%s662 + $0x8] sm:$0xff]
  %v665 = vld [vmem:[%s662 + $0x10] sm:$0xff]
  %v666 = vld [vmem:[%s662 + $0x18] sm:$0xff]
  %v667 = vld [vmem:[%s662 + $0x20] sm:$0xff]
  %v668 = vld [vmem:[%s662 + $0x28] sm:$0xff]
  %v669 = vld [vmem:[%s662 + $0x30] sm:$0xff]
  %v670 = vld [vmem:[%s662 + $0x38] sm:$0xff]
  %v671 = vld [vmem:[%s662 + $0x40] sm:$0xff]
  %v672 = vld [vmem:[%s662 + $0x48] sm:$0xff]
  %v673 = vld [vmem:[%s662 + $0x50] sm:$0xff]
  %v674 = vld [vmem:[%s662 + $0x58] sm:$0xff]
  %v676 = vsel %vm69, %v665, 0
  %v679 = vsel %vm69, %v668, 0
  %v682 = vsel %vm69, %v671, 0
  %v685 = vsel %vm69, %v674, 0
  %687 = vmatprep.subr.mxu0 0.0
  %688 = vmatpush1.msra.mxu0 %v29
  %689 = vmatprep.subr.mxu0 0.0
  %690 = vmatpush1.msra.mxu0 %v28
  %691 = vmatprep.subr.mxu0 0.0
  %692 = vmatpush1.msra.mxu0 %v27
  %693 = vmatprep.subr.mxu0 0.0
  %694 = vmatpush1.msra.mxu0 %v26
  %695 = vmatprep.subr.mxu0 0.0
  %696 = vmatpush1.msra.mxu0 %v25
  %697 = vmatprep.subr.mxu0 0.0
  %698 = vmatpush1.msra.mxu0 %v24
  %699 = vmatprep.subr.mxu0 0.0
  %700 = vmatpush1.msra.mxu0 %v23
  %701 = vmatprep.subr.mxu0 0.0
  %702 = vmatpush1.msra.mxu0 %v22
  %703 = vmatprep.subr.mxu0 0.0
  %704 = vmatpush1.msra.mxu0 %v21
  %705 = vmatprep.subr.mxu0 0.0
  %706 = vmatpush1.msra.mxu0 %v20
  %707 = vmatprep.subr.mxu0 0.0
  %708 = vmatpush1.msra.mxu0 %v19
  %709 = vmatprep.subr.mxu0 0.0
  %710 = vmatpush1.msra.mxu0 %v18
  %711 = vmatprep.subr.mxu0 0.0
  %712 = vmatpush1.msra.mxu0 %v17
  %713 = vmatprep.subr.mxu0 0.0
  %714 = vmatpush1.msra.mxu0 %v16
  %715 = vmatprep.subr.mxu0 0.0
  %716 = vmatpush1.msra.mxu0 %v15
  %717 = vmatprep.subr.mxu0 0.0
  %718 = vmatpush1.msra.mxu0 %v14
  %719 = vmatprep.subr.mxu0 0.0
  %720 = vmatpush2.msra.mxu0 %v45
  %721 = vmatprep.subr.mxu0 0.0
  %722 = vmatpush2.msra.mxu0 %v44
  %723 = vmatprep.subr.mxu0 0.0
  %724 = vmatpush2.msra.mxu0 %v43
  %725 = vmatprep.subr.mxu0 0.0
  %726 = vmatpush2.msra.mxu0 %v42
  %727 = vmatprep.subr.mxu0 0.0
  %728 = vmatpush2.msra.mxu0 %v41
  %729 = vmatprep.subr.mxu0 0.0
  %730 = vmatpush2.msra.mxu0 %v40
  %731 = vmatprep.subr.mxu0 0.0
  %732 = vmatpush2.msra.mxu0 %v39
  %733 = vmatprep.subr.mxu0 0.0
  %734 = vmatpush2.msra.mxu0 %v38
  %735 = vmatprep.subr.mxu0 0.0
  %736 = vmatpush2.msra.mxu0 %v37
  %737 = vmatprep.subr.mxu0 0.0
  %738 = vmatpush2.msra.mxu0 %v36
  %739 = vmatprep.subr.mxu0 0.0
  %740 = vmatpush2.msra.mxu0 %v35
  %741 = vmatprep.subr.mxu0 0.0
  %742 = vmatpush2.msra.mxu0 %v34
  %743 = vmatprep.subr.mxu0 0.0
  %744 = vmatpush2.msra.mxu0 %v33
  %745 = vmatprep.subr.mxu0 0.0
  %746 = vmatpush2.msra.mxu0 %v32
  %747 = vmatprep.subr.mxu0 0.0
  %748 = vmatpush2.msra.mxu0 %v31
  %749 = vmatprep.subr.mxu0 0.0
  %750 = vmatpush2.msra.mxu0 %v30
  %751 = vmatprep.mubr.f32.mxu0 %v664
  %752 = vmatmul.mubr.f32.gmra.mxu0 %v663
  %v753 = vpop.f32.mrf.mxu0
  %v754 = vadd.f32 %v67, %v753
  %v755 = vpop.f32.mrf.mxu0
  %756 = vmatprep.mubr.f32.mxu0 %v667
  %757 = vmatmul.mubr.f32.gmra.mxu0 %v666
  %v758 = vpop.f32.mrf.mxu0
  %v759 = vadd.f32 %v67, %v758
  %v760 = vpop.f32.mrf.mxu0
  %761 = vmatprep.mubr.f32.mxu0 %v670
  %762 = vmatmul.mubr.f32.gmra.mxu0 %v669
  %v763 = vpop.f32.mrf.mxu0
  %v764 = vadd.f32 %v67, %v763
  %v765 = vpop.f32.mrf.mxu0
  %766 = vmatprep.mubr.f32.mxu0 %v673
  %767 = vmatmul.mubr.f32.gmra.mxu0 %v672
  %v768 = vpop.f32.mrf.mxu0
  %v769 = vadd.f32 %v67, %v768
  %v770 = vpop.f32.mrf.mxu0
  %771 = vdwg.mxu0
  %772 = vmatprep.subr.mxu0 0.0
  %773 = vmatpush1.msra.mxu0 0.0
  %774 = vmatprep.subr.mxu0 0.0
  %775 = vmatpush1.msra.mxu0 0.0
  %776 = vmatprep.subr.mxu0 0.0
  %777 = vmatpush1.msra.mxu0 0.0
  %778 = vmatprep.subr.mxu0 0.0
  %779 = vmatpush1.msra.mxu0 0.0
  %780 = vmatprep.subr.mxu0 0.0
  %781 = vmatpush1.msra.mxu0 0.0
  %782 = vmatprep.subr.mxu0 0.0
  %783 = vmatpush1.msra.mxu0 0.0
  %784 = vmatprep.subr.mxu0 0.0
  %785 = vmatpush1.msra.mxu0 0.0
  %786 = vmatprep.subr.mxu0 0.0
  %787 = vmatpush1.msra.mxu0 0.0
  %788 = vmatprep.subr.mxu0 0.0
  %789 = vmatpush1.msra.mxu0 0.0
  %790 = vmatprep.subr.mxu0 0.0
  %791 = vmatpush1.msra.mxu0 0.0
  %792 = vmatprep.subr.mxu0 0.0
  %793 = vmatpush1.msra.mxu0 0.0
  %794 = vmatprep.subr.mxu0 0.0
  %795 = vmatpush1.msra.mxu0 0.0
  %796 = vmatprep.subr.mxu0 0.0
  %797 = vmatpush1.msra.mxu0 %v49
  %798 = vmatprep.subr.mxu0 0.0
  %799 = vmatpush1.msra.mxu0 %v48
  %800 = vmatprep.subr.mxu0 0.0
  %801 = vmatpush1.msra.mxu0 %v47
  %802 = vmatprep.subr.mxu0 0.0
  %803 = vmatpush1.msra.mxu0 %v46
  %804 = vmatprep.subr.mxu0 0.0
  %805 = vmatpush2.msra.mxu0 0.0
  %806 = vmatprep.subr.mxu0 0.0
  %807 = vmatpush2.msra.mxu0 0.0
  %808 = vmatprep.subr.mxu0 0.0
  %809 = vmatpush2.msra.mxu0 0.0
  %810 = vmatprep.subr.mxu0 0.0
  %811 = vmatpush2.msra.mxu0 0.0
  %812 = vmatprep.subr.mxu0 0.0
  %813 = vmatpush2.msra.mxu0 0.0
  %814 = vmatprep.subr.mxu0 0.0
  %815 = vmatpush2.msra.mxu0 0.0
  %816 = vmatprep.subr.mxu0 0.0
  %817 = vmatpush2.msra.mxu0 0.0
  %818 = vmatprep.subr.mxu0 0.0
  %819 = vmatpush2.msra.mxu0 0.0
  %820 = vmatprep.subr.mxu0 0.0
  %821 = vmatpush2.msra.mxu0 0.0
  %822 = vmatprep.subr.mxu0 0.0
  %823 = vmatpush2.msra.mxu0 0.0
  %824 = vmatprep.subr.mxu0 0.0
  %825 = vmatpush2.msra.mxu0 0.0
  %826 = vmatprep.subr.mxu0 0.0
  %827 = vmatpush2.msra.mxu0 0.0
  %828 = vmatprep.subr.mxu0 0.0
  %829 = vmatpush2.msra.mxu0 0.0
  %830 = vmatprep.subr.mxu0 0.0
  %831 = vmatpush2.msra.mxu0 0.0
  %832 = vmatprep.subr.mxu0 0.0
  %833 = vmatpush2.msra.mxu0 0.0
  %834 = vmatprep.subr.mxu0 0.0
  %835 = vmatpush2.msra.mxu0 0.0
  %836 = vmatprep.mubr.f32.mxu0 0.0
  %837 = vmatmul.mubr.f32.gmra.mxu0 %v676
  %v838 = vpop.f32.mrf.mxu0
  %v839 = vadd.f32 %v754, %v838
  %v840 = vpop.f32.mrf.mxu0
  %841 = vmatprep.mubr.f32.mxu0 0.0
  %842 = vmatmul.mubr.f32.gmra.mxu0 %v679
  %v843 = vpop.f32.mrf.mxu0
  %v844 = vadd.f32 %v759, %v843
  %v845 = vpop.f32.mrf.mxu0
  %846 = vmatprep.mubr.f32.mxu0 0.0
  %847 = vmatmul.mubr.f32.gmra.mxu0 %v682
  %v848 = vpop.f32.mrf.mxu0
  %v849 = vadd.f32 %v764, %v848
  %v850 = vpop.f32.mrf.mxu0
  %851 = vmatprep.mubr.f32.mxu0 0.0
  %852 = vmatmul.mubr.f32.gmra.mxu0 %v685
  %v853 = vpop.f32.mrf.mxu0
  %v854 = vadd.f32 %v769, %v853
  %v855 = vpop.f32.mrf.mxu0
  %856 = vdwg.mxu0
  %v857 = vmax.f32 %v839, 0.0
  %v858 = vmax.f32 %v844, 0.0
  %v859 = vmax.f32 %v849, 0.0
  %v860 = vmax.f32 %v854, 0.0
  %v861 = vmax.f32 %v658, %v857
  %v862 = vmax.f32 %v659, %v858
  %v863 = vmax.f32 %v660, %v859
  %v864 = vmax.f32 %v661, %v860
  %vm865 = vcmask 523264
  %866 = vst.msk [vmem:[%s3] sm:$0xff] %vm865, %v861
  %867 = vst.msk [vmem:[%s3 + $0x8] sm:$0xff] %vm865, %v862
  %868 = vst.msk [vmem:[%s3 + $0x10] sm:$0xff] %vm865, %v863
  %869 = vst.msk [vmem:[%s3 + $0x18] sm:$0xff] %vm865, %v864
  // Predicated region
  $region14: #{forward.7} parent=0 // pred_check
    _
  $region15: #{forward.7} parent=0 // pred_check_branch
    %871 = sbr.rel (0) target = $region17
  $region16: #{forward.7} parent=0 // pred_region
    _
  $region17: #{forward.7} parent=0 // pred_fallthru
    _
  // Predicated region
  $region18: #{forward.7} parent=0 // pred_check
    _
  $region19: #{forward.7} parent=0 // pred_check_branch
    %873 = sbr.rel (0) target = $region21
  $region20: #{forward.7} parent=0 // pred_region
    _
  $region21: #{forward.7} parent=0 // pred_fallthru
    _

// kernel: forward.8
$region0: #{forward.8}
  #allocation0 [shape = 'u32[]', space=smem, size = 0x4, offset = 0x4, fixed_abs, tag = 'smem constant byte address 0x4 - core index']
  #allocation1 [shape = 'u32[144,128]{1,0:T(1,128)}', space=vmem, size = 0x12000, scoped, tag = 'internal scratch']
  %s0 = inlined_call_operand.vmem [shape: f32[2,1024], index: 0, kind: input, shape index: {}]
  %s1 = inlined_call_operand.vmem [shape: f32[1024,256], index: 1, kind: input, shape index: {}]
  %s2 = inlined_call_operand.vmem [shape: f32[1,256], index: 2, kind: input, shape index: {}]
  %s3 = inlined_call_operand.vmem [shape: f32[256,256], index: 3, kind: input, shape index: {}]
  %s4 = inlined_call_operand.vmem [shape: f32[1,256], index: 4, kind: input, shape index: {}]
  %s5 = inlined_call_operand.vmem [shape: f32[256,256], index: 5, kind: input, shape index: {}]
  %s6 = inlined_call_operand.vmem [shape: f32[1,256], index: 6, kind: input, shape index: {}]
  %s7 = inlined_call_operand.vmem [shape: f32[16,64], index: 7, kind: input, shape index: {}]
  %s8 = inlined_call_operand.vmem [shape: f32[64,512], index: 8, kind: input, shape index: {}]
  %s9 = inlined_call_operand.vmem [shape: f32[1,512], index: 9, kind: input, shape index: {}]
  %s10 = inlined_call_operand.vmem [shape: f32[2,256], index: 10, kind: output, shape index: {0}]
  %s11 = inlined_call_operand.vmem [shape: f32[16,512], index: 11, kind: output, shape index: {1}]
  %12 = xla_tuple %s10, %s11
  %s13 = sld [smem:[#allocation0]]
  $region58: #{forward.8} parent=0
    _
  %s15 = ssub.s32 1, %s13
  %s16 = scalar_select 0, %s15, %s13
  // Predicated region
  $region2: #{forward.8} parent=0 // pred_check
    _
  $region3: #{forward.8} parent=0 // pred_check_branch
    %18 = sbr.rel (0) target = $region5
  $region4: #{forward.8} parent=0 // pred_region
    _
  $region5: #{forward.8} parent=0 // pred_fallthru
    _
  // Predicated region
  $region6: #{forward.8} parent=0 // pred_check
    _
  $region7: #{forward.8} parent=0 // pred_check_branch
    %20 = sbr.rel (0) target = $region9
  $region8: #{forward.8} parent=0 // pred_region
    _
  $region9: #{forward.8} parent=0 // pred_fallthru
    _
  // Predicated region
  $region10: #{forward.8} parent=0 // pred_check
    _
  $region11: #{forward.8} parent=0 // pred_check_branch
    %22 = sbr.rel (0) target = $region13
  $region12: #{forward.8} parent=0 // pred_region
    _
  $region13: #{forward.8} parent=0 // pred_fallthru
    _
  // Predicated region
  $region14: #{forward.8} parent=0 // pred_check
    _
  $region15: #{forward.8} parent=0 // pred_check_branch
    %24 = sbr.rel (0) target = $region17
  $region16: #{forward.8} parent=0 // pred_region
    _
  $region17: #{forward.8} parent=0 // pred_fallthru
    _
  // Predicated region
  $region18: #{forward.8} parent=0 // pred_check
    _
  $region19: #{forward.8} parent=0 // pred_check_branch
    %26 = sbr.rel (0) target = $region21
  $region20: #{forward.8} parent=0 // pred_region
    _
  $region21: #{forward.8} parent=0 // pred_fallthru
    _
  // Predicated region
  $region22: #{forward.8} parent=0 // pred_check
    _
  $region23: #{forward.8} parent=0 // pred_check_branch
    %28 = sbr.rel (0) target = $region25
  $region24: #{forward.8} parent=0 // pred_region
    _
  $region25: #{forward.8} parent=0 // pred_fallthru
    _
  // Predicated region
  $region26: #{forward.8} parent=0 // pred_check
    _
  $region27: #{forward.8} parent=0 // pred_check_branch
    %30 = sbr.rel (0) target = $region29
  $region28: #{forward.8} parent=0 // pred_region
    _
  $region29: #{forward.8} parent=0 // pred_fallthru
    _
  // Predicated region
  $region30: #{forward.8} parent=0 // pred_check
    _
  $region31: #{forward.8} parent=0 // pred_check_branch
    %32 = sbr.rel (0) target = $region33
  $region32: #{forward.8} parent=0 // pred_region
    _
  $region33: #{forward.8} parent=0 // pred_fallthru
    _
  // Predicated region
  $region34: #{forward.8} parent=0 // pred_check
    _
  $region35: #{forward.8} parent=0 // pred_check_branch
    %34 = sbr.rel (0) target = $region37
  $region36: #{forward.8} parent=0 // pred_region
    _
  $region37: #{forward.8} parent=0 // pred_fallthru
    _
  // Predicated region
  $region38: #{forward.8} parent=0 // pred_check
    _
  $region39: #{forward.8} parent=0 // pred_check_branch
    %36 = sbr.rel (0) target = $region41
  $region40: #{forward.8} parent=0 // pred_region
    _
  $region41: #{forward.8} parent=0 // pred_fallthru
    _
  %v37 = vld [vmem:[%s0] sm:$0xff]
  %v38 = vld [vmem:[%s0 + $0x8] sm:$0xff]
  %v39 = vld [vmem:[%s1] sm:$0xff]
  %v40 = vld [vmem:[%s1 + $0x8] sm:$0xff]
  %v41 = vld [vmem:[%s1 + $0x10] sm:$0xff]
  %v42 = vld [vmem:[%s1 + $0x18] sm:$0xff]
  %v43 = vld [vmem:[%s1 + $0x20] sm:$0xff]
  %v44 = vld [vmem:[%s1 + $0x28] sm:$0xff]
  %v45 = vld [vmem:[%s1 + $0x30] sm:$0xff]
  %v46 = vld [vmem:[%s1 + $0x38] sm:$0xff]
  %v47 = vld [vmem:[%s1 + $0x40] sm:$0xff]
  %v48 = vld [vmem:[%s1 + $0x48] sm:$0xff]
  %v49 = vld [vmem:[%s1 + $0x50] sm:$0xff]
  %v50 = vld [vmem:[%s1 + $0x58] sm:$0xff]
  %v51 = vld [vmem:[%s1 + $0x60] sm:$0xff]
  %v52 = vld [vmem:[%s1 + $0x68] sm:$0xff]
  %v53 = vld [vmem:[%s1 + $0x70] sm:$0xff]
  %v54 = vld [vmem:[%s1 + $0x78] sm:$0xff]
  %v55 = vld [vmem:[%s1 + $0x80] sm:$0xff]
  %v56 = vld [vmem:[%s1 + $0x88] sm:$0xff]
  %v57 = vld [vmem:[%s1 + $0x90] sm:$0xff]
  %v58 = vld [vmem:[%s1 + $0x98] sm:$0xff]
  %v59 = vld [vmem:[%s1 + $0xa0] sm:$0xff]
  %v60 = vld [vmem:[%s1 + $0xa8] sm:$0xff]
  %v61 = vld [vmem:[%s1 + $0xb0] sm:$0xff]
  %v62 = vld [vmem:[%s1 + $0xb8] sm:$0xff]
  %v63 = vld [vmem:[%s1 + $0xc0] sm:$0xff]
  %v64 = vld [vmem:[%s1 + $0xc8] sm:$0xff]
  %v65 = vld [vmem:[%s1 + $0xd0] sm:$0xff]
  %v66 = vld [vmem:[%s1 + $0xd8] sm:$0xff]
  %v67 = vld [vmem:[%s1 + $0xe0] sm:$0xff]
  %v68 = vld [vmem:[%s1 + $0xe8] sm:$0xff]
  %v69 = vld [vmem:[%s1 + $0xf0] sm:$0xff]
  %v70 = vld [vmem:[%s1 + $0xf8] sm:$0xff]
  %v71 = vld [vmem:[%s1 + $0x100] sm:$0xff]
  %v72 = vld [vmem:[%s1 + $0x108] sm:$0xff]
  %v73 = vld [vmem:[%s1 + $0x110] sm:$0xff]
  %v74 = vld [vmem:[%s1 + $0x118] sm:$0xff]
  %v75 = vld [vmem:[%s1 + $0x120] sm:$0xff]
  %v76 = vld [vmem:[%s1 + $0x128] sm:$0xff]
  %v77 = vld [vmem:[%s1 + $0x130] sm:$0xff]
  %v78 = vld [vmem:[%s1 + $0x138] sm:$0xff]
  %v79 = vld [vmem:[%s1 + $0x140] sm:$0xff]
  %v80 = vld [vmem:[%s1 + $0x148] sm:$0xff]
  %v81 = vld [vmem:[%s1 + $0x150] sm:$0xff]
  %v82 = vld [vmem:[%s1 + $0x158] sm:$0xff]
  %v83 = vld [vmem:[%s1 + $0x160] sm:$0xff]
  %v84 = vld [vmem:[%s1 + $0x168] sm:$0xff]
  %v85 = vld [vmem:[%s1 + $0x170] sm:$0xff]
  %v86 = vld [vmem:[%s1 + $0x178] sm:$0xff]
  %v87 = vld [vmem:[%s1 + $0x180] sm:$0xff]
  %v88 = vld [vmem:[%s1 + $0x188] sm:$0xff]
  %v89 = vld [vmem:[%s1 + $0x190] sm:$0xff]
  %v90 = vld [vmem:[%s1 + $0x198] sm:$0xff]
  %v91 = vld [vmem:[%s1 + $0x1a0] sm:$0xff]
  %v92 = vld [vmem:[%s1 + $0x1a8] sm:$0xff]
  %v93 = vld [vmem:[%s1 + $0x1b0] sm:$0xff]
  %v94 = vld [vmem:[%s1 + $0x1b8] sm:$0xff]
  %v95 = vld [vmem:[%s1 + $0x1c0] sm:$0xff]
  %v96 = vld [vmem:[%s1 + $0x1c8] sm:$0xff]
  %v97 = vld [vmem:[%s1 + $0x1d0] sm:$0xff]
  %v98 = vld [vmem:[%s1 + $0x1d8] sm:$0xff]
  %v99 = vld [vmem:[%s1 + $0x1e0] sm:$0xff]
  %v100 = vld [vmem:[%s1 + $0x1e8] sm:$0xff]
  %v101 = vld [vmem:[%s1 + $0x1f0] sm:$0xff]
  %v102 = vld [vmem:[%s1 + $0x1f8] sm:$0xff]
  %v103 = vld [vmem:[%s1 + $0x200] sm:$0xff]
  %v104 = vld [vmem:[%s1 + $0x208] sm:$0xff]
  %v105 = vld [vmem:[%s1 + $0x210] sm:$0xff]
  %v106 = vld [vmem:[%s1 + $0x218] sm:$0xff]
  %v107 = vld [vmem:[%s1 + $0x220] sm:$0xff]
  %v108 = vld [vmem:[%s1 + $0x228] sm:$0xff]
  %v109 = vld [vmem:[%s1 + $0x230] sm:$0xff]
  %v110 = vld [vmem:[%s1 + $0x238] sm:$0xff]
  %v111 = vld [vmem:[%s1 + $0x240] sm:$0xff]
  %v112 = vld [vmem:[%s1 + $0x248] sm:$0xff]
  %v113 = vld [vmem:[%s1 + $0x250] sm:$0xff]
  %v114 = vld [vmem:[%s1 + $0x258] sm:$0xff]
  %v115 = vld [vmem:[%s1 + $0x260] sm:$0xff]
  %v116 = vld [vmem:[%s1 + $0x268] sm:$0xff]
  %v117 = vld [vmem:[%s1 + $0x270] sm:$0xff]
  %v118 = vld [vmem:[%s1 + $0x278] sm:$0xff]
  %v119 = vld [vmem:[%s1 + $0x280] sm:$0xff]
  %v120 = vld [vmem:[%s1 + $0x288] sm:$0xff]
  %v121 = vld [vmem:[%s1 + $0x290] sm:$0xff]
  %v122 = vld [vmem:[%s1 + $0x298] sm:$0xff]
  %v123 = vld [vmem:[%s1 + $0x2a0] sm:$0xff]
  %v124 = vld [vmem:[%s1 + $0x2a8] sm:$0xff]
  %v125 = vld [vmem:[%s1 + $0x2b0] sm:$0xff]
  %v126 = vld [vmem:[%s1 + $0x2b8] sm:$0xff]
  %v127 = vld [vmem:[%s1 + $0x2c0] sm:$0xff]
  %v128 = vld [vmem:[%s1 + $0x2c8] sm:$0xff]
  %v129 = vld [vmem:[%s1 + $0x2d0] sm:$0xff]
  %v130 = vld [vmem:[%s1 + $0x2d8] sm:$0xff]
  %v131 = vld [vmem:[%s1 + $0x2e0] sm:$0xff]
  %v132 = vld [vmem:[%s1 + $0x2e8] sm:$0xff]
  %v133 = vld [vmem:[%s1 + $0x2f0] sm:$0xff]
  %v134 = vld [vmem:[%s1 + $0x2f8] sm:$0xff]
  %v135 = vld [vmem:[%s1 + $0x300] sm:$0xff]
  %v136 = vld [vmem:[%s1 + $0x308] sm:$0xff]
  %v137 = vld [vmem:[%s1 + $0x310] sm:$0xff]
  %v138 = vld [vmem:[%s1 + $0x318] sm:$0xff]
  %v139 = vld [vmem:[%s1 + $0x320] sm:$0xff]
  %v140 = vld [vmem:[%s1 + $0x328] sm:$0xff]
  %v141 = vld [vmem:[%s1 + $0x330] sm:$0xff]
  %v142 = vld [vmem:[%s1 + $0x338] sm:$0xff]
  %v143 = vld [vmem:[%s1 + $0x340] sm:$0xff]
  %v144 = vld [vmem:[%s1 + $0x348] sm:$0xff]
  %v145 = vld [vmem:[%s1 + $0x350] sm:$0xff]
  %v146 = vld [vmem:[%s1 + $0x358] sm:$0xff]
  %v147 = vld [vmem:[%s1 + $0x360] sm:$0xff]
  %v148 = vld [vmem:[%s1 + $0x368] sm:$0xff]
  %v149 = vld [vmem:[%s1 + $0x370] sm:$0xff]
  %v150 = vld [vmem:[%s1 + $0x378] sm:$0xff]
  %v151 = vld [vmem:[%s1 + $0x380] sm:$0xff]
  %v152 = vld [vmem:[%s1 + $0x388] sm:$0xff]
  %v153 = vld [vmem:[%s1 + $0x390] sm:$0xff]
  %v154 = vld [vmem:[%s1 + $0x398] sm:$0xff]
  %v155 = vld [vmem:[%s1 + $0x3a0] sm:$0xff]
  %v156 = vld [vmem:[%s1 + $0x3a8] sm:$0xff]
  %v157 = vld [vmem:[%s1 + $0x3b0] sm:$0xff]
  %v158 = vld [vmem:[%s1 + $0x3b8] sm:$0xff]
  %v159 = vld [vmem:[%s1 + $0x3c0] sm:$0xff]
  %v160 = vld [vmem:[%s1 + $0x3c8] sm:$0xff]
  %v161 = vld [vmem:[%s1 + $0x3d0] sm:$0xff]
  %v162 = vld [vmem:[%s1 + $0x3d8] sm:$0xff]
  %v163 = vld [vmem:[%s1 + $0x3e0] sm:$0xff]
  %v164 = vld [vmem:[%s1 + $0x3e8] sm:$0xff]
  %v165 = vld [vmem:[%s1 + $0x3f0] sm:$0xff]
  %v166 = vld [vmem:[%s1 + $0x3f8] sm:$0xff]
  %v167 = vld [vmem:[%s1 + $0x400] sm:$0xff]
  %v168 = vld [vmem:[%s1 + $0x408] sm:$0xff]
  %v169 = vld [vmem:[%s1 + $0x410] sm:$0xff]
  %v170 = vld [vmem:[%s1 + $0x418] sm:$0xff]
  %v171 = vld [vmem:[%s1 + $0x420] sm:$0xff]
  %v172 = vld [vmem:[%s1 + $0x428] sm:$0xff]
  %v173 = vld [vmem:[%s1 + $0x430] sm:$0xff]
  %v174 = vld [vmem:[%s1 + $0x438] sm:$0xff]
  %v175 = vld [vmem:[%s1 + $0x440] sm:$0xff]
  %v176 = vld [vmem:[%s1 + $0x448] sm:$0xff]
  %v177 = vld [vmem:[%s1 + $0x450] sm:$0xff]
  %v178 = vld [vmem:[%s1 + $0x458] sm:$0xff]
  %v179 = vld [vmem:[%s1 + $0x460] sm:$0xff]
  %v180 = vld [vmem:[%s1 + $0x468] sm:$0xff]
  %v181 = vld [vmem:[%s1 + $0x470] sm:$0xff]
  %v182 = vld [vmem:[%s1 + $0x478] sm:$0xff]
  %v183 = vld [vmem:[%s1 + $0x480] sm:$0xff]
  %v184 = vld [vmem:[%s1 + $0x488] sm:$0xff]
  %v185 = vld [vmem:[%s1 + $0x490] sm:$0xff]
  %v186 = vld [vmem:[%s1 + $0x498] sm:$0xff]
  %v187 = vld [vmem:[%s1 + $0x4a0] sm:$0xff]
  %v188 = vld [vmem:[%s1 + $0x4a8] sm:$0xff]
  %v189 = vld [vmem:[%s1 + $0x4b0] sm:$0xff]
  %v190 = vld [vmem:[%s1 + $0x4b8] sm:$0xff]
  %v191 = vld [vmem:[%s1 + $0x4c0] sm:$0xff]
  %v192 = vld [vmem:[%s1 + $0x4c8] sm:$0xff]
  %v193 = vld [vmem:[%s1 + $0x4d0] sm:$0xff]
  %v194 = vld [vmem:[%s1 + $0x4d8] sm:$0xff]
  %v195 = vld [vmem:[%s1 + $0x4e0] sm:$0xff]
  %v196 = vld [vmem:[%s1 + $0x4e8] sm:$0xff]
  %v197 = vld [vmem:[%s1 + $0x4f0] sm:$0xff]
  %v198 = vld [vmem:[%s1 + $0x4f8] sm:$0xff]
  %v199 = vld [vmem:[%s1 + $0x500] sm:$0xff]
  %v200 = vld [vmem:[%s1 + $0x508] sm:$0xff]
  %v201 = vld [vmem:[%s1 + $0x510] sm:$0xff]
  %v202 = vld [vmem:[%s1 + $0x518] sm:$0xff]
  %v203 = vld [vmem:[%s1 + $0x520] sm:$0xff]
  %v204 = vld [vmem:[%s1 + $0x528] sm:$0xff]
  %v205 = vld [vmem:[%s1 + $0x530] sm:$0xff]
  %v206 = vld [vmem:[%s1 + $0x538] sm:$0xff]
  %v207 = vld [vmem:[%s1 + $0x540] sm:$0xff]
  %v208 = vld [vmem:[%s1 + $0x548] sm:$0xff]
  %v209 = vld [vmem:[%s1 + $0x550] sm:$0xff]
  %v210 = vld [vmem:[%s1 + $0x558] sm:$0xff]
  %v211 = vld [vmem:[%s1 + $0x560] sm:$0xff]
  %v212 = vld [vmem:[%s1 + $0x568] sm:$0xff]
  %v213 = vld [vmem:[%s1 + $0x570] sm:$0xff]
  %v214 = vld [vmem:[%s1 + $0x578] sm:$0xff]
  %v215 = vld [vmem:[%s1 + $0x580] sm:$0xff]
  %v216 = vld [vmem:[%s1 + $0x588] sm:$0xff]
  %v217 = vld [vmem:[%s1 + $0x590] sm:$0xff]
  %v218 = vld [vmem:[%s1 + $0x598] sm:$0xff]
  %v219 = vld [vmem:[%s1 + $0x5a0] sm:$0xff]
  %v220 = vld [vmem:[%s1 + $0x5a8] sm:$0xff]
  %v221 = vld [vmem:[%s1 + $0x5b0] sm:$0xff]
  %v222 = vld [vmem:[%s1 + $0x5b8] sm:$0xff]
  %v223 = vld [vmem:[%s1 + $0x5c0] sm:$0xff]
  %v224 = vld [vmem:[%s1 + $0x5c8] sm:$0xff]
  %v225 = vld [vmem:[%s1 + $0x5d0] sm:$0xff]
  %v226 = vld [vmem:[%s1 + $0x5d8] sm:$0xff]
  %v227 = vld [vmem:[%s1 + $0x5e0] sm:$0xff]
  %v228 = vld [vmem:[%s1 + $0x5e8] sm:$0xff]
  %v229 = vld [vmem:[%s1 + $0x5f0] sm:$0xff]
  %v230 = vld [vmem:[%s1 + $0x5f8] sm:$0xff]
  %v231 = vld [vmem:[%s1 + $0x600] sm:$0xff]
  %v232 = vld [vmem:[%s1 + $0x608] sm:$0xff]
  %v233 = vld [vmem:[%s1 + $0x610] sm:$0xff]
  %v234 = vld [vmem:[%s1 + $0x618] sm:$0xff]
  %v235 = vld [vmem:[%s1 + $0x620] sm:$0xff]
  %v236 = vld [vmem:[%s1 + $0x628] sm:$0xff]
  %v237 = vld [vmem:[%s1 + $0x630] sm:$0xff]
  %v238 = vld [vmem:[%s1 + $0x638] sm:$0xff]
  %v239 = vld [vmem:[%s1 + $0x640] sm:$0xff]
  %v240 = vld [vmem:[%s1 + $0x648] sm:$0xff]
  %v241 = vld [vmem:[%s1 + $0x650] sm:$0xff]
  %v242 = vld [vmem:[%s1 + $0x658] sm:$0xff]
  %v243 = vld [vmem:[%s1 + $0x660] sm:$0xff]
  %v244 = vld [vmem:[%s1 + $0x668] sm:$0xff]
  %v245 = vld [vmem:[%s1 + $0x670] sm:$0xff]
  %v246 = vld [vmem:[%s1 + $0x678] sm:$0xff]
  %v247 = vld [vmem:[%s1 + $0x680] sm:$0xff]
  %v248 = vld [vmem:[%s1 + $0x688] sm:$0xff]
  %v249 = vld [vmem:[%s1 + $0x690] sm:$0xff]
  %v250 = vld [vmem:[%s1 + $0x698] sm:$0xff]
  %v251 = vld [vmem:[%s1 + $0x6a0] sm:$0xff]
  %v252 = vld [vmem:[%s1 + $0x6a8] sm:$0xff]
  %v253 = vld [vmem:[%s1 + $0x6b0] sm:$0xff]
  %v254 = vld [vmem:[%s1 + $0x6b8] sm:$0xff]
  %v255 = vld [vmem:[%s1 + $0x6c0] sm:$0xff]
  %v256 = vld [vmem:[%s1 + $0x6c8] sm:$0xff]
  %v257 = vld [vmem:[%s1 + $0x6d0] sm:$0xff]
  %v258 = vld [vmem:[%s1 + $0x6d8] sm:$0xff]
  %v259 = vld [vmem:[%s1 + $0x6e0] sm:$0xff]
  %v260 = vld [vmem:[%s1 + $0x6e8] sm:$0xff]
  %v261 = vld [vmem:[%s1 + $0x6f0] sm:$0xff]
  %v262 = vld [vmem:[%s1 + $0x6f8] sm:$0xff]
  %v263 = vld [vmem:[%s1 + $0x700] sm:$0xff]
  %v264 = vld [vmem:[%s1 + $0x708] sm:$0xff]
  %v265 = vld [vmem:[%s1 + $0x710] sm:$0xff]
  %v266 = vld [vmem:[%s1 + $0x718] sm:$0xff]
  %v267 = vld [vmem:[%s1 + $0x720] sm:$0xff]
  %v268 = vld [vmem:[%s1 + $0x728] sm:$0xff]
  %v269 = vld [vmem:[%s1 + $0x730] sm:$0xff]
  %v270 = vld [vmem:[%s1 + $0x738] sm:$0xff]
  %v271 = vld [vmem:[%s1 + $0x740] sm:$0xff]
  %v272 = vld [vmem:[%s1 + $0x748] sm:$0xff]
  %v273 = vld [vmem:[%s1 + $0x750] sm:$0xff]
  %v274 = vld [vmem:[%s1 + $0x758] sm:$0xff]
  %v275 = vld [vmem:[%s1 + $0x760] sm:$0xff]
  %v276 = vld [vmem:[%s1 + $0x768] sm:$0xff]
  %v277 = vld [vmem:[%s1 + $0x770] sm:$0xff]
  %v278 = vld [vmem:[%s1 + $0x778] sm:$0xff]
  %v279 = vld [vmem:[%s1 + $0x780] sm:$0xff]
  %v280 = vld [vmem:[%s1 + $0x788] sm:$0xff]
  %v281 = vld [vmem:[%s1 + $0x790] sm:$0xff]
  %v282 = vld [vmem:[%s1 + $0x798] sm:$0xff]
  %v283 = vld [vmem:[%s1 + $0x7a0] sm:$0xff]
  %v284 = vld [vmem:[%s1 + $0x7a8] sm:$0xff]
  %v285 = vld [vmem:[%s1 + $0x7b0] sm:$0xff]
  %v286 = vld [vmem:[%s1 + $0x7b8] sm:$0xff]
  %v287 = vld [vmem:[%s1 + $0x7c0] sm:$0xff]
  %v288 = vld [vmem:[%s1 + $0x7c8] sm:$0xff]
  %v289 = vld [vmem:[%s1 + $0x7d0] sm:$0xff]
  %v290 = vld [vmem:[%s1 + $0x7d8] sm:$0xff]
  %v291 = vld [vmem:[%s1 + $0x7e0] sm:$0xff]
  %v292 = vld [vmem:[%s1 + $0x7e8] sm:$0xff]
  %v293 = vld [vmem:[%s1 + $0x7f0] sm:$0xff]
  %v294 = vld [vmem:[%s1 + $0x7f8] sm:$0xff]
  %v295 = vld [vmem:[%s2] sm:$0x3]
  %v297 = vlaneseq
  %v298 = vshrl.u32 %v297, 7
  %v299 = vsub.s32 0, %v298
  %v300 = vrot.slane %v295, %v299
  %v301 = vlaneseq
  %v302 = vshrl.u32 %v301, 7
  %v303 = vsub.s32 1, %v302
  %v304 = vrot.slane %v295, %v303
  %v309 = vcombine.high %v37, %v37
  %v311 = vunpack.c.l.s4 1983009808
  %v312 = vunpack.c.0.s8 %v311
  %v313 = vlaneseq
  %v314 = vshrl.u32 %v313, 7
  %v315 = vsub.s32 %v312, %v314
  %v316 = vrot.slane %v37, %v315
  %v318 = vunpack.c.l.s4 1983009808
  %v319 = vunpack.c.0.s8 %v318
  %v320 = vlaneseq
  %v321 = vshrl.u32 %v320, 7
  %v322 = vsub.s32 %v319, %v321
  %v323 = vrot.slane %v309, %v322
  %v324 = vcombine.high %v316, %v316
  %v325 = vcombine.high %v323, %v323
  %v326 = vcombine.high %v38, %v38
  %v328 = vunpack.c.l.s4 1983009808
  %v329 = vunpack.c.0.s8 %v328
  %v330 = vlaneseq
  %v331 = vshrl.u32 %v330, 7
  %v332 = vsub.s32 %v329, %v331
  %v333 = vrot.slane %v38, %v332
  %v335 = vunpack.c.l.s4 1983009808
  %v336 = vunpack.c.0.s8 %v335
  %v337 = vlaneseq
  %v338 = vshrl.u32 %v337, 7
  %v339 = vsub.s32 %v336, %v338
  %v340 = vrot.slane %v326, %v339
  %v341 = vcombine.high %v333, %v333
  %v342 = vcombine.high %v340, %v340
  %351 = vmatprep.subr.mxu0 %v70
  %352 = vmatpush1.msra.mxu0 %v69
  %353 = vmatprep.subr.mxu0 %v68
  %354 = vmatpush1.msra.mxu0 %v67
  %355 = vmatprep.subr.mxu0 %v66
  %356 = vmatpush1.msra.mxu0 %v65
  %357 = vmatprep.subr.mxu0 %v64
  %358 = vmatpush1.msra.mxu0 %v63
  %359 = vmatprep.subr.mxu0 %v62
  %360 = vmatpush1.msra.mxu0 %v61
  %361 = vmatprep.subr.mxu0 %v60
  %362 = vmatpush1.msra.mxu0 %v59
  %363 = vmatprep.subr.mxu0 %v58
  %364 = vmatpush1.msra.mxu0 %v57
  %365 = vmatprep.subr.mxu0 %v56
  %366 = vmatpush1.msra.mxu0 %v55
  %367 = vmatprep.subr.mxu0 %v54
  %368 = vmatpush1.msra.mxu0 %v53
  %369 = vmatprep.subr.mxu0 %v52
  %370 = vmatpush1.msra.mxu0 %v51
  %371 = vmatprep.subr.mxu0 %v50
  %372 = vmatpush1.msra.mxu0 %v49
  %373 = vmatprep.subr.mxu0 %v48
  %374 = vmatpush1.msra.mxu0 %v47
  %375 = vmatprep.subr.mxu0 %v46
  %376 = vmatpush1.msra.mxu0 %v45
  %377 = vmatprep.subr.mxu0 %v44
  %378 = vmatpush1.msra.mxu0 %v43
  %379 = vmatprep.subr.mxu0 %v42
  %380 = vmatpush1.msra.mxu0 %v41
  %381 = vmatprep.subr.mxu0 %v40
  %382 = vmatpush1.msra.mxu0 %v39
  %383 = vmatprep.subr.mxu0 %v102
  %384 = vmatpush2.msra.mxu0 %v101
  %385 = vmatprep.subr.mxu0 %v100
  %386 = vmatpush2.msra.mxu0 %v99
  %387 = vmatprep.subr.mxu0 %v98
  %388 = vmatpush2.msra.mxu0 %v97
  %389 = vmatprep.subr.mxu0 %v96
  %390 = vmatpush2.msra.mxu0 %v95
  %391 = vmatprep.subr.mxu0 %v94
  %392 = vmatpush2.msra.mxu0 %v93
  %393 = vmatprep.subr.mxu0 %v92
  %394 = vmatpush2.msra.mxu0 %v91
  %395 = vmatprep.subr.mxu0 %v90
  %396 = vmatpush2.msra.mxu0 %v89
  %397 = vmatprep.subr.mxu0 %v88
  %398 = vmatpush2.msra.mxu0 %v87
  %399 = vmatprep.subr.mxu0 %v86
  %400 = vmatpush2.msra.mxu0 %v85
  %401 = vmatprep.subr.mxu0 %v84
  %402 = vmatpush2.msra.mxu0 %v83
  %403 = vmatprep.subr.mxu0 %v82
  %404 = vmatpush2.msra.mxu0 %v81
  %405 = vmatprep.subr.mxu0 %v80
  %406 = vmatpush2.msra.mxu0 %v79
  %407 = vmatprep.subr.mxu0 %v78
  %408 = vmatpush2.msra.mxu0 %v77
  %409 = vmatprep.subr.mxu0 %v76
  %410 = vmatpush2.msra.mxu0 %v75
  %411 = vmatprep.subr.mxu0 %v74
  %412 = vmatpush2.msra.mxu0 %v73
  %413 = vmatprep.subr.mxu0 %v72
  %414 = vmatpush2.msra.mxu0 %v71
  %415 = vmatprep.mubr.f32.mxu0 %v324
  %416 = vmatmul.mubr.f32.gmra.mxu0 %v316
  %v417 = vpop.f32.mrf.mxu0
  %v418 = vadd.f32 %v300, %v417
  %v419 = vpop.f32.mrf.mxu0
  %v420 = vadd.f32 %v304, %v419
  %421 = vdwg.mxu0
  %422 = vmatprep.subr.mxu0 %v134
  %423 = vmatpush1.msra.mxu0 %v133
  %424 = vmatprep.subr.mxu0 %v132
  %425 = vmatpush1.msra.mxu0 %v131
  %426 = vmatprep.subr.mxu0 %v130
  %427 = vmatpush1.msra.mxu0 %v129
  %428 = vmatprep.subr.mxu0 %v128
  %429 = vmatpush1.msra.mxu0 %v127
  %430 = vmatprep.subr.mxu0 %v126
  %431 = vmatpush1.msra.mxu0 %v125
  %432 = vmatprep.subr.mxu0 %v124
  %433 = vmatpush1.msra.mxu0 %v123
  %434 = vmatprep.subr.mxu0 %v122
  %435 = vmatpush1.msra.mxu0 %v121
  %436 = vmatprep.subr.mxu0 %v120
  %437 = vmatpush1.msra.mxu0 %v119
  %438 = vmatprep.subr.mxu0 %v118
  %439 = vmatpush1.msra.mxu0 %v117
  %440 = vmatprep.subr.mxu0 %v116
  %441 = vmatpush1.msra.mxu0 %v115
  %442 = vmatprep.subr.mxu0 %v114
  %443 = vmatpush1.msra.mxu0 %v113
  %444 = vmatprep.subr.mxu0 %v112
  %445 = vmatpush1.msra.mxu0 %v111
  %446 = vmatprep.subr.mxu0 %v110
  %447 = vmatpush1.msra.mxu0 %v109
  %448 = vmatprep.subr.mxu0 %v108
  %449 = vmatpush1.msra.mxu0 %v107
  %450 = vmatprep.subr.mxu0 %v106
  %451 = vmatpush1.msra.mxu0 %v105
  %452 = vmatprep.subr.mxu0 %v104
  %453 = vmatpush1.msra.mxu0 %v103
  %454 = vmatprep.subr.mxu0 %v166
  %455 = vmatpush2.msra.mxu0 %v165
  %456 = vmatprep.subr.mxu0 %v164
  %457 = vmatpush2.msra.mxu0 %v163
  %458 = vmatprep.subr.mxu0 %v162
  %459 = vmatpush2.msra.mxu0 %v161
  %460 = vmatprep.subr.mxu0 %v160
  %461 = vmatpush2.msra.mxu0 %v159
  %462 = vmatprep.subr.mxu0 %v158
  %463 = vmatpush2.msra.mxu0 %v157
  %464 = vmatprep.subr.mxu0 %v156
  %465 = vmatpush2.msra.mxu0 %v155
  %466 = vmatprep.subr.mxu0 %v154
  %467 = vmatpush2.msra.mxu0 %v153
  %468 = vmatprep.subr.mxu0 %v152
  %469 = vmatpush2.msra.mxu0 %v151
  %470 = vmatprep.subr.mxu0 %v150
  %471 = vmatpush2.msra.mxu0 %v149
  %472 = vmatprep.subr.mxu0 %v148
  %473 = vmatpush2.msra.mxu0 %v147
  %474 = vmatprep.subr.mxu0 %v146
  %475 = vmatpush2.msra.mxu0 %v145
  %476 = vmatprep.subr.mxu0 %v144
  %477 = vmatpush2.msra.mxu0 %v143
  %478 = vmatprep.subr.mxu0 %v142
  %479 = vmatpush2.msra.mxu0 %v141
  %480 = vmatprep.subr.mxu0 %v140
  %481 = vmatpush2.msra.mxu0 %v139
  %482 = vmatprep.subr.mxu0 %v138
  %483 = vmatpush2.msra.mxu0 %v137
  %484 = vmatprep.subr.mxu0 %v136
  %485 = vmatpush2.msra.mxu0 %v135
  %486 = vmatprep.mubr.f32.mxu0 %v325
  %487 = vmatmul.mubr.f32.gmra.mxu0 %v323
  %v488 = vpop.f32.mrf.mxu0
  %v489 = vadd.f32 %v418, %v488
  %v490 = vpop.f32.mrf.mxu0
  %v491 = vadd.f32 %v420, %v490
  %492 = vdwg.mxu0
  %493 = vmatprep.subr.mxu0 %v198
  %494 = vmatpush1.msra.mxu0 %v197
  %495 = vmatprep.subr.mxu0 %v196
  %496 = vmatpush1.msra.mxu0 %v195
  %497 = vmatprep.subr.mxu0 %v194
  %498 = vmatpush1.msra.mxu0 %v193
  %499 = vmatprep.subr.mxu0 %v192
  %500 = vmatpush1.msra.mxu0 %v191
  %501 = vmatprep.subr.mxu0 %v190
  %502 = vmatpush1.msra.mxu0 %v189
  %503 = vmatprep.subr.mxu0 %v188
  %504 = vmatpush1.msra.mxu0 %v187
  %505 = vmatprep.subr.mxu0 %v186
  %506 = vmatpush1.msra.mxu0 %v185
  %507 = vmatprep.subr.mxu0 %v184
  %508 = vmatpush1.msra.mxu0 %v183
  %509 = vmatprep.subr.mxu0 %v182
  %510 = vmatpush1.msra.mxu0 %v181
  %511 = vmatprep.subr.mxu0 %v180
  %512 = vmatpush1.msra.mxu0 %v179
  %513 = vmatprep.subr.mxu0 %v178
  %514 = vmatpush1.msra.mxu0 %v177
  %515 = vmatprep.subr.mxu0 %v176
  %516 = vmatpush1.msra.mxu0 %v175
  %517 = vmatprep.subr.mxu0 %v174
  %518 = vmatpush1.msra.mxu0 %v173
  %519 = vmatprep.subr.mxu0 %v172
  %520 = vmatpush1.msra.mxu0 %v171
  %521 = vmatprep.subr.mxu0 %v170
  %522 = vmatpush1.msra.mxu0 %v169
  %523 = vmatprep.subr.mxu0 %v168
  %524 = vmatpush1.msra.mxu0 %v167
  %525 = vmatprep.subr.mxu0 %v230
  %526 = vmatpush2.msra.mxu0 %v229
  %527 = vmatprep.subr.mxu0 %v228
  %528 = vmatpush2.msra.mxu0 %v227
  %529 = vmatprep.subr.mxu0 %v226
  %530 = vmatpush2.msra.mxu0 %v225
  %531 = vmatprep.subr.mxu0 %v224
  %532 = vmatpush2.msra.mxu0 %v223
  %533 = vmatprep.subr.mxu0 %v222
  %534 = vmatpush2.msra.mxu0 %v221
  %535 = vmatprep.subr.mxu0 %v220
  %536 = vmatpush2.msra.mxu0 %v219
  %537 = vmatprep.subr.mxu0 %v218
  %538 = vmatpush2.msra.mxu0 %v217
  %539 = vmatprep.subr.mxu0 %v216
  %540 = vmatpush2.msra.mxu0 %v215
  %541 = vmatprep.subr.mxu0 %v214
  %542 = vmatpush2.msra.mxu0 %v213
  %543 = vmatprep.subr.mxu0 %v212
  %544 = vmatpush2.msra.mxu0 %v211
  %545 = vmatprep.subr.mxu0 %v210
  %546 = vmatpush2.msra.mxu0 %v209
  %547 = vmatprep.subr.mxu0 %v208
  %548 = vmatpush2.msra.mxu0 %v207
  %549 = vmatprep.subr.mxu0 %v206
  %550 = vmatpush2.msra.mxu0 %v205
  %551 = vmatprep.subr.mxu0 %v204
  %552 = vmatpush2.msra.mxu0 %v203
  %553 = vmatprep.subr.mxu0 %v202
  %554 = vmatpush2.msra.mxu0 %v201
  %555 = vmatprep.subr.mxu0 %v200
  %556 = vmatpush2.msra.mxu0 %v199
  %557 = vmatprep.mubr.f32.mxu0 %v341
  %558 = vmatmul.mubr.f32.gmra.mxu0 %v333
  %v559 = vpop.f32.mrf.mxu0
  %v560 = vadd.f32 %v489, %v559
  %v561 = vpop.f32.mrf.mxu0
  %v562 = vadd.f32 %v491, %v561
  %563 = vdwg.mxu0
  %564 = vmatprep.subr.mxu0 %v262
  %565 = vmatpush1.msra.mxu0 %v261
  %566 = vmatprep.subr.mxu0 %v260
  %567 = vmatpush1.msra.mxu0 %v259
  %568 = vmatprep.subr.mxu0 %v258
  %569 = vmatpush1.msra.mxu0 %v257
  %570 = vmatprep.subr.mxu0 %v256
  %571 = vmatpush1.msra.mxu0 %v255
  %572 = vmatprep.subr.mxu0 %v254
  %573 = vmatpush1.msra.mxu0 %v253
  %574 = vmatprep.subr.mxu0 %v252
  %575 = vmatpush1.msra.mxu0 %v251
  %576 = vmatprep.subr.mxu0 %v250
  %577 = vmatpush1.msra.mxu0 %v249
  %578 = vmatprep.subr.mxu0 %v248
  %579 = vmatpush1.msra.mxu0 %v247
  %580 = vmatprep.subr.mxu0 %v246
  %581 = vmatpush1.msra.mxu0 %v245
  %582 = vmatprep.subr.mxu0 %v244
  %583 = vmatpush1.msra.mxu0 %v243
  %584 = vmatprep.subr.mxu0 %v242
  %585 = vmatpush1.msra.mxu0 %v241
  %586 = vmatprep.subr.mxu0 %v240
  %587 = vmatpush1.msra.mxu0 %v239
  %588 = vmatprep.subr.mxu0 %v238
  %589 = vmatpush1.msra.mxu0 %v237
  %590 = vmatprep.subr.mxu0 %v236
  %591 = vmatpush1.msra.mxu0 %v235
  %592 = vmatprep.subr.mxu0 %v234
  %593 = vmatpush1.msra.mxu0 %v233
  %594 = vmatprep.subr.mxu0 %v232
  %595 = vmatpush1.msra.mxu0 %v231
  %596 = vmatprep.subr.mxu0 %v294
  %597 = vmatpush2.msra.mxu0 %v293
  %598 = vmatprep.subr.mxu0 %v292
  %599 = vmatpush2.msra.mxu0 %v291
  %600 = vmatprep.subr.mxu0 %v290
  %601 = vmatpush2.msra.mxu0 %v289
  %602 = vmatprep.subr.mxu0 %v288
  %603 = vmatpush2.msra.mxu0 %v287
  %604 = vmatprep.subr.mxu0 %v286
  %605 = vmatpush2.msra.mxu0 %v285
  %606 = vmatprep.subr.mxu0 %v284
  %607 = vmatpush2.msra.mxu0 %v283
  %608 = vmatprep.subr.mxu0 %v282
  %609 = vmatpush2.msra.mxu0 %v281
  %610 = vmatprep.subr.mxu0 %v280
  %611 = vmatpush2.msra.mxu0 %v279
  %612 = vmatprep.subr.mxu0 %v278
  %613 = vmatpush2.msra.mxu0 %v277
  %614 = vmatprep.subr.mxu0 %v276
  %615 = vmatpush2.msra.mxu0 %v275
  %616 = vmatprep.subr.mxu0 %v274
  %617 = vmatpush2.msra.mxu0 %v273
  %618 = vmatprep.subr.mxu0 %v272
  %619 = vmatpush2.msra.mxu0 %v271
  %620 = vmatprep.subr.mxu0 %v270
  %621 = vmatpush2.msra.mxu0 %v269
  %622 = vmatprep.subr.mxu0 %v268
  %623 = vmatpush2.msra.mxu0 %v267
  %624 = vmatprep.subr.mxu0 %v266
  %625 = vmatpush2.msra.mxu0 %v265
  %626 = vmatprep.subr.mxu0 %v264
  %627 = vmatpush2.msra.mxu0 %v263
  %628 = vmatprep.mubr.f32.mxu0 %v342
  %629 = vmatmul.mubr.f32.gmra.mxu0 %v340
  %v630 = vpop.f32.mrf.mxu0
  %v631 = vadd.f32 %v560, %v630
  %v632 = vpop.f32.mrf.mxu0
  %v633 = vadd.f32 %v562, %v632
  %634 = vdwg.mxu0
  %v635 = vmax.f32 %v631, 0.0
  %v636 = vmax.f32 %v633, 0.0
  %v637 = vld [vmem:[%s3] sm:$0xff]
  %v638 = vld [vmem:[%s3 + $0x8] sm:$0xff]
  %v639 = vld [vmem:[%s3 + $0x10] sm:$0xff]
  %v640 = vld [vmem:[%s3 + $0x18] sm:$0xff]
  %v641 = vld [vmem:[%s3 + $0x20] sm:$0xff]
  %v642 = vld [vmem:[%s3 + $0x28] sm:$0xff]
  %v643 = vld [vmem:[%s3 + $0x30] sm:$0xff]
  %v644 = vld [vmem:[%s3 + $0x38] sm:$0xff]
  %v645 = vld [vmem:[%s3 + $0x40] sm:$0xff]
  %v646 = vld [vmem:[%s3 + $0x48] sm:$0xff]
  %v647 = vld [vmem:[%s3 + $0x50] sm:$0xff]
  %v648 = vld [vmem:[%s3 + $0x58] sm:$0xff]
  %v649 = vld [vmem:[%s3 + $0x60] sm:$0xff]
  %v650 = vld [vmem:[%s3 + $0x68] sm:$0xff]
  %v651 = vld [vmem:[%s3 + $0x70] sm:$0xff]
  %v652 = vld [vmem:[%s3 + $0x78] sm:$0xff]
  %v653 = vld [vmem:[%s3 + $0x80] sm:$0xff]
  %v654 = vld [vmem:[%s3 + $0x88] sm:$0xff]
  %v655 = vld [vmem:[%s3 + $0x90] sm:$0xff]
  %v656 = vld [vmem:[%s3 + $0x98] sm:$0xff]
  %v657 = vld [vmem:[%s3 + $0xa0] sm:$0xff]
  %v658 = vld [vmem:[%s3 + $0xa8] sm:$0xff]
  %v659 = vld [vmem:[%s3 + $0xb0] sm:$0xff]
  %v660 = vld [vmem:[%s3 + $0xb8] sm:$0xff]
  %v661 = vld [vmem:[%s3 + $0xc0] sm:$0xff]
  %v662 = vld [vmem:[%s3 + $0xc8] sm:$0xff]
  %v663 = vld [vmem:[%s3 + $0xd0] sm:$0xff]
  %v664 = vld [vmem:[%s3 + $0xd8] sm:$0xff]
  %v665 = vld [vmem:[%s3 + $0xe0] sm:$0xff]
  %v666 = vld [vmem:[%s3 + $0xe8] sm:$0xff]
  %v667 = vld [vmem:[%s3 + $0xf0] sm:$0xff]
  %v668 = vld [vmem:[%s3 + $0xf8] sm:$0xff]
  %v669 = vld [vmem:[%s3 + $0x100] sm:$0xff]
  %v670 = vld [vmem:[%s3 + $0x108] sm:$0xff]
  %v671 = vld [vmem:[%s3 + $0x110] sm:$0xff]
  %v672 = vld [vmem:[%s3 + $0x118] sm:$0xff]
  %v673 = vld [vmem:[%s3 + $0x120] sm:$0xff]
  %v674 = vld [vmem:[%s3 + $0x128] sm:$0xff]
  %v675 = vld [vmem:[%s3 + $0x130] sm:$0xff]
  %v676 = vld [vmem:[%s3 + $0x138] sm:$0xff]
  %v677 = vld [vmem:[%s3 + $0x140] sm:$0xff]
  %v678 = vld [vmem:[%s3 + $0x148] sm:$0xff]
  %v679 = vld [vmem:[%s3 + $0x150] sm:$0xff]
  %v680 = vld [vmem:[%s3 + $0x158] sm:$0xff]
  %v681 = vld [vmem:[%s3 + $0x160] sm:$0xff]
  %v682 = vld [vmem:[%s3 + $0x168] sm:$0xff]
  %v683 = vld [vmem:[%s3 + $0x170] sm:$0xff]
  %v684 = vld [vmem:[%s3 + $0x178] sm:$0xff]
  %v685 = vld [vmem:[%s3 + $0x180] sm:$0xff]
  %v686 = vld [vmem:[%s3 + $0x188] sm:$0xff]
  %v687 = vld [vmem:[%s3 + $0x190] sm:$0xff]
  %v688 = vld [vmem:[%s3 + $0x198] sm:$0xff]
  %v689 = vld [vmem:[%s3 + $0x1a0] sm:$0xff]
  %v690 = vld [vmem:[%s3 + $0x1a8] sm:$0xff]
  %v691 = vld [vmem:[%s3 + $0x1b0] sm:$0xff]
  %v692 = vld [vmem:[%s3 + $0x1b8] sm:$0xff]
  %v693 = vld [vmem:[%s3 + $0x1c0] sm:$0xff]
  %v694 = vld [vmem:[%s3 + $0x1c8] sm:$0xff]
  %v695 = vld [vmem:[%s3 + $0x1d0] sm:$0xff]
  %v696 = vld [vmem:[%s3 + $0x1d8] sm:$0xff]
  %v697 = vld [vmem:[%s3 + $0x1e0] sm:$0xff]
  %v698 = vld [vmem:[%s3 + $0x1e8] sm:$0xff]
  %v699 = vld [vmem:[%s3 + $0x1f0] sm:$0xff]
  %v700 = vld [vmem:[%s3 + $0x1f8] sm:$0xff]
  %v701 = vld [vmem:[%s4] sm:$0x3]
  %v703 = vlaneseq
  %v704 = vshrl.u32 %v703, 7
  %v705 = vsub.s32 0, %v704
  %v706 = vrot.slane %v701, %v705
  %v707 = vlaneseq
  %v708 = vshrl.u32 %v707, 7
  %v709 = vsub.s32 1, %v708
  %v710 = vrot.slane %v701, %v709
  %713 = vmatprep.subr.mxu0 %v668
  %714 = vmatpush1.msra.mxu0 %v667
  %715 = vmatprep.subr.mxu0 %v666
  %716 = vmatpush1.msra.mxu0 %v665
  %717 = vmatprep.subr.mxu0 %v664
  %718 = vmatpush1.msra.mxu0 %v663
  %719 = vmatprep.subr.mxu0 %v662
  %720 = vmatpush1.msra.mxu0 %v661
  %721 = vmatprep.subr.mxu0 %v660
  %722 = vmatpush1.msra.mxu0 %v659
  %723 = vmatprep.subr.mxu0 %v658
  %724 = vmatpush1.msra.mxu0 %v657
  %725 = vmatprep.subr.mxu0 %v656
  %726 = vmatpush1.msra.mxu0 %v655
  %727 = vmatprep.subr.mxu0 %v654
  %728 = vmatpush1.msra.mxu0 %v653
  %729 = vmatprep.subr.mxu0 %v652
  %730 = vmatpush1.msra.mxu0 %v651
  %731 = vmatprep.subr.mxu0 %v650
  %732 = vmatpush1.msra.mxu0 %v649
  %733 = vmatprep.subr.mxu0 %v648
  %734 = vmatpush1.msra.mxu0 %v647
  %735 = vmatprep.subr.mxu0 %v646
  %736 = vmatpush1.msra.mxu0 %v645
  %737 = vmatprep.subr.mxu0 %v644
  %738 = vmatpush1.msra.mxu0 %v643
  %739 = vmatprep.subr.mxu0 %v642
  %740 = vmatpush1.msra.mxu0 %v641
  %741 = vmatprep.subr.mxu0 %v640
  %742 = vmatpush1.msra.mxu0 %v639
  %743 = vmatprep.subr.mxu0 %v638
  %744 = vmatpush1.msra.mxu0 %v637
  %745 = vmatprep.subr.mxu0 %v700
  %746 = vmatpush2.msra.mxu0 %v699
  %747 = vmatprep.subr.mxu0 %v698
  %748 = vmatpush2.msra.mxu0 %v697
  %749 = vmatprep.subr.mxu0 %v696
  %750 = vmatpush2.msra.mxu0 %v695
  %751 = vmatprep.subr.mxu0 %v694
  %752 = vmatpush2.msra.mxu0 %v693
  %753 = vmatprep.subr.mxu0 %v692
  %754 = vmatpush2.msra.mxu0 %v691
  %755 = vmatprep.subr.mxu0 %v690
  %756 = vmatpush2.msra.mxu0 %v689
  %757 = vmatprep.subr.mxu0 %v688
  %758 = vmatpush2.msra.mxu0 %v687
  %759 = vmatprep.subr.mxu0 %v686
  %760 = vmatpush2.msra.mxu0 %v685
  %761 = vmatprep.subr.mxu0 %v684
  %762 = vmatpush2.msra.mxu0 %v683
  %763 = vmatprep.subr.mxu0 %v682
  %764 = vmatpush2.msra.mxu0 %v681
  %765 = vmatprep.subr.mxu0 %v680
  %766 = vmatpush2.msra.mxu0 %v679
  %767 = vmatprep.subr.mxu0 %v678
  %768 = vmatpush2.msra.mxu0 %v677
  %769 = vmatprep.subr.mxu0 %v676
  %770 = vmatpush2.msra.mxu0 %v675
  %771 = vmatprep.subr.mxu0 %v674
  %772 = vmatpush2.msra.mxu0 %v673
  %773 = vmatprep.subr.mxu0 %v672
  %774 = vmatpush2.msra.mxu0 %v671
  %775 = vmatprep.subr.mxu0 %v670
  %776 = vmatpush2.msra.mxu0 %v669
  %777 = vmatprep.mubr.f32.mxu0 %v636
  %778 = vmatmul.mubr.f32.gmra.mxu0 %v635
  %v779 = vpop.f32.mrf.mxu0
  %v780 = vadd.f32 %v706, %v779
  %v781 = vpop.f32.mrf.mxu0
  %v782 = vadd.f32 %v710, %v781
  %783 = vdwg.mxu0
  %v784 = vmax.f32 %v780, 0.0
  %v785 = vmax.f32 %v782, 0.0
  %v786 = vld [vmem:[%s5] sm:$0xff]
  %v787 = vld [vmem:[%s5 + $0x8] sm:$0xff]
  %v788 = vld [vmem:[%s5 + $0x10] sm:$0xff]
  %v789 = vld [vmem:[%s5 + $0x18] sm:$0xff]
  %v790 = vld [vmem:[%s5 + $0x20] sm:$0xff]
  %v791 = vld [vmem:[%s5 + $0x28] sm:$0xff]
  %v792 = vld [vmem:[%s5 + $0x30] sm:$0xff]
  %v793 = vld [vmem:[%s5 + $0x38] sm:$0xff]
  %v794 = vld [vmem:[%s5 + $0x40] sm:$0xff]
  %v795 = vld [vmem:[%s5 + $0x48] sm:$0xff]
  %v796 = vld [vmem:[%s5 + $0x50] sm:$0xff]
  %v797 = vld [vmem:[%s5 + $0x58] sm:$0xff]
  %v798 = vld [vmem:[%s5 + $0x60] sm:$0xff]
  %v799 = vld [vmem:[%s5 + $0x68] sm:$0xff]
  %v800 = vld [vmem:[%s5 + $0x70] sm:$0xff]
  %v801 = vld [vmem:[%s5 + $0x78] sm:$0xff]
  %v802 = vld [vmem:[%s5 + $0x80] sm:$0xff]
  %v803 = vld [vmem:[%s5 + $0x88] sm:$0xff]
  %v804 = vld [vmem:[%s5 + $0x90] sm:$0xff]
  %v805 = vld [vmem:[%s5 + $0x98] sm:$0xff]
  %v806 = vld [vmem:[%s5 + $0xa0] sm:$0xff]
  %v807 = vld [vmem:[%s5 + $0xa8] sm:$0xff]
  %v808 = vld [vmem:[%s5 + $0xb0] sm:$0xff]
  %v809 = vld [vmem:[%s5 + $0xb8] sm:$0xff]
  %v810 = vld [vmem:[%s5 + $0xc0] sm:$0xff]
  %v811 = vld [vmem:[%s5 + $0xc8] sm:$0xff]
  %v812 = vld [vmem:[%s5 + $0xd0] sm:$0xff]
  %v813 = vld [vmem:[%s5 + $0xd8] sm:$0xff]
  %v814 = vld [vmem:[%s5 + $0xe0] sm:$0xff]
  %v815 = vld [vmem:[%s5 + $0xe8] sm:$0xff]
  %v816 = vld [vmem:[%s5 + $0xf0] sm:$0xff]
  %v817 = vld [vmem:[%s5 + $0xf8] sm:$0xff]
  %v818 = vld [vmem:[%s5 + $0x100] sm:$0xff]
  %v819 = vld [vmem:[%s5 + $0x108] sm:$0xff]
  %v820 = vld [vmem:[%s5 + $0x110] sm:$0xff]
  %v821 = vld [vmem:[%s5 + $0x118] sm:$0xff]
  %v822 = vld [vmem:[%s5 + $0x120] sm:$0xff]
  %v823 = vld [vmem:[%s5 + $0x128] sm:$0xff]
  %v824 = vld [vmem:[%s5 + $0x130] sm:$0xff]
  %v825 = vld [vmem:[%s5 + $0x138] sm:$0xff]
  %v826 = vld [vmem:[%s5 + $0x140] sm:$0xff]
  %v827 = vld [vmem:[%s5 + $0x148] sm:$0xff]
  %v828 = vld [vmem:[%s5 + $0x150] sm:$0xff]
  %v829 = vld [vmem:[%s5 + $0x158] sm:$0xff]
  %v830 = vld [vmem:[%s5 + $0x160] sm:$0xff]
  %v831 = vld [vmem:[%s5 + $0x168] sm:$0xff]
  %v832 = vld [vmem:[%s5 + $0x170] sm:$0xff]
  %v833 = vld [vmem:[%s5 + $0x178] sm:$0xff]
  %v834 = vld [vmem:[%s5 + $0x180] sm:$0xff]
  %v835 = vld [vmem:[%s5 + $0x188] sm:$0xff]
  %v836 = vld [vmem:[%s5 + $0x190] sm:$0xff]
  %v837 = vld [vmem:[%s5 + $0x198] sm:$0xff]
  %v838 = vld [vmem:[%s5 + $0x1a0] sm:$0xff]
  %v839 = vld [vmem:[%s5 + $0x1a8] sm:$0xff]
  %v840 = vld [vmem:[%s5 + $0x1b0] sm:$0xff]
  %v841 = vld [vmem:[%s5 + $0x1b8] sm:$0xff]
  %v842 = vld [vmem:[%s5 + $0x1c0] sm:$0xff]
  %v843 = vld [vmem:[%s5 + $0x1c8] sm:$0xff]
  %v844 = vld [vmem:[%s5 + $0x1d0] sm:$0xff]
  %v845 = vld [vmem:[%s5 + $0x1d8] sm:$0xff]
  %v846 = vld [vmem:[%s5 + $0x1e0] sm:$0xff]
  %v847 = vld [vmem:[%s5 + $0x1e8] sm:$0xff]
  %v848 = vld [vmem:[%s5 + $0x1f0] sm:$0xff]
  %v849 = vld [vmem:[%s5 + $0x1f8] sm:$0xff]
  %v850 = vld [vmem:[%s6] sm:$0x3]
  %v852 = vlaneseq
  %v853 = vshrl.u32 %v852, 7
  %v854 = vsub.s32 0, %v853
  %v855 = vrot.slane %v850, %v854
  %v856 = vlaneseq
  %v857 = vshrl.u32 %v856, 7
  %v858 = vsub.s32 1, %v857
  %v859 = vrot.slane %v850, %v858
  %862 = vmatprep.subr.mxu0 %v817
  %863 = vmatpush1.msra.mxu0 %v816
  %864 = vmatprep.subr.mxu0 %v815
  %865 = vmatpush1.msra.mxu0 %v814
  %866 = vmatprep.subr.mxu0 %v813
  %867 = vmatpush1.msra.mxu0 %v812
  %868 = vmatprep.subr.mxu0 %v811
  %869 = vmatpush1.msra.mxu0 %v810
  %870 = vmatprep.subr.mxu0 %v809
  %871 = vmatpush1.msra.mxu0 %v808
  %872 = vmatprep.subr.mxu0 %v807
  %873 = vmatpush1.msra.mxu0 %v806
  %874 = vmatprep.subr.mxu0 %v805
  %875 = vmatpush1.msra.mxu0 %v804
  %876 = vmatprep.subr.mxu0 %v803
  %877 = vmatpush1.msra.mxu0 %v802
  %878 = vmatprep.subr.mxu0 %v801
  %879 = vmatpush1.msra.mxu0 %v800
  %880 = vmatprep.subr.mxu0 %v799
  %881 = vmatpush1.msra.mxu0 %v798
  %882 = vmatprep.subr.mxu0 %v797
  %883 = vmatpush1.msra.mxu0 %v796
  %884 = vmatprep.subr.mxu0 %v795
  %885 = vmatpush1.msra.mxu0 %v794
  %886 = vmatprep.subr.mxu0 %v793
  %887 = vmatpush1.msra.mxu0 %v792
  %888 = vmatprep.subr.mxu0 %v791
  %889 = vmatpush1.msra.mxu0 %v790
  %890 = vmatprep.subr.mxu0 %v789
  %891 = vmatpush1.msra.mxu0 %v788
  %892 = vmatprep.subr.mxu0 %v787
  %893 = vmatpush1.msra.mxu0 %v786
  %894 = vmatprep.subr.mxu0 %v849
  %895 = vmatpush2.msra.mxu0 %v848
  %896 = vmatprep.subr.mxu0 %v847
  %897 = vmatpush2.msra.mxu0 %v846
  %898 = vmatprep.subr.mxu0 %v845
  %899 = vmatpush2.msra.mxu0 %v844
  %900 = vmatprep.subr.mxu0 %v843
  %901 = vmatpush2.msra.mxu0 %v842
  %902 = vmatprep.subr.mxu0 %v841
  %903 = vmatpush2.msra.mxu0 %v840
  %904 = vmatprep.subr.mxu0 %v839
  %905 = vmatpush2.msra.mxu0 %v838
  %906 = vmatprep.subr.mxu0 %v837
  %907 = vmatpush2.msra.mxu0 %v836
  %908 = vmatprep.subr.mxu0 %v835
  %909 = vmatpush2.msra.mxu0 %v834
  %910 = vmatprep.subr.mxu0 %v833
  %911 = vmatpush2.msra.mxu0 %v832
  %912 = vmatprep.subr.mxu0 %v831
  %913 = vmatpush2.msra.mxu0 %v830
  %914 = vmatprep.subr.mxu0 %v829
  %915 = vmatpush2.msra.mxu0 %v828
  %916 = vmatprep.subr.mxu0 %v827
  %917 = vmatpush2.msra.mxu0 %v826
  %918 = vmatprep.subr.mxu0 %v825
  %919 = vmatpush2.msra.mxu0 %v824
  %920 = vmatprep.subr.mxu0 %v823
  %921 = vmatpush2.msra.mxu0 %v822
  %922 = vmatprep.subr.mxu0 %v821
  %923 = vmatpush2.msra.mxu0 %v820
  %924 = vmatprep.subr.mxu0 %v819
  %925 = vmatpush2.msra.mxu0 %v818
  %926 = vmatprep.mubr.f32.mxu0 %v785
  %927 = vmatmul.mubr.f32.gmra.mxu0 %v784
  %v928 = vpop.f32.mrf.mxu0
  %v929 = vadd.f32 %v855, %v928
  %v930 = vpop.f32.mrf.mxu0
  %v931 = vadd.f32 %v859, %v930
  %932 = vdwg.mxu0
  %v933 = vtanh.pop %v929
  %v934 = vtanh.pop %v931
  %v935 = vmul.f32 %v933, %v933
  %v936 = vmul.f32 %v934, %v934
  %vm937 = vcmask 1041408
  %v938 = vsel %vm937, %v935, 0.0
  %v939 = vsel %vm937, %v936, 0.0
  %v940 = vadd.f32 %v938, %v939
  %941 = vadd.xlane.f32.xlu0 %v940
  %v942 = vpop.xlane.xlu0 %941
  %v943 = vrsqrt.pop %v942
  %v944 = vmul.f32 %v942, %v943
  %vm945 = vcmp.eq.f32.partialorder %v942, inf
  %v946 = vsel %vm945, %v942, %v944
  %vm947 = vcmp.eq.f32.partialorder %v942, 0.0
  %v948 = vand.u32 %v942, 2147483648
  %v949 = vsel %vm947, %v948, %v946
  %v950 = vrcp.pop %v949
  %v951 = vmul.f32 %v933, %v950
  %v952 = vmul.f32 %v934, %v950
  %v955 = vcombine.low %v951, %v952
  %v957 = vunpack.c.l.s4 1983009808
  %v958 = vunpack.c.0.s8 %v957
  %v959 = vlaneseq
  %v960 = vshrl.u32 %v959, 7
  %v961 = vsub.s32 %v958, %v960
  %v962 = vrot.slane %v955, %v961
  %964 = vst [vmem:[%s10] sm:$0xf] %v962
  %v965 = vld [vmem:[%s7] sm:$0xff]
  %v966 = vld [vmem:[%s7 + $0x8] sm:$0xff]
  %v967 = vld [vmem:[%s8] sm:$0xff]
  %v968 = vld [vmem:[%s8 + $0x8] sm:$0xff]
  %v969 = vld [vmem:[%s8 + $0x10] sm:$0xff]
  %v970 = vld [vmem:[%s8 + $0x18] sm:$0xff]
  %v971 = vld [vmem:[%s8 + $0x20] sm:$0xff]
  %v972 = vld [vmem:[%s8 + $0x28] sm:$0xff]
  %v973 = vld [vmem:[%s8 + $0x30] sm:$0xff]
  %v974 = vld [vmem:[%s8 + $0x38] sm:$0xff]
  %v975 = vld [vmem:[%s8 + $0x40] sm:$0xff]
  %v976 = vld [vmem:[%s8 + $0x48] sm:$0xff]
  %v977 = vld [vmem:[%s8 + $0x50] sm:$0xff]
  %v978 = vld [vmem:[%s8 + $0x58] sm:$0xff]
  %v979 = vld [vmem:[%s8 + $0x60] sm:$0xff]
  %v980 = vld [vmem:[%s8 + $0x68] sm:$0xff]
  %v981 = vld [vmem:[%s8 + $0x70] sm:$0xff]
  %v982 = vld [vmem:[%s8 + $0x78] sm:$0xff]
  %v983 = vld [vmem:[%s8 + $0x80] sm:$0xff]
  %v984 = vld [vmem:[%s8 + $0x88] sm:$0xff]
  %v985 = vld [vmem:[%s8 + $0x90] sm:$0xff]
  %v986 = vld [vmem:[%s8 + $0x98] sm:$0xff]
  %v987 = vld [vmem:[%s8 + $0xa0] sm:$0xff]
  %v988 = vld [vmem:[%s8 + $0xa8] sm:$0xff]
  %v989 = vld [vmem:[%s8 + $0xb0] sm:$0xff]
  %v990 = vld [vmem:[%s8 + $0xb8] sm:$0xff]
  %v991 = vld [vmem:[%s8 + $0xc0] sm:$0xff]
  %v992 = vld [vmem:[%s8 + $0xc8] sm:$0xff]
  %v993 = vld [vmem:[%s8 + $0xd0] sm:$0xff]
  %v994 = vld [vmem:[%s8 + $0xd8] sm:$0xff]
  %v995 = vld [vmem:[%s8 + $0xe0] sm:$0xff]
  %v996 = vld [vmem:[%s8 + $0xe8] sm:$0xff]
  %v997 = vld [vmem:[%s8 + $0xf0] sm:$0xff]
  %v998 = vld [vmem:[%s8 + $0xf8] sm:$0xff]
  %v999 = vld [vmem:[%s9] sm:$0xf]
  %v1001 = vlaneseq
  %v1002 = vshrl.u32 %v1001, 7
  %v1003 = vsub.s32 0, %v1002
  %v1004 = vrot.slane %v999, %v1003
  %v1005 = vlaneseq
  %v1006 = vshrl.u32 %v1005, 7
  %v1007 = vsub.s32 1, %v1006
  %v1008 = vrot.slane %v999, %v1007
  %v1009 = vlaneseq
  %v1010 = vshrl.u32 %v1009, 7
  %v1011 = vsub.s32 2, %v1010
  %v1012 = vrot.slane %v999, %v1011
  %v1013 = vlaneseq
  %v1014 = vshrl.u32 %v1013, 7
  %v1015 = vsub.s32 3, %v1014
  %v1016 = vrot.slane %v999, %v1015
  %vm1021 = vcmask 523264
  %v1023 = vsel %vm1021, %v965, 0
  %v1026 = vsel %vm1021, %v966, 0
  %1028 = vmatprep.subr.mxu0 0.0
  %1029 = vmatpush1.msra.mxu0 0.0
  %1030 = vmatprep.subr.mxu0 0.0
  %1031 = vmatpush1.msra.mxu0 0.0
  %1032 = vmatprep.subr.mxu0 0.0
  %1033 = vmatpush1.msra.mxu0 0.0
  %1034 = vmatprep.subr.mxu0 0.0
  %1035 = vmatpush1.msra.mxu0 0.0
  %1036 = vmatprep.subr.mxu0 0.0
  %1037 = vmatpush1.msra.mxu0 0.0
  %1038 = vmatprep.subr.mxu0 0.0
  %1039 = vmatpush1.msra.mxu0 0.0
  %1040 = vmatprep.subr.mxu0 0.0
  %1041 = vmatpush1.msra.mxu0 0.0
  %1042 = vmatprep.subr.mxu0 0.0
  %1043 = vmatpush1.msra.mxu0 0.0
  %1044 = vmatprep.subr.mxu0 %v996
  %1045 = vmatpush1.msra.mxu0 %v995
  %1046 = vmatprep.subr.mxu0 %v992
  %1047 = vmatpush1.msra.mxu0 %v991
  %1048 = vmatprep.subr.mxu0 %v988
  %1049 = vmatpush1.msra.mxu0 %v987
  %1050 = vmatprep.subr.mxu0 %v984
  %1051 = vmatpush1.msra.mxu0 %v983
  %1052 = vmatprep.subr.mxu0 %v980
  %1053 = vmatpush1.msra.mxu0 %v979
  %1054 = vmatprep.subr.mxu0 %v976
  %1055 = vmatpush1.msra.mxu0 %v975
  %1056 = vmatprep.subr.mxu0 %v972
  %1057 = vmatpush1.msra.mxu0 %v971
  %1058 = vmatprep.subr.mxu0 %v968
  %1059 = vmatpush1.msra.mxu0 %v967
  %1060 = vmatprep.subr.mxu0 0.0
  %1061 = vmatpush2.msra.mxu0 0.0
  %1062 = vmatprep.subr.mxu0 0.0
  %1063 = vmatpush2.msra.mxu0 0.0
  %1064 = vmatprep.subr.mxu0 0.0
  %1065 = vmatpush2.msra.mxu0 0.0
  %1066 = vmatprep.subr.mxu0 0.0
  %1067 = vmatpush2.msra.mxu0 0.0
  %1068 = vmatprep.subr.mxu0 0.0
  %1069 = vmatpush2.msra.mxu0 0.0
  %1070 = vmatprep.subr.mxu0 0.0
  %1071 = vmatpush2.msra.mxu0 0.0
  %1072 = vmatprep.subr.mxu0 0.0
  %1073 = vmatpush2.msra.mxu0 0.0
  %1074 = vmatprep.subr.mxu0 0.0
  %1075 = vmatpush2.msra.mxu0 0.0
  %1076 = vmatprep.subr.mxu0 0.0
  %1077 = vmatpush2.msra.mxu0 0.0
  %1078 = vmatprep.subr.mxu0 0.0
  %1079 = vmatpush2.msra.mxu0 0.0
  %1080 = vmatprep.subr.mxu0 0.0
  %1081 = vmatpush2.msra.mxu0 0.0
  %1082 = vmatprep.subr.mxu0 0.0
  %1083 = vmatpush2.msra.mxu0 0.0
  %1084 = vmatprep.subr.mxu0 0.0
  %1085 = vmatpush2.msra.mxu0 0.0
  %1086 = vmatprep.subr.mxu0 0.0
  %1087 = vmatpush2.msra.mxu0 0.0
  %1088 = vmatprep.subr.mxu0 0.0
  %1089 = vmatpush2.msra.mxu0 0.0
  %1090 = vmatprep.subr.mxu0 0.0
  %1091 = vmatpush2.msra.mxu0 0.0
  %1092 = vmatprep.mubr.f32.mxu0 0.0
  %1093 = vmatmul.mubr.f32.gmra.mxu0 %v1023
  %v1094 = vpop.f32.mrf.mxu0
  %v1095 = vadd.f32 %v1004, %v1094
  %v1096 = vpop.f32.mrf.mxu0
  %v1097 = vadd.f32 %v1008, %v1096
  %1098 = vmatprep.mubr.f32.mxu0 0.0
  %1099 = vmatmul.mubr.f32.gmra.mxu0 %v1026
  %v1100 = vpop.f32.mrf.mxu0
  %v1101 = vadd.f32 %v1004, %v1100
  %v1102 = vpop.f32.mrf.mxu0
  %v1103 = vadd.f32 %v1008, %v1102
  %1104 = vdwg.mxu0
  %1105 = vmatprep.subr.mxu0 0.0
  %1106 = vmatpush1.msra.mxu0 0.0
  %1107 = vmatprep.subr.mxu0 0.0
  %1108 = vmatpush1.msra.mxu0 0.0
  %1109 = vmatprep.subr.mxu0 0.0
  %1110 = vmatpush1.msra.mxu0 0.0
  %1111 = vmatprep.subr.mxu0 0.0
  %1112 = vmatpush1.msra.mxu0 0.0
  %1113 = vmatprep.subr.mxu0 0.0
  %1114 = vmatpush1.msra.mxu0 0.0
  %1115 = vmatprep.subr.mxu0 0.0
  %1116 = vmatpush1.msra.mxu0 0.0
  %1117 = vmatprep.subr.mxu0 0.0
  %1118 = vmatpush1.msra.mxu0 0.0
  %1119 = vmatprep.subr.mxu0 0.0
  %1120 = vmatpush1.msra.mxu0 0.0
  %1121 = vmatprep.subr.mxu0 %v998
  %1122 = vmatpush1.msra.mxu0 %v997
  %1123 = vmatprep.subr.mxu0 %v994
  %1124 = vmatpush1.msra.mxu0 %v993
  %1125 = vmatprep.subr.mxu0 %v990
  %1126 = vmatpush1.msra.mxu0 %v989
  %1127 = vmatprep.subr.mxu0 %v986
  %1128 = vmatpush1.msra.mxu0 %v985
  %1129 = vmatprep.subr.mxu0 %v982
  %1130 = vmatpush1.msra.mxu0 %v981
  %1131 = vmatprep.subr.mxu0 %v978
  %1132 = vmatpush1.msra.mxu0 %v977
  %1133 = vmatprep.subr.mxu0 %v974
  %1134 = vmatpush1.msra.mxu0 %v973
  %1135 = vmatprep.subr.mxu0 %v970
  %1136 = vmatpush1.msra.mxu0 %v969
  %1137 = vmatprep.subr.mxu0 0.0
  %1138 = vmatpush2.msra.mxu0 0.0
  %1139 = vmatprep.subr.mxu0 0.0
  %1140 = vmatpush2.msra.mxu0 0.0
  %1141 = vmatprep.subr.mxu0 0.0
  %1142 = vmatpush2.msra.mxu0 0.0
  %1143 = vmatprep.subr.mxu0 0.0
  %1144 = vmatpush2.msra.mxu0 0.0
  %1145 = vmatprep.subr.mxu0 0.0
  %1146 = vmatpush2.msra.mxu0 0.0
  %1147 = vmatprep.subr.mxu0 0.0
  %1148 = vmatpush2.msra.mxu0 0.0
  %1149 = vmatprep.subr.mxu0 0.0
  %1150 = vmatpush2.msra.mxu0 0.0
  %1151 = vmatprep.subr.mxu0 0.0
  %1152 = vmatpush2.msra.mxu0 0.0
  %1153 = vmatprep.subr.mxu0 0.0
  %1154 = vmatpush2.msra.mxu0 0.0
  %1155 = vmatprep.subr.mxu0 0.0
  %1156 = vmatpush2.msra.mxu0 0.0
  %1157 = vmatprep.subr.mxu0 0.0
  %1158 = vmatpush2.msra.mxu0 0.0
  %1159 = vmatprep.subr.mxu0 0.0
  %1160 = vmatpush2.msra.mxu0 0.0
  %1161 = vmatprep.subr.mxu0 0.0
  %1162 = vmatpush2.msra.mxu0 0.0
  %1163 = vmatprep.subr.mxu0 0.0
  %1164 = vmatpush2.msra.mxu0 0.0
  %1165 = vmatprep.subr.mxu0 0.0
  %1166 = vmatpush2.msra.mxu0 0.0
  %1167 = vmatprep.subr.mxu0 0.0
  %1168 = vmatpush2.msra.mxu0 0.0
  %1169 = vmatprep.mubr.f32.mxu0 0.0
  %1170 = vmatmul.mubr.f32.gmra.mxu0 %v1023
  %v1171 = vpop.f32.mrf.mxu0
  %v1172 = vadd.f32 %v1012, %v1171
  %v1173 = vpop.f32.mrf.mxu0
  %v1174 = vadd.f32 %v1016, %v1173
  %1175 = vmatprep.mubr.f32.mxu0 0.0
  %1176 = vmatmul.mubr.f32.gmra.mxu0 %v1026
  %v1177 = vpop.f32.mrf.mxu0
  %v1178 = vadd.f32 %v1012, %v1177
  %v1179 = vpop.f32.mrf.mxu0
  %v1180 = vadd.f32 %v1016, %v1179
  %1181 = vdwg.mxu0
  %1182 = vst [vmem:[%s11] sm:$0xff] %v1095
  %1183 = vst [vmem:[%s11 + $0x8] sm:$0xff] %v1097
  %1184 = vst [vmem:[%s11 + $0x10] sm:$0xff] %v1172
  %1185 = vst [vmem:[%s11 + $0x18] sm:$0xff] %v1174
  %1186 = vst [vmem:[%s11 + $0x20] sm:$0xff] %v1101
  %1187 = vst [vmem:[%s11 + $0x28] sm:$0xff] %v1103
  %1188 = vst [vmem:[%s11 + $0x30] sm:$0xff] %v1178
  %1189 = vst [vmem:[%s11 + $0x38] sm:$0xff] %v1180
  // Predicated region
  $region42: #{forward.8} parent=0 // pred_check
    _
  $region43: #{forward.8} parent=0 // pred_check_branch
    %1191 = sbr.rel (0) target = $region45
  $region44: #{forward.8} parent=0 // pred_region
    _
  $region45: #{forward.8} parent=0 // pred_fallthru
    _
  // Predicated region
  $region46: #{forward.8} parent=0 // pred_check
    _
  $region47: #{forward.8} parent=0 // pred_check_branch
    %1193 = sbr.rel (0) target = $region49
  $region48: #{forward.8} parent=0 // pred_region
    _
  $region49: #{forward.8} parent=0 // pred_fallthru
    _
  // Predicated region
  $region50: #{forward.8} parent=0 // pred_check
    _
  $region51: #{forward.8} parent=0 // pred_check_branch
    %1195 = sbr.rel (0) target = $region53
  $region52: #{forward.8} parent=0 // pred_region
    _
  $region53: #{forward.8} parent=0 // pred_fallthru
    _
  // Predicated region
  $region54: #{forward.8} parent=0 // pred_check
    _
  $region55: #{forward.8} parent=0 // pred_check_branch
    %1197 = sbr.rel (0) target = $region57
  $region56: #{forward.8} parent=0 // pred_region
    _
  $region57: #{forward.8} parent=0 // pred_fallthru
    _

// kernel: forward.9
$region0: #{forward.9}
  #allocation0 [shape = 'u32[]', space=smem, size = 0x4, offset = 0x4, fixed_abs, tag = 'smem constant byte address 0x4 - core index']
  #allocation1 [shape = 'u32[144,128]{1,0:T(1,128)}', space=vmem, size = 0x12000, scoped, tag = 'internal scratch']
  #allocation2 [shape = 'f32[2,128]{1,0:T(2,128)}', space=vmem, size = 0x400, scoped, tag = 'scratch operand']
  #allocation3 [shape = 'f32[2,128]{1,0:T(2,128)}', space=vmem, size = 0x400, scoped, tag = 'scratch operand']
  #allocation4 [shape = 'f32[2,128]{1,0:T(2,128)}', space=vmem, size = 0x400, scoped, tag = 'scratch operand']
  #allocation5 [shape = 'f32[2,128]{1,0:T(2,128)}', space=vmem, size = 0x400, scoped, tag = 'scratch operand']
  %s0 = inlined_call_operand.vmem [shape: f32[8,2,512], index: 0, kind: input, shape index: {}]
  %s1 = inlined_call_operand.vmem [shape: f32[128,512], index: 1, kind: input, shape index: {}]
  %s2 = inlined_call_operand.vmem [shape: f32[128,512], index: 2, kind: input, shape index: {}]
  %s3 = inlined_call_operand.vmem [shape: f32[128,512], index: 3, kind: input, shape index: {}]
  %s4 = inlined_call_operand.vmem [shape: f32[1,512], index: 4, kind: input, shape index: {}]
  %s5 = inlined_call_operand.vmem [shape: f32[2,256], index: 5, kind: input, shape index: {}]
  %s6 = inlined_call_operand.vmem [shape: f32[128,256], index: 6, kind: input, shape index: {}]
  %s7 = inlined_call_operand.vmem [shape: f32[1,256], index: 7, kind: input, shape index: {}]
  %s8 = inlined_call_operand.vmem [shape: f32[128,10], index: 8, kind: input, shape index: {}]
  %s9 = inlined_call_operand.vmem [shape: f32[1,10], index: 9, kind: input, shape index: {}]
  %s10 = inlined_call_operand.vmem [shape: f32[256,128], index: 10, kind: input, shape index: {}]
  %s11 = inlined_call_operand.vmem [shape: f32[1,128], index: 11, kind: input, shape index: {}]
  %s12 = inlined_call_operand.vmem [shape: f32[128,50], index: 12, kind: input, shape index: {}]
  %s13 = inlined_call_operand.vmem [shape: f32[1,50], index: 13, kind: input, shape index: {}]
  %s14 = inlined_call_operand.vmem [shape: f32[10,50], index: 14, kind: input, shape index: {}]
  %s15 = inlined_call_operand.vmem [shape: f32[50,128], index: 15, kind: input, shape index: {}]
  %s16 = inlined_call_operand.vmem [shape: f32[1,128], index: 16, kind: input, shape index: {}]
  %s17 = inlined_call_operand.vmem [shape: f32[128,50], index: 17, kind: input, shape index: {}]
  %s18 = inlined_call_operand.vmem [shape: f32[1,50], index: 18, kind: input, shape index: {}]
  %s19 = inlined_call_operand.hbm [shape: f32[2,50], index: 19, kind: output, shape index: {0}]
  %s20 = inlined_call_operand.hbm [shape: f32[2,10], index: 20, kind: output, shape index: {1}]
  %21 = xla_tuple %s19, %s20
  %s22 = sld [smem:[#allocation0]]
  $region125: #{forward.9} parent=0
    _
  %s24 = ssub.s32 1, %s22
  %s25 = scalar_select 0, %s24, %s22
  $region1: #{forward.9} parent=0
    #allocation6 [shape = 'u8[1024]{0}', space=vmem, size = 0x400, scoped, tag = 'output window, operand 0, single buffered']
    #allocation7 [shape = 's32[2]{0}', space=sflag, size = 0x8, scoped, tag = 'scoped memory for forward.9']
    #allocation8 [shape = 'u8[1024]{0}', space=vmem, size = 0x400, scoped, tag = 'output window, operand 1, single buffered']
    #allocation9 [shape = 's32[1]{0}', space=sflag, size = 0x4, scoped, tag = 'scoped memory for forward.9']
    %26 = vsyncpa [#allocation7], 0
    %27 = vsyncpa [#allocation9], 0
    loop: start=0, step=1, limit=10
    $region2: #{forward.9} parent=1 // loop_pre_header
      _
    $region3: #{forward.9} parent=1 // loop_header
      %s29 = sphi 0, %s33
      %p30 = scmp.ge.s32.totalorder %s29, 10
      %s39 = sphi 0, %s41
      %s42 = sphi 0, %s39
      %s43 = sphi 0, %s42
      %s59 = sphi 0, %s43
      %s63 = sphi 0, %s63
      %s65 = sphi 0, %s63
      %s66 = sphi 0, %s65
      %s80 = sphi 0, %s66
      %s84 = sphi 0, %s84
      %s86 = sphi 0, %s84
      %s87 = sphi 0, %s86
      %s101 = sphi 0, %s87
      %s105 = sphi 0, %s105
      %s107 = sphi 0, %s105
      %s108 = sphi 0, %s107
      %s122 = sphi 0, %s108
      %s126 = sphi 0, %s126
      %s128 = sphi 0, %s126
      %s129 = sphi 0, %s128
      %s143 = sphi 0, %s129
      %s147 = sphi 0, %s147
      %s149 = sphi 0, %s147
      %s150 = sphi 0, %s149
      %s164 = sphi 0, %s150
      %s168 = sphi 0, %s168
      %s170 = sphi 0, %s168
      %s171 = sphi 0, %s170
      %s185 = sphi 0, %s171
      %s189 = sphi 0, %s189
      %s191 = sphi 0, %s189
      %s192 = sphi 0, %s191
      %s206 = sphi 0, %s192
      %s210 = sphi 0, %s210
      %s212 = sphi 0, %s210
      %s213 = sphi 0, %s212
      %s227 = sphi 0, %s213
      %s231 = sphi 0, %s231
      %s233 = sphi 0, %s231
      %s234 = sphi 0, %s233
      %s248 = sphi 0, %s234
      %s252 = sphi 0, %s252
      %s254 = sphi 0, %s252
      %s255 = sphi 0, %s254
      %s269 = sphi 0, %s255
      %s273 = sphi 0, %s273
      %s275 = sphi 0, %s273
      %s276 = sphi 0, %s275
      %s290 = sphi 0, %s276
      %s294 = sphi 0, %s294
      %s296 = sphi 0, %s294
      %s297 = sphi 0, %s296
      %s311 = sphi 0, %s297
      %s315 = sphi 0, %s315
      %s317 = sphi 0, %s315
      %s318 = sphi 0, %s317
      %s332 = sphi 0, %s318
      %s336 = sphi 0, %s336
      %s338 = sphi 0, %s336
      %s339 = sphi 0, %s338
      %s353 = sphi 0, %s339
      %s357 = sphi 0, %s357
      %s359 = sphi 0, %s357
      %s360 = sphi 0, %s359
      %s374 = sphi 0, %s360
      %s378 = sphi 0, %s378
      %s380 = sphi 0, %s378
      %s381 = sphi 0, %s380
      %s395 = sphi 0, %s381
      %s399 = sphi 0, %s399
      %s401 = sphi 0, %s399
      %s402 = sphi 0, %s401
      %s416 = sphi 0, %s402
      %s420 = sphi 0, %s420
      %s422 = sphi 0, %s420
      %s423 = sphi 0, %s422
      %s437 = sphi 0, %s423
      %s441 = sphi 0, %s441
      %s443 = sphi 0, %s441
      %s444 = sphi 0, %s443
      %s458 = sphi 0, %s444
      %s462 = sphi 0, %s462
      %s464 = sphi 0, %s462
      %s465 = sphi 0, %s464
      %s479 = sphi 0, %s465
    $region4: #{forward.9} parent=1 // loop_header_branch
      %32 = sbr.rel (%p30) target = $region8
    $region5: #{forward.9} parent=1 // loop_body
      %s34 = ssub.s32 %s29, 1
      %s35 = ssub.s32 %s29, 2
      %s36 = sadd.s32 %s29, 1
      %s37 = ssub.s32 %s29, %s36
      %p38 = scmp.eq.s32.totalorder %s37, 0
      %s40 = sadd.s32 %s39, 1
      %s41 = scalar_select %p38, %s39, %s40
      %p44 = pneg %p38
      %p45 = scmp.eq.s32.totalorder %s29, 7
      %p46 = por %p44, %p45
      %p47 = scmp.ne.s32.totalorder %s39, %s42
      %p48 = scmp.eq.s32.totalorder %s29, 0
      %p49 = por %p47, %p48
      %p50 = scmp.ne.s32.totalorder %s39, %s42
      %p51 = scmp.eq.s32.totalorder %s34, 7
      %p52 = por %p50, %p51
      %p53 = scmp.ne.s32.totalorder %s42, %s43
      %p54 = scmp.eq.s32.totalorder %s34, 0
      %p55 = por %p53, %p54
      %p56 = scmp.ne.s32.totalorder %s42, %s43
      %p57 = scmp.eq.s32.totalorder %s35, 7
      %p58 = por %p56, %p57
      %p60 = scmp.ne.s32.totalorder %s43, %s59
      %p61 = scmp.eq.s32.totalorder %s35, 0
      %p62 = por %p60, %p61
      %s64 = sadd.s32 %s63, 1
      %p67 = scmp.eq.s32.totalorder %s29, 7
      %p68 = scmp.ne.s32.totalorder %s63, %s65
      %p69 = scmp.eq.s32.totalorder %s29, 0
      %p70 = por %p68, %p69
      %p71 = scmp.ne.s32.totalorder %s63, %s65
      %p72 = scmp.eq.s32.totalorder %s34, 7
      %p73 = por %p71, %p72
      %p74 = scmp.ne.s32.totalorder %s65, %s66
      %p75 = scmp.eq.s32.totalorder %s34, 0
      %p76 = por %p74, %p75
      %p77 = scmp.ne.s32.totalorder %s65, %s66
      %p78 = scmp.eq.s32.totalorder %s35, 7
      %p79 = por %p77, %p78
      %p81 = scmp.ne.s32.totalorder %s66, %s80
      %p82 = scmp.eq.s32.totalorder %s35, 0
      %p83 = por %p81, %p82
      %s85 = sadd.s32 %s84, 1
      %p88 = scmp.eq.s32.totalorder %s29, 7
      %p89 = scmp.ne.s32.totalorder %s84, %s86
      %p90 = scmp.eq.s32.totalorder %s29, 0
      %p91 = por %p89, %p90
      %p92 = scmp.ne.s32.totalorder %s84, %s86
      %p93 = scmp.eq.s32.totalorder %s34, 7
      %p94 = por %p92, %p93
      %p95 = scmp.ne.s32.totalorder %s86, %s87
      %p96 = scmp.eq.s32.totalorder %s34, 0
      %p97 = por %p95, %p96
      %p98 = scmp.ne.s32.totalorder %s86, %s87
      %p99 = scmp.eq.s32.totalorder %s35, 7
      %p100 = por %p98, %p99
      %p102 = scmp.ne.s32.totalorder %s87, %s101
      %p103 = scmp.eq.s32.totalorder %s35, 0
      %p104 = por %p102, %p103
      %s106 = sadd.s32 %s105, 1
      %p109 = scmp.eq.s32.totalorder %s29, 7
      %p110 = scmp.ne.s32.totalorder %s105, %s107
      %p111 = scmp.eq.s32.totalorder %s29, 0
      %p112 = por %p110, %p111
      %p113 = scmp.ne.s32.totalorder %s105, %s107
      %p114 = scmp.eq.s32.totalorder %s34, 7
      %p115 = por %p113, %p114
      %p116 = scmp.ne.s32.totalorder %s107, %s108
      %p117 = scmp.eq.s32.totalorder %s34, 0
      %p118 = por %p116, %p117
      %p119 = scmp.ne.s32.totalorder %s107, %s108
      %p120 = scmp.eq.s32.totalorder %s35, 7
      %p121 = por %p119, %p120
      %p123 = scmp.ne.s32.totalorder %s108, %s122
      %p124 = scmp.eq.s32.totalorder %s35, 0
      %p125 = por %p123, %p124
      %s127 = sadd.s32 %s126, 1
      %p130 = scmp.eq.s32.totalorder %s29, 7
      %p131 = scmp.ne.s32.totalorder %s126, %s128
      %p132 = scmp.eq.s32.totalorder %s29, 0
      %p133 = por %p131, %p132
      %p134 = scmp.ne.s32.totalorder %s126, %s128
      %p135 = scmp.eq.s32.totalorder %s34, 7
      %p136 = por %p134, %p135
      %p137 = scmp.ne.s32.totalorder %s128, %s129
      %p138 = scmp.eq.s32.totalorder %s34, 0
      %p139 = por %p137, %p138
      %p140 = scmp.ne.s32.totalorder %s128, %s129
      %p141 = scmp.eq.s32.totalorder %s35, 7
      %p142 = por %p140, %p141
      %p144 = scmp.ne.s32.totalorder %s129, %s143
      %p145 = scmp.eq.s32.totalorder %s35, 0
      %p146 = por %p144, %p145
      %s148 = sadd.s32 %s147, 1
      %p151 = scmp.eq.s32.totalorder %s29, 7
      %p152 = scmp.ne.s32.totalorder %s147, %s149
      %p153 = scmp.eq.s32.totalorder %s29, 0
      %p154 = por %p152, %p153
      %p155 = scmp.ne.s32.totalorder %s147, %s149
      %p156 = scmp.eq.s32.totalorder %s34, 7
      %p157 = por %p155, %p156
      %p158 = scmp.ne.s32.totalorder %s149, %s150
      %p159 = scmp.eq.s32.totalorder %s34, 0
      %p160 = por %p158, %p159
      %p161 = scmp.ne.s32.totalorder %s149, %s150
      %p162 = scmp.eq.s32.totalorder %s35, 7
      %p163 = por %p161, %p162
      %p165 = scmp.ne.s32.totalorder %s150, %s164
      %p166 = scmp.eq.s32.totalorder %s35, 0
      %p167 = por %p165, %p166
      %s169 = sadd.s32 %s168, 1
      %p172 = scmp.eq.s32.totalorder %s29, 7
      %p173 = scmp.ne.s32.totalorder %s168, %s170
      %p174 = scmp.eq.s32.totalorder %s29, 0
      %p175 = por %p173, %p174
      %p176 = scmp.ne.s32.totalorder %s168, %s170
      %p177 = scmp.eq.s32.totalorder %s34, 7
      %p178 = por %p176, %p177
      %p179 = scmp.ne.s32.totalorder %s170, %s171
      %p180 = scmp.eq.s32.totalorder %s34, 0
      %p181 = por %p179, %p180
      %p182 = scmp.ne.s32.totalorder %s170, %s171
      %p183 = scmp.eq.s32.totalorder %s35, 7
      %p184 = por %p182, %p183
      %p186 = scmp.ne.s32.totalorder %s171, %s185
      %p187 = scmp.eq.s32.totalorder %s35, 0
      %p188 = por %p186, %p187
      %s190 = sadd.s32 %s189, 1
      %p193 = scmp.eq.s32.totalorder %s29, 7
      %p194 = scmp.ne.s32.totalorder %s189, %s191
      %p195 = scmp.eq.s32.totalorder %s29, 0
      %p196 = por %p194, %p195
      %p197 = scmp.ne.s32.totalorder %s189, %s191
      %p198 = scmp.eq.s32.totalorder %s34, 7
      %p199 = por %p197, %p198
      %p200 = scmp.ne.s32.totalorder %s191, %s192
      %p201 = scmp.eq.s32.totalorder %s34, 0
      %p202 = por %p200, %p201
      %p203 = scmp.ne.s32.totalorder %s191, %s192
      %p204 = scmp.eq.s32.totalorder %s35, 7
      %p205 = por %p203, %p204
      %p207 = scmp.ne.s32.totalorder %s192, %s206
      %p208 = scmp.eq.s32.totalorder %s35, 0
      %p209 = por %p207, %p208
      %s211 = sadd.s32 %s210, 1
      %p214 = scmp.eq.s32.totalorder %s29, 7
      %p215 = scmp.ne.s32.totalorder %s210, %s212
      %p216 = scmp.eq.s32.totalorder %s29, 0
      %p217 = por %p215, %p216
      %p218 = scmp.ne.s32.totalorder %s210, %s212
      %p219 = scmp.eq.s32.totalorder %s34, 7
      %p220 = por %p218, %p219
      %p221 = scmp.ne.s32.totalorder %s212, %s213
      %p222 = scmp.eq.s32.totalorder %s34, 0
      %p223 = por %p221, %p222
      %p224 = scmp.ne.s32.totalorder %s212, %s213
      %p225 = scmp.eq.s32.totalorder %s35, 7
      %p226 = por %p224, %p225
      %p228 = scmp.ne.s32.totalorder %s213, %s227
      %p229 = scmp.eq.s32.totalorder %s35, 0
      %p230 = por %p228, %p229
      %s232 = sadd.s32 %s231, 1
      %p235 = scmp.eq.s32.totalorder %s29, 7
      %p236 = scmp.ne.s32.totalorder %s231, %s233
      %p237 = scmp.eq.s32.totalorder %s29, 0
      %p238 = por %p236, %p237
      %p239 = scmp.ne.s32.totalorder %s231, %s233
      %p240 = scmp.eq.s32.totalorder %s34, 7
      %p241 = por %p239, %p240
      %p242 = scmp.ne.s32.totalorder %s233, %s234
      %p243 = scmp.eq.s32.totalorder %s34, 0
      %p244 = por %p242, %p243
      %p245 = scmp.ne.s32.totalorder %s233, %s234
      %p246 = scmp.eq.s32.totalorder %s35, 7
      %p247 = por %p245, %p246
      %p249 = scmp.ne.s32.totalorder %s234, %s248
      %p250 = scmp.eq.s32.totalorder %s35, 0
      %p251 = por %p249, %p250
      %s253 = sadd.s32 %s252, 1
      %p256 = scmp.eq.s32.totalorder %s29, 7
      %p257 = scmp.ne.s32.totalorder %s252, %s254
      %p258 = scmp.eq.s32.totalorder %s29, 0
      %p259 = por %p257, %p258
      %p260 = scmp.ne.s32.totalorder %s252, %s254
      %p261 = scmp.eq.s32.totalorder %s34, 7
      %p262 = por %p260, %p261
      %p263 = scmp.ne.s32.totalorder %s254, %s255
      %p264 = scmp.eq.s32.totalorder %s34, 0
      %p265 = por %p263, %p264
      %p266 = scmp.ne.s32.totalorder %s254, %s255
      %p267 = scmp.eq.s32.totalorder %s35, 7
      %p268 = por %p266, %p267
      %p270 = scmp.ne.s32.totalorder %s255, %s269
      %p271 = scmp.eq.s32.totalorder %s35, 0
      %p272 = por %p270, %p271
      %s274 = sadd.s32 %s273, 1
      %p277 = scmp.eq.s32.totalorder %s29, 7
      %p278 = scmp.ne.s32.totalorder %s273, %s275
      %p279 = scmp.eq.s32.totalorder %s29, 0
      %p280 = por %p278, %p279
      %p281 = scmp.ne.s32.totalorder %s273, %s275
      %p282 = scmp.eq.s32.totalorder %s34, 7
      %p283 = por %p281, %p282
      %p284 = scmp.ne.s32.totalorder %s275, %s276
      %p285 = scmp.eq.s32.totalorder %s34, 0
      %p286 = por %p284, %p285
      %p287 = scmp.ne.s32.totalorder %s275, %s276
      %p288 = scmp.eq.s32.totalorder %s35, 7
      %p289 = por %p287, %p288
      %p291 = scmp.ne.s32.totalorder %s276, %s290
      %p292 = scmp.eq.s32.totalorder %s35, 0
      %p293 = por %p291, %p292
      %s295 = sadd.s32 %s294, 1
      %p298 = scmp.eq.s32.totalorder %s29, 7
      %p299 = scmp.ne.s32.totalorder %s294, %s296
      %p300 = scmp.eq.s32.totalorder %s29, 0
      %p301 = por %p299, %p300
      %p302 = scmp.ne.s32.totalorder %s294, %s296
      %p303 = scmp.eq.s32.totalorder %s34, 7
      %p304 = por %p302, %p303
      %p305 = scmp.ne.s32.totalorder %s296, %s297
      %p306 = scmp.eq.s32.totalorder %s34, 0
      %p307 = por %p305, %p306
      %p308 = scmp.ne.s32.totalorder %s296, %s297
      %p309 = scmp.eq.s32.totalorder %s35, 7
      %p310 = por %p308, %p309
      %p312 = scmp.ne.s32.totalorder %s297, %s311
      %p313 = scmp.eq.s32.totalorder %s35, 0
      %p314 = por %p312, %p313
      %s316 = sadd.s32 %s315, 1
      %p319 = scmp.eq.s32.totalorder %s29, 7
      %p320 = scmp.ne.s32.totalorder %s315, %s317
      %p321 = scmp.eq.s32.totalorder %s29, 0
      %p322 = por %p320, %p321
      %p323 = scmp.ne.s32.totalorder %s315, %s317
      %p324 = scmp.eq.s32.totalorder %s34, 7
      %p325 = por %p323, %p324
      %p326 = scmp.ne.s32.totalorder %s317, %s318
      %p327 = scmp.eq.s32.totalorder %s34, 0
      %p328 = por %p326, %p327
      %p329 = scmp.ne.s32.totalorder %s317, %s318
      %p330 = scmp.eq.s32.totalorder %s35, 7
      %p331 = por %p329, %p330
      %p333 = scmp.ne.s32.totalorder %s318, %s332
      %p334 = scmp.eq.s32.totalorder %s35, 0
      %p335 = por %p333, %p334
      %s337 = sadd.s32 %s336, 1
      %p340 = scmp.eq.s32.totalorder %s29, 7
      %p341 = scmp.ne.s32.totalorder %s336, %s338
      %p342 = scmp.eq.s32.totalorder %s29, 0
      %p343 = por %p341, %p342
      %p344 = scmp.ne.s32.totalorder %s336, %s338
      %p345 = scmp.eq.s32.totalorder %s34, 7
      %p346 = por %p344, %p345
      %p347 = scmp.ne.s32.totalorder %s338, %s339
      %p348 = scmp.eq.s32.totalorder %s34, 0
      %p349 = por %p347, %p348
      %p350 = scmp.ne.s32.totalorder %s338, %s339
      %p351 = scmp.eq.s32.totalorder %s35, 7
      %p352 = por %p350, %p351
      %p354 = scmp.ne.s32.totalorder %s339, %s353
      %p355 = scmp.eq.s32.totalorder %s35, 0
      %p356 = por %p354, %p355
      %s358 = sadd.s32 %s357, 1
      %p361 = scmp.eq.s32.totalorder %s29, 7
      %p362 = scmp.ne.s32.totalorder %s357, %s359
      %p363 = scmp.eq.s32.totalorder %s29, 0
      %p364 = por %p362, %p363
      %p365 = scmp.ne.s32.totalorder %s357, %s359
      %p366 = scmp.eq.s32.totalorder %s34, 7
      %p367 = por %p365, %p366
      %p368 = scmp.ne.s32.totalorder %s359, %s360
      %p369 = scmp.eq.s32.totalorder %s34, 0
      %p370 = por %p368, %p369
      %p371 = scmp.ne.s32.totalorder %s359, %s360
      %p372 = scmp.eq.s32.totalorder %s35, 7
      %p373 = por %p371, %p372
      %p375 = scmp.ne.s32.totalorder %s360, %s374
      %p376 = scmp.eq.s32.totalorder %s35, 0
      %p377 = por %p375, %p376
      %s379 = sadd.s32 %s378, 1
      %p382 = scmp.eq.s32.totalorder %s29, 7
      %p383 = scmp.ne.s32.totalorder %s378, %s380
      %p384 = scmp.eq.s32.totalorder %s29, 0
      %p385 = por %p383, %p384
      %p386 = scmp.ne.s32.totalorder %s378, %s380
      %p387 = scmp.eq.s32.totalorder %s34, 7
      %p388 = por %p386, %p387
      %p389 = scmp.ne.s32.totalorder %s380, %s381
      %p390 = scmp.eq.s32.totalorder %s34, 0
      %p391 = por %p389, %p390
      %p392 = scmp.ne.s32.totalorder %s380, %s381
      %p393 = scmp.eq.s32.totalorder %s35, 7
      %p394 = por %p392, %p393
      %p396 = scmp.ne.s32.totalorder %s381, %s395
      %p397 = scmp.eq.s32.totalorder %s35, 0
      %p398 = por %p396, %p397
      %s400 = sadd.s32 %s399, 1
      %p403 = scmp.eq.s32.totalorder %s29, 7
      %p404 = scmp.ne.s32.totalorder %s399, %s401
      %p405 = scmp.eq.s32.totalorder %s29, 0
      %p406 = por %p404, %p405
      %p407 = scmp.ne.s32.totalorder %s399, %s401
      %p408 = scmp.eq.s32.totalorder %s34, 7
      %p409 = por %p407, %p408
      %p410 = scmp.ne.s32.totalorder %s401, %s402
      %p411 = scmp.eq.s32.totalorder %s34, 0
      %p412 = por %p410, %p411
      %p413 = scmp.ne.s32.totalorder %s401, %s402
      %p414 = scmp.eq.s32.totalorder %s35, 7
      %p415 = por %p413, %p414
      %p417 = scmp.ne.s32.totalorder %s402, %s416
      %p418 = scmp.eq.s32.totalorder %s35, 0
      %p419 = por %p417, %p418
      %s421 = sadd.s32 %s420, 1
      %p424 = scmp.eq.s32.totalorder %s29, 7
      %p425 = scmp.ne.s32.totalorder %s420, %s422
      %p426 = scmp.eq.s32.totalorder %s29, 0
      %p427 = por %p425, %p426
      %p428 = scmp.ne.s32.totalorder %s420, %s422
      %p429 = scmp.eq.s32.totalorder %s34, 7
      %p430 = por %p428, %p429
      %p431 = scmp.ne.s32.totalorder %s422, %s423
      %p432 = scmp.eq.s32.totalorder %s34, 0
      %p433 = por %p431, %p432
      %p434 = scmp.ne.s32.totalorder %s422, %s423
      %p435 = scmp.eq.s32.totalorder %s35, 7
      %p436 = por %p434, %p435
      %p438 = scmp.ne.s32.totalorder %s423, %s437
      %p439 = scmp.eq.s32.totalorder %s35, 0
      %p440 = por %p438, %p439
      %s442 = sadd.s32 %s441, 1
      %p445 = scmp.eq.s32.totalorder %s29, 7
      %p446 = scmp.ne.s32.totalorder %s441, %s443
      %p447 = scmp.eq.s32.totalorder %s29, 0
      %p448 = por %p446, %p447
      %p449 = scmp.ne.s32.totalorder %s441, %s443
      %p450 = scmp.eq.s32.totalorder %s34, 7
      %p451 = por %p449, %p450
      %p452 = scmp.ne.s32.totalorder %s443, %s444
      %p453 = scmp.eq.s32.totalorder %s34, 0
      %p454 = por %p452, %p453
      %p455 = scmp.ne.s32.totalorder %s443, %s444
      %p456 = scmp.eq.s32.totalorder %s35, 7
      %p457 = por %p455, %p456
      %p459 = scmp.ne.s32.totalorder %s444, %s458
      %p460 = scmp.eq.s32.totalorder %s35, 0
      %p461 = por %p459, %p460
      %s463 = sadd.s32 %s462, 1
      %p466 = scmp.eq.s32.totalorder %s29, 7
      %p467 = scmp.ne.s32.totalorder %s462, %s464
      %p468 = scmp.eq.s32.totalorder %s29, 0
      %p469 = por %p467, %p468
      %p470 = scmp.ne.s32.totalorder %s462, %s464
      %p471 = scmp.eq.s32.totalorder %s34, 7
      %p472 = por %p470, %p471
      %p473 = scmp.ne.s32.totalorder %s464, %s465
      %p474 = scmp.eq.s32.totalorder %s34, 0
      %p475 = por %p473, %p474
      %p476 = scmp.ne.s32.totalorder %s464, %s465
      %p477 = scmp.eq.s32.totalorder %s35, 7
      %p478 = por %p476, %p477
      %p480 = scmp.ne.s32.totalorder %s465, %s479
      %p481 = scmp.eq.s32.totalorder %s35, 0
      %p482 = por %p480, %p481
      %p483 = scmp.le.s32.totalorder 1, %s29
      %p484 = scmp.lt.s32.totalorder %s29, 9
      %p485 = pnand %p483, %p484
      %p486 = pneg %p485
      // Predicated region
      $region9: #{forward.9} parent=5 // pred_check
        _
      $region10: #{forward.9} parent=5 // pred_check_branch
        %488 = sbr.rel (%p485) target = $region12
      $region11: #{forward.9} parent=5 // pred_region
        %s489 = ssub.s32 %s29, 1
        // Predicated region
        $region13: #{forward.9} parent=11 // pred_check
          %p490 = pneg %p76
        $region14: #{forward.9} parent=11 // pred_check_branch
          %492 = sbr.rel (%p490) target = $region16
        $region15: #{forward.9} parent=11 // pred_region
          _
        $region16: #{forward.9} parent=11 // pred_fallthru
          _
        // Predicated region
        $region17: #{forward.9} parent=11 // pred_check
          %p493 = pneg %p97
        $region18: #{forward.9} parent=11 // pred_check_branch
          %495 = sbr.rel (%p493) target = $region20
        $region19: #{forward.9} parent=11 // pred_region
          _
        $region20: #{forward.9} parent=11 // pred_fallthru
          _
        // Predicated region
        $region21: #{forward.9} parent=11 // pred_check
          %p496 = pneg %p118
        $region22: #{forward.9} parent=11 // pred_check_branch
          %498 = sbr.rel (%p496) target = $region24
        $region23: #{forward.9} parent=11 // pred_region
          _
        $region24: #{forward.9} parent=11 // pred_fallthru
          _
        // Predicated region
        $region25: #{forward.9} parent=11 // pred_check
          %p499 = pneg %p139
        $region26: #{forward.9} parent=11 // pred_check_branch
          %501 = sbr.rel (%p499) target = $region28
        $region27: #{forward.9} parent=11 // pred_region
          _
        $region28: #{forward.9} parent=11 // pred_fallthru
          _
        // Predicated region
        $region29: #{forward.9} parent=11 // pred_check
          %p502 = pneg %p160
        $region30: #{forward.9} parent=11 // pred_check_branch
          %504 = sbr.rel (%p502) target = $region32
        $region31: #{forward.9} parent=11 // pred_region
          _
        $region32: #{forward.9} parent=11 // pred_fallthru
          _
        // Predicated region
        $region33: #{forward.9} parent=11 // pred_check
          %p505 = pneg %p181
        $region34: #{forward.9} parent=11 // pred_check_branch
          %507 = sbr.rel (%p505) target = $region36
        $region35: #{forward.9} parent=11 // pred_region
          _
        $region36: #{forward.9} parent=11 // pred_fallthru
          _
        // Predicated region
        $region37: #{forward.9} parent=11 // pred_check
          %p508 = pneg %p202
        $region38: #{forward.9} parent=11 // pred_check_branch
          %510 = sbr.rel (%p508) target = $region40
        $region39: #{forward.9} parent=11 // pred_region
          _
        $region40: #{forward.9} parent=11 // pred_fallthru
          _
        // Predicated region
        $region41: #{forward.9} parent=11 // pred_check
          %p511 = pneg %p223
        $region42: #{forward.9} parent=11 // pred_check_branch
          %513 = sbr.rel (%p511) target = $region44
        $region43: #{forward.9} parent=11 // pred_region
          _
        $region44: #{forward.9} parent=11 // pred_fallthru
          _
        // Predicated region
        $region45: #{forward.9} parent=11 // pred_check
          %p514 = pneg %p244
        $region46: #{forward.9} parent=11 // pred_check_branch
          %516 = sbr.rel (%p514) target = $region48
        $region47: #{forward.9} parent=11 // pred_region
          _
        $region48: #{forward.9} parent=11 // pred_fallthru
          _
        // Predicated region
        $region49: #{forward.9} parent=11 // pred_check
          %p517 = pneg %p265
        $region50: #{forward.9} parent=11 // pred_check_branch
          %519 = sbr.rel (%p517) target = $region52
        $region51: #{forward.9} parent=11 // pred_region
          _
        $region52: #{forward.9} parent=11 // pred_fallthru
          _
        // Predicated region
        $region53: #{forward.9} parent=11 // pred_check
          %p520 = pneg %p286
        $region54: #{forward.9} parent=11 // pred_check_branch
          %522 = sbr.rel (%p520) target = $region56
        $region55: #{forward.9} parent=11 // pred_region
          _
        $region56: #{forward.9} parent=11 // pred_fallthru
          _
        // Predicated region
        $region57: #{forward.9} parent=11 // pred_check
          %p523 = pneg %p307
        $region58: #{forward.9} parent=11 // pred_check_branch
          %525 = sbr.rel (%p523) target = $region60
        $region59: #{forward.9} parent=11 // pred_region
          _
        $region60: #{forward.9} parent=11 // pred_fallthru
          _
        // Predicated region
        $region61: #{forward.9} parent=11 // pred_check
          %p526 = pneg %p328
        $region62: #{forward.9} parent=11 // pred_check_branch
          %528 = sbr.rel (%p526) target = $region64
        $region63: #{forward.9} parent=11 // pred_region
          _
        $region64: #{forward.9} parent=11 // pred_fallthru
          _
        // Predicated region
        $region65: #{forward.9} parent=11 // pred_check
          %p529 = pneg %p349
        $region66: #{forward.9} parent=11 // pred_check_branch
          %531 = sbr.rel (%p529) target = $region68
        $region67: #{forward.9} parent=11 // pred_region
          _
        $region68: #{forward.9} parent=11 // pred_fallthru
          _
        // Predicated region
        $region69: #{forward.9} parent=11 // pred_check
          %p532 = pneg %p370
        $region70: #{forward.9} parent=11 // pred_check_branch
          %534 = sbr.rel (%p532) target = $region72
        $region71: #{forward.9} parent=11 // pred_region
          _
        $region72: #{forward.9} parent=11 // pred_fallthru
          _
        // Predicated region
        $region73: #{forward.9} parent=11 // pred_check
          %p535 = pneg %p391
        $region74: #{forward.9} parent=11 // pred_check_branch
          %537 = sbr.rel (%p535) target = $region76
        $region75: #{forward.9} parent=11 // pred_region
          _
        $region76: #{forward.9} parent=11 // pred_fallthru
          _
        // Predicated region
        $region77: #{forward.9} parent=11 // pred_check
          %p538 = pneg %p412
        $region78: #{forward.9} parent=11 // pred_check_branch
          %540 = sbr.rel (%p538) target = $region80
        $region79: #{forward.9} parent=11 // pred_region
          _
        $region80: #{forward.9} parent=11 // pred_fallthru
          _
        // Predicated region
        $region81: #{forward.9} parent=11 // pred_check
          %p541 = pneg %p433
        $region82: #{forward.9} parent=11 // pred_check_branch
          %543 = sbr.rel (%p541) target = $region84
        $region83: #{forward.9} parent=11 // pred_region
          _
        $region84: #{forward.9} parent=11 // pred_fallthru
          _
      $region12: #{forward.9} parent=5 // pred_fallthru
        _
      %p544 = scmp.lt.s32.totalorder %s29, 8
      // Predicated region
      $region85: #{forward.9} parent=5 // pred_check
        %p545 = pneg %p544
      $region86: #{forward.9} parent=5 // pred_check_branch
        %547 = sbr.rel (%p545) target = $region88
      $region87: #{forward.9} parent=5 // pred_region
        // Predicated region
        $region89: #{forward.9} parent=87 // pred_check
          %p548 = pneg %p49
        $region90: #{forward.9} parent=87 // pred_check_branch
          %550 = sbr.rel (%p548) target = $region92
        $region91: #{forward.9} parent=87 // pred_region
          %p551 = scmp.lt.s32.totalorder %s29, 7
          %s552 = scalar_select %p551, %s29, 7
          %s553 = smul.addr %s552, 4
          %s554 = smul.addr %s553, 2
          %s555 = scalar_lea.vmem %s0, %s554
        $region92: #{forward.9} parent=87 // pred_fallthru
          _
      $region88: #{forward.9} parent=5 // pred_fallthru
        _
      %p556 = scmp.le.s32.totalorder 1, %s29
      %p557 = scmp.lt.s32.totalorder %s29, 9
      %p558 = pnand %p556, %p557
      %p559 = pneg %p558
      // Predicated region
      $region93: #{forward.9} parent=5 // pred_check
        _
      $region94: #{forward.9} parent=5 // pred_check_branch
        %561 = sbr.rel (%p558) target = $region96
      $region95: #{forward.9} parent=5 // pred_region
        %s562 = ssub.s32 %s29, 1
        %p563 = scmp.lt.s32.totalorder %s34, 7
        %s564 = scalar_select %p563, %s34, 7
        %s565 = smul.addr %s564, 4
        %s566 = smul.addr %s565, 2
        %s567 = scalar_lea.vmem %s0, %s566
        %p568 = pneg %p55
        %p569 = pneg %p52
        %p570 = pneg %p76
        %p571 = pneg %p73
        %p572 = pneg %p97
        %p573 = pneg %p94
        %p574 = pneg %p118
        %p575 = pneg %p115
        %p576 = pneg %p139
        %p577 = pneg %p136
        %p578 = pneg %p160
        %p579 = pneg %p157
        %p580 = pneg %p181
        %p581 = pneg %p178
        %p582 = pneg %p202
        %p583 = pneg %p199
        %p584 = pneg %p223
        %p585 = pneg %p220
        %p586 = pneg %p244
        %p587 = pneg %p241
        %p588 = pneg %p265
        %p589 = pneg %p262
        %p590 = pneg %p286
        %p591 = pneg %p283
        %p592 = pneg %p307
        %p593 = pneg %p304
        %p594 = pneg %p328
        %p595 = pneg %p325
        %p596 = pneg %p349
        %p597 = pneg %p346
        %p598 = pneg %p370
        %p599 = pneg %p367
        %p600 = pneg %p391
        %p601 = pneg %p388
        %p602 = pneg %p412
        %p603 = pneg %p409
        %p604 = pneg %p433
        %p605 = pneg %p430
        %p606 = pneg %p454
        %p607 = pneg %p451
        %p608 = pneg %p475
        %p609 = pneg %p472
        %p610 = scmp.lt.s32.totalorder %s34, 7
        %s611 = scalar_select %p610, %s34, 7
        %s612 = smul.addr %s611, 4
        %s613 = smul.addr %s612, 2
        %s614 = scalar_lea.vmem %s0, %s613
        %p615 = scmp.eq.s32.totalorder %s34, 0
        // Predicated region
        $region97: #{forward.9} parent=95 // pred_check
          %p616 = pneg %p615
        $region98: #{forward.9} parent=95 // pred_check_branch
          %618 = sbr.rel (%p616) target = $region100
        $region99: #{forward.9} parent=95 // pred_region
          %619 = vst [vmem:[#allocation2] sm:$0x3] 0.0
          %620 = vst [vmem:[#allocation3] sm:$0x3] 0.0
          %621 = vst [vmem:[#allocation4] sm:$0x3] 0.0
          %622 = vst [vmem:[#allocation5] sm:$0x3] 0.0
        $region100: #{forward.9} parent=95 // pred_fallthru
          _
        %v623 = vld [vmem:[%s614] sm:$0xff]
        %v624 = vld [vmem:[#allocation2] sm:$0x3]
        %v625 = vld [vmem:[%s1] sm:$0xff]
        %v626 = vld [vmem:[%s1 + $0x8] sm:$0xff]
        %v627 = vld [vmem:[%s1 + $0x10] sm:$0xff]
        %v628 = vld [vmem:[%s1 + $0x18] sm:$0xff]
        %v629 = vld [vmem:[%s1 + $0x20] sm:$0xff]
        %v630 = vld [vmem:[%s1 + $0x28] sm:$0xff]
        %v631 = vld [vmem:[%s1 + $0x30] sm:$0xff]
        %v632 = vld [vmem:[%s1 + $0x38] sm:$0xff]
        %v633 = vld [vmem:[%s1 + $0x40] sm:$0xff]
        %v634 = vld [vmem:[%s1 + $0x48] sm:$0xff]
        %v635 = vld [vmem:[%s1 + $0x50] sm:$0xff]
        %v636 = vld [vmem:[%s1 + $0x58] sm:$0xff]
        %v637 = vld [vmem:[%s1 + $0x60] sm:$0xff]
        %v638 = vld [vmem:[%s1 + $0x68] sm:$0xff]
        %v639 = vld [vmem:[%s1 + $0x70] sm:$0xff]
        %v640 = vld [vmem:[%s1 + $0x78] sm:$0xff]
        %v641 = vld [vmem:[%s1 + $0x80] sm:$0xff]
        %v642 = vld [vmem:[%s1 + $0x88] sm:$0xff]
        %v643 = vld [vmem:[%s1 + $0x90] sm:$0xff]
        %v644 = vld [vmem:[%s1 + $0x98] sm:$0xff]
        %v645 = vld [vmem:[%s1 + $0xa0] sm:$0xff]
        %v646 = vld [vmem:[%s1 + $0xa8] sm:$0xff]
        %v647 = vld [vmem:[%s1 + $0xb0] sm:$0xff]
        %v648 = vld [vmem:[%s1 + $0xb8] sm:$0xff]
        %v649 = vld [vmem:[%s1 + $0xc0] sm:$0xff]
        %v650 = vld [vmem:[%s1 + $0xc8] sm:$0xff]
        %v651 = vld [vmem:[%s1 + $0xd0] sm:$0xff]
        %v652 = vld [vmem:[%s1 + $0xd8] sm:$0xff]
        %v653 = vld [vmem:[%s1 + $0xe0] sm:$0xff]
        %v654 = vld [vmem:[%s1 + $0xe8] sm:$0xff]
        %v655 = vld [vmem:[%s1 + $0xf0] sm:$0xff]
        %v656 = vld [vmem:[%s1 + $0xf8] sm:$0xff]
        %v657 = vld [vmem:[%s1 + $0x100] sm:$0xff]
        %v658 = vld [vmem:[%s1 + $0x108] sm:$0xff]
        %v659 = vld [vmem:[%s1 + $0x110] sm:$0xff]
        %v660 = vld [vmem:[%s1 + $0x118] sm:$0xff]
        %v661 = vld [vmem:[%s1 + $0x120] sm:$0xff]
        %v662 = vld [vmem:[%s1 + $0x128] sm:$0xff]
        %v663 = vld [vmem:[%s1 + $0x130] sm:$0xff]
        %v664 = vld [vmem:[%s1 + $0x138] sm:$0xff]
        %v665 = vld [vmem:[%s1 + $0x140] sm:$0xff]
        %v666 = vld [vmem:[%s1 + $0x148] sm:$0xff]
        %v667 = vld [vmem:[%s1 + $0x150] sm:$0xff]
        %v668 = vld [vmem:[%s1 + $0x158] sm:$0xff]
        %v669 = vld [vmem:[%s1 + $0x160] sm:$0xff]
        %v670 = vld [vmem:[%s1 + $0x168] sm:$0xff]
        %v671 = vld [vmem:[%s1 + $0x170] sm:$0xff]
        %v672 = vld [vmem:[%s1 + $0x178] sm:$0xff]
        %v673 = vld [vmem:[%s1 + $0x180] sm:$0xff]
        %v674 = vld [vmem:[%s1 + $0x188] sm:$0xff]
        %v675 = vld [vmem:[%s1 + $0x190] sm:$0xff]
        %v676 = vld [vmem:[%s1 + $0x198] sm:$0xff]
        %v677 = vld [vmem:[%s1 + $0x1a0] sm:$0xff]
        %v678 = vld [vmem:[%s1 + $0x1a8] sm:$0xff]
        %v679 = vld [vmem:[%s1 + $0x1b0] sm:$0xff]
        %v680 = vld [vmem:[%s1 + $0x1b8] sm:$0xff]
        %v681 = vld [vmem:[%s1 + $0x1c0] sm:$0xff]
        %v682 = vld [vmem:[%s1 + $0x1c8] sm:$0xff]
        %v683 = vld [vmem:[%s1 + $0x1d0] sm:$0xff]
        %v684 = vld [vmem:[%s1 + $0x1d8] sm:$0xff]
        %v685 = vld [vmem:[%s1 + $0x1e0] sm:$0xff]
        %v686 = vld [vmem:[%s1 + $0x1e8] sm:$0xff]
        %v687 = vld [vmem:[%s1 + $0x1f0] sm:$0xff]
        %v688 = vld [vmem:[%s1 + $0x1f8] sm:$0xff]
        %689 = vmatprep.subr.mxu0 %v686
        %690 = vmatpush1.msra.mxu0 %v685
        %691 = vmatprep.subr.mxu0 %v682
        %692 = vmatpush1.msra.mxu0 %v681
        %693 = vmatprep.subr.mxu0 %v678
        %694 = vmatpush1.msra.mxu0 %v677
        %695 = vmatprep.subr.mxu0 %v674
        %696 = vmatpush1.msra.mxu0 %v673
        %697 = vmatprep.subr.mxu0 %v670
        %698 = vmatpush1.msra.mxu0 %v669
        %699 = vmatprep.subr.mxu0 %v666
        %700 = vmatpush1.msra.mxu0 %v665
        %701 = vmatprep.subr.mxu0 %v662
        %702 = vmatpush1.msra.mxu0 %v661
        %703 = vmatprep.subr.mxu0 %v658
        %704 = vmatpush1.msra.mxu0 %v657
        %705 = vmatprep.subr.mxu0 %v654
        %706 = vmatpush1.msra.mxu0 %v653
        %707 = vmatprep.subr.mxu0 %v650
        %708 = vmatpush1.msra.mxu0 %v649
        %709 = vmatprep.subr.mxu0 %v646
        %710 = vmatpush1.msra.mxu0 %v645
        %711 = vmatprep.subr.mxu0 %v642
        %712 = vmatpush1.msra.mxu0 %v641
        %713 = vmatprep.subr.mxu0 %v638
        %714 = vmatpush1.msra.mxu0 %v637
        %715 = vmatprep.subr.mxu0 %v634
        %716 = vmatpush1.msra.mxu0 %v633
        %717 = vmatprep.subr.mxu0 %v630
        %718 = vmatpush1.msra.mxu0 %v629
        %719 = vmatprep.subr.mxu0 %v626
        %720 = vmatpush1.msra.mxu0 %v625
        %721 = vmatprep.subr.mxu0 0.0
        %722 = vmatpush2.msra.mxu0 0.0
        %723 = vmatprep.subr.mxu0 0.0
        %724 = vmatpush2.msra.mxu0 0.0
        %725 = vmatprep.subr.mxu0 0.0
        %726 = vmatpush2.msra.mxu0 0.0
        %727 = vmatprep.subr.mxu0 0.0
        %728 = vmatpush2.msra.mxu0 0.0
        %729 = vmatprep.subr.mxu0 0.0
        %730 = vmatpush2.msra.mxu0 0.0
        %731 = vmatprep.subr.mxu0 0.0
        %732 = vmatpush2.msra.mxu0 0.0
        %733 = vmatprep.subr.mxu0 0.0
        %734 = vmatpush2.msra.mxu0 0.0
        %735 = vmatprep.subr.mxu0 0.0
        %736 = vmatpush2.msra.mxu0 0.0
        %737 = vmatprep.subr.mxu0 0.0
        %738 = vmatpush2.msra.mxu0 0.0
        %739 = vmatprep.subr.mxu0 0.0
        %740 = vmatpush2.msra.mxu0 0.0
        %741 = vmatprep.subr.mxu0 0.0
        %742 = vmatpush2.msra.mxu0 0.0
        %743 = vmatprep.subr.mxu0 0.0
        %744 = vmatpush2.msra.mxu0 0.0
        %745 = vmatprep.subr.mxu0 0.0
        %746 = vmatpush2.msra.mxu0 0.0
        %747 = vmatprep.subr.mxu0 0.0
        %748 = vmatpush2.msra.mxu0 0.0
        %749 = vmatprep.subr.mxu0 0.0
        %750 = vmatpush2.msra.mxu0 0.0
        %751 = vmatprep.subr.mxu0 0.0
        %752 = vmatpush2.msra.mxu0 0.0
        %753 = vmatprep.mubr.f32.mxu0 0.0
        %754 = vmatmul.mubr.f32.gmra.mxu0 %v624
        %v755 = vpop.f32.mrf.mxu0
        %v756 = vadd.f32 0.0, %v755
        %v757 = vpop.f32.mrf.mxu0
        %v758 = vadd.f32 0.0, %v757
        %759 = vdwg.mxu0
        %760 = vmatprep.subr.mxu0 %v688
        %761 = vmatpush1.msra.mxu0 %v687
        %762 = vmatprep.subr.mxu0 %v684
        %763 = vmatpush1.msra.mxu0 %v683
        %764 = vmatprep.subr.mxu0 %v680
        %765 = vmatpush1.msra.mxu0 %v679
        %766 = vmatprep.subr.mxu0 %v676
        %767 = vmatpush1.msra.mxu0 %v675
        %768 = vmatprep.subr.mxu0 %v672
        %769 = vmatpush1.msra.mxu0 %v671
        %770 = vmatprep.subr.mxu0 %v668
        %771 = vmatpush1.msra.mxu0 %v667
        %772 = vmatprep.subr.mxu0 %v664
        %773 = vmatpush1.msra.mxu0 %v663
        %774 = vmatprep.subr.mxu0 %v660
        %775 = vmatpush1.msra.mxu0 %v659
        %776 = vmatprep.subr.mxu0 %v656
        %777 = vmatpush1.msra.mxu0 %v655
        %778 = vmatprep.subr.mxu0 %v652
        %779 = vmatpush1.msra.mxu0 %v651
        %780 = vmatprep.subr.mxu0 %v648
        %781 = vmatpush1.msra.mxu0 %v647
        %782 = vmatprep.subr.mxu0 %v644
        %783 = vmatpush1.msra.mxu0 %v643
        %784 = vmatprep.subr.mxu0 %v640
        %785 = vmatpush1.msra.mxu0 %v639
        %786 = vmatprep.subr.mxu0 %v636
        %787 = vmatpush1.msra.mxu0 %v635
        %788 = vmatprep.subr.mxu0 %v632
        %789 = vmatpush1.msra.mxu0 %v631
        %790 = vmatprep.subr.mxu0 %v628
        %791 = vmatpush1.msra.mxu0 %v627
        %792 = vmatprep.subr.mxu0 0.0
        %793 = vmatpush2.msra.mxu0 0.0
        %794 = vmatprep.subr.mxu0 0.0
        %795 = vmatpush2.msra.mxu0 0.0
        %796 = vmatprep.subr.mxu0 0.0
        %797 = vmatpush2.msra.mxu0 0.0
        %798 = vmatprep.subr.mxu0 0.0
        %799 = vmatpush2.msra.mxu0 0.0
        %800 = vmatprep.subr.mxu0 0.0
        %801 = vmatpush2.msra.mxu0 0.0
        %802 = vmatprep.subr.mxu0 0.0
        %803 = vmatpush2.msra.mxu0 0.0
        %804 = vmatprep.subr.mxu0 0.0
        %805 = vmatpush2.msra.mxu0 0.0
        %806 = vmatprep.subr.mxu0 0.0
        %807 = vmatpush2.msra.mxu0 0.0
        %808 = vmatprep.subr.mxu0 0.0
        %809 = vmatpush2.msra.mxu0 0.0
        %810 = vmatprep.subr.mxu0 0.0
        %811 = vmatpush2.msra.mxu0 0.0
        %812 = vmatprep.subr.mxu0 0.0
        %813 = vmatpush2.msra.mxu0 0.0
        %814 = vmatprep.subr.mxu0 0.0
        %815 = vmatpush2.msra.mxu0 0.0
        %816 = vmatprep.subr.mxu0 0.0
        %817 = vmatpush2.msra.mxu0 0.0
        %818 = vmatprep.subr.mxu0 0.0
        %819 = vmatpush2.msra.mxu0 0.0
        %820 = vmatprep.subr.mxu0 0.0
        %821 = vmatpush2.msra.mxu0 0.0
        %822 = vmatprep.subr.mxu0 0.0
        %823 = vmatpush2.msra.mxu0 0.0
        %824 = vmatprep.mubr.f32.mxu0 0.0
        %825 = vmatmul.mubr.f32.gmra.mxu0 %v624
        %v826 = vpop.f32.mrf.mxu0
        %v827 = vadd.f32 0.0, %v826
        %v828 = vpop.f32.mrf.mxu0
        %v829 = vadd.f32 0.0, %v828
        %830 = vdwg.mxu0
        %v835 = vcombine.low %v756, %v758
        %v836 = vcombine.low %v827, %v829
        %v838 = vunpack.c.l.s4 1983009808
        %v839 = vunpack.c.0.s8 %v838
        %v840 = vlaneseq
        %v841 = vshrl.u32 %v840, 7
        %v842 = vsub.s32 %v839, %v841
        %v843 = vrot.slane %v835, %v842
        %v845 = vunpack.c.l.s4 1983009808
        %v846 = vunpack.c.0.s8 %v845
        %v847 = vlaneseq
        %v848 = vshrl.u32 %v847, 7
        %v849 = vsub.s32 %v846, %v848
        %v850 = vrot.slane %v836, %v849
        %v851 = vcombine.low %v843, %v850
        %v853 = vadd.f32 %v623, %v851
        %v854 = vld [vmem:[#allocation3] sm:$0x3]
        %v855 = vxor.u32 %v853, 2147483648
        %v856 = vmul.f32 %v855, 1.442695
        %v857 = vpow.pop %v856
        %v858 = vadd.f32 %v857, 1.0
        %v859 = vrcp.pop %v858
        %v860 = vmul.f32 1.0, %v859
        %v862 = vrot.slane %v853, 2
        %v864 = vxor.u32 %v862, 2147483648
        %v865 = vmul.f32 %v864, 1.442695
        %v866 = vpow.pop %v865
        %v867 = vadd.f32 %v866, 1.0
        %v868 = vrcp.pop %v867
        %v869 = vmul.f32 1.0, %v868
        %v870 = vrot.slane %v853, 4
        %v872 = vtanh.pop %v870
        %v873 = vrot.slane %v853, 6
        %v875 = vxor.u32 %v873, 2147483648
        %v876 = vmul.f32 %v875, 1.442695
        %v877 = vpow.pop %v876
        %v878 = vadd.f32 %v877, 1.0
        %v879 = vrcp.pop %v878
        %v880 = vmul.f32 1.0, %v879
        %v881 = vmul.f32 %v869, %v854
        %v882 = vmul.f32 %v860, %v872
        %v883 = vadd.f32 %v881, %v882
        %v884 = vtanh.pop %v883
        %v885 = vmul.f32 %v880, %v884
        %886 = vst [vmem:[#allocation2] sm:$0x3] %v885
        %887 = vst [vmem:[#allocation3] sm:$0x3] %v883
        %v888 = vld [vmem:[%s2] sm:$0xff]
        %v889 = vld [vmem:[%s2 + $0x8] sm:$0xff]
        %v890 = vld [vmem:[%s2 + $0x10] sm:$0xff]
        %v891 = vld [vmem:[%s2 + $0x18] sm:$0xff]
        %v892 = vld [vmem:[%s2 + $0x20] sm:$0xff]
        %v893 = vld [vmem:[%s2 + $0x28] sm:$0xff]
        %v894 = vld [vmem:[%s2 + $0x30] sm:$0xff]
        %v895 = vld [vmem:[%s2 + $0x38] sm:$0xff]
        %v896 = vld [vmem:[%s2 + $0x40] sm:$0xff]
        %v897 = vld [vmem:[%s2 + $0x48] sm:$0xff]
        %v898 = vld [vmem:[%s2 + $0x50] sm:$0xff]
        %v899 = vld [vmem:[%s2 + $0x58] sm:$0xff]
        %v900 = vld [vmem:[%s2 + $0x60] sm:$0xff]
        %v901 = vld [vmem:[%s2 + $0x68] sm:$0xff]
        %v902 = vld [vmem:[%s2 + $0x70] sm:$0xff]
        %v903 = vld [vmem:[%s2 + $0x78] sm:$0xff]
        %v904 = vld [vmem:[%s2 + $0x80] sm:$0xff]
        %v905 = vld [vmem:[%s2 + $0x88] sm:$0xff]
        %v906 = vld [vmem:[%s2 + $0x90] sm:$0xff]
        %v907 = vld [vmem:[%s2 + $0x98] sm:$0xff]
        %v908 = vld [vmem:[%s2 + $0xa0] sm:$0xff]
        %v909 = vld [vmem:[%s2 + $0xa8] sm:$0xff]
        %v910 = vld [vmem:[%s2 + $0xb0] sm:$0xff]
        %v911 = vld [vmem:[%s2 + $0xb8] sm:$0xff]
        %v912 = vld [vmem:[%s2 + $0xc0] sm:$0xff]
        %v913 = vld [vmem:[%s2 + $0xc8] sm:$0xff]
        %v914 = vld [vmem:[%s2 + $0xd0] sm:$0xff]
        %v915 = vld [vmem:[%s2 + $0xd8] sm:$0xff]
        %v916 = vld [vmem:[%s2 + $0xe0] sm:$0xff]
        %v917 = vld [vmem:[%s2 + $0xe8] sm:$0xff]
        %v918 = vld [vmem:[%s2 + $0xf0] sm:$0xff]
        %v919 = vld [vmem:[%s2 + $0xf8] sm:$0xff]
        %v920 = vld [vmem:[%s2 + $0x100] sm:$0xff]
        %v921 = vld [vmem:[%s2 + $0x108] sm:$0xff]
        %v922 = vld [vmem:[%s2 + $0x110] sm:$0xff]
        %v923 = vld [vmem:[%s2 + $0x118] sm:$0xff]
        %v924 = vld [vmem:[%s2 + $0x120] sm:$0xff]
        %v925 = vld [vmem:[%s2 + $0x128] sm:$0xff]
        %v926 = vld [vmem:[%s2 + $0x130] sm:$0xff]
        %v927 = vld [vmem:[%s2 + $0x138] sm:$0xff]
        %v928 = vld [vmem:[%s2 + $0x140] sm:$0xff]
        %v929 = vld [vmem:[%s2 + $0x148] sm:$0xff]
        %v930 = vld [vmem:[%s2 + $0x150] sm:$0xff]
        %v931 = vld [vmem:[%s2 + $0x158] sm:$0xff]
        %v932 = vld [vmem:[%s2 + $0x160] sm:$0xff]
        %v933 = vld [vmem:[%s2 + $0x168] sm:$0xff]
        %v934 = vld [vmem:[%s2 + $0x170] sm:$0xff]
        %v935 = vld [vmem:[%s2 + $0x178] sm:$0xff]
        %v936 = vld [vmem:[%s2 + $0x180] sm:$0xff]
        %v937 = vld [vmem:[%s2 + $0x188] sm:$0xff]
        %v938 = vld [vmem:[%s2 + $0x190] sm:$0xff]
        %v939 = vld [vmem:[%s2 + $0x198] sm:$0xff]
        %v940 = vld [vmem:[%s2 + $0x1a0] sm:$0xff]
        %v941 = vld [vmem:[%s2 + $0x1a8] sm:$0xff]
        %v942 = vld [vmem:[%s2 + $0x1b0] sm:$0xff]
        %v943 = vld [vmem:[%s2 + $0x1b8] sm:$0xff]
        %v944 = vld [vmem:[%s2 + $0x1c0] sm:$0xff]
        %v945 = vld [vmem:[%s2 + $0x1c8] sm:$0xff]
        %v946 = vld [vmem:[%s2 + $0x1d0] sm:$0xff]
        %v947 = vld [vmem:[%s2 + $0x1d8] sm:$0xff]
        %v948 = vld [vmem:[%s2 + $0x1e0] sm:$0xff]
        %v949 = vld [vmem:[%s2 + $0x1e8] sm:$0xff]
        %v950 = vld [vmem:[%s2 + $0x1f0] sm:$0xff]
        %v951 = vld [vmem:[%s2 + $0x1f8] sm:$0xff]
        %v952 = vld [vmem:[#allocation4] sm:$0x3]
        %v953 = vld [vmem:[%s3] sm:$0xff]
        %v954 = vld [vmem:[%s3 + $0x8] sm:$0xff]
        %v955 = vld [vmem:[%s3 + $0x10] sm:$0xff]
        %v956 = vld [vmem:[%s3 + $0x18] sm:$0xff]
        %v957 = vld [vmem:[%s3 + $0x20] sm:$0xff]
        %v958 = vld [vmem:[%s3 + $0x28] sm:$0xff]
        %v959 = vld [vmem:[%s3 + $0x30] sm:$0xff]
        %v960 = vld [vmem:[%s3 + $0x38] sm:$0xff]
        %v961 = vld [vmem:[%s3 + $0x40] sm:$0xff]
        %v962 = vld [vmem:[%s3 + $0x48] sm:$0xff]
        %v963 = vld [vmem:[%s3 + $0x50] sm:$0xff]
        %v964 = vld [vmem:[%s3 + $0x58] sm:$0xff]
        %v965 = vld [vmem:[%s3 + $0x60] sm:$0xff]
        %v966 = vld [vmem:[%s3 + $0x68] sm:$0xff]
        %v967 = vld [vmem:[%s3 + $0x70] sm:$0xff]
        %v968 = vld [vmem:[%s3 + $0x78] sm:$0xff]
        %v969 = vld [vmem:[%s3 + $0x80] sm:$0xff]
        %v970 = vld [vmem:[%s3 + $0x88] sm:$0xff]
        %v971 = vld [vmem:[%s3 + $0x90] sm:$0xff]
        %v972 = vld [vmem:[%s3 + $0x98] sm:$0xff]
        %v973 = vld [vmem:[%s3 + $0xa0] sm:$0xff]
        %v974 = vld [vmem:[%s3 + $0xa8] sm:$0xff]
        %v975 = vld [vmem:[%s3 + $0xb0] sm:$0xff]
        %v976 = vld [vmem:[%s3 + $0xb8] sm:$0xff]
        %v977 = vld [vmem:[%s3 + $0xc0] sm:$0xff]
        %v978 = vld [vmem:[%s3 + $0xc8] sm:$0xff]
        %v979 = vld [vmem:[%s3 + $0xd0] sm:$0xff]
        %v980 = vld [vmem:[%s3 + $0xd8] sm:$0xff]
        %v981 = vld [vmem:[%s3 + $0xe0] sm:$0xff]
        %v982 = vld [vmem:[%s3 + $0xe8] sm:$0xff]
        %v983 = vld [vmem:[%s3 + $0xf0] sm:$0xff]
        %v984 = vld [vmem:[%s3 + $0xf8] sm:$0xff]
        %v985 = vld [vmem:[%s3 + $0x100] sm:$0xff]
        %v986 = vld [vmem:[%s3 + $0x108] sm:$0xff]
        %v987 = vld [vmem:[%s3 + $0x110] sm:$0xff]
        %v988 = vld [vmem:[%s3 + $0x118] sm:$0xff]
        %v989 = vld [vmem:[%s3 + $0x120] sm:$0xff]
        %v990 = vld [vmem:[%s3 + $0x128] sm:$0xff]
        %v991 = vld [vmem:[%s3 + $0x130] sm:$0xff]
        %v992 = vld [vmem:[%s3 + $0x138] sm:$0xff]
        %v993 = vld [vmem:[%s3 + $0x140] sm:$0xff]
        %v994 = vld [vmem:[%s3 + $0x148] sm:$0xff]
        %v995 = vld [vmem:[%s3 + $0x150] sm:$0xff]
        %v996 = vld [vmem:[%s3 + $0x158] sm:$0xff]
        %v997 = vld [vmem:[%s3 + $0x160] sm:$0xff]
        %v998 = vld [vmem:[%s3 + $0x168] sm:$0xff]
        %v999 = vld [vmem:[%s3 + $0x170] sm:$0xff]
        %v1000 = vld [vmem:[%s3 + $0x178] sm:$0xff]
        %v1001 = vld [vmem:[%s3 + $0x180] sm:$0xff]
        %v1002 = vld [vmem:[%s3 + $0x188] sm:$0xff]
        %v1003 = vld [vmem:[%s3 + $0x190] sm:$0xff]
        %v1004 = vld [vmem:[%s3 + $0x198] sm:$0xff]
        %v1005 = vld [vmem:[%s3 + $0x1a0] sm:$0xff]
        %v1006 = vld [vmem:[%s3 + $0x1a8] sm:$0xff]
        %v1007 = vld [vmem:[%s3 + $0x1b0] sm:$0xff]
        %v1008 = vld [vmem:[%s3 + $0x1b8] sm:$0xff]
        %v1009 = vld [vmem:[%s3 + $0x1c0] sm:$0xff]
        %v1010 = vld [vmem:[%s3 + $0x1c8] sm:$0xff]
        %v1011 = vld [vmem:[%s3 + $0x1d0] sm:$0xff]
        %v1012 = vld [vmem:[%s3 + $0x1d8] sm:$0xff]
        %v1013 = vld [vmem:[%s3 + $0x1e0] sm:$0xff]
        %v1014 = vld [vmem:[%s3 + $0x1e8] sm:$0xff]
        %v1015 = vld [vmem:[%s3 + $0x1f0] sm:$0xff]
        %v1016 = vld [vmem:[%s3 + $0x1f8] sm:$0xff]
        %1017 = vmatprep.subr.mxu0 %v1014
        %1018 = vmatpush1.msra.mxu0 %v1013
        %1019 = vmatprep.subr.mxu0 %v1010
        %1020 = vmatpush1.msra.mxu0 %v1009
        %1021 = vmatprep.subr.mxu0 %v1006
        %1022 = vmatpush1.msra.mxu0 %v1005
        %1023 = vmatprep.subr.mxu0 %v1002
        %1024 = vmatpush1.msra.mxu0 %v1001
        %1025 = vmatprep.subr.mxu0 %v998
        %1026 = vmatpush1.msra.mxu0 %v997
        %1027 = vmatprep.subr.mxu0 %v994
        %1028 = vmatpush1.msra.mxu0 %v993
        %1029 = vmatprep.subr.mxu0 %v990
        %1030 = vmatpush1.msra.mxu0 %v989
        %1031 = vmatprep.subr.mxu0 %v986
        %1032 = vmatpush1.msra.mxu0 %v985
        %1033 = vmatprep.subr.mxu0 %v982
        %1034 = vmatpush1.msra.mxu0 %v981
        %1035 = vmatprep.subr.mxu0 %v978
        %1036 = vmatpush1.msra.mxu0 %v977
        %1037 = vmatprep.subr.mxu0 %v974
        %1038 = vmatpush1.msra.mxu0 %v973
        %1039 = vmatprep.subr.mxu0 %v970
        %1040 = vmatpush1.msra.mxu0 %v969
        %1041 = vmatprep.subr.mxu0 %v966
        %1042 = vmatpush1.msra.mxu0 %v965
        %1043 = vmatprep.subr.mxu0 %v962
        %1044 = vmatpush1.msra.mxu0 %v961
        %1045 = vmatprep.subr.mxu0 %v958
        %1046 = vmatpush1.msra.mxu0 %v957
        %1047 = vmatprep.subr.mxu0 %v954
        %1048 = vmatpush1.msra.mxu0 %v953
        %1049 = vmatprep.subr.mxu0 0.0
        %1050 = vmatpush2.msra.mxu0 0.0
        %1051 = vmatprep.subr.mxu0 0.0
        %1052 = vmatpush2.msra.mxu0 0.0
        %1053 = vmatprep.subr.mxu0 0.0
        %1054 = vmatpush2.msra.mxu0 0.0
        %1055 = vmatprep.subr.mxu0 0.0
        %1056 = vmatpush2.msra.mxu0 0.0
        %1057 = vmatprep.subr.mxu0 0.0
        %1058 = vmatpush2.msra.mxu0 0.0
        %1059 = vmatprep.subr.mxu0 0.0
        %1060 = vmatpush2.msra.mxu0 0.0
        %1061 = vmatprep.subr.mxu0 0.0
        %1062 = vmatpush2.msra.mxu0 0.0
        %1063 = vmatprep.subr.mxu0 0.0
        %1064 = vmatpush2.msra.mxu0 0.0
        %1065 = vmatprep.subr.mxu0 0.0
        %1066 = vmatpush2.msra.mxu0 0.0
        %1067 = vmatprep.subr.mxu0 0.0
        %1068 = vmatpush2.msra.mxu0 0.0
        %1069 = vmatprep.subr.mxu0 0.0
        %1070 = vmatpush2.msra.mxu0 0.0
        %1071 = vmatprep.subr.mxu0 0.0
        %1072 = vmatpush2.msra.mxu0 0.0
        %1073 = vmatprep.subr.mxu0 0.0
        %1074 = vmatpush2.msra.mxu0 0.0
        %1075 = vmatprep.subr.mxu0 0.0
        %1076 = vmatpush2.msra.mxu0 0.0
        %1077 = vmatprep.subr.mxu0 0.0
        %1078 = vmatpush2.msra.mxu0 0.0
        %1079 = vmatprep.subr.mxu0 0.0
        %1080 = vmatpush2.msra.mxu0 0.0
        %1081 = vmatprep.mubr.f32.mxu0 0.0
        %1082 = vmatmul.mubr.f32.gmra.mxu0 %v952
        %v1083 = vpop.f32.mrf.mxu0
        %v1084 = vadd.f32 0.0, %v1083
        %v1085 = vpop.f32.mrf.mxu0
        %v1086 = vadd.f32 0.0, %v1085
        %1087 = vdwg.mxu0
        %1088 = vmatprep.subr.mxu0 %v1016
        %1089 = vmatpush1.msra.mxu0 %v1015
        %1090 = vmatprep.subr.mxu0 %v1012
        %1091 = vmatpush1.msra.mxu0 %v1011
        %1092 = vmatprep.subr.mxu0 %v1008
        %1093 = vmatpush1.msra.mxu0 %v1007
        %1094 = vmatprep.subr.mxu0 %v1004
        %1095 = vmatpush1.msra.mxu0 %v1003
        %1096 = vmatprep.subr.mxu0 %v1000
        %1097 = vmatpush1.msra.mxu0 %v999
        %1098 = vmatprep.subr.mxu0 %v996
        %1099 = vmatpush1.msra.mxu0 %v995
        %1100 = vmatprep.subr.mxu0 %v992
        %1101 = vmatpush1.msra.mxu0 %v991
        %1102 = vmatprep.subr.mxu0 %v988
        %1103 = vmatpush1.msra.mxu0 %v987
        %1104 = vmatprep.subr.mxu0 %v984
        %1105 = vmatpush1.msra.mxu0 %v983
        %1106 = vmatprep.subr.mxu0 %v980
        %1107 = vmatpush1.msra.mxu0 %v979
        %1108 = vmatprep.subr.mxu0 %v976
        %1109 = vmatpush1.msra.mxu0 %v975
        %1110 = vmatprep.subr.mxu0 %v972
        %1111 = vmatpush1.msra.mxu0 %v971
        %1112 = vmatprep.subr.mxu0 %v968
        %1113 = vmatpush1.msra.mxu0 %v967
        %1114 = vmatprep.subr.mxu0 %v964
        %1115 = vmatpush1.msra.mxu0 %v963
        %1116 = vmatprep.subr.mxu0 %v960
        %1117 = vmatpush1.msra.mxu0 %v959
        %1118 = vmatprep.subr.mxu0 %v956
        %1119 = vmatpush1.msra.mxu0 %v955
        %1120 = vmatprep.subr.mxu0 0.0
        %1121 = vmatpush2.msra.mxu0 0.0
        %1122 = vmatprep.subr.mxu0 0.0
        %1123 = vmatpush2.msra.mxu0 0.0
        %1124 = vmatprep.subr.mxu0 0.0
        %1125 = vmatpush2.msra.mxu0 0.0
        %1126 = vmatprep.subr.mxu0 0.0
        %1127 = vmatpush2.msra.mxu0 0.0
        %1128 = vmatprep.subr.mxu0 0.0
        %1129 = vmatpush2.msra.mxu0 0.0
        %1130 = vmatprep.subr.mxu0 0.0
        %1131 = vmatpush2.msra.mxu0 0.0
        %1132 = vmatprep.subr.mxu0 0.0
        %1133 = vmatpush2.msra.mxu0 0.0
        %1134 = vmatprep.subr.mxu0 0.0
        %1135 = vmatpush2.msra.mxu0 0.0
        %1136 = vmatprep.subr.mxu0 0.0
        %1137 = vmatpush2.msra.mxu0 0.0
        %1138 = vmatprep.subr.mxu0 0.0
        %1139 = vmatpush2.msra.mxu0 0.0
        %1140 = vmatprep.subr.mxu0 0.0
        %1141 = vmatpush2.msra.mxu0 0.0
        %1142 = vmatprep.subr.mxu0 0.0
        %1143 = vmatpush2.msra.mxu0 0.0
        %1144 = vmatprep.subr.mxu0 0.0
        %1145 = vmatpush2.msra.mxu0 0.0
        %1146 = vmatprep.subr.mxu0 0.0
        %1147 = vmatpush2.msra.mxu0 0.0
        %1148 = vmatprep.subr.mxu0 0.0
        %1149 = vmatpush2.msra.mxu0 0.0
        %1150 = vmatprep.subr.mxu0 0.0
        %1151 = vmatpush2.msra.mxu0 0.0
        %1152 = vmatprep.mubr.f32.mxu0 0.0
        %1153 = vmatmul.mubr.f32.gmra.mxu0 %v952
        %v1154 = vpop.f32.mrf.mxu0
        %v1155 = vadd.f32 0.0, %v1154
        %v1156 = vpop.f32.mrf.mxu0
        %v1157 = vadd.f32 0.0, %v1156
        %1158 = vdwg.mxu0
        %1159 = vmatprep.subr.mxu0 %v949
        %1160 = vmatpush1.msra.mxu0 %v948
        %1161 = vmatprep.subr.mxu0 %v945
        %1162 = vmatpush1.msra.mxu0 %v944
        %1163 = vmatprep.subr.mxu0 %v941
        %1164 = vmatpush1.msra.mxu0 %v940
        %1165 = vmatprep.subr.mxu0 %v937
        %1166 = vmatpush1.msra.mxu0 %v936
        %1167 = vmatprep.subr.mxu0 %v933
        %1168 = vmatpush1.msra.mxu0 %v932
        %1169 = vmatprep.subr.mxu0 %v929
        %1170 = vmatpush1.msra.mxu0 %v928
        %1171 = vmatprep.subr.mxu0 %v925
        %1172 = vmatpush1.msra.mxu0 %v924
        %1173 = vmatprep.subr.mxu0 %v921
        %1174 = vmatpush1.msra.mxu0 %v920
        %1175 = vmatprep.subr.mxu0 %v917
        %1176 = vmatpush1.msra.mxu0 %v916
        %1177 = vmatprep.subr.mxu0 %v913
        %1178 = vmatpush1.msra.mxu0 %v912
        %1179 = vmatprep.subr.mxu0 %v909
        %1180 = vmatpush1.msra.mxu0 %v908
        %1181 = vmatprep.subr.mxu0 %v905
        %1182 = vmatpush1.msra.mxu0 %v904
        %1183 = vmatprep.subr.mxu0 %v901
        %1184 = vmatpush1.msra.mxu0 %v900
        %1185 = vmatprep.subr.mxu0 %v897
        %1186 = vmatpush1.msra.mxu0 %v896
        %1187 = vmatprep.subr.mxu0 %v893
        %1188 = vmatpush1.msra.mxu0 %v892
        %1189 = vmatprep.subr.mxu0 %v889
        %1190 = vmatpush1.msra.mxu0 %v888
        %1191 = vmatprep.subr.mxu0 0.0
        %1192 = vmatpush2.msra.mxu0 0.0
        %1193 = vmatprep.subr.mxu0 0.0
        %1194 = vmatpush2.msra.mxu0 0.0
        %1195 = vmatprep.subr.mxu0 0.0
        %1196 = vmatpush2.msra.mxu0 0.0
        %1197 = vmatprep.subr.mxu0 0.0
        %1198 = vmatpush2.msra.mxu0 0.0
        %1199 = vmatprep.subr.mxu0 0.0
        %1200 = vmatpush2.msra.mxu0 0.0
        %1201 = vmatprep.subr.mxu0 0.0
        %1202 = vmatpush2.msra.mxu0 0.0
        %1203 = vmatprep.subr.mxu0 0.0
        %1204 = vmatpush2.msra.mxu0 0.0
        %1205 = vmatprep.subr.mxu0 0.0
        %1206 = vmatpush2.msra.mxu0 0.0
        %1207 = vmatprep.subr.mxu0 0.0
        %1208 = vmatpush2.msra.mxu0 0.0
        %1209 = vmatprep.subr.mxu0 0.0
        %1210 = vmatpush2.msra.mxu0 0.0
        %1211 = vmatprep.subr.mxu0 0.0
        %1212 = vmatpush2.msra.mxu0 0.0
        %1213 = vmatprep.subr.mxu0 0.0
        %1214 = vmatpush2.msra.mxu0 0.0
        %1215 = vmatprep.subr.mxu0 0.0
        %1216 = vmatpush2.msra.mxu0 0.0
        %1217 = vmatprep.subr.mxu0 0.0
        %1218 = vmatpush2.msra.mxu0 0.0
        %1219 = vmatprep.subr.mxu0 0.0
        %1220 = vmatpush2.msra.mxu0 0.0
        %1221 = vmatprep.subr.mxu0 0.0
        %1222 = vmatpush2.msra.mxu0 0.0
        %1223 = vmatprep.mubr.f32.mxu0 0.0
        %1224 = vmatmul.mubr.f32.gmra.mxu0 %v885
        %v1225 = vpop.f32.mrf.mxu0
        %v1226 = vadd.f32 %v1084, %v1225
        %v1227 = vpop.f32.mrf.mxu0
        %v1228 = vadd.f32 %v1086, %v1227
        %1229 = vdwg.mxu0
        %1230 = vmatprep.subr.mxu0 %v951
        %1231 = vmatpush1.msra.mxu0 %v950
        %1232 = vmatprep.subr.mxu0 %v947
        %1233 = vmatpush1.msra.mxu0 %v946
        %1234 = vmatprep.subr.mxu0 %v943
        %1235 = vmatpush1.msra.mxu0 %v942
        %1236 = vmatprep.subr.mxu0 %v939
        %1237 = vmatpush1.msra.mxu0 %v938
        %1238 = vmatprep.subr.mxu0 %v935
        %1239 = vmatpush1.msra.mxu0 %v934
        %1240 = vmatprep.subr.mxu0 %v931
        %1241 = vmatpush1.msra.mxu0 %v930
        %1242 = vmatprep.subr.mxu0 %v927
        %1243 = vmatpush1.msra.mxu0 %v926
        %1244 = vmatprep.subr.mxu0 %v923
        %1245 = vmatpush1.msra.mxu0 %v922
        %1246 = vmatprep.subr.mxu0 %v919
        %1247 = vmatpush1.msra.mxu0 %v918
        %1248 = vmatprep.subr.mxu0 %v915
        %1249 = vmatpush1.msra.mxu0 %v914
        %1250 = vmatprep.subr.mxu0 %v911
        %1251 = vmatpush1.msra.mxu0 %v910
        %1252 = vmatprep.subr.mxu0 %v907
        %1253 = vmatpush1.msra.mxu0 %v906
        %1254 = vmatprep.subr.mxu0 %v903
        %1255 = vmatpush1.msra.mxu0 %v902
        %1256 = vmatprep.subr.mxu0 %v899
        %1257 = vmatpush1.msra.mxu0 %v898
        %1258 = vmatprep.subr.mxu0 %v895
        %1259 = vmatpush1.msra.mxu0 %v894
        %1260 = vmatprep.subr.mxu0 %v891
        %1261 = vmatpush1.msra.mxu0 %v890
        %1262 = vmatprep.subr.mxu0 0.0
        %1263 = vmatpush2.msra.mxu0 0.0
        %1264 = vmatprep.subr.mxu0 0.0
        %1265 = vmatpush2.msra.mxu0 0.0
        %1266 = vmatprep.subr.mxu0 0.0
        %1267 = vmatpush2.msra.mxu0 0.0
        %1268 = vmatprep.subr.mxu0 0.0
        %1269 = vmatpush2.msra.mxu0 0.0
        %1270 = vmatprep.subr.mxu0 0.0
        %1271 = vmatpush2.msra.mxu0 0.0
        %1272 = vmatprep.subr.mxu0 0.0
        %1273 = vmatpush2.msra.mxu0 0.0
        %1274 = vmatprep.subr.mxu0 0.0
        %1275 = vmatpush2.msra.mxu0 0.0
        %1276 = vmatprep.subr.mxu0 0.0
        %1277 = vmatpush2.msra.mxu0 0.0
        %1278 = vmatprep.subr.mxu0 0.0
        %1279 = vmatpush2.msra.mxu0 0.0
        %1280 = vmatprep.subr.mxu0 0.0
        %1281 = vmatpush2.msra.mxu0 0.0
        %1282 = vmatprep.subr.mxu0 0.0
        %1283 = vmatpush2.msra.mxu0 0.0
        %1284 = vmatprep.subr.mxu0 0.0
        %1285 = vmatpush2.msra.mxu0 0.0
        %1286 = vmatprep.subr.mxu0 0.0
        %1287 = vmatpush2.msra.mxu0 0.0
        %1288 = vmatprep.subr.mxu0 0.0
        %1289 = vmatpush2.msra.mxu0 0.0
        %1290 = vmatprep.subr.mxu0 0.0
        %1291 = vmatpush2.msra.mxu0 0.0
        %1292 = vmatprep.subr.mxu0 0.0
        %1293 = vmatpush2.msra.mxu0 0.0
        %1294 = vmatprep.mubr.f32.mxu0 0.0
        %1295 = vmatmul.mubr.f32.gmra.mxu0 %v885
        %v1296 = vpop.f32.mrf.mxu0
        %v1297 = vadd.f32 %v1155, %v1296
        %v1298 = vpop.f32.mrf.mxu0
        %v1299 = vadd.f32 %v1157, %v1298
        %1300 = vdwg.mxu0
        %v1301 = vld [vmem:[%s4] sm:$0xf]
        %v1303 = vlaneseq
        %v1304 = vshrl.u32 %v1303, 7
        %v1305 = vsub.s32 0, %v1304
        %v1306 = vrot.slane %v1301, %v1305
        %v1307 = vlaneseq
        %v1308 = vshrl.u32 %v1307, 7
        %v1309 = vsub.s32 1, %v1308
        %v1310 = vrot.slane %v1301, %v1309
        %v1311 = vlaneseq
        %v1312 = vshrl.u32 %v1311, 7
        %v1313 = vsub.s32 2, %v1312
        %v1314 = vrot.slane %v1301, %v1313
        %v1315 = vlaneseq
        %v1316 = vshrl.u32 %v1315, 7
        %v1317 = vsub.s32 3, %v1316
        %v1318 = vrot.slane %v1301, %v1317
        %v1323 = vadd.f32 %v1226, %v1306
        %v1324 = vadd.f32 %v1228, %v1310
        %v1325 = vadd.f32 %v1297, %v1314
        %v1326 = vadd.f32 %v1299, %v1318
        %v1327 = vld [vmem:[#allocation5] sm:$0x3]
        %v1328 = vxor.u32 %v1323, 2147483648
        %v1329 = vmul.f32 %v1328, 1.442695
        %v1330 = vpow.pop %v1329
        %v1331 = vadd.f32 %v1330, 1.0
        %v1332 = vrcp.pop %v1331
        %v1333 = vmul.f32 1.0, %v1332
        %v1334 = vxor.u32 %v1324, 2147483648
        %v1335 = vmul.f32 %v1334, 1.442695
        %v1336 = vpow.pop %v1335
        %v1337 = vadd.f32 %v1336, 1.0
        %v1338 = vrcp.pop %v1337
        %v1339 = vmul.f32 1.0, %v1338
        %v1340 = vtanh.pop %v1325
        %v1341 = vxor.u32 %v1326, 2147483648
        %v1342 = vmul.f32 %v1341, 1.442695
        %v1343 = vpow.pop %v1342
        %v1344 = vadd.f32 %v1343, 1.0
        %v1345 = vrcp.pop %v1344
        %v1346 = vmul.f32 1.0, %v1345
        %v1347 = vmul.f32 %v1339, %v1327
        %v1348 = vmul.f32 %v1333, %v1340
        %v1349 = vadd.f32 %v1347, %v1348
        %v1350 = vtanh.pop %v1349
        %v1351 = vmul.f32 %v1346, %v1350
        %1352 = vst [vmem:[#allocation4] sm:$0x3] %v1351
        %1353 = vst [vmem:[#allocation5] sm:$0x3] %v1349
        %p1354 = scmp.eq.s32.totalorder %s34, 7
        // Predicated region
        $region101: #{forward.9} parent=95 // pred_check
          %p1355 = pneg %p1354
        $region102: #{forward.9} parent=95 // pred_check_branch
          %1357 = sbr.rel (%p1355) target = $region104
        $region103: #{forward.9} parent=95 // pred_region
          %v1358 = vld [vmem:[%s6] sm:$0xff]
          %v1359 = vld [vmem:[%s6 + $0x8] sm:$0xff]
          %v1360 = vld [vmem:[%s6 + $0x10] sm:$0xff]
          %v1361 = vld [vmem:[%s6 + $0x18] sm:$0xff]
          %v1362 = vld [vmem:[%s6 + $0x20] sm:$0xff]
          %v1363 = vld [vmem:[%s6 + $0x28] sm:$0xff]
          %v1364 = vld [vmem:[%s6 + $0x30] sm:$0xff]
          %v1365 = vld [vmem:[%s6 + $0x38] sm:$0xff]
          %v1366 = vld [vmem:[%s6 + $0x40] sm:$0xff]
          %v1367 = vld [vmem:[%s6 + $0x48] sm:$0xff]
          %v1368 = vld [vmem:[%s6 + $0x50] sm:$0xff]
          %v1369 = vld [vmem:[%s6 + $0x58] sm:$0xff]
          %v1370 = vld [vmem:[%s6 + $0x60] sm:$0xff]
          %v1371 = vld [vmem:[%s6 + $0x68] sm:$0xff]
          %v1372 = vld [vmem:[%s6 + $0x70] sm:$0xff]
          %v1373 = vld [vmem:[%s6 + $0x78] sm:$0xff]
          %v1374 = vld [vmem:[%s6 + $0x80] sm:$0xff]
          %v1375 = vld [vmem:[%s6 + $0x88] sm:$0xff]
          %v1376 = vld [vmem:[%s6 + $0x90] sm:$0xff]
          %v1377 = vld [vmem:[%s6 + $0x98] sm:$0xff]
          %v1378 = vld [vmem:[%s6 + $0xa0] sm:$0xff]
          %v1379 = vld [vmem:[%s6 + $0xa8] sm:$0xff]
          %v1380 = vld [vmem:[%s6 + $0xb0] sm:$0xff]
          %v1381 = vld [vmem:[%s6 + $0xb8] sm:$0xff]
          %v1382 = vld [vmem:[%s6 + $0xc0] sm:$0xff]
          %v1383 = vld [vmem:[%s6 + $0xc8] sm:$0xff]
          %v1384 = vld [vmem:[%s6 + $0xd0] sm:$0xff]
          %v1385 = vld [vmem:[%s6 + $0xd8] sm:$0xff]
          %v1386 = vld [vmem:[%s6 + $0xe0] sm:$0xff]
          %v1387 = vld [vmem:[%s6 + $0xe8] sm:$0xff]
          %v1388 = vld [vmem:[%s6 + $0xf0] sm:$0xff]
          %v1389 = vld [vmem:[%s6 + $0xf8] sm:$0xff]
          %v1390 = vld [vmem:[%s7] sm:$0x3]
          %v1392 = vlaneseq
          %v1393 = vshrl.u32 %v1392, 7
          %v1394 = vsub.s32 0, %v1393
          %v1395 = vrot.slane %v1390, %v1394
          %v1396 = vlaneseq
          %v1397 = vshrl.u32 %v1396, 7
          %v1398 = vsub.s32 1, %v1397
          %v1399 = vrot.slane %v1390, %v1398
          %1402 = vmatprep.subr.mxu0 %v1389
          %1403 = vmatpush1.msra.mxu0 %v1388
          %1404 = vmatprep.subr.mxu0 %v1387
          %1405 = vmatpush1.msra.mxu0 %v1386
          %1406 = vmatprep.subr.mxu0 %v1385
          %1407 = vmatpush1.msra.mxu0 %v1384
          %1408 = vmatprep.subr.mxu0 %v1383
          %1409 = vmatpush1.msra.mxu0 %v1382
          %1410 = vmatprep.subr.mxu0 %v1381
          %1411 = vmatpush1.msra.mxu0 %v1380
          %1412 = vmatprep.subr.mxu0 %v1379
          %1413 = vmatpush1.msra.mxu0 %v1378
          %1414 = vmatprep.subr.mxu0 %v1377
          %1415 = vmatpush1.msra.mxu0 %v1376
          %1416 = vmatprep.subr.mxu0 %v1375
          %1417 = vmatpush1.msra.mxu0 %v1374
          %1418 = vmatprep.subr.mxu0 %v1373
          %1419 = vmatpush1.msra.mxu0 %v1372
          %1420 = vmatprep.subr.mxu0 %v1371
          %1421 = vmatpush1.msra.mxu0 %v1370
          %1422 = vmatprep.subr.mxu0 %v1369
          %1423 = vmatpush1.msra.mxu0 %v1368
          %1424 = vmatprep.subr.mxu0 %v1367
          %1425 = vmatpush1.msra.mxu0 %v1366
          %1426 = vmatprep.subr.mxu0 %v1365
          %1427 = vmatpush1.msra.mxu0 %v1364
          %1428 = vmatprep.subr.mxu0 %v1363
          %1429 = vmatpush1.msra.mxu0 %v1362
          %1430 = vmatprep.subr.mxu0 %v1361
          %1431 = vmatpush1.msra.mxu0 %v1360
          %1432 = vmatprep.subr.mxu0 %v1359
          %1433 = vmatpush1.msra.mxu0 %v1358
          %1434 = vmatprep.subr.mxu0 0.0
          %1435 = vmatpush2.msra.mxu0 0.0
          %1436 = vmatprep.subr.mxu0 0.0
          %1437 = vmatpush2.msra.mxu0 0.0
          %1438 = vmatprep.subr.mxu0 0.0
          %1439 = vmatpush2.msra.mxu0 0.0
          %1440 = vmatprep.subr.mxu0 0.0
          %1441 = vmatpush2.msra.mxu0 0.0
          %1442 = vmatprep.subr.mxu0 0.0
          %1443 = vmatpush2.msra.mxu0 0.0
          %1444 = vmatprep.subr.mxu0 0.0
          %1445 = vmatpush2.msra.mxu0 0.0
          %1446 = vmatprep.subr.mxu0 0.0
          %1447 = vmatpush2.msra.mxu0 0.0
          %1448 = vmatprep.subr.mxu0 0.0
          %1449 = vmatpush2.msra.mxu0 0.0
          %1450 = vmatprep.subr.mxu0 0.0
          %1451 = vmatpush2.msra.mxu0 0.0
          %1452 = vmatprep.subr.mxu0 0.0
          %1453 = vmatpush2.msra.mxu0 0.0
          %1454 = vmatprep.subr.mxu0 0.0
          %1455 = vmatpush2.msra.mxu0 0.0
          %1456 = vmatprep.subr.mxu0 0.0
          %1457 = vmatpush2.msra.mxu0 0.0
          %1458 = vmatprep.subr.mxu0 0.0
          %1459 = vmatpush2.msra.mxu0 0.0
          %1460 = vmatprep.subr.mxu0 0.0
          %1461 = vmatpush2.msra.mxu0 0.0
          %1462 = vmatprep.subr.mxu0 0.0
          %1463 = vmatpush2.msra.mxu0 0.0
          %1464 = vmatprep.subr.mxu0 0.0
          %1465 = vmatpush2.msra.mxu0 0.0
          %1466 = vmatprep.mubr.f32.mxu0 0.0
          %1467 = vmatmul.mubr.f32.gmra.mxu0 %v1351
          %v1468 = vpop.f32.mrf.mxu0
          %v1469 = vadd.f32 %v1395, %v1468
          %v1470 = vpop.f32.mrf.mxu0
          %v1471 = vadd.f32 %v1399, %v1470
          %1472 = vdwg.mxu0
          %v1473 = vld [vmem:[%s8] sm:$0xff]
          %v1474 = vld [vmem:[%s8 + $0x8] sm:$0xff]
          %v1475 = vld [vmem:[%s8 + $0x10] sm:$0xff]
          %v1476 = vld [vmem:[%s8 + $0x18] sm:$0xff]
          %v1477 = vld [vmem:[%s8 + $0x20] sm:$0xff]
          %v1478 = vld [vmem:[%s8 + $0x28] sm:$0xff]
          %v1479 = vld [vmem:[%s8 + $0x30] sm:$0xff]
          %v1480 = vld [vmem:[%s8 + $0x38] sm:$0xff]
          %v1481 = vld [vmem:[%s8 + $0x40] sm:$0xff]
          %v1482 = vld [vmem:[%s8 + $0x48] sm:$0xff]
          %v1483 = vld [vmem:[%s8 + $0x50] sm:$0xff]
          %v1484 = vld [vmem:[%s8 + $0x58] sm:$0xff]
          %v1485 = vld [vmem:[%s8 + $0x60] sm:$0xff]
          %v1486 = vld [vmem:[%s8 + $0x68] sm:$0xff]
          %v1487 = vld [vmem:[%s8 + $0x70] sm:$0xff]
          %v1488 = vld [vmem:[%s8 + $0x78] sm:$0xff]
          %v1489 = vld [vmem:[%s9] sm:$0x1]
          %v1491 = vlaneseq
          %v1492 = vshrl.u32 %v1491, 7
          %v1493 = vsub.s32 0, %v1492
          %v1494 = vrot.slane %v1489, %v1493
          %1496 = vmatprep.subr.mxu0 0.0
          %1497 = vmatpush1.msra.mxu0 %v1488
          %1498 = vmatprep.subr.mxu0 0.0
          %1499 = vmatpush1.msra.mxu0 %v1487
          %1500 = vmatprep.subr.mxu0 0.0
          %1501 = vmatpush1.msra.mxu0 %v1486
          %1502 = vmatprep.subr.mxu0 0.0
          %1503 = vmatpush1.msra.mxu0 %v1485
          %1504 = vmatprep.subr.mxu0 0.0
          %1505 = vmatpush1.msra.mxu0 %v1484
          %1506 = vmatprep.subr.mxu0 0.0
          %1507 = vmatpush1.msra.mxu0 %v1483
          %1508 = vmatprep.subr.mxu0 0.0
          %1509 = vmatpush1.msra.mxu0 %v1482
          %1510 = vmatprep.subr.mxu0 0.0
          %1511 = vmatpush1.msra.mxu0 %v1481
          %1512 = vmatprep.subr.mxu0 0.0
          %1513 = vmatpush1.msra.mxu0 %v1480
          %1514 = vmatprep.subr.mxu0 0.0
          %1515 = vmatpush1.msra.mxu0 %v1479
          %1516 = vmatprep.subr.mxu0 0.0
          %1517 = vmatpush1.msra.mxu0 %v1478
          %1518 = vmatprep.subr.mxu0 0.0
          %1519 = vmatpush1.msra.mxu0 %v1477
          %1520 = vmatprep.subr.mxu0 0.0
          %1521 = vmatpush1.msra.mxu0 %v1476
          %1522 = vmatprep.subr.mxu0 0.0
          %1523 = vmatpush1.msra.mxu0 %v1475
          %1524 = vmatprep.subr.mxu0 0.0
          %1525 = vmatpush1.msra.mxu0 %v1474
          %1526 = vmatprep.subr.mxu0 0.0
          %1527 = vmatpush1.msra.mxu0 %v1473
          %1528 = vmatprep.subr.mxu0 0.0
          %1529 = vmatpush2.msra.mxu0 0.0
          %1530 = vmatprep.subr.mxu0 0.0
          %1531 = vmatpush2.msra.mxu0 0.0
          %1532 = vmatprep.subr.mxu0 0.0
          %1533 = vmatpush2.msra.mxu0 0.0
          %1534 = vmatprep.subr.mxu0 0.0
          %1535 = vmatpush2.msra.mxu0 0.0
          %1536 = vmatprep.subr.mxu0 0.0
          %1537 = vmatpush2.msra.mxu0 0.0
          %1538 = vmatprep.subr.mxu0 0.0
          %1539 = vmatpush2.msra.mxu0 0.0
          %1540 = vmatprep.subr.mxu0 0.0
          %1541 = vmatpush2.msra.mxu0 0.0
          %1542 = vmatprep.subr.mxu0 0.0
          %1543 = vmatpush2.msra.mxu0 0.0
          %1544 = vmatprep.subr.mxu0 0.0
          %1545 = vmatpush2.msra.mxu0 0.0
          %1546 = vmatprep.subr.mxu0 0.0
          %1547 = vmatpush2.msra.mxu0 0.0
          %1548 = vmatprep.subr.mxu0 0.0
          %1549 = vmatpush2.msra.mxu0 0.0
          %1550 = vmatprep.subr.mxu0 0.0
          %1551 = vmatpush2.msra.mxu0 0.0
          %1552 = vmatprep.subr.mxu0 0.0
          %1553 = vmatpush2.msra.mxu0 0.0
          %1554 = vmatprep.subr.mxu0 0.0
          %1555 = vmatpush2.msra.mxu0 0.0
          %1556 = vmatprep.subr.mxu0 0.0
          %1557 = vmatpush2.msra.mxu0 0.0
          %1558 = vmatprep.subr.mxu0 0.0
          %1559 = vmatpush2.msra.mxu0 0.0
          %1560 = vmatprep.mubr.f32.mxu0 0.0
          %1561 = vmatmul.mubr.f32.gmra.mxu0 %v1351
          %v1562 = vpop.f32.mrf.mxu0
          %v1563 = vadd.f32 %v1494, %v1562
          %v1564 = vpop.f32.mrf.mxu0
          %1565 = vdwg.mxu0
          %v1566 = vld [vmem:[%s5] sm:$0xf]
          %v1569 = vcombine.low %v1469, %v1471
          %v1571 = vunpack.c.l.s4 1983009808
          %v1572 = vunpack.c.0.s8 %v1571
          %v1573 = vlaneseq
          %v1574 = vshrl.u32 %v1573, 7
          %v1575 = vsub.s32 %v1572, %v1574
          %v1576 = vrot.slane %v1569, %v1575
          %v1578 = vmul.f32 %v1566, %v1576
          %v1579 = vld [vmem:[%s10] sm:$0xff]
          %v1580 = vld [vmem:[%s10 + $0x8] sm:$0xff]
          %v1581 = vld [vmem:[%s10 + $0x10] sm:$0xff]
          %v1582 = vld [vmem:[%s10 + $0x18] sm:$0xff]
          %v1583 = vld [vmem:[%s10 + $0x20] sm:$0xff]
          %v1584 = vld [vmem:[%s10 + $0x28] sm:$0xff]
          %v1585 = vld [vmem:[%s10 + $0x30] sm:$0xff]
          %v1586 = vld [vmem:[%s10 + $0x38] sm:$0xff]
          %v1587 = vld [vmem:[%s10 + $0x40] sm:$0xff]
          %v1588 = vld [vmem:[%s10 + $0x48] sm:$0xff]
          %v1589 = vld [vmem:[%s10 + $0x50] sm:$0xff]
          %v1590 = vld [vmem:[%s10 + $0x58] sm:$0xff]
          %v1591 = vld [vmem:[%s10 + $0x60] sm:$0xff]
          %v1592 = vld [vmem:[%s10 + $0x68] sm:$0xff]
          %v1593 = vld [vmem:[%s10 + $0x70] sm:$0xff]
          %v1594 = vld [vmem:[%s10 + $0x78] sm:$0xff]
          %v1595 = vld [vmem:[%s10 + $0x80] sm:$0xff]
          %v1596 = vld [vmem:[%s10 + $0x88] sm:$0xff]
          %v1597 = vld [vmem:[%s10 + $0x90] sm:$0xff]
          %v1598 = vld [vmem:[%s10 + $0x98] sm:$0xff]
          %v1599 = vld [vmem:[%s10 + $0xa0] sm:$0xff]
          %v1600 = vld [vmem:[%s10 + $0xa8] sm:$0xff]
          %v1601 = vld [vmem:[%s10 + $0xb0] sm:$0xff]
          %v1602 = vld [vmem:[%s10 + $0xb8] sm:$0xff]
          %v1603 = vld [vmem:[%s10 + $0xc0] sm:$0xff]
          %v1604 = vld [vmem:[%s10 + $0xc8] sm:$0xff]
          %v1605 = vld [vmem:[%s10 + $0xd0] sm:$0xff]
          %v1606 = vld [vmem:[%s10 + $0xd8] sm:$0xff]
          %v1607 = vld [vmem:[%s10 + $0xe0] sm:$0xff]
          %v1608 = vld [vmem:[%s10 + $0xe8] sm:$0xff]
          %v1609 = vld [vmem:[%s10 + $0xf0] sm:$0xff]
          %v1610 = vld [vmem:[%s10 + $0xf8] sm:$0xff]
          %v1611 = vld [vmem:[%s11] sm:$0x1]
          %v1613 = vlaneseq
          %v1614 = vshrl.u32 %v1613, 7
          %v1615 = vsub.s32 0, %v1614
          %v1616 = vrot.slane %v1611, %v1615
          %v1620 = vunpack.c.l.s4 1983009808
          %v1621 = vunpack.c.0.s8 %v1620
          %v1622 = vlaneseq
          %v1623 = vshrl.u32 %v1622, 7
          %v1624 = vsub.s32 %v1621, %v1623
          %v1625 = vrot.slane %v1578, %v1624
          %v1626 = vcombine.high %v1625, %v1625
          %1629 = vmatprep.subr.mxu0 0.0
          %1630 = vmatpush1.msra.mxu0 %v1594
          %1631 = vmatprep.subr.mxu0 0.0
          %1632 = vmatpush1.msra.mxu0 %v1593
          %1633 = vmatprep.subr.mxu0 0.0
          %1634 = vmatpush1.msra.mxu0 %v1592
          %1635 = vmatprep.subr.mxu0 0.0
          %1636 = vmatpush1.msra.mxu0 %v1591
          %1637 = vmatprep.subr.mxu0 0.0
          %1638 = vmatpush1.msra.mxu0 %v1590
          %1639 = vmatprep.subr.mxu0 0.0
          %1640 = vmatpush1.msra.mxu0 %v1589
          %1641 = vmatprep.subr.mxu0 0.0
          %1642 = vmatpush1.msra.mxu0 %v1588
          %1643 = vmatprep.subr.mxu0 0.0
          %1644 = vmatpush1.msra.mxu0 %v1587
          %1645 = vmatprep.subr.mxu0 0.0
          %1646 = vmatpush1.msra.mxu0 %v1586
          %1647 = vmatprep.subr.mxu0 0.0
          %1648 = vmatpush1.msra.mxu0 %v1585
          %1649 = vmatprep.subr.mxu0 0.0
          %1650 = vmatpush1.msra.mxu0 %v1584
          %1651 = vmatprep.subr.mxu0 0.0
          %1652 = vmatpush1.msra.mxu0 %v1583
          %1653 = vmatprep.subr.mxu0 0.0
          %1654 = vmatpush1.msra.mxu0 %v1582
          %1655 = vmatprep.subr.mxu0 0.0
          %1656 = vmatpush1.msra.mxu0 %v1581
          %1657 = vmatprep.subr.mxu0 0.0
          %1658 = vmatpush1.msra.mxu0 %v1580
          %1659 = vmatprep.subr.mxu0 0.0
          %1660 = vmatpush1.msra.mxu0 %v1579
          %1661 = vmatprep.subr.mxu0 0.0
          %1662 = vmatpush2.msra.mxu0 %v1610
          %1663 = vmatprep.subr.mxu0 0.0
          %1664 = vmatpush2.msra.mxu0 %v1609
          %1665 = vmatprep.subr.mxu0 0.0
          %1666 = vmatpush2.msra.mxu0 %v1608
          %1667 = vmatprep.subr.mxu0 0.0
          %1668 = vmatpush2.msra.mxu0 %v1607
          %1669 = vmatprep.subr.mxu0 0.0
          %1670 = vmatpush2.msra.mxu0 %v1606
          %1671 = vmatprep.subr.mxu0 0.0
          %1672 = vmatpush2.msra.mxu0 %v1605
          %1673 = vmatprep.subr.mxu0 0.0
          %1674 = vmatpush2.msra.mxu0 %v1604
          %1675 = vmatprep.subr.mxu0 0.0
          %1676 = vmatpush2.msra.mxu0 %v1603
          %1677 = vmatprep.subr.mxu0 0.0
          %1678 = vmatpush2.msra.mxu0 %v1602
          %1679 = vmatprep.subr.mxu0 0.0
          %1680 = vmatpush2.msra.mxu0 %v1601
          %1681 = vmatprep.subr.mxu0 0.0
          %1682 = vmatpush2.msra.mxu0 %v1600
          %1683 = vmatprep.subr.mxu0 0.0
          %1684 = vmatpush2.msra.mxu0 %v1599
          %1685 = vmatprep.subr.mxu0 0.0
          %1686 = vmatpush2.msra.mxu0 %v1598
          %1687 = vmatprep.subr.mxu0 0.0
          %1688 = vmatpush2.msra.mxu0 %v1597
          %1689 = vmatprep.subr.mxu0 0.0
          %1690 = vmatpush2.msra.mxu0 %v1596
          %1691 = vmatprep.subr.mxu0 0.0
          %1692 = vmatpush2.msra.mxu0 %v1595
          %1693 = vmatprep.mubr.f32.mxu0 %v1626
          %1694 = vmatmul.mubr.f32.gmra.mxu0 %v1625
          %v1695 = vpop.f32.mrf.mxu0
          %v1696 = vadd.f32 %v1616, %v1695
          %v1697 = vpop.f32.mrf.mxu0
          %1698 = vdwg.mxu0
          %v1699 = vmax.f32 %v1696, 0.0
          %v1700 = vld [vmem:[%s12] sm:$0xff]
          %v1701 = vld [vmem:[%s12 + $0x8] sm:$0xff]
          %v1702 = vld [vmem:[%s12 + $0x10] sm:$0xff]
          %v1703 = vld [vmem:[%s12 + $0x18] sm:$0xff]
          %v1704 = vld [vmem:[%s12 + $0x20] sm:$0xff]
          %v1705 = vld [vmem:[%s12 + $0x28] sm:$0xff]
          %v1706 = vld [vmem:[%s12 + $0x30] sm:$0xff]
          %v1707 = vld [vmem:[%s12 + $0x38] sm:$0xff]
          %v1708 = vld [vmem:[%s12 + $0x40] sm:$0xff]
          %v1709 = vld [vmem:[%s12 + $0x48] sm:$0xff]
          %v1710 = vld [vmem:[%s12 + $0x50] sm:$0xff]
          %v1711 = vld [vmem:[%s12 + $0x58] sm:$0xff]
          %v1712 = vld [vmem:[%s12 + $0x60] sm:$0xff]
          %v1713 = vld [vmem:[%s12 + $0x68] sm:$0xff]
          %v1714 = vld [vmem:[%s12 + $0x70] sm:$0xff]
          %v1715 = vld [vmem:[%s12 + $0x78] sm:$0xff]
          %v1716 = vld [vmem:[%s13] sm:$0x1]
          %v1718 = vlaneseq
          %v1719 = vshrl.u32 %v1718, 7
          %v1720 = vsub.s32 0, %v1719
          %v1721 = vrot.slane %v1716, %v1720
          %1723 = vmatprep.subr.mxu0 0.0
          %1724 = vmatpush1.msra.mxu0 %v1715
          %1725 = vmatprep.subr.mxu0 0.0
          %1726 = vmatpush1.msra.mxu0 %v1714
          %1727 = vmatprep.subr.mxu0 0.0
          %1728 = vmatpush1.msra.mxu0 %v1713
          %1729 = vmatprep.subr.mxu0 0.0
          %1730 = vmatpush1.msra.mxu0 %v1712
          %1731 = vmatprep.subr.mxu0 0.0
          %1732 = vmatpush1.msra.mxu0 %v1711
          %1733 = vmatprep.subr.mxu0 0.0
          %1734 = vmatpush1.msra.mxu0 %v1710
          %1735 = vmatprep.subr.mxu0 0.0
          %1736 = vmatpush1.msra.mxu0 %v1709
          %1737 = vmatprep.subr.mxu0 0.0
          %1738 = vmatpush1.msra.mxu0 %v1708
          %1739 = vmatprep.subr.mxu0 0.0
          %1740 = vmatpush1.msra.mxu0 %v1707
          %1741 = vmatprep.subr.mxu0 0.0
          %1742 = vmatpush1.msra.mxu0 %v1706
          %1743 = vmatprep.subr.mxu0 0.0
          %1744 = vmatpush1.msra.mxu0 %v1705
          %1745 = vmatprep.subr.mxu0 0.0
          %1746 = vmatpush1.msra.mxu0 %v1704
          %1747 = vmatprep.subr.mxu0 0.0
          %1748 = vmatpush1.msra.mxu0 %v1703
          %1749 = vmatprep.subr.mxu0 0.0
          %1750 = vmatpush1.msra.mxu0 %v1702
          %1751 = vmatprep.subr.mxu0 0.0
          %1752 = vmatpush1.msra.mxu0 %v1701
          %1753 = vmatprep.subr.mxu0 0.0
          %1754 = vmatpush1.msra.mxu0 %v1700
          %1755 = vmatprep.subr.mxu0 0.0
          %1756 = vmatpush2.msra.mxu0 0.0
          %1757 = vmatprep.subr.mxu0 0.0
          %1758 = vmatpush2.msra.mxu0 0.0
          %1759 = vmatprep.subr.mxu0 0.0
          %1760 = vmatpush2.msra.mxu0 0.0
          %1761 = vmatprep.subr.mxu0 0.0
          %1762 = vmatpush2.msra.mxu0 0.0
          %1763 = vmatprep.subr.mxu0 0.0
          %1764 = vmatpush2.msra.mxu0 0.0
          %1765 = vmatprep.subr.mxu0 0.0
          %1766 = vmatpush2.msra.mxu0 0.0
          %1767 = vmatprep.subr.mxu0 0.0
          %1768 = vmatpush2.msra.mxu0 0.0
          %1769 = vmatprep.subr.mxu0 0.0
          %1770 = vmatpush2.msra.mxu0 0.0
          %1771 = vmatprep.subr.mxu0 0.0
          %1772 = vmatpush2.msra.mxu0 0.0
          %1773 = vmatprep.subr.mxu0 0.0
          %1774 = vmatpush2.msra.mxu0 0.0
          %1775 = vmatprep.subr.mxu0 0.0
          %1776 = vmatpush2.msra.mxu0 0.0
          %1777 = vmatprep.subr.mxu0 0.0
          %1778 = vmatpush2.msra.mxu0 0.0
          %1779 = vmatprep.subr.mxu0 0.0
          %1780 = vmatpush2.msra.mxu0 0.0
          %1781 = vmatprep.subr.mxu0 0.0
          %1782 = vmatpush2.msra.mxu0 0.0
          %1783 = vmatprep.subr.mxu0 0.0
          %1784 = vmatpush2.msra.mxu0 0.0
          %1785 = vmatprep.subr.mxu0 0.0
          %1786 = vmatpush2.msra.mxu0 0.0
          %1787 = vmatprep.mubr.f32.mxu0 0.0
          %1788 = vmatmul.mubr.f32.gmra.mxu0 %v1699
          %v1789 = vpop.f32.mrf.mxu0
          %v1790 = vadd.f32 %v1721, %v1789
          %v1791 = vpop.f32.mrf.mxu0
          %1792 = vdwg.mxu0
          %vm1793 = vcmask 74752
          %v1794 = vsel %vm1793, %v1563, -inf
          %1795 = vmax.xlane.f32.xlu0 %v1794
          %v1796 = vpop.xlane.xlu0 %1795
          %v1797 = vsub.f32 %v1563, %v1796
          %v1798 = vmul.f32 %v1797, 1.442695
          %v1799 = vpow.pop %v1798
          %v1800 = vsel %vm1793, %v1799, 0.0
          %1801 = vadd.xlane.f32.xlu0 %v1800
          %v1802 = vpop.xlane.xlu0 %1801
          %v1803 = vrcp.pop %v1802
          %v1804 = vmul.f32 %v1799, %v1803
          %v1805 = vld [vmem:[%s14] sm:$0xff]
          %v1806 = vld [vmem:[%s14 + $0x8] sm:$0x3]
          %vm1807 = vcmask 80896
          %v1809 = vsel %vm1807, %v1804, 0
          %vm1811 = vcmask 1041408
          %v1813 = vsel %vm1811, %v1806, 0
          %1815 = vmatprep.subr.mxu0 0.0
          %1816 = vmatpush1.msra.mxu0 0.0
          %1817 = vmatprep.subr.mxu0 0.0
          %1818 = vmatpush1.msra.mxu0 0.0
          %1819 = vmatprep.subr.mxu0 0.0
          %1820 = vmatpush1.msra.mxu0 0.0
          %1821 = vmatprep.subr.mxu0 0.0
          %1822 = vmatpush1.msra.mxu0 0.0
          %1823 = vmatprep.subr.mxu0 0.0
          %1824 = vmatpush1.msra.mxu0 0.0
          %1825 = vmatprep.subr.mxu0 0.0
          %1826 = vmatpush1.msra.mxu0 0.0
          %1827 = vmatprep.subr.mxu0 0.0
          %1828 = vmatpush1.msra.mxu0 0.0
          %1829 = vmatprep.subr.mxu0 0.0
          %1830 = vmatpush1.msra.mxu0 0.0
          %1831 = vmatprep.subr.mxu0 0.0
          %1832 = vmatpush1.msra.mxu0 0.0
          %1833 = vmatprep.subr.mxu0 0.0
          %1834 = vmatpush1.msra.mxu0 0.0
          %1835 = vmatprep.subr.mxu0 0.0
          %1836 = vmatpush1.msra.mxu0 0.0
          %1837 = vmatprep.subr.mxu0 0.0
          %1838 = vmatpush1.msra.mxu0 0.0
          %1839 = vmatprep.subr.mxu0 0.0
          %1840 = vmatpush1.msra.mxu0 0.0
          %1841 = vmatprep.subr.mxu0 0.0
          %1842 = vmatpush1.msra.mxu0 0.0
          %1843 = vmatprep.subr.mxu0 0.0
          %1844 = vmatpush1.msra.mxu0 %v1813
          %1845 = vmatprep.subr.mxu0 0.0
          %1846 = vmatpush1.msra.mxu0 %v1805
          %1847 = vmatprep.subr.mxu0 0.0
          %1848 = vmatpush2.msra.mxu0 0.0
          %1849 = vmatprep.subr.mxu0 0.0
          %1850 = vmatpush2.msra.mxu0 0.0
          %1851 = vmatprep.subr.mxu0 0.0
          %1852 = vmatpush2.msra.mxu0 0.0
          %1853 = vmatprep.subr.mxu0 0.0
          %1854 = vmatpush2.msra.mxu0 0.0
          %1855 = vmatprep.subr.mxu0 0.0
          %1856 = vmatpush2.msra.mxu0 0.0
          %1857 = vmatprep.subr.mxu0 0.0
          %1858 = vmatpush2.msra.mxu0 0.0
          %1859 = vmatprep.subr.mxu0 0.0
          %1860 = vmatpush2.msra.mxu0 0.0
          %1861 = vmatprep.subr.mxu0 0.0
          %1862 = vmatpush2.msra.mxu0 0.0
          %1863 = vmatprep.subr.mxu0 0.0
          %1864 = vmatpush2.msra.mxu0 0.0
          %1865 = vmatprep.subr.mxu0 0.0
          %1866 = vmatpush2.msra.mxu0 0.0
          %1867 = vmatprep.subr.mxu0 0.0
          %1868 = vmatpush2.msra.mxu0 0.0
          %1869 = vmatprep.subr.mxu0 0.0
          %1870 = vmatpush2.msra.mxu0 0.0
          %1871 = vmatprep.subr.mxu0 0.0
          %1872 = vmatpush2.msra.mxu0 0.0
          %1873 = vmatprep.subr.mxu0 0.0
          %1874 = vmatpush2.msra.mxu0 0.0
          %1875 = vmatprep.subr.mxu0 0.0
          %1876 = vmatpush2.msra.mxu0 0.0
          %1877 = vmatprep.subr.mxu0 0.0
          %1878 = vmatpush2.msra.mxu0 0.0
          %1879 = vmatprep.mubr.f32.mxu0 0.0
          %1880 = vmatmul.mubr.f32.gmra.mxu0 %v1809
          %v1881 = vpop.f32.mrf.mxu0
          %v1882 = vadd.f32 0.0, %v1881
          %v1883 = vpop.f32.mrf.mxu0
          %1884 = vdwg.mxu0
          %v1885 = vmul.f32 %v1790, %v1882
          %v1886 = vld [vmem:[%s15] sm:$0xff]
          %v1887 = vld [vmem:[%s15 + $0x8] sm:$0xff]
          %v1888 = vld [vmem:[%s15 + $0x10] sm:$0xff]
          %v1889 = vld [vmem:[%s15 + $0x18] sm:$0xff]
          %v1890 = vld [vmem:[%s15 + $0x20] sm:$0xff]
          %v1891 = vld [vmem:[%s15 + $0x28] sm:$0xff]
          %v1892 = vld [vmem:[%s15 + $0x30] sm:$0x3]
          %v1893 = vld [vmem:[%s16] sm:$0x1]
          %v1895 = vlaneseq
          %v1896 = vshrl.u32 %v1895, 7
          %v1897 = vsub.s32 0, %v1896
          %v1898 = vrot.slane %v1893, %v1897
          %vm1900 = vcmask 408576
          %v1902 = vsel %vm1900, %v1885, 0
          %v1905 = vsel %vm1811, %v1892, 0
          %1907 = vmatprep.subr.mxu0 0.0
          %1908 = vmatpush1.msra.mxu0 0.0
          %1909 = vmatprep.subr.mxu0 0.0
          %1910 = vmatpush1.msra.mxu0 0.0
          %1911 = vmatprep.subr.mxu0 0.0
          %1912 = vmatpush1.msra.mxu0 0.0
          %1913 = vmatprep.subr.mxu0 0.0
          %1914 = vmatpush1.msra.mxu0 0.0
          %1915 = vmatprep.subr.mxu0 0.0
          %1916 = vmatpush1.msra.mxu0 0.0
          %1917 = vmatprep.subr.mxu0 0.0
          %1918 = vmatpush1.msra.mxu0 0.0
          %1919 = vmatprep.subr.mxu0 0.0
          %1920 = vmatpush1.msra.mxu0 0.0
          %1921 = vmatprep.subr.mxu0 0.0
          %1922 = vmatpush1.msra.mxu0 0.0
          %1923 = vmatprep.subr.mxu0 0.0
          %1924 = vmatpush1.msra.mxu0 0.0
          %1925 = vmatprep.subr.mxu0 0.0
          %1926 = vmatpush1.msra.mxu0 %v1905
          %1927 = vmatprep.subr.mxu0 0.0
          %1928 = vmatpush1.msra.mxu0 %v1891
          %1929 = vmatprep.subr.mxu0 0.0
          %1930 = vmatpush1.msra.mxu0 %v1890
          %1931 = vmatprep.subr.mxu0 0.0
          %1932 = vmatpush1.msra.mxu0 %v1889
          %1933 = vmatprep.subr.mxu0 0.0
          %1934 = vmatpush1.msra.mxu0 %v1888
          %1935 = vmatprep.subr.mxu0 0.0
          %1936 = vmatpush1.msra.mxu0 %v1887
          %1937 = vmatprep.subr.mxu0 0.0
          %1938 = vmatpush1.msra.mxu0 %v1886
          %1939 = vmatprep.subr.mxu0 0.0
          %1940 = vmatpush2.msra.mxu0 0.0
          %1941 = vmatprep.subr.mxu0 0.0
          %1942 = vmatpush2.msra.mxu0 0.0
          %1943 = vmatprep.subr.mxu0 0.0
          %1944 = vmatpush2.msra.mxu0 0.0
          %1945 = vmatprep.subr.mxu0 0.0
          %1946 = vmatpush2.msra.mxu0 0.0
          %1947 = vmatprep.subr.mxu0 0.0
          %1948 = vmatpush2.msra.mxu0 0.0
          %1949 = vmatprep.subr.mxu0 0.0
          %1950 = vmatpush2.msra.mxu0 0.0
          %1951 = vmatprep.subr.mxu0 0.0
          %1952 = vmatpush2.msra.mxu0 0.0
          %1953 = vmatprep.subr.mxu0 0.0
          %1954 = vmatpush2.msra.mxu0 0.0
          %1955 = vmatprep.subr.mxu0 0.0
          %1956 = vmatpush2.msra.mxu0 0.0
          %1957 = vmatprep.subr.mxu0 0.0
          %1958 = vmatpush2.msra.mxu0 0.0
          %1959 = vmatprep.subr.mxu0 0.0
          %1960 = vmatpush2.msra.mxu0 0.0
          %1961 = vmatprep.subr.mxu0 0.0
          %1962 = vmatpush2.msra.mxu0 0.0
          %1963 = vmatprep.subr.mxu0 0.0
          %1964 = vmatpush2.msra.mxu0 0.0
          %1965 = vmatprep.subr.mxu0 0.0
          %1966 = vmatpush2.msra.mxu0 0.0
          %1967 = vmatprep.subr.mxu0 0.0
          %1968 = vmatpush2.msra.mxu0 0.0
          %1969 = vmatprep.subr.mxu0 0.0
          %1970 = vmatpush2.msra.mxu0 0.0
          %1971 = vmatprep.mubr.f32.mxu0 0.0
          %1972 = vmatmul.mubr.f32.gmra.mxu0 %v1902
          %v1973 = vpop.f32.mrf.mxu0
          %v1974 = vadd.f32 %v1898, %v1973
          %v1975 = vpop.f32.mrf.mxu0
          %1976 = vdwg.mxu0
          %v1977 = vmax.f32 %v1974, 0.0
          %v1978 = vld [vmem:[%s17] sm:$0xff]
          %v1979 = vld [vmem:[%s17 + $0x8] sm:$0xff]
          %v1980 = vld [vmem:[%s17 + $0x10] sm:$0xff]
          %v1981 = vld [vmem:[%s17 + $0x18] sm:$0xff]
          %v1982 = vld [vmem:[%s17 + $0x20] sm:$0xff]
          %v1983 = vld [vmem:[%s17 + $0x28] sm:$0xff]
          %v1984 = vld [vmem:[%s17 + $0x30] sm:$0xff]
          %v1985 = vld [vmem:[%s17 + $0x38] sm:$0xff]
          %v1986 = vld [vmem:[%s17 + $0x40] sm:$0xff]
          %v1987 = vld [vmem:[%s17 + $0x48] sm:$0xff]
          %v1988 = vld [vmem:[%s17 + $0x50] sm:$0xff]
          %v1989 = vld [vmem:[%s17 + $0x58] sm:$0xff]
          %v1990 = vld [vmem:[%s17 + $0x60] sm:$0xff]
          %v1991 = vld [vmem:[%s17 + $0x68] sm:$0xff]
          %v1992 = vld [vmem:[%s17 + $0x70] sm:$0xff]
          %v1993 = vld [vmem:[%s17 + $0x78] sm:$0xff]
          %v1994 = vld [vmem:[%s18] sm:$0x1]
          %v1996 = vlaneseq
          %v1997 = vshrl.u32 %v1996, 7
          %v1998 = vsub.s32 0, %v1997
          %v1999 = vrot.slane %v1994, %v1998
          %2001 = vmatprep.subr.mxu0 0.0
          %2002 = vmatpush1.msra.mxu0 %v1993
          %2003 = vmatprep.subr.mxu0 0.0
          %2004 = vmatpush1.msra.mxu0 %v1992
          %2005 = vmatprep.subr.mxu0 0.0
          %2006 = vmatpush1.msra.mxu0 %v1991
          %2007 = vmatprep.subr.mxu0 0.0
          %2008 = vmatpush1.msra.mxu0 %v1990
          %2009 = vmatprep.subr.mxu0 0.0
          %2010 = vmatpush1.msra.mxu0 %v1989
          %2011 = vmatprep.subr.mxu0 0.0
          %2012 = vmatpush1.msra.mxu0 %v1988
          %2013 = vmatprep.subr.mxu0 0.0
          %2014 = vmatpush1.msra.mxu0 %v1987
          %2015 = vmatprep.subr.mxu0 0.0
          %2016 = vmatpush1.msra.mxu0 %v1986
          %2017 = vmatprep.subr.mxu0 0.0
          %2018 = vmatpush1.msra.mxu0 %v1985
          %2019 = vmatprep.subr.mxu0 0.0
          %2020 = vmatpush1.msra.mxu0 %v1984
          %2021 = vmatprep.subr.mxu0 0.0
          %2022 = vmatpush1.msra.mxu0 %v1983
          %2023 = vmatprep.subr.mxu0 0.0
          %2024 = vmatpush1.msra.mxu0 %v1982
          %2025 = vmatprep.subr.mxu0 0.0
          %2026 = vmatpush1.msra.mxu0 %v1981
          %2027 = vmatprep.subr.mxu0 0.0
          %2028 = vmatpush1.msra.mxu0 %v1980
          %2029 = vmatprep.subr.mxu0 0.0
          %2030 = vmatpush1.msra.mxu0 %v1979
          %2031 = vmatprep.subr.mxu0 0.0
          %2032 = vmatpush1.msra.mxu0 %v1978
          %2033 = vmatprep.subr.mxu0 0.0
          %2034 = vmatpush2.msra.mxu0 0.0
          %2035 = vmatprep.subr.mxu0 0.0
          %2036 = vmatpush2.msra.mxu0 0.0
          %2037 = vmatprep.subr.mxu0 0.0
          %2038 = vmatpush2.msra.mxu0 0.0
          %2039 = vmatprep.subr.mxu0 0.0
          %2040 = vmatpush2.msra.mxu0 0.0
          %2041 = vmatprep.subr.mxu0 0.0
          %2042 = vmatpush2.msra.mxu0 0.0
          %2043 = vmatprep.subr.mxu0 0.0
          %2044 = vmatpush2.msra.mxu0 0.0
          %2045 = vmatprep.subr.mxu0 0.0
          %2046 = vmatpush2.msra.mxu0 0.0
          %2047 = vmatprep.subr.mxu0 0.0
          %2048 = vmatpush2.msra.mxu0 0.0
          %2049 = vmatprep.subr.mxu0 0.0
          %2050 = vmatpush2.msra.mxu0 0.0
          %2051 = vmatprep.subr.mxu0 0.0
          %2052 = vmatpush2.msra.mxu0 0.0
          %2053 = vmatprep.subr.mxu0 0.0
          %2054 = vmatpush2.msra.mxu0 0.0
          %2055 = vmatprep.subr.mxu0 0.0
          %2056 = vmatpush2.msra.mxu0 0.0
          %2057 = vmatprep.subr.mxu0 0.0
          %2058 = vmatpush2.msra.mxu0 0.0
          %2059 = vmatprep.subr.mxu0 0.0
          %2060 = vmatpush2.msra.mxu0 0.0
          %2061 = vmatprep.subr.mxu0 0.0
          %2062 = vmatpush2.msra.mxu0 0.0
          %2063 = vmatprep.subr.mxu0 0.0
          %2064 = vmatpush2.msra.mxu0 0.0
          %2065 = vmatprep.mubr.f32.mxu0 0.0
          %2066 = vmatmul.mubr.f32.gmra.mxu0 %v1977
          %v2067 = vpop.f32.mrf.mxu0
          %v2068 = vadd.f32 %v1999, %v2067
          %v2069 = vpop.f32.mrf.mxu0
          %2070 = vdwg.mxu0
          %vm2071 = vcmask 402432
          %2072 = vst.msk [vmem:[#allocation6] sm:$0x3] %vm2071, %v2068
          %2073 = vst.msk [vmem:[#allocation8] sm:$0x3] %vm1793, %v1563
        $region104: #{forward.9} parent=95 // pred_fallthru
          _
        // Predicated region
        $region105: #{forward.9} parent=95 // pred_check
          %p2074 = pneg %p451
        $region106: #{forward.9} parent=95 // pred_check_branch
          %2076 = sbr.rel (%p2074) target = $region108
        $region107: #{forward.9} parent=95 // pred_region
          %s2078 = ssub.s32 32, 32
          %2079 = vsyncadd [#allocation7], %s2078
          %s2081 = sshll.u32 [#allocation6], 4
          %s2082 = int_to_ptr.vmem [resolvable:$true] %s2081
          %2084 = dma.vmem_to_hbm [thread:$0]  %s2082, 32, %s19, [#allocation7]
        $region108: #{forward.9} parent=95 // pred_fallthru
          _
        // Predicated region
        $region109: #{forward.9} parent=95 // pred_check
          %p2085 = pneg %p472
        $region110: #{forward.9} parent=95 // pred_check_branch
          %2087 = sbr.rel (%p2085) target = $region112
        $region111: #{forward.9} parent=95 // pred_region
          %s2089 = ssub.s32 32, 32
          %2090 = vsyncadd [#allocation9], %s2089
          %s2092 = sshll.u32 [#allocation8], 4
          %s2093 = int_to_ptr.vmem [resolvable:$true] %s2092
          %2095 = dma.vmem_to_hbm [thread:$0]  %s2093, 32, %s20, [#allocation9]
        $region112: #{forward.9} parent=95 // pred_fallthru
          _
        // Predicated region
        $region113: #{forward.9} parent=95 // pred_check
          %p2096 = pneg %p451
        $region114: #{forward.9} parent=95 // pred_check_branch
          %2098 = sbr.rel (%p2096) target = $region116
        $region115: #{forward.9} parent=95 // pred_region
          %2099 = dma.done [#allocation7], 32
        $region116: #{forward.9} parent=95 // pred_fallthru
          _
        // Predicated region
        $region117: #{forward.9} parent=95 // pred_check
          %p2100 = pneg %p472
        $region118: #{forward.9} parent=95 // pred_check_branch
          %2102 = sbr.rel (%p2100) target = $region120
        $region119: #{forward.9} parent=95 // pred_region
          %2103 = dma.done [#allocation9], 32
        $region120: #{forward.9} parent=95 // pred_fallthru
          _
      $region96: #{forward.9} parent=5 // pred_fallthru
        _
      %p2104 = scmp.le.s32.totalorder 2, %s29
      // Predicated region
      $region121: #{forward.9} parent=5 // pred_check
        %p2105 = pneg %p2104
      $region122: #{forward.9} parent=5 // pred_check_branch
        %2107 = sbr.rel (%p2105) target = $region124
      $region123: #{forward.9} parent=5 // pred_region
        %s2108 = ssub.s32 %s29, 2
      $region124: #{forward.9} parent=5 // pred_fallthru
        _
    $region6: #{forward.9} parent=1 // loop_footer
      %s33 = sadd.s32 1, %s29
    $region7: #{forward.9} parent=1 // loop_footer_branch
      %28 = sbr.rel target = $region3
    $region8: #{forward.9} parent=1 // loop_exit
      _
    %2109 = vsyncpa [#allocation7], 1
    %s2110 = scalar_lea.sflag [#allocation7], 1
    %2111 = vsyncpa %s2110, 1
    %2112 = vsyncpa [#allocation9], 1

</llo_original>
